<compile_context>
chip_gen: v7x
topology: tpu7x:2x2x1
jax: 0.10.0
libtpu: 0.0.40
codegen_flags: <defaults>
</compile_context>

<pallas_src>
import functools
import math

import jax
import jax.numpy as jnp
from jax.experimental import pallas as pl
from jax.experimental.pallas import tpu as pltpu


# -----------------------------------------------------------------------------
# In-kernel math helpers (take Refs for params; read with [...] at point of use)
# -----------------------------------------------------------------------------
def _project(x2, w_ref, b_ref):
    """[R, din] @ [din, dout] + [1, dout]; bf16 operands, f32 accumulation."""
    return jnp.dot(x2.astype(jnp.bfloat16), w_ref[...].astype(jnp.bfloat16),
                   preferred_element_type=jnp.float32) + b_ref[...].astype(jnp.float32)


def _split_heads(x2, bt, n, num_heads, dh):
    """[bt*n, num_heads*dh] -> [bt*num_heads, n, dh] (head-batched layout)."""
    return jnp.stack(
        [x2[b * n:(b + 1) * n, h * dh:(h + 1) * dh]
         for b in range(bt) for h in range(num_heads)], axis=0)


def _merge_heads(xh, bt, num_heads):
    """[bt*num_heads, n, dh] -> [bt*n, num_heads*dh]."""
    rows = [jnp.concatenate([xh[b * num_heads + h] for h in range(num_heads)], axis=-1)
            for b in range(bt)]
    return rows[0] if bt == 1 else jnp.concatenate(rows, axis=0)


def _attention(q2, k2, v2, bt, nq, nk, num_heads):
    """Multi-head attention + per-head residual, as in the reference MAB.

    q2: [bt*nq, dv] f32 (already projected), k2/v2: [bt*nk, dv] f32.
    NOTE: the reference scales by 1/sqrt(dim_V), not 1/sqrt(head_dim).
    """
    dv = q2.shape[-1]
    dh = dv // num_heads
    scale = 1.0 / math.sqrt(dv)
    qh = _split_heads(q2, bt, nq, num_heads, dh)   # [bt*H, nq, dh]
    kh = _split_heads(k2, bt, nk, num_heads, dh)   # [bt*H, nk, dh]
    vh = _split_heads(v2, bt, nk, num_heads, dh)   # [bt*H, nk, dh]
    # One batched contraction over the leading (batch*head) axis.
    s = jnp.einsum("bqd,bkd->bqk", qh.astype(jnp.bfloat16), kh.astype(jnp.bfloat16),
                   preferred_element_type=jnp.float32) * scale
    s = s - jnp.max(s, axis=-1, keepdims=True)
    p = jnp.exp(s)
    p = p * pl.reciprocal(jnp.sum(p, axis=-1, keepdims=True), approx=True)
    av = jnp.einsum("bqk,bkd->bqd", p.astype(jnp.bfloat16), vh.astype(jnp.bfloat16),
                    preferred_element_type=jnp.float32)
    oh = qh + av                                   # per-head residual: Q_ + A @ V_
    return _merge_heads(oh, bt, num_heads)


def _mab_tail(o2, wo_ref, bo_ref):
    """O + relu(fc_o(O))."""
    ff = _project(o2, wo_ref, bo_ref)
    return o2 + jnp.maximum(ff, 0.0)


def _cross_mab(q2, xk2, m, bt, nq, nk, num_heads):
    """MAB with Q already projected; K/V use one merged [dk, 2*dv] projection."""
    dv = q2.shape[-1]
    kv = _project(xk2, m["wkv"], m["bkv"])
    k2, v2 = kv[:, :dv], kv[:, dv:]
    o2 = _attention(q2, k2, v2, bt, nq, nk, num_heads)
    return _mab_tail(o2, m["wo"], m["bo"])


def _self_mab(x2, m, bt, n, num_heads):
    """Self-attention MAB (SAB) with a fully merged [d, 3*dv] QKV projection."""
    qkv = _project(x2, m["wqkv"], m["bqkv"])
    dv = qkv.shape[-1] // 3
    q2, k2, v2 = qkv[:, :dv], qkv[:, dv:2 * dv], qkv[:, 2 * dv:]
    o2 = _attention(q2, k2, v2, bt, n, n, num_heads)
    return _mab_tail(o2, m["wo"], m["bo"])


def _forward_math(x, p, bt, num_heads):
    """Whole SetTransformer forward for one batch tile. x: [bt, N, din] f32."""
    n = x.shape[1]
    x2 = x.reshape(bt * n, x.shape[-1]).astype(jnp.float32)

    # ---- encoder: ISAB blocks ----------------------------------------------
    for layer in p["enc"]:
        m0, m1 = layer["mab0"], layer["mab1"]
        # mab0: Q = fc_q(I) is batch-independent and was folded into the params
        # at prep time -> just read it and tile over the batch inside VMEM.
        q_i = layer["qI"][...].astype(jnp.float32)           # [ni, dv]
        ni = q_i.shape[0]
        if bt > 1:
            q_i = jnp.concatenate([q_i] * bt, axis=0)        # [bt*ni, dv]
        h2 = _cross_mab(q_i, x2, m0, bt, ni, n, num_heads)
        # mab1: Q = X, K = H
        q_x = _project(x2, m1["wq"], m1["bq"])
        x2 = _cross_mab(q_x, h2, m1, bt, n, ni, num_heads)

    # ---- decoder: PMA -> SAB* -> Linear --------------------------------------
    pma = p["dec_pma"]
    q_s = pma["qS"][...].astype(jnp.float32)                 # [num_outputs, dv]
    no = q_s.shape[0]
    if bt > 1:
        q_s = jnp.concatenate([q_s] * bt, axis=0)
    y2 = _cross_mab(q_s, x2, pma["mab"], bt, no, n, num_heads)

    for layer in p["dec_sab"]:
        y2 = _self_mab(y2, layer, bt, no, num_heads)

    out = _project(y2, p["dec_lin"]["w"], p["dec_lin"]["b"])  # [bt*no, dout_pad]
    return out.reshape(bt, no, -1)


# -----------------------------------------------------------------------------
# Fused Pallas kernel + wrapper
# -----------------------------------------------------------------------------
def _set_transformer_kernel(x_ref, *rest, treedef, n_leaves, num_heads):
    param_refs = jax.tree_util.tree_unflatten(treedef, rest[:n_leaves])
    o_ref = rest[n_leaves]
    bt = x_ref.shape[0]
    out = _forward_math(x_ref[...], param_refs, bt, num_heads)
    o_ref[...] = out.astype(o_ref.dtype)


def _const_index_map(ndim):
    def index_map(b):
        return (0,) * ndim
    return index_map


def _default_batch_tile(batch):
    if batch <= 1:
        return max(batch, 1)
    # Largest tile that still leaves >= 2 grid steps (v7x has 2 TensorCores).
    for bt in range(batch // 2, 0, -1):
        if batch % bt == 0:
            return bt
    return 1


def set_transformer_forward(x, fused_params, *, num_heads, dim_output,
                            batch_tile=None):
    B, N, din = x.shape
    leaves, treedef = jax.tree_util.tree_flatten(fused_params)
    n_leaves = len(leaves)

    bt = batch_tile if batch_tile is not None else _default_batch_tile(B)
    assert B % bt == 0, (B, bt)
    nb = B // bt

    num_outputs, dim_hidden = fused_params["dec_pma"]["qS"].shape
    dout_pad = fused_params["dec_lin"]["w"].shape[1]
    assert dim_hidden % num_heads == 0, "dim_hidden must be divisible by num_heads"

    kernel = functools.partial(_set_transformer_kernel, treedef=treedef,
                               n_leaves=n_leaves, num_heads=num_heads)

    in_specs = [pl.BlockSpec((bt, N, din), lambda b: (b, 0, 0))]
    for leaf in leaves:
        # Full-array blocks with constant index maps: weights are DMA'd into VMEM
        # once and stay resident across all grid steps (no per-layer HBM traffic).
        in_specs.append(pl.BlockSpec(leaf.shape, _const_index_map(leaf.ndim)))

    out = pl.pallas_call(
        kernel,
        out_shape=jax.ShapeDtypeStruct((B, num_outputs, dout_pad), jnp.float32),
        grid=(nb,),
        in_specs=in_specs,
        out_specs=pl.BlockSpec((bt, num_outputs, dout_pad), lambda b: (b, 0, 0)),
        compiler_params=pltpu.CompilerParams(dimension_semantics=("parallel",)),
    )(x, *leaves)
    return out[..., :dim_output]   # drop lane padding of the final Linear


# -----------------------------------------------------------------------------
# Parameter init (PyTorch-layout) and repacking for the fused kernel
# -----------------------------------------------------------------------------
def _init_linear(key, din, dout):
    kw, kb = jax.random.split(key)
    lim = 1.0 / math.sqrt(din)
    w = jax.random.uniform(kw, (din, dout), jnp.float32, -lim, lim)   # [in, out]
    b = jax.random.uniform(kb, (1, dout), jnp.float32, -lim, lim)
    return w, b


def _init_mab(key, dq, dk, dv):
    ks = jax.random.split(key, 4)
    wq, bq = _init_linear(ks[0], dq, dv)
    wk, bk = _init_linear(ks[1], dk, dv)
    wv, bv = _init_linear(ks[2], dk, dv)
    wo, bo = _init_linear(ks[3], dv, dv)
    return dict(wq=wq, bq=bq, wk=wk, bk=bk, wv=wv, bv=bv, wo=wo, bo=bo)


def _xavier(key, shape):
    fan_in, fan_out = shape[-1], shape[-2]
    lim = math.sqrt(6.0 / (fan_in + fan_out))
    return jax.random.uniform(key, shape, jnp.float32, -lim, lim)


def init_set_transformer(key, dim_input, num_outputs, dim_output,
                         num_inds, dim_hidden, num_heads,
                         encoder_depth, decoder_depth):
    params = {"enc": [], "dec_sab": []}
    for d in range(encoder_depth):
        din = dim_input if d == 0 else dim_hidden
        key, k_i, k0, k1 = jax.random.split(key, 4)
        params["enc"].append(dict(
            I=_xavier(k_i, (1, num_inds, dim_hidden)),
            mab0=_init_mab(k0, dim_hidden, din, dim_hidden),
            mab1=_init_mab(k1, din, dim_hidden, dim_hidden),
        ))
    key, k_s, k_p = jax.random.split(key, 3)
    params["dec_pma"] = dict(
        S=_xavier(k_s, (1, num_outputs, dim_hidden)),
        mab=_init_mab(k_p, dim_hidden, dim_hidden, dim_hidden),
    )
    for _ in range(decoder_depth):
        key, ks = jax.random.split(key)
        params["dec_sab"].append(dict(mab=_init_mab(ks, dim_hidden, dim_hidden, dim_hidden)))
    key, kl = jax.random.split(key)
    w, b = _init_linear(kl, dim_hidden, dim_output)
    params["dec_lin"] = dict(w=w, b=b)
    return params


def prepare_fused_params(params, dim_output):
    """Repack params for the fused kernel:
       * fold the batch-independent Q-projections of inducing points / seeds
         (fc_q(I), fc_q(S)) into the parameters (computed once on the host),
       * merge K/V (and Q/K/V for SABs) into single projection matrices,
       * cast weights to bf16 (biases / precomputed Qs stay f32),
       * zero-pad the final Linear's output dim to 128 lanes (lane-dense store).
    """
    def hostproj(x, w, b):   # same bf16-operand / f32-accum policy as the kernel
        return jnp.dot(x.astype(jnp.bfloat16), w.astype(jnp.bfloat16),
                       preferred_element_type=jnp.float32) + b

    def cross(m):   # Q comes precomputed or from the caller; K/V merged
        return dict(
            wkv=jnp.concatenate([m["wk"], m["wv"]], axis=1).astype(jnp.bfloat16),
            bkv=jnp.concatenate([m["bk"], m["bv"]], axis=1),
            wo=m["wo"].astype(jnp.bfloat16), bo=m["bo"])

    def cross_with_q(m):   # MAB whose Q depends on the data (X) -> keep wq/bq
        c = cross(m)
        c["wq"] = m["wq"].astype(jnp.bfloat16)
        c["bq"] = m["bq"]
        return c

    def selfa(m):   # SAB: Q, K, V all from the same input -> fully merged
        return dict(
            wqkv=jnp.concatenate([m["wq"], m["wk"], m["wv"]], axis=1).astype(jnp.bfloat16),
            bqkv=jnp.concatenate([m["bq"], m["bk"], m["bv"]], axis=1),
            wo=m["wo"].astype(jnp.bfloat16), bo=m["bo"])

    fused = {"enc": [], "dec_sab": []}
    for layer in params["enc"]:
        m0 = layer["mab0"]
        q_i = hostproj(layer["I"][0], m0["wq"], m0["bq"])   # [num_inds, dv] f32
        fused["enc"].append(dict(qI=q_i,
                                 mab0=cross(m0),
                                 mab1=cross_with_q(layer["mab1"])))
    pm = params["dec_pma"]["mab"]
    q_s = hostproj(params["dec_pma"]["S"][0], pm["wq"], pm["bq"])  # [num_outputs, dv]
    fused["dec_pma"] = dict(qS=q_s, mab=cross(pm))
    for layer in params["dec_sab"]:
        fused["dec_sab"].append(selfa(layer["mab"]))

    w, b = params["dec_lin"]["w"], params["dec_lin"]["b"]
    dout_pad = ((dim_output + 127) // 128) * 128
    w_pad = jnp.zeros((w.shape[0], dout_pad), jnp.float32).at[:, :dim_output].set(w)
    b_pad = jnp.zeros((1, dout_pad), jnp.float32).at[:, :dim_output].set(b)
    fused["dec_lin"] = dict(w=w_pad.astype(jnp.bfloat16), b=b_pad)
    return fused


# -----------------------------------------------------------------------------
# Independent plain-JAX reference (per-head loop, unmerged weights) for checking
# -----------------------------------------------------------------------------
def reference_forward(x, params, num_heads):
    def lin(t, w, b):
        return jnp.dot(t.astype(jnp.bfloat16), w.astype(jnp.bfloat16),
                       preferred_element_type=jnp.float32) + b

    def mab(xq, xk, m):
        q = lin(xq, m["wq"], m["bq"])
        k = lin(xk, m["wk"], m["bk"])
        v = lin(xk, m["wv"], m["bv"])
        dv = q.shape[-1]
        dh = dv // num_heads
        outs = []
        for h in range(num_heads):
            qs, ks, vs = (t[..., h * dh:(h + 1) * dh] for t in (q, k, v))
            s = jnp.einsum("bqd,bkd->bqk", qs.astype(jnp.bfloat16),
                           ks.astype(jnp.bfloat16),
                           preferred_element_type=jnp.float32) / math.sqrt(dv)
            a = jax.nn.softmax(s, axis=-1)
            outs.append(qs + jnp.einsum("bqk,bkd->bqd", a.astype(jnp.bfloat16),
                                        vs.astype(jnp.bfloat16),
                                        preferred_element_type=jnp.float32))
        o = jnp.concatenate(outs, axis=-1)
        return o + jax.nn.relu(lin(o, m["wo"], m["bo"]))

    B = x.shape[0]
    for layer in params["enc"]:
        i_b = jnp.broadcast_to(layer["I"], (B,) + layer["I"].shape[1:])
        h = mab(i_b, x, layer["mab0"])
        x = mab(x, h, layer["mab1"])
    s_b = jnp.broadcast_to(params["dec_pma"]["S"],
                           (B,) + params["dec_pma"]["S"].shape[1:])
    y = mab(s_b, x, params["dec_pma"]["mab"])
    for layer in params["dec_sab"]:
        y = mab(y, y, layer["mab"])
    return lin(y, params["dec_lin"]["w"], params["dec_lin"]["b"])


# -----------------------------------------------------------------------------
if __name__ == "__main__":
    B, N = 2, 8
    dim_input, dim_hidden, dim_output = 16, 32, 8
    num_heads, num_inds, num_outputs = 4, 8, 4
    encoder_depth, decoder_depth = 2, 2

    key = jax.random.PRNGKey(0)
    key, kx, kp = jax.random.split(key, 3)
    X = jax.random.normal(kx, (B, N, dim_input), jnp.float32)

    params = init_set_transformer(kp, dim_input, num_outputs, dim_output,
                                  num_inds, dim_hidden, num_heads,
                                  encoder_depth, decoder_depth)
    fused = prepare_fused_params(params, dim_output)

    fwd = jax.jit(functools.partial(set_transformer_forward,
                                    num_heads=num_heads, dim_output=dim_output))
    out = jax.block_until_ready(fwd(X, fused))

    assert out.shape == (B, num_outputs, dim_output), out.shape
    assert bool(jnp.all(jnp.isfinite(out)))

    # Sanity-check the fused kernel against an independent plain-JAX reference
    # (same bf16 matmul policy; tolerance covers approx-reciprocal + reordering).
    ref = reference_forward(X, params, num_heads)
    max_diff = float(jnp.max(jnp.abs(out - ref)))
    assert max_diff < 5e-2, f"kernel deviates from reference: max|diff|={max_diff}"

    print("KERNEL_OK")
</pallas_src>

<mosaic_0001>
module attributes {stable_mosaic.version = 11 : i64} {
  func.func @_set_transformer_kernel(%arg0: i32, %arg1: memref<1x8x16xf32, #tpu.memory_space<vmem>>, %arg2: memref<1x128xf32, #tpu.memory_space<vmem>>, %arg3: memref<32x128xbf16, #tpu.memory_space<vmem>>, %arg4: memref<1x64xf32, #tpu.memory_space<vmem>>, %arg5: memref<1x32xf32, #tpu.memory_space<vmem>>, %arg6: memref<32x64xbf16, #tpu.memory_space<vmem>>, %arg7: memref<32x32xbf16, #tpu.memory_space<vmem>>, %arg8: memref<4x32xf32, #tpu.memory_space<vmem>>, %arg9: memref<1x32xf32, #tpu.memory_space<vmem>>, %arg10: memref<1x96xf32, #tpu.memory_space<vmem>>, %arg11: memref<32x32xbf16, #tpu.memory_space<vmem>>, %arg12: memref<32x96xbf16, #tpu.memory_space<vmem>>, %arg13: memref<1x32xf32, #tpu.memory_space<vmem>>, %arg14: memref<1x96xf32, #tpu.memory_space<vmem>>, %arg15: memref<32x32xbf16, #tpu.memory_space<vmem>>, %arg16: memref<32x96xbf16, #tpu.memory_space<vmem>>, %arg17: memref<1x64xf32, #tpu.memory_space<vmem>>, %arg18: memref<1x32xf32, #tpu.memory_space<vmem>>, %arg19: memref<16x64xbf16, #tpu.memory_space<vmem>>, %arg20: memref<32x32xbf16, #tpu.memory_space<vmem>>, %arg21: memref<1x64xf32, #tpu.memory_space<vmem>>, %arg22: memref<1x32xf32, #tpu.memory_space<vmem>>, %arg23: memref<1x32xf32, #tpu.memory_space<vmem>>, %arg24: memref<32x64xbf16, #tpu.memory_space<vmem>>, %arg25: memref<32x32xbf16, #tpu.memory_space<vmem>>, %arg26: memref<16x32xbf16, #tpu.memory_space<vmem>>, %arg27: memref<8x32xf32, #tpu.memory_space<vmem>>, %arg28: memref<1x64xf32, #tpu.memory_space<vmem>>, %arg29: memref<1x32xf32, #tpu.memory_space<vmem>>, %arg30: memref<32x64xbf16, #tpu.memory_space<vmem>>, %arg31: memref<32x32xbf16, #tpu.memory_space<vmem>>, %arg32: memref<1x64xf32, #tpu.memory_space<vmem>>, %arg33: memref<1x32xf32, #tpu.memory_space<vmem>>, %arg34: memref<1x32xf32, #tpu.memory_space<vmem>>, %arg35: memref<32x64xbf16, #tpu.memory_space<vmem>>, %arg36: memref<32x32xbf16, #tpu.memory_space<vmem>>, %arg37: memref<32x32xbf16, #tpu.memory_space<vmem>>, %arg38: memref<8x32xf32, #tpu.memory_space<vmem>>, %arg39: memref<1x4x128xf32, #tpu.memory_space<vmem>>) attributes {dimension_semantics = [#tpu.dimension_semantics<parallel>], iteration_bounds = array<i64: 2>, scalar_prefetch = 0 : i64, scratch_operands = 0 : i64, tpu.core_type = #tpu.core_type<tc>, window_params = [{transform_indices = @transform_0, window_bounds = array<i64: 1, 8, 16>}, {pipeline_mode = #tpu.pipeline_mode<synchronous>, transform_indices = @transform_1, window_bounds = array<i64: 1, 128>}, {pipeline_mode = #tpu.pipeline_mode<synchronous>, transform_indices = @transform_2, window_bounds = array<i64: 32, 128>}, {pipeline_mode = #tpu.pipeline_mode<synchronous>, transform_indices = @transform_3, window_bounds = array<i64: 1, 64>}, {pipeline_mode = #tpu.pipeline_mode<synchronous>, transform_indices = @transform_4, window_bounds = array<i64: 1, 32>}, {pipeline_mode = #tpu.pipeline_mode<synchronous>, transform_indices = @transform_5, window_bounds = array<i64: 32, 64>}, {pipeline_mode = #tpu.pipeline_mode<synchronous>, transform_indices = @transform_6, window_bounds = array<i64: 32, 32>}, {pipeline_mode = #tpu.pipeline_mode<synchronous>, transform_indices = @transform_7, window_bounds = array<i64: 4, 32>}, {pipeline_mode = #tpu.pipeline_mode<synchronous>, transform_indices = @transform_8, window_bounds = array<i64: 1, 32>}, {pipeline_mode = #tpu.pipeline_mode<synchronous>, transform_indices = @transform_9, window_bounds = array<i64: 1, 96>}, {pipeline_mode = #tpu.pipeline_mode<synchronous>, transform_indices = @transform_10, window_bounds = array<i64: 32, 32>}, {pipeline_mode = #tpu.pipeline_mode<synchronous>, transform_indices = @transform_11, window_bounds = array<i64: 32, 96>}, {pipeline_mode = #tpu.pipeline_mode<synchronous>, transform_indices = @transform_12, window_bounds = array<i64: 1, 32>}, {pipeline_mode = #tpu.pipeline_mode<synchronous>, transform_indices = @transform_13, window_bounds = array<i64: 1, 96>}, {pipeline_mode = #tpu.pipeline_mode<synchronous>, transform_indices = @transform_14, window_bounds = array<i64: 32, 32>}, {pipeline_mode = #tpu.pipeline_mode<synchronous>, transform_indices = @transform_15, window_bounds = array<i64: 32, 96>}, {pipeline_mode = #tpu.pipeline_mode<synchronous>, transform_indices = @transform_16, window_bounds = array<i64: 1, 64>}, {pipeline_mode = #tpu.pipeline_mode<synchronous>, transform_indices = @transform_17, window_bounds = array<i64: 1, 32>}, {pipeline_mode = #tpu.pipeline_mode<synchronous>, transform_indices = @transform_18, window_bounds = array<i64: 16, 64>}, {pipeline_mode = #tpu.pipeline_mode<synchronous>, transform_indices = @transform_19, window_bounds = array<i64: 32, 32>}, {pipeline_mode = #tpu.pipeline_mode<synchronous>, transform_indices = @transform_20, window_bounds = array<i64: 1, 64>}, {pipeline_mode = #tpu.pipeline_mode<synchronous>, transform_indices = @transform_21, window_bounds = array<i64: 1, 32>}, {pipeline_mode = #tpu.pipeline_mode<synchronous>, transform_indices = @transform_22, window_bounds = array<i64: 1, 32>}, {pipeline_mode = #tpu.pipeline_mode<synchronous>, transform_indices = @transform_23, window_bounds = array<i64: 32, 64>}, {pipeline_mode = #tpu.pipeline_mode<synchronous>, transform_indices = @transform_24, window_bounds = array<i64: 32, 32>}, {pipeline_mode = #tpu.pipeline_mode<synchronous>, transform_indices = @transform_25, window_bounds = array<i64: 16, 32>}, {pipeline_mode = #tpu.pipeline_mode<synchronous>, transform_indices = @transform_26, window_bounds = array<i64: 8, 32>}, {pipeline_mode = #tpu.pipeline_mode<synchronous>, transform_indices = @transform_27, window_bounds = array<i64: 1, 64>}, {pipeline_mode = #tpu.pipeline_mode<synchronous>, transform_indices = @transform_28, window_bounds = array<i64: 1, 32>}, {pipeline_mode = #tpu.pipeline_mode<synchronous>, transform_indices = @transform_29, window_bounds = array<i64: 32, 64>}, {pipeline_mode = #tpu.pipeline_mode<synchronous>, transform_indices = @transform_30, window_bounds = array<i64: 32, 32>}, {pipeline_mode = #tpu.pipeline_mode<synchronous>, transform_indices = @transform_31, window_bounds = array<i64: 1, 64>}, {pipeline_mode = #tpu.pipeline_mode<synchronous>, transform_indices = @transform_32, window_bounds = array<i64: 1, 32>}, {pipeline_mode = #tpu.pipeline_mode<synchronous>, transform_indices = @transform_33, window_bounds = array<i64: 1, 32>}, {pipeline_mode = #tpu.pipeline_mode<synchronous>, transform_indices = @transform_34, window_bounds = array<i64: 32, 64>}, {pipeline_mode = #tpu.pipeline_mode<synchronous>, transform_indices = @transform_35, window_bounds = array<i64: 32, 32>}, {pipeline_mode = #tpu.pipeline_mode<synchronous>, transform_indices = @transform_36, window_bounds = array<i64: 32, 32>}, {pipeline_mode = #tpu.pipeline_mode<synchronous>, transform_indices = @transform_37, window_bounds = array<i64: 8, 32>}, {transform_indices = @transform_38, window_bounds = array<i64: 1, 4, 128>}]} {
    %c0 = arith.constant 0 : index
    %c0_0 = arith.constant 0 : index
    %c0_1 = arith.constant 0 : index
    %0 = vector.load %arg1[%c0, %c0_0, %c0_1] : memref<1x8x16xf32, #tpu.memory_space<vmem>>, vector<1x8x16xf32>
    %1 = vector.shape_cast %0 : vector<1x8x16xf32> to vector<8x16xf32>
    %c0_2 = arith.constant 0 : index
    %c0_3 = arith.constant 0 : index
    %2 = vector.load %arg27[%c0_2, %c0_3] : memref<8x32xf32, #tpu.memory_space<vmem>>, vector<8x32xf32>
    %3 = arith.truncf %1 : vector<8x16xf32> to vector<8x16xbf16>
    %c0_4 = arith.constant 0 : index
    %c0_5 = arith.constant 0 : index
    %4 = vector.load %arg19[%c0_4, %c0_5] : memref<16x64xbf16, #tpu.memory_space<vmem>>, vector<16x64xbf16>
    %cst = arith.constant dense<0.000000e+00> : vector<8x64xf32>
    %5 = tpu.matmul %3, %4, %cst {dimension_numbers = #tpu.dot_dimension_numbers<[1], [0], [0], [1], [0, 0, 1, 1], [], []>} : vector<8x16xbf16>, vector<16x64xbf16>, vector<8x64xf32> -> vector<8x64xf32>
    %c0_6 = arith.constant 0 : index
    %c0_7 = arith.constant 0 : index
    %6 = vector.load %arg17[%c0_6, %c0_7] : memref<1x64xf32, #tpu.memory_space<vmem>>, vector<1x64xf32>
    %7 = vector.broadcast %6 : vector<1x64xf32> to vector<8x64xf32>
    %8 = arith.addf %5, %7 : vector<8x64xf32>
    %9 = vector.extract_strided_slice %8 {offsets = [0, 0], sizes = [8, 32], strides = [1, 1]} : vector<8x64xf32> to vector<8x32xf32>
    %10 = vector.extract_strided_slice %8 {offsets = [0, 32], sizes = [8, 32], strides = [1, 1]} : vector<8x64xf32> to vector<8x32xf32>
    %11 = vector.extract_strided_slice %2 {offsets = [0, 0], sizes = [8, 8], strides = [1, 1]} : vector<8x32xf32> to vector<8x8xf32>
    %12 = vector.extract_strided_slice %2 {offsets = [0, 8], sizes = [8, 8], strides = [1, 1]} : vector<8x32xf32> to vector<8x8xf32>
    %13 = vector.extract_strided_slice %2 {offsets = [0, 16], sizes = [8, 8], strides = [1, 1]} : vector<8x32xf32> to vector<8x8xf32>
    %14 = vector.extract_strided_slice %2 {offsets = [0, 24], sizes = [8, 8], strides = [1, 1]} : vector<8x32xf32> to vector<8x8xf32>
    %15 = vector.shape_cast %11 : vector<8x8xf32> to vector<1x8x8xf32>
    %16 = vector.shape_cast %12 : vector<8x8xf32> to vector<1x8x8xf32>
    %17 = vector.shape_cast %13 : vector<8x8xf32> to vector<1x8x8xf32>
    %18 = vector.shape_cast %14 : vector<8x8xf32> to vector<1x8x8xf32>
    %19 = tpu.concatenate %15, %16, %17, %18 in 0 : vector<1x8x8xf32>, vector<1x8x8xf32>, vector<1x8x8xf32>, vector<1x8x8xf32> -> vector<4x8x8xf32>
    %20 = vector.extract_strided_slice %9 {offsets = [0, 0], sizes = [8, 8], strides = [1, 1]} : vector<8x32xf32> to vector<8x8xf32>
    %21 = vector.extract_strided_slice %9 {offsets = [0, 8], sizes = [8, 8], strides = [1, 1]} : vector<8x32xf32> to vector<8x8xf32>
    %22 = vector.extract_strided_slice %9 {offsets = [0, 16], sizes = [8, 8], strides = [1, 1]} : vector<8x32xf32> to vector<8x8xf32>
    %23 = vector.extract_strided_slice %9 {offsets = [0, 24], sizes = [8, 8], strides = [1, 1]} : vector<8x32xf32> to vector<8x8xf32>
    %24 = vector.shape_cast %20 : vector<8x8xf32> to vector<1x8x8xf32>
    %25 = vector.shape_cast %21 : vector<8x8xf32> to vector<1x8x8xf32>
    %26 = vector.shape_cast %22 : vector<8x8xf32> to vector<1x8x8xf32>
    %27 = vector.shape_cast %23 : vector<8x8xf32> to vector<1x8x8xf32>
    %28 = tpu.concatenate %24, %25, %26, %27 in 0 : vector<1x8x8xf32>, vector<1x8x8xf32>, vector<1x8x8xf32>, vector<1x8x8xf32> -> vector<4x8x8xf32>
    %29 = vector.extract_strided_slice %10 {offsets = [0, 0], sizes = [8, 8], strides = [1, 1]} : vector<8x32xf32> to vector<8x8xf32>
    %30 = vector.extract_strided_slice %10 {offsets = [0, 8], sizes = [8, 8], strides = [1, 1]} : vector<8x32xf32> to vector<8x8xf32>
    %31 = vector.extract_strided_slice %10 {offsets = [0, 16], sizes = [8, 8], strides = [1, 1]} : vector<8x32xf32> to vector<8x8xf32>
    %32 = vector.extract_strided_slice %10 {offsets = [0, 24], sizes = [8, 8], strides = [1, 1]} : vector<8x32xf32> to vector<8x8xf32>
    %33 = vector.shape_cast %29 : vector<8x8xf32> to vector<1x8x8xf32>
    %34 = vector.shape_cast %30 : vector<8x8xf32> to vector<1x8x8xf32>
    %35 = vector.shape_cast %31 : vector<8x8xf32> to vector<1x8x8xf32>
    %36 = vector.shape_cast %32 : vector<8x8xf32> to vector<1x8x8xf32>
    %37 = tpu.concatenate %33, %34, %35, %36 in 0 : vector<1x8x8xf32>, vector<1x8x8xf32>, vector<1x8x8xf32>, vector<1x8x8xf32> -> vector<4x8x8xf32>
    %38 = arith.truncf %19 : vector<4x8x8xf32> to vector<4x8x8xbf16>
    %39 = arith.truncf %28 : vector<4x8x8xf32> to vector<4x8x8xbf16>
    "tpu.trace_start"() <{level = 10 : i32, message = "bqd,bkd->bqk"}> : () -> ()
    %cst_8 = arith.constant dense<0.000000e+00> : vector<4x8x8xf32>
    %40 = tpu.matmul %38, %39, %cst_8 {dimension_numbers = #tpu.dot_dimension_numbers<[2], [2], [1], [1], [0, 0, 0, 1, 1, 1], [0], [0]>} : vector<4x8x8xbf16>, vector<4x8x8xbf16>, vector<4x8x8xf32> -> vector<4x8x8xf32>
    "tpu.trace_stop"() : () -> ()
    %cst_9 = arith.constant 0.176776692 : f32
    %41 = vector.broadcast %cst_9 : f32 to vector<4x8x8xf32>
    %42 = arith.mulf %40, %41 : vector<4x8x8xf32>
    %cst_10 = arith.constant dense<0xFF800000> : vector<4x8xf32>
    %43 = vector.multi_reduction <maximumf>, %42, %cst_10 [2] : vector<4x8x8xf32> to vector<4x8xf32>
    %44 = vector.shape_cast %43 : vector<4x8xf32> to vector<4x8x1xf32>
    %45 = vector.broadcast %44 : vector<4x8x1xf32> to vector<4x8x8xf32>
    %46 = arith.subf %42, %45 : vector<4x8x8xf32>
    %47 = math.exp %46 : vector<4x8x8xf32>
    %cst_11 = arith.constant dense<0.000000e+00> : vector<4x8xf32>
    %48 = vector.multi_reduction <add>, %47, %cst_11 [2] : vector<4x8x8xf32> to vector<4x8xf32>
    %49 = vector.shape_cast %48 : vector<4x8xf32> to vector<4x8x1xf32>
    %50 = tpu.reciprocal %49 {approx = true} : vector<4x8x1xf32> -> vector<4x8x1xf32>
    %51 = vector.broadcast %50 : vector<4x8x1xf32> to vector<4x8x8xf32>
    %52 = arith.mulf %47, %51 : vector<4x8x8xf32>
    %53 = arith.truncf %52 : vector<4x8x8xf32> to vector<4x8x8xbf16>
    %54 = arith.truncf %37 : vector<4x8x8xf32> to vector<4x8x8xbf16>
    "tpu.trace_start"() <{level = 10 : i32, message = "bqk,bkd->bqd"}> : () -> ()
    %cst_12 = arith.constant dense<0.000000e+00> : vector<4x8x8xf32>
    %55 = tpu.matmul %53, %54, %cst_12 {dimension_numbers = #tpu.dot_dimension_numbers<[2], [1], [1], [2], [0, 0, 0, 1, 1, 2], [0], [0]>} : vector<4x8x8xbf16>, vector<4x8x8xbf16>, vector<4x8x8xf32> -> vector<4x8x8xf32>
    "tpu.trace_stop"() : () -> ()
    %56 = arith.addf %19, %55 : vector<4x8x8xf32>
    %57 = vector.extract_strided_slice %56 {offsets = [0, 0, 0], sizes = [1, 8, 8], strides = [1, 1, 1]} : vector<4x8x8xf32> to vector<1x8x8xf32>
    %58 = vector.shape_cast %57 : vector<1x8x8xf32> to vector<8x8xf32>
    %59 = vector.extract_strided_slice %56 {offsets = [1, 0, 0], sizes = [1, 8, 8], strides = [1, 1, 1]} : vector<4x8x8xf32> to vector<1x8x8xf32>
    %60 = vector.shape_cast %59 : vector<1x8x8xf32> to vector<8x8xf32>
    %61 = vector.extract_strided_slice %56 {offsets = [2, 0, 0], sizes = [1, 8, 8], strides = [1, 1, 1]} : vector<4x8x8xf32> to vector<1x8x8xf32>
    %62 = vector.shape_cast %61 : vector<1x8x8xf32> to vector<8x8xf32>
    %63 = vector.extract_strided_slice %56 {offsets = [3, 0, 0], sizes = [1, 8, 8], strides = [1, 1, 1]} : vector<4x8x8xf32> to vector<1x8x8xf32>
    %64 = vector.shape_cast %63 : vector<1x8x8xf32> to vector<8x8xf32>
    %65 = tpu.concatenate %58, %60, %62, %64 in 1 : vector<8x8xf32>, vector<8x8xf32>, vector<8x8xf32>, vector<8x8xf32> -> vector<8x32xf32>
    %66 = arith.truncf %65 : vector<8x32xf32> to vector<8x32xbf16>
    %c0_13 = arith.constant 0 : index
    %c0_14 = arith.constant 0 : index
    %67 = vector.load %arg20[%c0_13, %c0_14] : memref<32x32xbf16, #tpu.memory_space<vmem>>, vector<32x32xbf16>
    %cst_15 = arith.constant dense<0.000000e+00> : vector<8x32xf32>
    %68 = tpu.matmul %66, %67, %cst_15 {dimension_numbers = #tpu.dot_dimension_numbers<[1], [0], [0], [1], [0, 0, 1, 1], [], []>} : vector<8x32xbf16>, vector<32x32xbf16>, vector<8x32xf32> -> vector<8x32xf32>
    %c0_16 = arith.constant 0 : index
    %c0_17 = arith.constant 0 : index
    %69 = vector.load %arg18[%c0_16, %c0_17] : memref<1x32xf32, #tpu.memory_space<vmem>>, vector<1x32xf32>
    %70 = vector.broadcast %69 : vector<1x32xf32> to vector<8x32xf32>
    %71 = arith.addf %68, %70 : vector<8x32xf32>
    %cst_18 = arith.constant 0.000000e+00 : f32
    %72 = vector.broadcast %cst_18 : f32 to vector<8x32xf32>
    %73 = arith.maximumf %71, %72 : vector<8x32xf32>
    %74 = arith.addf %65, %73 : vector<8x32xf32>
    %75 = arith.truncf %1 : vector<8x16xf32> to vector<8x16xbf16>
    %c0_19 = arith.constant 0 : index
    %c0_20 = arith.constant 0 : index
    %76 = vector.load %arg26[%c0_19, %c0_20] : memref<16x32xbf16, #tpu.memory_space<vmem>>, vector<16x32xbf16>
    %cst_21 = arith.constant dense<0.000000e+00> : vector<8x32xf32>
    %77 = tpu.matmul %75, %76, %cst_21 {dimension_numbers = #tpu.dot_dimension_numbers<[1], [0], [0], [1], [0, 0, 1, 1], [], []>} : vector<8x16xbf16>, vector<16x32xbf16>, vector<8x32xf32> -> vector<8x32xf32>
    %c0_22 = arith.constant 0 : index
    %c0_23 = arith.constant 0 : index
    %78 = vector.load %arg23[%c0_22, %c0_23] : memref<1x32xf32, #tpu.memory_space<vmem>>, vector<1x32xf32>
    %79 = vector.broadcast %78 : vector<1x32xf32> to vector<8x32xf32>
    %80 = arith.addf %77, %79 : vector<8x32xf32>
    %81 = arith.truncf %74 : vector<8x32xf32> to vector<8x32xbf16>
    %c0_24 = arith.constant 0 : index
    %c0_25 = arith.constant 0 : index
    %82 = vector.load %arg24[%c0_24, %c0_25] : memref<32x64xbf16, #tpu.memory_space<vmem>>, vector<32x64xbf16>
    %cst_26 = arith.constant dense<0.000000e+00> : vector<8x64xf32>
    %83 = tpu.matmul %81, %82, %cst_26 {dimension_numbers = #tpu.dot_dimension_numbers<[1], [0], [0], [1], [0, 0, 1, 1], [], []>} : vector<8x32xbf16>, vector<32x64xbf16>, vector<8x64xf32> -> vector<8x64xf32>
    %c0_27 = arith.constant 0 : index
    %c0_28 = arith.constant 0 : index
    %84 = vector.load %arg21[%c0_27, %c0_28] : memref<1x64xf32, #tpu.memory_space<vmem>>, vector<1x64xf32>
    %85 = vector.broadcast %84 : vector<1x64xf32> to vector<8x64xf32>
    %86 = arith.addf %83, %85 : vector<8x64xf32>
    %87 = vector.extract_strided_slice %86 {offsets = [0, 0], sizes = [8, 32], strides = [1, 1]} : vector<8x64xf32> to vector<8x32xf32>
    %88 = vector.extract_strided_slice %86 {offsets = [0, 32], sizes = [8, 32], strides = [1, 1]} : vector<8x64xf32> to vector<8x32xf32>
    %89 = vector.extract_strided_slice %80 {offsets = [0, 0], sizes = [8, 8], strides = [1, 1]} : vector<8x32xf32> to vector<8x8xf32>
    %90 = vector.extract_strided_slice %80 {offsets = [0, 8], sizes = [8, 8], strides = [1, 1]} : vector<8x32xf32> to vector<8x8xf32>
    %91 = vector.extract_strided_slice %80 {offsets = [0, 16], sizes = [8, 8], strides = [1, 1]} : vector<8x32xf32> to vector<8x8xf32>
    %92 = vector.extract_strided_slice %80 {offsets = [0, 24], sizes = [8, 8], strides = [1, 1]} : vector<8x32xf32> to vector<8x8xf32>
    %93 = vector.shape_cast %89 : vector<8x8xf32> to vector<1x8x8xf32>
    %94 = vector.shape_cast %90 : vector<8x8xf32> to vector<1x8x8xf32>
    %95 = vector.shape_cast %91 : vector<8x8xf32> to vector<1x8x8xf32>
    %96 = vector.shape_cast %92 : vector<8x8xf32> to vector<1x8x8xf32>
    %97 = tpu.concatenate %93, %94, %95, %96 in 0 : vector<1x8x8xf32>, vector<1x8x8xf32>, vector<1x8x8xf32>, vector<1x8x8xf32> -> vector<4x8x8xf32>
    %98 = vector.extract_strided_slice %87 {offsets = [0, 0], sizes = [8, 8], strides = [1, 1]} : vector<8x32xf32> to vector<8x8xf32>
    %99 = vector.extract_strided_slice %87 {offsets = [0, 8], sizes = [8, 8], strides = [1, 1]} : vector<8x32xf32> to vector<8x8xf32>
    %100 = vector.extract_strided_slice %87 {offsets = [0, 16], sizes = [8, 8], strides = [1, 1]} : vector<8x32xf32> to vector<8x8xf32>
    %101 = vector.extract_strided_slice %87 {offsets = [0, 24], sizes = [8, 8], strides = [1, 1]} : vector<8x32xf32> to vector<8x8xf32>
    %102 = vector.shape_cast %98 : vector<8x8xf32> to vector<1x8x8xf32>
    %103 = vector.shape_cast %99 : vector<8x8xf32> to vector<1x8x8xf32>
    %104 = vector.shape_cast %100 : vector<8x8xf32> to vector<1x8x8xf32>
    %105 = vector.shape_cast %101 : vector<8x8xf32> to vector<1x8x8xf32>
    %106 = tpu.concatenate %102, %103, %104, %105 in 0 : vector<1x8x8xf32>, vector<1x8x8xf32>, vector<1x8x8xf32>, vector<1x8x8xf32> -> vector<4x8x8xf32>
    %107 = vector.extract_strided_slice %88 {offsets = [0, 0], sizes = [8, 8], strides = [1, 1]} : vector<8x32xf32> to vector<8x8xf32>
    %108 = vector.extract_strided_slice %88 {offsets = [0, 8], sizes = [8, 8], strides = [1, 1]} : vector<8x32xf32> to vector<8x8xf32>
    %109 = vector.extract_strided_slice %88 {offsets = [0, 16], sizes = [8, 8], strides = [1, 1]} : vector<8x32xf32> to vector<8x8xf32>
    %110 = vector.extract_strided_slice %88 {offsets = [0, 24], sizes = [8, 8], strides = [1, 1]} : vector<8x32xf32> to vector<8x8xf32>
    %111 = vector.shape_cast %107 : vector<8x8xf32> to vector<1x8x8xf32>
    %112 = vector.shape_cast %108 : vector<8x8xf32> to vector<1x8x8xf32>
    %113 = vector.shape_cast %109 : vector<8x8xf32> to vector<1x8x8xf32>
    %114 = vector.shape_cast %110 : vector<8x8xf32> to vector<1x8x8xf32>
    %115 = tpu.concatenate %111, %112, %113, %114 in 0 : vector<1x8x8xf32>, vector<1x8x8xf32>, vector<1x8x8xf32>, vector<1x8x8xf32> -> vector<4x8x8xf32>
    %116 = arith.truncf %97 : vector<4x8x8xf32> to vector<4x8x8xbf16>
    %117 = arith.truncf %106 : vector<4x8x8xf32> to vector<4x8x8xbf16>
    "tpu.trace_start"() <{level = 10 : i32, message = "bqd,bkd->bqk"}> : () -> ()
    %cst_29 = arith.constant dense<0.000000e+00> : vector<4x8x8xf32>
    %118 = tpu.matmul %116, %117, %cst_29 {dimension_numbers = #tpu.dot_dimension_numbers<[2], [2], [1], [1], [0, 0, 0, 1, 1, 1], [0], [0]>} : vector<4x8x8xbf16>, vector<4x8x8xbf16>, vector<4x8x8xf32> -> vector<4x8x8xf32>
    "tpu.trace_stop"() : () -> ()
    %cst_30 = arith.constant 0.176776692 : f32
    %119 = vector.broadcast %cst_30 : f32 to vector<4x8x8xf32>
    %120 = arith.mulf %118, %119 : vector<4x8x8xf32>
    %cst_31 = arith.constant dense<0xFF800000> : vector<4x8xf32>
    %121 = vector.multi_reduction <maximumf>, %120, %cst_31 [2] : vector<4x8x8xf32> to vector<4x8xf32>
    %122 = vector.shape_cast %121 : vector<4x8xf32> to vector<4x8x1xf32>
    %123 = vector.broadcast %122 : vector<4x8x1xf32> to vector<4x8x8xf32>
    %124 = arith.subf %120, %123 : vector<4x8x8xf32>
    %125 = math.exp %124 : vector<4x8x8xf32>
    %cst_32 = arith.constant dense<0.000000e+00> : vector<4x8xf32>
    %126 = vector.multi_reduction <add>, %125, %cst_32 [2] : vector<4x8x8xf32> to vector<4x8xf32>
    %127 = vector.shape_cast %126 : vector<4x8xf32> to vector<4x8x1xf32>
    %128 = tpu.reciprocal %127 {approx = true} : vector<4x8x1xf32> -> vector<4x8x1xf32>
    %129 = vector.broadcast %128 : vector<4x8x1xf32> to vector<4x8x8xf32>
    %130 = arith.mulf %125, %129 : vector<4x8x8xf32>
    %131 = arith.truncf %130 : vector<4x8x8xf32> to vector<4x8x8xbf16>
    %132 = arith.truncf %115 : vector<4x8x8xf32> to vector<4x8x8xbf16>
    "tpu.trace_start"() <{level = 10 : i32, message = "bqk,bkd->bqd"}> : () -> ()
    %cst_33 = arith.constant dense<0.000000e+00> : vector<4x8x8xf32>
    %133 = tpu.matmul %131, %132, %cst_33 {dimension_numbers = #tpu.dot_dimension_numbers<[2], [1], [1], [2], [0, 0, 0, 1, 1, 2], [0], [0]>} : vector<4x8x8xbf16>, vector<4x8x8xbf16>, vector<4x8x8xf32> -> vector<4x8x8xf32>
    "tpu.trace_stop"() : () -> ()
    %134 = arith.addf %97, %133 : vector<4x8x8xf32>
    %135 = vector.extract_strided_slice %134 {offsets = [0, 0, 0], sizes = [1, 8, 8], strides = [1, 1, 1]} : vector<4x8x8xf32> to vector<1x8x8xf32>
    %136 = vector.shape_cast %135 : vector<1x8x8xf32> to vector<8x8xf32>
    %137 = vector.extract_strided_slice %134 {offsets = [1, 0, 0], sizes = [1, 8, 8], strides = [1, 1, 1]} : vector<4x8x8xf32> to vector<1x8x8xf32>
    %138 = vector.shape_cast %137 : vector<1x8x8xf32> to vector<8x8xf32>
    %139 = vector.extract_strided_slice %134 {offsets = [2, 0, 0], sizes = [1, 8, 8], strides = [1, 1, 1]} : vector<4x8x8xf32> to vector<1x8x8xf32>
    %140 = vector.shape_cast %139 : vector<1x8x8xf32> to vector<8x8xf32>
    %141 = vector.extract_strided_slice %134 {offsets = [3, 0, 0], sizes = [1, 8, 8], strides = [1, 1, 1]} : vector<4x8x8xf32> to vector<1x8x8xf32>
    %142 = vector.shape_cast %141 : vector<1x8x8xf32> to vector<8x8xf32>
    %143 = tpu.concatenate %136, %138, %140, %142 in 1 : vector<8x8xf32>, vector<8x8xf32>, vector<8x8xf32>, vector<8x8xf32> -> vector<8x32xf32>
    %144 = arith.truncf %143 : vector<8x32xf32> to vector<8x32xbf16>
    %c0_34 = arith.constant 0 : index
    %c0_35 = arith.constant 0 : index
    %145 = vector.load %arg25[%c0_34, %c0_35] : memref<32x32xbf16, #tpu.memory_space<vmem>>, vector<32x32xbf16>
    %cst_36 = arith.constant dense<0.000000e+00> : vector<8x32xf32>
    %146 = tpu.matmul %144, %145, %cst_36 {dimension_numbers = #tpu.dot_dimension_numbers<[1], [0], [0], [1], [0, 0, 1, 1], [], []>} : vector<8x32xbf16>, vector<32x32xbf16>, vector<8x32xf32> -> vector<8x32xf32>
    %c0_37 = arith.constant 0 : index
    %c0_38 = arith.constant 0 : index
    %147 = vector.load %arg22[%c0_37, %c0_38] : memref<1x32xf32, #tpu.memory_space<vmem>>, vector<1x32xf32>
    %148 = vector.broadcast %147 : vector<1x32xf32> to vector<8x32xf32>
    %149 = arith.addf %146, %148 : vector<8x32xf32>
    %cst_39 = arith.constant 0.000000e+00 : f32
    %150 = vector.broadcast %cst_39 : f32 to vector<8x32xf32>
    %151 = arith.maximumf %149, %150 : vector<8x32xf32>
    %152 = arith.addf %143, %151 : vector<8x32xf32>
    %c0_40 = arith.constant 0 : index
    %c0_41 = arith.constant 0 : index
    %153 = vector.load %arg38[%c0_40, %c0_41] : memref<8x32xf32, #tpu.memory_space<vmem>>, vector<8x32xf32>
    %154 = arith.truncf %152 : vector<8x32xf32> to vector<8x32xbf16>
    %c0_42 = arith.constant 0 : index
    %c0_43 = arith.constant 0 : index
    %155 = vector.load %arg30[%c0_42, %c0_43] : memref<32x64xbf16, #tpu.memory_space<vmem>>, vector<32x64xbf16>
    %cst_44 = arith.constant dense<0.000000e+00> : vector<8x64xf32>
    %156 = tpu.matmul %154, %155, %cst_44 {dimension_numbers = #tpu.dot_dimension_numbers<[1], [0], [0], [1], [0, 0, 1, 1], [], []>} : vector<8x32xbf16>, vector<32x64xbf16>, vector<8x64xf32> -> vector<8x64xf32>
    %c0_45 = arith.constant 0 : index
    %c0_46 = arith.constant 0 : index
    %157 = vector.load %arg28[%c0_45, %c0_46] : memref<1x64xf32, #tpu.memory_space<vmem>>, vector<1x64xf32>
    %158 = vector.broadcast %157 : vector<1x64xf32> to vector<8x64xf32>
    %159 = arith.addf %156, %158 : vector<8x64xf32>
    %160 = vector.extract_strided_slice %159 {offsets = [0, 0], sizes = [8, 32], strides = [1, 1]} : vector<8x64xf32> to vector<8x32xf32>
    %161 = vector.extract_strided_slice %159 {offsets = [0, 32], sizes = [8, 32], strides = [1, 1]} : vector<8x64xf32> to vector<8x32xf32>
    %162 = vector.extract_strided_slice %153 {offsets = [0, 0], sizes = [8, 8], strides = [1, 1]} : vector<8x32xf32> to vector<8x8xf32>
    %163 = vector.extract_strided_slice %153 {offsets = [0, 8], sizes = [8, 8], strides = [1, 1]} : vector<8x32xf32> to vector<8x8xf32>
    %164 = vector.extract_strided_slice %153 {offsets = [0, 16], sizes = [8, 8], strides = [1, 1]} : vector<8x32xf32> to vector<8x8xf32>
    %165 = vector.extract_strided_slice %153 {offsets = [0, 24], sizes = [8, 8], strides = [1, 1]} : vector<8x32xf32> to vector<8x8xf32>
    %166 = vector.shape_cast %162 : vector<8x8xf32> to vector<1x8x8xf32>
    %167 = vector.shape_cast %163 : vector<8x8xf32> to vector<1x8x8xf32>
    %168 = vector.shape_cast %164 : vector<8x8xf32> to vector<1x8x8xf32>
    %169 = vector.shape_cast %165 : vector<8x8xf32> to vector<1x8x8xf32>
    %170 = tpu.concatenate %166, %167, %168, %169 in 0 : vector<1x8x8xf32>, vector<1x8x8xf32>, vector<1x8x8xf32>, vector<1x8x8xf32> -> vector<4x8x8xf32>
    %171 = vector.extract_strided_slice %160 {offsets = [0, 0], sizes = [8, 8], strides = [1, 1]} : vector<8x32xf32> to vector<8x8xf32>
    %172 = vector.extract_strided_slice %160 {offsets = [0, 8], sizes = [8, 8], strides = [1, 1]} : vector<8x32xf32> to vector<8x8xf32>
    %173 = vector.extract_strided_slice %160 {offsets = [0, 16], sizes = [8, 8], strides = [1, 1]} : vector<8x32xf32> to vector<8x8xf32>
    %174 = vector.extract_strided_slice %160 {offsets = [0, 24], sizes = [8, 8], strides = [1, 1]} : vector<8x32xf32> to vector<8x8xf32>
    %175 = vector.shape_cast %171 : vector<8x8xf32> to vector<1x8x8xf32>
    %176 = vector.shape_cast %172 : vector<8x8xf32> to vector<1x8x8xf32>
    %177 = vector.shape_cast %173 : vector<8x8xf32> to vector<1x8x8xf32>
    %178 = vector.shape_cast %174 : vector<8x8xf32> to vector<1x8x8xf32>
    %179 = tpu.concatenate %175, %176, %177, %178 in 0 : vector<1x8x8xf32>, vector<1x8x8xf32>, vector<1x8x8xf32>, vector<1x8x8xf32> -> vector<4x8x8xf32>
    %180 = vector.extract_strided_slice %161 {offsets = [0, 0], sizes = [8, 8], strides = [1, 1]} : vector<8x32xf32> to vector<8x8xf32>
    %181 = vector.extract_strided_slice %161 {offsets = [0, 8], sizes = [8, 8], strides = [1, 1]} : vector<8x32xf32> to vector<8x8xf32>
    %182 = vector.extract_strided_slice %161 {offsets = [0, 16], sizes = [8, 8], strides = [1, 1]} : vector<8x32xf32> to vector<8x8xf32>
    %183 = vector.extract_strided_slice %161 {offsets = [0, 24], sizes = [8, 8], strides = [1, 1]} : vector<8x32xf32> to vector<8x8xf32>
    %184 = vector.shape_cast %180 : vector<8x8xf32> to vector<1x8x8xf32>
    %185 = vector.shape_cast %181 : vector<8x8xf32> to vector<1x8x8xf32>
    %186 = vector.shape_cast %182 : vector<8x8xf32> to vector<1x8x8xf32>
    %187 = vector.shape_cast %183 : vector<8x8xf32> to vector<1x8x8xf32>
    %188 = tpu.concatenate %184, %185, %186, %187 in 0 : vector<1x8x8xf32>, vector<1x8x8xf32>, vector<1x8x8xf32>, vector<1x8x8xf32> -> vector<4x8x8xf32>
    %189 = arith.truncf %170 : vector<4x8x8xf32> to vector<4x8x8xbf16>
    %190 = arith.truncf %179 : vector<4x8x8xf32> to vector<4x8x8xbf16>
    "tpu.trace_start"() <{level = 10 : i32, message = "bqd,bkd->bqk"}> : () -> ()
    %cst_47 = arith.constant dense<0.000000e+00> : vector<4x8x8xf32>
    %191 = tpu.matmul %189, %190, %cst_47 {dimension_numbers = #tpu.dot_dimension_numbers<[2], [2], [1], [1], [0, 0, 0, 1, 1, 1], [0], [0]>} : vector<4x8x8xbf16>, vector<4x8x8xbf16>, vector<4x8x8xf32> -> vector<4x8x8xf32>
    "tpu.trace_stop"() : () -> ()
    %cst_48 = arith.constant 0.176776692 : f32
    %192 = vector.broadcast %cst_48 : f32 to vector<4x8x8xf32>
    %193 = arith.mulf %191, %192 : vector<4x8x8xf32>
    %cst_49 = arith.constant dense<0xFF800000> : vector<4x8xf32>
    %194 = vector.multi_reduction <maximumf>, %193, %cst_49 [2] : vector<4x8x8xf32> to vector<4x8xf32>
    %195 = vector.shape_cast %194 : vector<4x8xf32> to vector<4x8x1xf32>
    %196 = vector.broadcast %195 : vector<4x8x1xf32> to vector<4x8x8xf32>
    %197 = arith.subf %193, %196 : vector<4x8x8xf32>
    %198 = math.exp %197 : vector<4x8x8xf32>
    %cst_50 = arith.constant dense<0.000000e+00> : vector<4x8xf32>
    %199 = vector.multi_reduction <add>, %198, %cst_50 [2] : vector<4x8x8xf32> to vector<4x8xf32>
    %200 = vector.shape_cast %199 : vector<4x8xf32> to vector<4x8x1xf32>
    %201 = tpu.reciprocal %200 {approx = true} : vector<4x8x1xf32> -> vector<4x8x1xf32>
    %202 = vector.broadcast %201 : vector<4x8x1xf32> to vector<4x8x8xf32>
    %203 = arith.mulf %198, %202 : vector<4x8x8xf32>
    %204 = arith.truncf %203 : vector<4x8x8xf32> to vector<4x8x8xbf16>
    %205 = arith.truncf %188 : vector<4x8x8xf32> to vector<4x8x8xbf16>
    "tpu.trace_start"() <{level = 10 : i32, message = "bqk,bkd->bqd"}> : () -> ()
    %cst_51 = arith.constant dense<0.000000e+00> : vector<4x8x8xf32>
    %206 = tpu.matmul %204, %205, %cst_51 {dimension_numbers = #tpu.dot_dimension_numbers<[2], [1], [1], [2], [0, 0, 0, 1, 1, 2], [0], [0]>} : vector<4x8x8xbf16>, vector<4x8x8xbf16>, vector<4x8x8xf32> -> vector<4x8x8xf32>
    "tpu.trace_stop"() : () -> ()
    %207 = arith.addf %170, %206 : vector<4x8x8xf32>
    %208 = vector.extract_strided_slice %207 {offsets = [0, 0, 0], sizes = [1, 8, 8], strides = [1, 1, 1]} : vector<4x8x8xf32> to vector<1x8x8xf32>
    %209 = vector.shape_cast %208 : vector<1x8x8xf32> to vector<8x8xf32>
    %210 = vector.extract_strided_slice %207 {offsets = [1, 0, 0], sizes = [1, 8, 8], strides = [1, 1, 1]} : vector<4x8x8xf32> to vector<1x8x8xf32>
    %211 = vector.shape_cast %210 : vector<1x8x8xf32> to vector<8x8xf32>
    %212 = vector.extract_strided_slice %207 {offsets = [2, 0, 0], sizes = [1, 8, 8], strides = [1, 1, 1]} : vector<4x8x8xf32> to vector<1x8x8xf32>
    %213 = vector.shape_cast %212 : vector<1x8x8xf32> to vector<8x8xf32>
    %214 = vector.extract_strided_slice %207 {offsets = [3, 0, 0], sizes = [1, 8, 8], strides = [1, 1, 1]} : vector<4x8x8xf32> to vector<1x8x8xf32>
    %215 = vector.shape_cast %214 : vector<1x8x8xf32> to vector<8x8xf32>
    %216 = tpu.concatenate %209, %211, %213, %215 in 1 : vector<8x8xf32>, vector<8x8xf32>, vector<8x8xf32>, vector<8x8xf32> -> vector<8x32xf32>
    %217 = arith.truncf %216 : vector<8x32xf32> to vector<8x32xbf16>
    %c0_52 = arith.constant 0 : index
    %c0_53 = arith.constant 0 : index
    %218 = vector.load %arg31[%c0_52, %c0_53] : memref<32x32xbf16, #tpu.memory_space<vmem>>, vector<32x32xbf16>
    %cst_54 = arith.constant dense<0.000000e+00> : vector<8x32xf32>
    %219 = tpu.matmul %217, %218, %cst_54 {dimension_numbers = #tpu.dot_dimension_numbers<[1], [0], [0], [1], [0, 0, 1, 1], [], []>} : vector<8x32xbf16>, vector<32x32xbf16>, vector<8x32xf32> -> vector<8x32xf32>
    %c0_55 = arith.constant 0 : index
    %c0_56 = arith.constant 0 : index
    %220 = vector.load %arg29[%c0_55, %c0_56] : memref<1x32xf32, #tpu.memory_space<vmem>>, vector<1x32xf32>
    %221 = vector.broadcast %220 : vector<1x32xf32> to vector<8x32xf32>
    %222 = arith.addf %219, %221 : vector<8x32xf32>
    %cst_57 = arith.constant 0.000000e+00 : f32
    %223 = vector.broadcast %cst_57 : f32 to vector<8x32xf32>
    %224 = arith.maximumf %222, %223 : vector<8x32xf32>
    %225 = arith.addf %216, %224 : vector<8x32xf32>
    %226 = arith.truncf %152 : vector<8x32xf32> to vector<8x32xbf16>
    %c0_58 = arith.constant 0 : index
    %c0_59 = arith.constant 0 : index
    %227 = vector.load %arg37[%c0_58, %c0_59] : memref<32x32xbf16, #tpu.memory_space<vmem>>, vector<32x32xbf16>
    %cst_60 = arith.constant dense<0.000000e+00> : vector<8x32xf32>
    %228 = tpu.matmul %226, %227, %cst_60 {dimension_numbers = #tpu.dot_dimension_numbers<[1], [0], [0], [1], [0, 0, 1, 1], [], []>} : vector<8x32xbf16>, vector<32x32xbf16>, vector<8x32xf32> -> vector<8x32xf32>
    %c0_61 = arith.constant 0 : index
    %c0_62 = arith.constant 0 : index
    %229 = vector.load %arg34[%c0_61, %c0_62] : memref<1x32xf32, #tpu.memory_space<vmem>>, vector<1x32xf32>
    %230 = vector.broadcast %229 : vector<1x32xf32> to vector<8x32xf32>
    %231 = arith.addf %228, %230 : vector<8x32xf32>
    %232 = arith.truncf %225 : vector<8x32xf32> to vector<8x32xbf16>
    %c0_63 = arith.constant 0 : index
    %c0_64 = arith.constant 0 : index
    %233 = vector.load %arg35[%c0_63, %c0_64] : memref<32x64xbf16, #tpu.memory_space<vmem>>, vector<32x64xbf16>
    %cst_65 = arith.constant dense<0.000000e+00> : vector<8x64xf32>
    %234 = tpu.matmul %232, %233, %cst_65 {dimension_numbers = #tpu.dot_dimension_numbers<[1], [0], [0], [1], [0, 0, 1, 1], [], []>} : vector<8x32xbf16>, vector<32x64xbf16>, vector<8x64xf32> -> vector<8x64xf32>
    %c0_66 = arith.constant 0 : index
    %c0_67 = arith.constant 0 : index
    %235 = vector.load %arg32[%c0_66, %c0_67] : memref<1x64xf32, #tpu.memory_space<vmem>>, vector<1x64xf32>
    %236 = vector.broadcast %235 : vector<1x64xf32> to vector<8x64xf32>
    %237 = arith.addf %234, %236 : vector<8x64xf32>
    %238 = vector.extract_strided_slice %237 {offsets = [0, 0], sizes = [8, 32], strides = [1, 1]} : vector<8x64xf32> to vector<8x32xf32>
    %239 = vector.extract_strided_slice %237 {offsets = [0, 32], sizes = [8, 32], strides = [1, 1]} : vector<8x64xf32> to vector<8x32xf32>
    %240 = vector.extract_strided_slice %231 {offsets = [0, 0], sizes = [8, 8], strides = [1, 1]} : vector<8x32xf32> to vector<8x8xf32>
    %241 = vector.extract_strided_slice %231 {offsets = [0, 8], sizes = [8, 8], strides = [1, 1]} : vector<8x32xf32> to vector<8x8xf32>
    %242 = vector.extract_strided_slice %231 {offsets = [0, 16], sizes = [8, 8], strides = [1, 1]} : vector<8x32xf32> to vector<8x8xf32>
    %243 = vector.extract_strided_slice %231 {offsets = [0, 24], sizes = [8, 8], strides = [1, 1]} : vector<8x32xf32> to vector<8x8xf32>
    %244 = vector.shape_cast %240 : vector<8x8xf32> to vector<1x8x8xf32>
    %245 = vector.shape_cast %241 : vector<8x8xf32> to vector<1x8x8xf32>
    %246 = vector.shape_cast %242 : vector<8x8xf32> to vector<1x8x8xf32>
    %247 = vector.shape_cast %243 : vector<8x8xf32> to vector<1x8x8xf32>
    %248 = tpu.concatenate %244, %245, %246, %247 in 0 : vector<1x8x8xf32>, vector<1x8x8xf32>, vector<1x8x8xf32>, vector<1x8x8xf32> -> vector<4x8x8xf32>
    %249 = vector.extract_strided_slice %238 {offsets = [0, 0], sizes = [8, 8], strides = [1, 1]} : vector<8x32xf32> to vector<8x8xf32>
    %250 = vector.extract_strided_slice %238 {offsets = [0, 8], sizes = [8, 8], strides = [1, 1]} : vector<8x32xf32> to vector<8x8xf32>
    %251 = vector.extract_strided_slice %238 {offsets = [0, 16], sizes = [8, 8], strides = [1, 1]} : vector<8x32xf32> to vector<8x8xf32>
    %252 = vector.extract_strided_slice %238 {offsets = [0, 24], sizes = [8, 8], strides = [1, 1]} : vector<8x32xf32> to vector<8x8xf32>
    %253 = vector.shape_cast %249 : vector<8x8xf32> to vector<1x8x8xf32>
    %254 = vector.shape_cast %250 : vector<8x8xf32> to vector<1x8x8xf32>
    %255 = vector.shape_cast %251 : vector<8x8xf32> to vector<1x8x8xf32>
    %256 = vector.shape_cast %252 : vector<8x8xf32> to vector<1x8x8xf32>
    %257 = tpu.concatenate %253, %254, %255, %256 in 0 : vector<1x8x8xf32>, vector<1x8x8xf32>, vector<1x8x8xf32>, vector<1x8x8xf32> -> vector<4x8x8xf32>
    %258 = vector.extract_strided_slice %239 {offsets = [0, 0], sizes = [8, 8], strides = [1, 1]} : vector<8x32xf32> to vector<8x8xf32>
    %259 = vector.extract_strided_slice %239 {offsets = [0, 8], sizes = [8, 8], strides = [1, 1]} : vector<8x32xf32> to vector<8x8xf32>
    %260 = vector.extract_strided_slice %239 {offsets = [0, 16], sizes = [8, 8], strides = [1, 1]} : vector<8x32xf32> to vector<8x8xf32>
    %261 = vector.extract_strided_slice %239 {offsets = [0, 24], sizes = [8, 8], strides = [1, 1]} : vector<8x32xf32> to vector<8x8xf32>
    %262 = vector.shape_cast %258 : vector<8x8xf32> to vector<1x8x8xf32>
    %263 = vector.shape_cast %259 : vector<8x8xf32> to vector<1x8x8xf32>
    %264 = vector.shape_cast %260 : vector<8x8xf32> to vector<1x8x8xf32>
    %265 = vector.shape_cast %261 : vector<8x8xf32> to vector<1x8x8xf32>
    %266 = tpu.concatenate %262, %263, %264, %265 in 0 : vector<1x8x8xf32>, vector<1x8x8xf32>, vector<1x8x8xf32>, vector<1x8x8xf32> -> vector<4x8x8xf32>
    %267 = arith.truncf %248 : vector<4x8x8xf32> to vector<4x8x8xbf16>
    %268 = arith.truncf %257 : vector<4x8x8xf32> to vector<4x8x8xbf16>
    "tpu.trace_start"() <{level = 10 : i32, message = "bqd,bkd->bqk"}> : () -> ()
    %cst_68 = arith.constant dense<0.000000e+00> : vector<4x8x8xf32>
    %269 = tpu.matmul %267, %268, %cst_68 {dimension_numbers = #tpu.dot_dimension_numbers<[2], [2], [1], [1], [0, 0, 0, 1, 1, 1], [0], [0]>} : vector<4x8x8xbf16>, vector<4x8x8xbf16>, vector<4x8x8xf32> -> vector<4x8x8xf32>
    "tpu.trace_stop"() : () -> ()
    %cst_69 = arith.constant 0.176776692 : f32
    %270 = vector.broadcast %cst_69 : f32 to vector<4x8x8xf32>
    %271 = arith.mulf %269, %270 : vector<4x8x8xf32>
    %cst_70 = arith.constant dense<0xFF800000> : vector<4x8xf32>
    %272 = vector.multi_reduction <maximumf>, %271, %cst_70 [2] : vector<4x8x8xf32> to vector<4x8xf32>
    %273 = vector.shape_cast %272 : vector<4x8xf32> to vector<4x8x1xf32>
    %274 = vector.broadcast %273 : vector<4x8x1xf32> to vector<4x8x8xf32>
    %275 = arith.subf %271, %274 : vector<4x8x8xf32>
    %276 = math.exp %275 : vector<4x8x8xf32>
    %cst_71 = arith.constant dense<0.000000e+00> : vector<4x8xf32>
    %277 = vector.multi_reduction <add>, %276, %cst_71 [2] : vector<4x8x8xf32> to vector<4x8xf32>
    %278 = vector.shape_cast %277 : vector<4x8xf32> to vector<4x8x1xf32>
    %279 = tpu.reciprocal %278 {approx = true} : vector<4x8x1xf32> -> vector<4x8x1xf32>
    %280 = vector.broadcast %279 : vector<4x8x1xf32> to vector<4x8x8xf32>
    %281 = arith.mulf %276, %280 : vector<4x8x8xf32>
    %282 = arith.truncf %281 : vector<4x8x8xf32> to vector<4x8x8xbf16>
    %283 = arith.truncf %266 : vector<4x8x8xf32> to vector<4x8x8xbf16>
    "tpu.trace_start"() <{level = 10 : i32, message = "bqk,bkd->bqd"}> : () -> ()
    %cst_72 = arith.constant dense<0.000000e+00> : vector<4x8x8xf32>
    %284 = tpu.matmul %282, %283, %cst_72 {dimension_numbers = #tpu.dot_dimension_numbers<[2], [1], [1], [2], [0, 0, 0, 1, 1, 2], [0], [0]>} : vector<4x8x8xbf16>, vector<4x8x8xbf16>, vector<4x8x8xf32> -> vector<4x8x8xf32>
    "tpu.trace_stop"() : () -> ()
    %285 = arith.addf %248, %284 : vector<4x8x8xf32>
    %286 = vector.extract_strided_slice %285 {offsets = [0, 0, 0], sizes = [1, 8, 8], strides = [1, 1, 1]} : vector<4x8x8xf32> to vector<1x8x8xf32>
    %287 = vector.shape_cast %286 : vector<1x8x8xf32> to vector<8x8xf32>
    %288 = vector.extract_strided_slice %285 {offsets = [1, 0, 0], sizes = [1, 8, 8], strides = [1, 1, 1]} : vector<4x8x8xf32> to vector<1x8x8xf32>
    %289 = vector.shape_cast %288 : vector<1x8x8xf32> to vector<8x8xf32>
    %290 = vector.extract_strided_slice %285 {offsets = [2, 0, 0], sizes = [1, 8, 8], strides = [1, 1, 1]} : vector<4x8x8xf32> to vector<1x8x8xf32>
    %291 = vector.shape_cast %290 : vector<1x8x8xf32> to vector<8x8xf32>
    %292 = vector.extract_strided_slice %285 {offsets = [3, 0, 0], sizes = [1, 8, 8], strides = [1, 1, 1]} : vector<4x8x8xf32> to vector<1x8x8xf32>
    %293 = vector.shape_cast %292 : vector<1x8x8xf32> to vector<8x8xf32>
    %294 = tpu.concatenate %287, %289, %291, %293 in 1 : vector<8x8xf32>, vector<8x8xf32>, vector<8x8xf32>, vector<8x8xf32> -> vector<8x32xf32>
    %295 = arith.truncf %294 : vector<8x32xf32> to vector<8x32xbf16>
    %c0_73 = arith.constant 0 : index
    %c0_74 = arith.constant 0 : index
    %296 = vector.load %arg36[%c0_73, %c0_74] : memref<32x32xbf16, #tpu.memory_space<vmem>>, vector<32x32xbf16>
    %cst_75 = arith.constant dense<0.000000e+00> : vector<8x32xf32>
    %297 = tpu.matmul %295, %296, %cst_75 {dimension_numbers = #tpu.dot_dimension_numbers<[1], [0], [0], [1], [0, 0, 1, 1], [], []>} : vector<8x32xbf16>, vector<32x32xbf16>, vector<8x32xf32> -> vector<8x32xf32>
    %c0_76 = arith.constant 0 : index
    %c0_77 = arith.constant 0 : index
    %298 = vector.load %arg33[%c0_76, %c0_77] : memref<1x32xf32, #tpu.memory_space<vmem>>, vector<1x32xf32>
    %299 = vector.broadcast %298 : vector<1x32xf32> to vector<8x32xf32>
    %300 = arith.addf %297, %299 : vector<8x32xf32>
    %cst_78 = arith.constant 0.000000e+00 : f32
    %301 = vector.broadcast %cst_78 : f32 to vector<8x32xf32>
    %302 = arith.maximumf %300, %301 : vector<8x32xf32>
    %303 = arith.addf %294, %302 : vector<8x32xf32>
    %c0_79 = arith.constant 0 : index
    %c0_80 = arith.constant 0 : index
    %304 = vector.load %arg8[%c0_79, %c0_80] : memref<4x32xf32, #tpu.memory_space<vmem>>, vector<4x32xf32>
    %305 = arith.truncf %303 : vector<8x32xf32> to vector<8x32xbf16>
    %c0_81 = arith.constant 0 : index
    %c0_82 = arith.constant 0 : index
    %306 = vector.load %arg6[%c0_81, %c0_82] : memref<32x64xbf16, #tpu.memory_space<vmem>>, vector<32x64xbf16>
    %cst_83 = arith.constant dense<0.000000e+00> : vector<8x64xf32>
    %307 = tpu.matmul %305, %306, %cst_83 {dimension_numbers = #tpu.dot_dimension_numbers<[1], [0], [0], [1], [0, 0, 1, 1], [], []>} : vector<8x32xbf16>, vector<32x64xbf16>, vector<8x64xf32> -> vector<8x64xf32>
    %c0_84 = arith.constant 0 : index
    %c0_85 = arith.constant 0 : index
    %308 = vector.load %arg4[%c0_84, %c0_85] : memref<1x64xf32, #tpu.memory_space<vmem>>, vector<1x64xf32>
    %309 = vector.broadcast %308 : vector<1x64xf32> to vector<8x64xf32>
    %310 = arith.addf %307, %309 : vector<8x64xf32>
    %311 = vector.extract_strided_slice %310 {offsets = [0, 0], sizes = [8, 32], strides = [1, 1]} : vector<8x64xf32> to vector<8x32xf32>
    %312 = vector.extract_strided_slice %310 {offsets = [0, 32], sizes = [8, 32], strides = [1, 1]} : vector<8x64xf32> to vector<8x32xf32>
    %313 = vector.extract_strided_slice %304 {offsets = [0, 0], sizes = [4, 8], strides = [1, 1]} : vector<4x32xf32> to vector<4x8xf32>
    %314 = vector.extract_strided_slice %304 {offsets = [0, 8], sizes = [4, 8], strides = [1, 1]} : vector<4x32xf32> to vector<4x8xf32>
    %315 = vector.extract_strided_slice %304 {offsets = [0, 16], sizes = [4, 8], strides = [1, 1]} : vector<4x32xf32> to vector<4x8xf32>
    %316 = vector.extract_strided_slice %304 {offsets = [0, 24], sizes = [4, 8], strides = [1, 1]} : vector<4x32xf32> to vector<4x8xf32>
    %317 = vector.shape_cast %313 : vector<4x8xf32> to vector<1x4x8xf32>
    %318 = vector.shape_cast %314 : vector<4x8xf32> to vector<1x4x8xf32>
    %319 = vector.shape_cast %315 : vector<4x8xf32> to vector<1x4x8xf32>
    %320 = vector.shape_cast %316 : vector<4x8xf32> to vector<1x4x8xf32>
    %321 = tpu.concatenate %317, %318, %319, %320 in 0 : vector<1x4x8xf32>, vector<1x4x8xf32>, vector<1x4x8xf32>, vector<1x4x8xf32> -> vector<4x4x8xf32>
    %322 = vector.extract_strided_slice %311 {offsets = [0, 0], sizes = [8, 8], strides = [1, 1]} : vector<8x32xf32> to vector<8x8xf32>
    %323 = vector.extract_strided_slice %311 {offsets = [0, 8], sizes = [8, 8], strides = [1, 1]} : vector<8x32xf32> to vector<8x8xf32>
    %324 = vector.extract_strided_slice %311 {offsets = [0, 16], sizes = [8, 8], strides = [1, 1]} : vector<8x32xf32> to vector<8x8xf32>
    %325 = vector.extract_strided_slice %311 {offsets = [0, 24], sizes = [8, 8], strides = [1, 1]} : vector<8x32xf32> to vector<8x8xf32>
    %326 = vector.shape_cast %322 : vector<8x8xf32> to vector<1x8x8xf32>
    %327 = vector.shape_cast %323 : vector<8x8xf32> to vector<1x8x8xf32>
    %328 = vector.shape_cast %324 : vector<8x8xf32> to vector<1x8x8xf32>
    %329 = vector.shape_cast %325 : vector<8x8xf32> to vector<1x8x8xf32>
    %330 = tpu.concatenate %326, %327, %328, %329 in 0 : vector<1x8x8xf32>, vector<1x8x8xf32>, vector<1x8x8xf32>, vector<1x8x8xf32> -> vector<4x8x8xf32>
    %331 = vector.extract_strided_slice %312 {offsets = [0, 0], sizes = [8, 8], strides = [1, 1]} : vector<8x32xf32> to vector<8x8xf32>
    %332 = vector.extract_strided_slice %312 {offsets = [0, 8], sizes = [8, 8], strides = [1, 1]} : vector<8x32xf32> to vector<8x8xf32>
    %333 = vector.extract_strided_slice %312 {offsets = [0, 16], sizes = [8, 8], strides = [1, 1]} : vector<8x32xf32> to vector<8x8xf32>
    %334 = vector.extract_strided_slice %312 {offsets = [0, 24], sizes = [8, 8], strides = [1, 1]} : vector<8x32xf32> to vector<8x8xf32>
    %335 = vector.shape_cast %331 : vector<8x8xf32> to vector<1x8x8xf32>
    %336 = vector.shape_cast %332 : vector<8x8xf32> to vector<1x8x8xf32>
    %337 = vector.shape_cast %333 : vector<8x8xf32> to vector<1x8x8xf32>
    %338 = vector.shape_cast %334 : vector<8x8xf32> to vector<1x8x8xf32>
    %339 = tpu.concatenate %335, %336, %337, %338 in 0 : vector<1x8x8xf32>, vector<1x8x8xf32>, vector<1x8x8xf32>, vector<1x8x8xf32> -> vector<4x8x8xf32>
    %340 = arith.truncf %321 : vector<4x4x8xf32> to vector<4x4x8xbf16>
    %341 = arith.truncf %330 : vector<4x8x8xf32> to vector<4x8x8xbf16>
    "tpu.trace_start"() <{level = 10 : i32, message = "bqd,bkd->bqk"}> : () -> ()
    %cst_86 = arith.constant dense<0.000000e+00> : vector<4x4x8xf32>
    %342 = tpu.matmul %340, %341, %cst_86 {dimension_numbers = #tpu.dot_dimension_numbers<[2], [2], [1], [1], [0, 0, 0, 1, 1, 1], [0], [0]>} : vector<4x4x8xbf16>, vector<4x8x8xbf16>, vector<4x4x8xf32> -> vector<4x4x8xf32>
    "tpu.trace_stop"() : () -> ()
    %cst_87 = arith.constant 0.176776692 : f32
    %343 = vector.broadcast %cst_87 : f32 to vector<4x4x8xf32>
    %344 = arith.mulf %342, %343 : vector<4x4x8xf32>
    %cst_88 = arith.constant dense<0xFF800000> : vector<4x4xf32>
    %345 = vector.multi_reduction <maximumf>, %344, %cst_88 [2] : vector<4x4x8xf32> to vector<4x4xf32>
    %346 = vector.shape_cast %345 : vector<4x4xf32> to vector<4x4x1xf32>
    %347 = vector.broadcast %346 : vector<4x4x1xf32> to vector<4x4x8xf32>
    %348 = arith.subf %344, %347 : vector<4x4x8xf32>
    %349 = math.exp %348 : vector<4x4x8xf32>
    %cst_89 = arith.constant dense<0.000000e+00> : vector<4x4xf32>
    %350 = vector.multi_reduction <add>, %349, %cst_89 [2] : vector<4x4x8xf32> to vector<4x4xf32>
    %351 = vector.shape_cast %350 : vector<4x4xf32> to vector<4x4x1xf32>
    %352 = tpu.reciprocal %351 {approx = true} : vector<4x4x1xf32> -> vector<4x4x1xf32>
    %353 = vector.broadcast %352 : vector<4x4x1xf32> to vector<4x4x8xf32>
    %354 = arith.mulf %349, %353 : vector<4x4x8xf32>
    %355 = arith.truncf %354 : vector<4x4x8xf32> to vector<4x4x8xbf16>
    %356 = arith.truncf %339 : vector<4x8x8xf32> to vector<4x8x8xbf16>
    "tpu.trace_start"() <{level = 10 : i32, message = "bqk,bkd->bqd"}> : () -> ()
    %cst_90 = arith.constant dense<0.000000e+00> : vector<4x4x8xf32>
    %357 = tpu.matmul %355, %356, %cst_90 {dimension_numbers = #tpu.dot_dimension_numbers<[2], [1], [1], [2], [0, 0, 0, 1, 1, 2], [0], [0]>} : vector<4x4x8xbf16>, vector<4x8x8xbf16>, vector<4x4x8xf32> -> vector<4x4x8xf32>
    "tpu.trace_stop"() : () -> ()
    %358 = arith.addf %321, %357 : vector<4x4x8xf32>
    %359 = vector.extract_strided_slice %358 {offsets = [0, 0, 0], sizes = [1, 4, 8], strides = [1, 1, 1]} : vector<4x4x8xf32> to vector<1x4x8xf32>
    %360 = vector.shape_cast %359 : vector<1x4x8xf32> to vector<4x8xf32>
    %361 = vector.extract_strided_slice %358 {offsets = [1, 0, 0], sizes = [1, 4, 8], strides = [1, 1, 1]} : vector<4x4x8xf32> to vector<1x4x8xf32>
    %362 = vector.shape_cast %361 : vector<1x4x8xf32> to vector<4x8xf32>
    %363 = vector.extract_strided_slice %358 {offsets = [2, 0, 0], sizes = [1, 4, 8], strides = [1, 1, 1]} : vector<4x4x8xf32> to vector<1x4x8xf32>
    %364 = vector.shape_cast %363 : vector<1x4x8xf32> to vector<4x8xf32>
    %365 = vector.extract_strided_slice %358 {offsets = [3, 0, 0], sizes = [1, 4, 8], strides = [1, 1, 1]} : vector<4x4x8xf32> to vector<1x4x8xf32>
    %366 = vector.shape_cast %365 : vector<1x4x8xf32> to vector<4x8xf32>
    %367 = tpu.concatenate %360, %362, %364, %366 in 1 : vector<4x8xf32>, vector<4x8xf32>, vector<4x8xf32>, vector<4x8xf32> -> vector<4x32xf32>
    %368 = arith.truncf %367 : vector<4x32xf32> to vector<4x32xbf16>
    %c0_91 = arith.constant 0 : index
    %c0_92 = arith.constant 0 : index
    %369 = vector.load %arg7[%c0_91, %c0_92] : memref<32x32xbf16, #tpu.memory_space<vmem>>, vector<32x32xbf16>
    %cst_93 = arith.constant dense<0.000000e+00> : vector<4x32xf32>
    %370 = tpu.matmul %368, %369, %cst_93 {dimension_numbers = #tpu.dot_dimension_numbers<[1], [0], [0], [1], [0, 0, 1, 1], [], []>} : vector<4x32xbf16>, vector<32x32xbf16>, vector<4x32xf32> -> vector<4x32xf32>
    %c0_94 = arith.constant 0 : index
    %c0_95 = arith.constant 0 : index
    %371 = vector.load %arg5[%c0_94, %c0_95] : memref<1x32xf32, #tpu.memory_space<vmem>>, vector<1x32xf32>
    %372 = vector.broadcast %371 : vector<1x32xf32> to vector<4x32xf32>
    %373 = arith.addf %370, %372 : vector<4x32xf32>
    %cst_96 = arith.constant 0.000000e+00 : f32
    %374 = vector.broadcast %cst_96 : f32 to vector<4x32xf32>
    %375 = arith.maximumf %373, %374 : vector<4x32xf32>
    %376 = arith.addf %367, %375 : vector<4x32xf32>
    %377 = arith.truncf %376 : vector<4x32xf32> to vector<4x32xbf16>
    %c0_97 = arith.constant 0 : index
    %c0_98 = arith.constant 0 : index
    %378 = vector.load %arg12[%c0_97, %c0_98] : memref<32x96xbf16, #tpu.memory_space<vmem>>, vector<32x96xbf16>
    %cst_99 = arith.constant dense<0.000000e+00> : vector<4x96xf32>
    %379 = tpu.matmul %377, %378, %cst_99 {dimension_numbers = #tpu.dot_dimension_numbers<[1], [0], [0], [1], [0, 0, 1, 1], [], []>} : vector<4x32xbf16>, vector<32x96xbf16>, vector<4x96xf32> -> vector<4x96xf32>
    %c0_100 = arith.constant 0 : index
    %c0_101 = arith.constant 0 : index
    %380 = vector.load %arg10[%c0_100, %c0_101] : memref<1x96xf32, #tpu.memory_space<vmem>>, vector<1x96xf32>
    %381 = vector.broadcast %380 : vector<1x96xf32> to vector<4x96xf32>
    %382 = arith.addf %379, %381 : vector<4x96xf32>
    %383 = vector.extract_strided_slice %382 {offsets = [0, 0], sizes = [4, 32], strides = [1, 1]} : vector<4x96xf32> to vector<4x32xf32>
    %384 = vector.extract_strided_slice %382 {offsets = [0, 32], sizes = [4, 32], strides = [1, 1]} : vector<4x96xf32> to vector<4x32xf32>
    %385 = vector.extract_strided_slice %382 {offsets = [0, 64], sizes = [4, 32], strides = [1, 1]} : vector<4x96xf32> to vector<4x32xf32>
    %386 = vector.extract_strided_slice %383 {offsets = [0, 0], sizes = [4, 8], strides = [1, 1]} : vector<4x32xf32> to vector<4x8xf32>
    %387 = vector.extract_strided_slice %383 {offsets = [0, 8], sizes = [4, 8], strides = [1, 1]} : vector<4x32xf32> to vector<4x8xf32>
    %388 = vector.extract_strided_slice %383 {offsets = [0, 16], sizes = [4, 8], strides = [1, 1]} : vector<4x32xf32> to vector<4x8xf32>
    %389 = vector.extract_strided_slice %383 {offsets = [0, 24], sizes = [4, 8], strides = [1, 1]} : vector<4x32xf32> to vector<4x8xf32>
    %390 = vector.shape_cast %386 : vector<4x8xf32> to vector<1x4x8xf32>
    %391 = vector.shape_cast %387 : vector<4x8xf32> to vector<1x4x8xf32>
    %392 = vector.shape_cast %388 : vector<4x8xf32> to vector<1x4x8xf32>
    %393 = vector.shape_cast %389 : vector<4x8xf32> to vector<1x4x8xf32>
    %394 = tpu.concatenate %390, %391, %392, %393 in 0 : vector<1x4x8xf32>, vector<1x4x8xf32>, vector<1x4x8xf32>, vector<1x4x8xf32> -> vector<4x4x8xf32>
    %395 = vector.extract_strided_slice %384 {offsets = [0, 0], sizes = [4, 8], strides = [1, 1]} : vector<4x32xf32> to vector<4x8xf32>
    %396 = vector.extract_strided_slice %384 {offsets = [0, 8], sizes = [4, 8], strides = [1, 1]} : vector<4x32xf32> to vector<4x8xf32>
    %397 = vector.extract_strided_slice %384 {offsets = [0, 16], sizes = [4, 8], strides = [1, 1]} : vector<4x32xf32> to vector<4x8xf32>
    %398 = vector.extract_strided_slice %384 {offsets = [0, 24], sizes = [4, 8], strides = [1, 1]} : vector<4x32xf32> to vector<4x8xf32>
    %399 = vector.shape_cast %395 : vector<4x8xf32> to vector<1x4x8xf32>
    %400 = vector.shape_cast %396 : vector<4x8xf32> to vector<1x4x8xf32>
    %401 = vector.shape_cast %397 : vector<4x8xf32> to vector<1x4x8xf32>
    %402 = vector.shape_cast %398 : vector<4x8xf32> to vector<1x4x8xf32>
    %403 = tpu.concatenate %399, %400, %401, %402 in 0 : vector<1x4x8xf32>, vector<1x4x8xf32>, vector<1x4x8xf32>, vector<1x4x8xf32> -> vector<4x4x8xf32>
    %404 = vector.extract_strided_slice %385 {offsets = [0, 0], sizes = [4, 8], strides = [1, 1]} : vector<4x32xf32> to vector<4x8xf32>
    %405 = vector.extract_strided_slice %385 {offsets = [0, 8], sizes = [4, 8], strides = [1, 1]} : vector<4x32xf32> to vector<4x8xf32>
    %406 = vector.extract_strided_slice %385 {offsets = [0, 16], sizes = [4, 8], strides = [1, 1]} : vector<4x32xf32> to vector<4x8xf32>
    %407 = vector.extract_strided_slice %385 {offsets = [0, 24], sizes = [4, 8], strides = [1, 1]} : vector<4x32xf32> to vector<4x8xf32>
    %408 = vector.shape_cast %404 : vector<4x8xf32> to vector<1x4x8xf32>
    %409 = vector.shape_cast %405 : vector<4x8xf32> to vector<1x4x8xf32>
    %410 = vector.shape_cast %406 : vector<4x8xf32> to vector<1x4x8xf32>
    %411 = vector.shape_cast %407 : vector<4x8xf32> to vector<1x4x8xf32>
    %412 = tpu.concatenate %408, %409, %410, %411 in 0 : vector<1x4x8xf32>, vector<1x4x8xf32>, vector<1x4x8xf32>, vector<1x4x8xf32> -> vector<4x4x8xf32>
    %413 = arith.truncf %394 : vector<4x4x8xf32> to vector<4x4x8xbf16>
    %414 = arith.truncf %403 : vector<4x4x8xf32> to vector<4x4x8xbf16>
    "tpu.trace_start"() <{level = 10 : i32, message = "bqd,bkd->bqk"}> : () -> ()
    %cst_102 = arith.constant dense<0.000000e+00> : vector<4x4x4xf32>
    %415 = tpu.matmul %413, %414, %cst_102 {dimension_numbers = #tpu.dot_dimension_numbers<[2], [2], [1], [1], [0, 0, 0, 1, 1, 1], [0], [0]>} : vector<4x4x8xbf16>, vector<4x4x8xbf16>, vector<4x4x4xf32> -> vector<4x4x4xf32>
    "tpu.trace_stop"() : () -> ()
    %cst_103 = arith.constant 0.176776692 : f32
    %416 = vector.broadcast %cst_103 : f32 to vector<4x4x4xf32>
    %417 = arith.mulf %415, %416 : vector<4x4x4xf32>
    %cst_104 = arith.constant dense<0xFF800000> : vector<4x4xf32>
    %418 = vector.multi_reduction <maximumf>, %417, %cst_104 [2] : vector<4x4x4xf32> to vector<4x4xf32>
    %419 = vector.shape_cast %418 : vector<4x4xf32> to vector<4x4x1xf32>
    %420 = vector.broadcast %419 : vector<4x4x1xf32> to vector<4x4x4xf32>
    %421 = arith.subf %417, %420 : vector<4x4x4xf32>
    %422 = math.exp %421 : vector<4x4x4xf32>
    %cst_105 = arith.constant dense<0.000000e+00> : vector<4x4xf32>
    %423 = vector.multi_reduction <add>, %422, %cst_105 [2] : vector<4x4x4xf32> to vector<4x4xf32>
    %424 = vector.shape_cast %423 : vector<4x4xf32> to vector<4x4x1xf32>
    %425 = tpu.reciprocal %424 {approx = true} : vector<4x4x1xf32> -> vector<4x4x1xf32>
    %426 = vector.broadcast %425 : vector<4x4x1xf32> to vector<4x4x4xf32>
    %427 = arith.mulf %422, %426 : vector<4x4x4xf32>
    %428 = arith.truncf %427 : vector<4x4x4xf32> to vector<4x4x4xbf16>
    %429 = arith.truncf %412 : vector<4x4x8xf32> to vector<4x4x8xbf16>
    "tpu.trace_start"() <{level = 10 : i32, message = "bqk,bkd->bqd"}> : () -> ()
    %cst_106 = arith.constant dense<0.000000e+00> : vector<4x4x8xf32>
    %430 = tpu.matmul %428, %429, %cst_106 {dimension_numbers = #tpu.dot_dimension_numbers<[2], [1], [1], [2], [0, 0, 0, 1, 1, 2], [0], [0]>} : vector<4x4x4xbf16>, vector<4x4x8xbf16>, vector<4x4x8xf32> -> vector<4x4x8xf32>
    "tpu.trace_stop"() : () -> ()
    %431 = arith.addf %394, %430 : vector<4x4x8xf32>
    %432 = vector.extract_strided_slice %431 {offsets = [0, 0, 0], sizes = [1, 4, 8], strides = [1, 1, 1]} : vector<4x4x8xf32> to vector<1x4x8xf32>
    %433 = vector.shape_cast %432 : vector<1x4x8xf32> to vector<4x8xf32>
    %434 = vector.extract_strided_slice %431 {offsets = [1, 0, 0], sizes = [1, 4, 8], strides = [1, 1, 1]} : vector<4x4x8xf32> to vector<1x4x8xf32>
    %435 = vector.shape_cast %434 : vector<1x4x8xf32> to vector<4x8xf32>
    %436 = vector.extract_strided_slice %431 {offsets = [2, 0, 0], sizes = [1, 4, 8], strides = [1, 1, 1]} : vector<4x4x8xf32> to vector<1x4x8xf32>
    %437 = vector.shape_cast %436 : vector<1x4x8xf32> to vector<4x8xf32>
    %438 = vector.extract_strided_slice %431 {offsets = [3, 0, 0], sizes = [1, 4, 8], strides = [1, 1, 1]} : vector<4x4x8xf32> to vector<1x4x8xf32>
    %439 = vector.shape_cast %438 : vector<1x4x8xf32> to vector<4x8xf32>
    %440 = tpu.concatenate %433, %435, %437, %439 in 1 : vector<4x8xf32>, vector<4x8xf32>, vector<4x8xf32>, vector<4x8xf32> -> vector<4x32xf32>
    %441 = arith.truncf %440 : vector<4x32xf32> to vector<4x32xbf16>
    %c0_107 = arith.constant 0 : index
    %c0_108 = arith.constant 0 : index
    %442 = vector.load %arg11[%c0_107, %c0_108] : memref<32x32xbf16, #tpu.memory_space<vmem>>, vector<32x32xbf16>
    %cst_109 = arith.constant dense<0.000000e+00> : vector<4x32xf32>
    %443 = tpu.matmul %441, %442, %cst_109 {dimension_numbers = #tpu.dot_dimension_numbers<[1], [0], [0], [1], [0, 0, 1, 1], [], []>} : vector<4x32xbf16>, vector<32x32xbf16>, vector<4x32xf32> -> vector<4x32xf32>
    %c0_110 = arith.constant 0 : index
    %c0_111 = arith.constant 0 : index
    %444 = vector.load %arg9[%c0_110, %c0_111] : memref<1x32xf32, #tpu.memory_space<vmem>>, vector<1x32xf32>
    %445 = vector.broadcast %444 : vector<1x32xf32> to vector<4x32xf32>
    %446 = arith.addf %443, %445 : vector<4x32xf32>
    %cst_112 = arith.constant 0.000000e+00 : f32
    %447 = vector.broadcast %cst_112 : f32 to vector<4x32xf32>
    %448 = arith.maximumf %446, %447 : vector<4x32xf32>
    %449 = arith.addf %440, %448 : vector<4x32xf32>
    %450 = arith.truncf %449 : vector<4x32xf32> to vector<4x32xbf16>
    %c0_113 = arith.constant 0 : index
    %c0_114 = arith.constant 0 : index
    %451 = vector.load %arg16[%c0_113, %c0_114] : memref<32x96xbf16, #tpu.memory_space<vmem>>, vector<32x96xbf16>
    %cst_115 = arith.constant dense<0.000000e+00> : vector<4x96xf32>
    %452 = tpu.matmul %450, %451, %cst_115 {dimension_numbers = #tpu.dot_dimension_numbers<[1], [0], [0], [1], [0, 0, 1, 1], [], []>} : vector<4x32xbf16>, vector<32x96xbf16>, vector<4x96xf32> -> vector<4x96xf32>
    %c0_116 = arith.constant 0 : index
    %c0_117 = arith.constant 0 : index
    %453 = vector.load %arg14[%c0_116, %c0_117] : memref<1x96xf32, #tpu.memory_space<vmem>>, vector<1x96xf32>
    %454 = vector.broadcast %453 : vector<1x96xf32> to vector<4x96xf32>
    %455 = arith.addf %452, %454 : vector<4x96xf32>
    %456 = vector.extract_strided_slice %455 {offsets = [0, 0], sizes = [4, 32], strides = [1, 1]} : vector<4x96xf32> to vector<4x32xf32>
    %457 = vector.extract_strided_slice %455 {offsets = [0, 32], sizes = [4, 32], strides = [1, 1]} : vector<4x96xf32> to vector<4x32xf32>
    %458 = vector.extract_strided_slice %455 {offsets = [0, 64], sizes = [4, 32], strides = [1, 1]} : vector<4x96xf32> to vector<4x32xf32>
    %459 = vector.extract_strided_slice %456 {offsets = [0, 0], sizes = [4, 8], strides = [1, 1]} : vector<4x32xf32> to vector<4x8xf32>
    %460 = vector.extract_strided_slice %456 {offsets = [0, 8], sizes = [4, 8], strides = [1, 1]} : vector<4x32xf32> to vector<4x8xf32>
    %461 = vector.extract_strided_slice %456 {offsets = [0, 16], sizes = [4, 8], strides = [1, 1]} : vector<4x32xf32> to vector<4x8xf32>
    %462 = vector.extract_strided_slice %456 {offsets = [0, 24], sizes = [4, 8], strides = [1, 1]} : vector<4x32xf32> to vector<4x8xf32>
    %463 = vector.shape_cast %459 : vector<4x8xf32> to vector<1x4x8xf32>
    %464 = vector.shape_cast %460 : vector<4x8xf32> to vector<1x4x8xf32>
    %465 = vector.shape_cast %461 : vector<4x8xf32> to vector<1x4x8xf32>
    %466 = vector.shape_cast %462 : vector<4x8xf32> to vector<1x4x8xf32>
    %467 = tpu.concatenate %463, %464, %465, %466 in 0 : vector<1x4x8xf32>, vector<1x4x8xf32>, vector<1x4x8xf32>, vector<1x4x8xf32> -> vector<4x4x8xf32>
    %468 = vector.extract_strided_slice %457 {offsets = [0, 0], sizes = [4, 8], strides = [1, 1]} : vector<4x32xf32> to vector<4x8xf32>
    %469 = vector.extract_strided_slice %457 {offsets = [0, 8], sizes = [4, 8], strides = [1, 1]} : vector<4x32xf32> to vector<4x8xf32>
    %470 = vector.extract_strided_slice %457 {offsets = [0, 16], sizes = [4, 8], strides = [1, 1]} : vector<4x32xf32> to vector<4x8xf32>
    %471 = vector.extract_strided_slice %457 {offsets = [0, 24], sizes = [4, 8], strides = [1, 1]} : vector<4x32xf32> to vector<4x8xf32>
    %472 = vector.shape_cast %468 : vector<4x8xf32> to vector<1x4x8xf32>
    %473 = vector.shape_cast %469 : vector<4x8xf32> to vector<1x4x8xf32>
    %474 = vector.shape_cast %470 : vector<4x8xf32> to vector<1x4x8xf32>
    %475 = vector.shape_cast %471 : vector<4x8xf32> to vector<1x4x8xf32>
    %476 = tpu.concatenate %472, %473, %474, %475 in 0 : vector<1x4x8xf32>, vector<1x4x8xf32>, vector<1x4x8xf32>, vector<1x4x8xf32> -> vector<4x4x8xf32>
    %477 = vector.extract_strided_slice %458 {offsets = [0, 0], sizes = [4, 8], strides = [1, 1]} : vector<4x32xf32> to vector<4x8xf32>
    %478 = vector.extract_strided_slice %458 {offsets = [0, 8], sizes = [4, 8], strides = [1, 1]} : vector<4x32xf32> to vector<4x8xf32>
    %479 = vector.extract_strided_slice %458 {offsets = [0, 16], sizes = [4, 8], strides = [1, 1]} : vector<4x32xf32> to vector<4x8xf32>
    %480 = vector.extract_strided_slice %458 {offsets = [0, 24], sizes = [4, 8], strides = [1, 1]} : vector<4x32xf32> to vector<4x8xf32>
    %481 = vector.shape_cast %477 : vector<4x8xf32> to vector<1x4x8xf32>
    %482 = vector.shape_cast %478 : vector<4x8xf32> to vector<1x4x8xf32>
    %483 = vector.shape_cast %479 : vector<4x8xf32> to vector<1x4x8xf32>
    %484 = vector.shape_cast %480 : vector<4x8xf32> to vector<1x4x8xf32>
    %485 = tpu.concatenate %481, %482, %483, %484 in 0 : vector<1x4x8xf32>, vector<1x4x8xf32>, vector<1x4x8xf32>, vector<1x4x8xf32> -> vector<4x4x8xf32>
    %486 = arith.truncf %467 : vector<4x4x8xf32> to vector<4x4x8xbf16>
    %487 = arith.truncf %476 : vector<4x4x8xf32> to vector<4x4x8xbf16>
    "tpu.trace_start"() <{level = 10 : i32, message = "bqd,bkd->bqk"}> : () -> ()
    %cst_118 = arith.constant dense<0.000000e+00> : vector<4x4x4xf32>
    %488 = tpu.matmul %486, %487, %cst_118 {dimension_numbers = #tpu.dot_dimension_numbers<[2], [2], [1], [1], [0, 0, 0, 1, 1, 1], [0], [0]>} : vector<4x4x8xbf16>, vector<4x4x8xbf16>, vector<4x4x4xf32> -> vector<4x4x4xf32>
    "tpu.trace_stop"() : () -> ()
    %cst_119 = arith.constant 0.176776692 : f32
    %489 = vector.broadcast %cst_119 : f32 to vector<4x4x4xf32>
    %490 = arith.mulf %488, %489 : vector<4x4x4xf32>
    %cst_120 = arith.constant dense<0xFF800000> : vector<4x4xf32>
    %491 = vector.multi_reduction <maximumf>, %490, %cst_120 [2] : vector<4x4x4xf32> to vector<4x4xf32>
    %492 = vector.shape_cast %491 : vector<4x4xf32> to vector<4x4x1xf32>
    %493 = vector.broadcast %492 : vector<4x4x1xf32> to vector<4x4x4xf32>
    %494 = arith.subf %490, %493 : vector<4x4x4xf32>
    %495 = math.exp %494 : vector<4x4x4xf32>
    %cst_121 = arith.constant dense<0.000000e+00> : vector<4x4xf32>
    %496 = vector.multi_reduction <add>, %495, %cst_121 [2] : vector<4x4x4xf32> to vector<4x4xf32>
    %497 = vector.shape_cast %496 : vector<4x4xf32> to vector<4x4x1xf32>
    %498 = tpu.reciprocal %497 {approx = true} : vector<4x4x1xf32> -> vector<4x4x1xf32>
    %499 = vector.broadcast %498 : vector<4x4x1xf32> to vector<4x4x4xf32>
    %500 = arith.mulf %495, %499 : vector<4x4x4xf32>
    %501 = arith.truncf %500 : vector<4x4x4xf32> to vector<4x4x4xbf16>
    %502 = arith.truncf %485 : vector<4x4x8xf32> to vector<4x4x8xbf16>
    "tpu.trace_start"() <{level = 10 : i32, message = "bqk,bkd->bqd"}> : () -> ()
    %cst_122 = arith.constant dense<0.000000e+00> : vector<4x4x8xf32>
    %503 = tpu.matmul %501, %502, %cst_122 {dimension_numbers = #tpu.dot_dimension_numbers<[2], [1], [1], [2], [0, 0, 0, 1, 1, 2], [0], [0]>} : vector<4x4x4xbf16>, vector<4x4x8xbf16>, vector<4x4x8xf32> -> vector<4x4x8xf32>
    "tpu.trace_stop"() : () -> ()
    %504 = arith.addf %467, %503 : vector<4x4x8xf32>
    %505 = vector.extract_strided_slice %504 {offsets = [0, 0, 0], sizes = [1, 4, 8], strides = [1, 1, 1]} : vector<4x4x8xf32> to vector<1x4x8xf32>
    %506 = vector.shape_cast %505 : vector<1x4x8xf32> to vector<4x8xf32>
    %507 = vector.extract_strided_slice %504 {offsets = [1, 0, 0], sizes = [1, 4, 8], strides = [1, 1, 1]} : vector<4x4x8xf32> to vector<1x4x8xf32>
    %508 = vector.shape_cast %507 : vector<1x4x8xf32> to vector<4x8xf32>
    %509 = vector.extract_strided_slice %504 {offsets = [2, 0, 0], sizes = [1, 4, 8], strides = [1, 1, 1]} : vector<4x4x8xf32> to vector<1x4x8xf32>
    %510 = vector.shape_cast %509 : vector<1x4x8xf32> to vector<4x8xf32>
    %511 = vector.extract_strided_slice %504 {offsets = [3, 0, 0], sizes = [1, 4, 8], strides = [1, 1, 1]} : vector<4x4x8xf32> to vector<1x4x8xf32>
    %512 = vector.shape_cast %511 : vector<1x4x8xf32> to vector<4x8xf32>
    %513 = tpu.concatenate %506, %508, %510, %512 in 1 : vector<4x8xf32>, vector<4x8xf32>, vector<4x8xf32>, vector<4x8xf32> -> vector<4x32xf32>
    %514 = arith.truncf %513 : vector<4x32xf32> to vector<4x32xbf16>
    %c0_123 = arith.constant 0 : index
    %c0_124 = arith.constant 0 : index
    %515 = vector.load %arg15[%c0_123, %c0_124] : memref<32x32xbf16, #tpu.memory_space<vmem>>, vector<32x32xbf16>
    %cst_125 = arith.constant dense<0.000000e+00> : vector<4x32xf32>
    %516 = tpu.matmul %514, %515, %cst_125 {dimension_numbers = #tpu.dot_dimension_numbers<[1], [0], [0], [1], [0, 0, 1, 1], [], []>} : vector<4x32xbf16>, vector<32x32xbf16>, vector<4x32xf32> -> vector<4x32xf32>
    %c0_126 = arith.constant 0 : index
    %c0_127 = arith.constant 0 : index
    %517 = vector.load %arg13[%c0_126, %c0_127] : memref<1x32xf32, #tpu.memory_space<vmem>>, vector<1x32xf32>
    %518 = vector.broadcast %517 : vector<1x32xf32> to vector<4x32xf32>
    %519 = arith.addf %516, %518 : vector<4x32xf32>
    %cst_128 = arith.constant 0.000000e+00 : f32
    %520 = vector.broadcast %cst_128 : f32 to vector<4x32xf32>
    %521 = arith.maximumf %519, %520 : vector<4x32xf32>
    %522 = arith.addf %513, %521 : vector<4x32xf32>
    %523 = arith.truncf %522 : vector<4x32xf32> to vector<4x32xbf16>
    %c0_129 = arith.constant 0 : index
    %c0_130 = arith.constant 0 : index
    %524 = vector.load %arg3[%c0_129, %c0_130] : memref<32x128xbf16, #tpu.memory_space<vmem>>, vector<32x128xbf16>
    %cst_131 = arith.constant dense<0.000000e+00> : vector<4x128xf32>
    %525 = tpu.matmul %523, %524, %cst_131 {dimension_numbers = #tpu.dot_dimension_numbers<[1], [0], [0], [1], [0, 0, 1, 1], [], []>} : vector<4x32xbf16>, vector<32x128xbf16>, vector<4x128xf32> -> vector<4x128xf32>
    %c0_132 = arith.constant 0 : index
    %c0_133 = arith.constant 0 : index
    %526 = vector.load %arg2[%c0_132, %c0_133] : memref<1x128xf32, #tpu.memory_space<vmem>>, vector<1x128xf32>
    %527 = vector.broadcast %526 : vector<1x128xf32> to vector<4x128xf32>
    %528 = arith.addf %525, %527 : vector<4x128xf32>
    %529 = vector.shape_cast %528 : vector<4x128xf32> to vector<1x4x128xf32>
    %c0_134 = arith.constant 0 : index
    %c0_135 = arith.constant 0 : index
    %c0_136 = arith.constant 0 : index
    %530 = vector.load %arg39[%c0_134, %c0_135, %c0_136] : memref<1x4x128xf32, #tpu.memory_space<vmem>>, vector<1x4x128xf32>
    tpu.vector_store %arg39[%c0_134, %c0_135, %c0_136], %529 {strides = array<i32>} : memref<1x4x128xf32, #tpu.memory_space<vmem>>, vector<1x4x128xf32>,
    return
  }
  func.func @transform_0(%arg0: i32) -> (i32, i32, i32) {
    %c0_i32 = arith.constant 0 : i32
    %c0_i32_0 = arith.constant 0 : i32
    %c0_i32_1 = arith.constant 0 : i32
    return %arg0, %c0_i32, %c0_i32_0 : i32, i32, i32
  }
  func.func @transform_1(%arg0: i32) -> (i32, i32) {
    %c0_i32 = arith.constant 0 : i32
    %c0_i32_0 = arith.constant 0 : i32
    %c0_i32_1 = arith.constant 0 : i32
    return %c0_i32, %c0_i32_0 : i32, i32
  }
  func.func @transform_2(%arg0: i32) -> (i32, i32) {
    %c0_i32 = arith.constant 0 : i32
    %c0_i32_0 = arith.constant 0 : i32
    %c0_i32_1 = arith.constant 0 : i32
    return %c0_i32, %c0_i32_0 : i32, i32
  }
  func.func @transform_3(%arg0: i32) -> (i32, i32) {
    %c0_i32 = arith.constant 0 : i32
    %c0_i32_0 = arith.constant 0 : i32
    %c0_i32_1 = arith.constant 0 : i32
    return %c0_i32, %c0_i32_0 : i32, i32
  }
  func.func @transform_4(%arg0: i32) -> (i32, i32) {
    %c0_i32 = arith.constant 0 : i32
    %c0_i32_0 = arith.constant 0 : i32
    %c0_i32_1 = arith.constant 0 : i32
    return %c0_i32, %c0_i32_0 : i32, i32
  }
  func.func @transform_5(%arg0: i32) -> (i32, i32) {
    %c0_i32 = arith.constant 0 : i32
    %c0_i32_0 = arith.constant 0 : i32
    %c0_i32_1 = arith.constant 0 : i32
    return %c0_i32, %c0_i32_0 : i32, i32
  }
  func.func @transform_6(%arg0: i32) -> (i32, i32) {
    %c0_i32 = arith.constant 0 : i32
    %c0_i32_0 = arith.constant 0 : i32
    %c0_i32_1 = arith.constant 0 : i32
    return %c0_i32, %c0_i32_0 : i32, i32
  }
  func.func @transform_7(%arg0: i32) -> (i32, i32) {
    %c0_i32 = arith.constant 0 : i32
    %c0_i32_0 = arith.constant 0 : i32
    %c0_i32_1 = arith.constant 0 : i32
    return %c0_i32, %c0_i32_0 : i32, i32
  }
  func.func @transform_8(%arg0: i32) -> (i32, i32) {
    %c0_i32 = arith.constant 0 : i32
    %c0_i32_0 = arith.constant 0 : i32
    %c0_i32_1 = arith.constant 0 : i32
    return %c0_i32, %c0_i32_0 : i32, i32
  }
  func.func @transform_9(%arg0: i32) -> (i32, i32) {
    %c0_i32 = arith.constant 0 : i32
    %c0_i32_0 = arith.constant 0 : i32
    %c0_i32_1 = arith.constant 0 : i32
    return %c0_i32, %c0_i32_0 : i32, i32
  }
  func.func @transform_10(%arg0: i32) -> (i32, i32) {
    %c0_i32 = arith.constant 0 : i32
    %c0_i32_0 = arith.constant 0 : i32
    %c0_i32_1 = arith.constant 0 : i32
    return %c0_i32, %c0_i32_0 : i32, i32
  }
  func.func @transform_11(%arg0: i32) -> (i32, i32) {
    %c0_i32 = arith.constant 0 : i32
    %c0_i32_0 = arith.constant 0 : i32
    %c0_i32_1 = arith.constant 0 : i32
    return %c0_i32, %c0_i32_0 : i32, i32
  }
  func.func @transform_12(%arg0: i32) -> (i32, i32) {
    %c0_i32 = arith.constant 0 : i32
    %c0_i32_0 = arith.constant 0 : i32
    %c0_i32_1 = arith.constant 0 : i32
    return %c0_i32, %c0_i32_0 : i32, i32
  }
  func.func @transform_13(%arg0: i32) -> (i32, i32) {
    %c0_i32 = arith.constant 0 : i32
    %c0_i32_0 = arith.constant 0 : i32
    %c0_i32_1 = arith.constant 0 : i32
    return %c0_i32, %c0_i32_0 : i32, i32
  }
  func.func @transform_14(%arg0: i32) -> (i32, i32) {
    %c0_i32 = arith.constant 0 : i32
    %c0_i32_0 = arith.constant 0 : i32
    %c0_i32_1 = arith.constant 0 : i32
    return %c0_i32, %c0_i32_0 : i32, i32
  }
  func.func @transform_15(%arg0: i32) -> (i32, i32) {
    %c0_i32 = arith.constant 0 : i32
    %c0_i32_0 = arith.constant 0 : i32
    %c0_i32_1 = arith.constant 0 : i32
    return %c0_i32, %c0_i32_0 : i32, i32
  }
  func.func @transform_16(%arg0: i32) -> (i32, i32) {
    %c0_i32 = arith.constant 0 : i32
    %c0_i32_0 = arith.constant 0 : i32
    %c0_i32_1 = arith.constant 0 : i32
    return %c0_i32, %c0_i32_0 : i32, i32
  }
  func.func @transform_17(%arg0: i32) -> (i32, i32) {
    %c0_i32 = arith.constant 0 : i32
    %c0_i32_0 = arith.constant 0 : i32
    %c0_i32_1 = arith.constant 0 : i32
    return %c0_i32, %c0_i32_0 : i32, i32
  }
  func.func @transform_18(%arg0: i32) -> (i32, i32) {
    %c0_i32 = arith.constant 0 : i32
    %c0_i32_0 = arith.constant 0 : i32
    %c0_i32_1 = arith.constant 0 : i32
    return %c0_i32, %c0_i32_0 : i32, i32
  }
  func.func @transform_19(%arg0: i32) -> (i32, i32) {
    %c0_i32 = arith.constant 0 : i32
    %c0_i32_0 = arith.constant 0 : i32
    %c0_i32_1 = arith.constant 0 : i32
    return %c0_i32, %c0_i32_0 : i32, i32
  }
  func.func @transform_20(%arg0: i32) -> (i32, i32) {
    %c0_i32 = arith.constant 0 : i32
    %c0_i32_0 = arith.constant 0 : i32
    %c0_i32_1 = arith.constant 0 : i32
    return %c0_i32, %c0_i32_0 : i32, i32
  }
  func.func @transform_21(%arg0: i32) -> (i32, i32) {
    %c0_i32 = arith.constant 0 : i32
    %c0_i32_0 = arith.constant 0 : i32
    %c0_i32_1 = arith.constant 0 : i32
    return %c0_i32, %c0_i32_0 : i32, i32
  }
  func.func @transform_22(%arg0: i32) -> (i32, i32) {
    %c0_i32 = arith.constant 0 : i32
    %c0_i32_0 = arith.constant 0 : i32
    %c0_i32_1 = arith.constant 0 : i32
    return %c0_i32, %c0_i32_0 : i32, i32
  }
  func.func @transform_23(%arg0: i32) -> (i32, i32) {
    %c0_i32 = arith.constant 0 : i32
    %c0_i32_0 = arith.constant 0 : i32
    %c0_i32_1 = arith.constant 0 : i32
    return %c0_i32, %c0_i32_0 : i32, i32
  }
  func.func @transform_24(%arg0: i32) -> (i32, i32) {
    %c0_i32 = arith.constant 0 : i32
    %c0_i32_0 = arith.constant 0 : i32
    %c0_i32_1 = arith.constant 0 : i32
    return %c0_i32, %c0_i32_0 : i32, i32
  }
  func.func @transform_25(%arg0: i32) -> (i32, i32) {
    %c0_i32 = arith.constant 0 : i32
    %c0_i32_0 = arith.constant 0 : i32
    %c0_i32_1 = arith.constant 0 : i32
    return %c0_i32, %c0_i32_0 : i32, i32
  }
  func.func @transform_26(%arg0: i32) -> (i32, i32) {
    %c0_i32 = arith.constant 0 : i32
    %c0_i32_0 = arith.constant 0 : i32
    %c0_i32_1 = arith.constant 0 : i32
    return %c0_i32, %c0_i32_0 : i32, i32
  }
  func.func @transform_27(%arg0: i32) -> (i32, i32) {
    %c0_i32 = arith.constant 0 : i32
    %c0_i32_0 = arith.constant 0 : i32
    %c0_i32_1 = arith.constant 0 : i32
    return %c0_i32, %c0_i32_0 : i32, i32
  }
  func.func @transform_28(%arg0: i32) -> (i32, i32) {
    %c0_i32 = arith.constant 0 : i32
    %c0_i32_0 = arith.constant 0 : i32
    %c0_i32_1 = arith.constant 0 : i32
    return %c0_i32, %c0_i32_0 : i32, i32
  }
  func.func @transform_29(%arg0: i32) -> (i32, i32) {
    %c0_i32 = arith.constant 0 : i32
    %c0_i32_0 = arith.constant 0 : i32
    %c0_i32_1 = arith.constant 0 : i32
    return %c0_i32, %c0_i32_0 : i32, i32
  }
  func.func @transform_30(%arg0: i32) -> (i32, i32) {
    %c0_i32 = arith.constant 0 : i32
    %c0_i32_0 = arith.constant 0 : i32
    %c0_i32_1 = arith.constant 0 : i32
    return %c0_i32, %c0_i32_0 : i32, i32
  }
  func.func @transform_31(%arg0: i32) -> (i32, i32) {
    %c0_i32 = arith.constant 0 : i32
    %c0_i32_0 = arith.constant 0 : i32
    %c0_i32_1 = arith.constant 0 : i32
    return %c0_i32, %c0_i32_0 : i32, i32
  }
  func.func @transform_32(%arg0: i32) -> (i32, i32) {
    %c0_i32 = arith.constant 0 : i32
    %c0_i32_0 = arith.constant 0 : i32
    %c0_i32_1 = arith.constant 0 : i32
    return %c0_i32, %c0_i32_0 : i32, i32
  }
  func.func @transform_33(%arg0: i32) -> (i32, i32) {
    %c0_i32 = arith.constant 0 : i32
    %c0_i32_0 = arith.constant 0 : i32
    %c0_i32_1 = arith.constant 0 : i32
    return %c0_i32, %c0_i32_0 : i32, i32
  }
  func.func @transform_34(%arg0: i32) -> (i32, i32) {
    %c0_i32 = arith.constant 0 : i32
    %c0_i32_0 = arith.constant 0 : i32
    %c0_i32_1 = arith.constant 0 : i32
    return %c0_i32, %c0_i32_0 : i32, i32
  }
  func.func @transform_35(%arg0: i32) -> (i32, i32) {
    %c0_i32 = arith.constant 0 : i32
    %c0_i32_0 = arith.constant 0 : i32
    %c0_i32_1 = arith.constant 0 : i32
    return %c0_i32, %c0_i32_0 : i32, i32
  }
  func.func @transform_36(%arg0: i32) -> (i32, i32) {
    %c0_i32 = arith.constant 0 : i32
    %c0_i32_0 = arith.constant 0 : i32
    %c0_i32_1 = arith.constant 0 : i32
    return %c0_i32, %c0_i32_0 : i32, i32
  }
  func.func @transform_37(%arg0: i32) -> (i32, i32) {
    %c0_i32 = arith.constant 0 : i32
    %c0_i32_0 = arith.constant 0 : i32
    %c0_i32_1 = arith.constant 0 : i32
    return %c0_i32, %c0_i32_0 : i32, i32
  }
  func.func @transform_38(%arg0: i32) -> (i32, i32, i32) {
    %c0_i32 = arith.constant 0 : i32
    %c0_i32_0 = arith.constant 0 : i32
    %c0_i32_1 = arith.constant 0 : i32
    return %arg0, %c0_i32, %c0_i32_0 : i32, i32, i32
  }
}

</mosaic_0001>

<llo_original>
// kernel: set_transformer_forward.1
$region0: #{set_transformer_forward.1}
  #allocation0 [shape = 'u32[]', space=smem, size = 0x4, offset = 0x4, fixed_abs, tag = 'smem constant byte address 0x4 - core index']
  #allocation1 [shape = 'u32[144,128]{1,0:T(1,128)}', space=vmem, size = 0x12000, scoped, tag = 'internal scratch']
  %s0 = inlined_call_operand.smem [shape: u32[39], index: -1, kind: input, shape index: {}]
  %s1 = sld [smem:[%s0]]
  %s2 = scalar_lea.smem %s0, 1
  %s3 = sld [smem:[%s2]]
  %s4 = scalar_lea.smem %s0, 2
  %s5 = sld [smem:[%s4]]
  %s6 = scalar_lea.smem %s0, 3
  %s7 = sld [smem:[%s6]]
  %s8 = scalar_lea.smem %s0, 4
  %s9 = sld [smem:[%s8]]
  %s10 = scalar_lea.smem %s0, 5
  %s11 = sld [smem:[%s10]]
  %s12 = scalar_lea.smem %s0, 6
  %s13 = sld [smem:[%s12]]
  %s14 = scalar_lea.smem %s0, 7
  %s15 = sld [smem:[%s14]]
  %s16 = scalar_lea.smem %s0, 8
  %s17 = sld [smem:[%s16]]
  %s18 = scalar_lea.smem %s0, 9
  %s19 = sld [smem:[%s18]]
  %s20 = scalar_lea.smem %s0, 10
  %s21 = sld [smem:[%s20]]
  %s22 = scalar_lea.smem %s0, 11
  %s23 = sld [smem:[%s22]]
  %s24 = scalar_lea.smem %s0, 12
  %s25 = sld [smem:[%s24]]
  %s26 = scalar_lea.smem %s0, 13
  %s27 = sld [smem:[%s26]]
  %s28 = scalar_lea.smem %s0, 14
  %s29 = sld [smem:[%s28]]
  %s30 = scalar_lea.smem %s0, 15
  %s31 = sld [smem:[%s30]]
  %s32 = scalar_lea.smem %s0, 16
  %s33 = sld [smem:[%s32]]
  %s34 = scalar_lea.smem %s0, 17
  %s35 = sld [smem:[%s34]]
  %s36 = scalar_lea.smem %s0, 18
  %s37 = sld [smem:[%s36]]
  %s38 = scalar_lea.smem %s0, 19
  %s39 = sld [smem:[%s38]]
  %s40 = scalar_lea.smem %s0, 20
  %s41 = sld [smem:[%s40]]
  %s42 = scalar_lea.smem %s0, 21
  %s43 = sld [smem:[%s42]]
  %s44 = scalar_lea.smem %s0, 22
  %s45 = sld [smem:[%s44]]
  %s46 = scalar_lea.smem %s0, 23
  %s47 = sld [smem:[%s46]]
  %s48 = scalar_lea.smem %s0, 24
  %s49 = sld [smem:[%s48]]
  %s50 = scalar_lea.smem %s0, 25
  %s51 = sld [smem:[%s50]]
  %s52 = scalar_lea.smem %s0, 26
  %s53 = sld [smem:[%s52]]
  %s54 = scalar_lea.smem %s0, 27
  %s55 = sld [smem:[%s54]]
  %s56 = scalar_lea.smem %s0, 28
  %s57 = sld [smem:[%s56]]
  %s58 = scalar_lea.smem %s0, 29
  %s59 = sld [smem:[%s58]]
  %s60 = scalar_lea.smem %s0, 30
  %s61 = sld [smem:[%s60]]
  %s62 = scalar_lea.smem %s0, 31
  %s63 = sld [smem:[%s62]]
  %s64 = scalar_lea.smem %s0, 32
  %s65 = sld [smem:[%s64]]
  %s66 = scalar_lea.smem %s0, 33
  %s67 = sld [smem:[%s66]]
  %s68 = scalar_lea.smem %s0, 34
  %s69 = sld [smem:[%s68]]
  %s70 = scalar_lea.smem %s0, 35
  %s71 = sld [smem:[%s70]]
  %s72 = scalar_lea.smem %s0, 36
  %s73 = sld [smem:[%s72]]
  %s74 = scalar_lea.smem %s0, 37
  %s75 = sld [smem:[%s74]]
  %s76 = scalar_lea.smem %s0, 38
  %s77 = sld [smem:[%s76]]
  %s78 = sld [smem:[#allocation0]]
  $region301: #{set_transformer_forward.1} parent=0
    _
  %s80 = ssub.s32 1, %s78
  %s81 = scalar_select 0, %s80, %s78
  $region1: #{set_transformer_forward.1} parent=0
    #allocation2 [shape = 'u8[8192]{0}', space=vmem, size = 0x2000, scoped, tag = 'input window, operand 0']
    #allocation3 [shape = 's32[2]{0}', space=sflag, size = 0x8, scoped, tag = 'scoped memory for set_transformer_forward.1']
    #allocation4 [shape = 's32[2]{0}', space=sflag, size = 0x8, scoped, tag = 'scoped memory for set_transformer_forward.1']
    #allocation5 [shape = 'u8[512]{0}', space=vmem, size = 0x400, scoped, tag = 'input window, operand 1, single buffered']
    #allocation6 [shape = 's32[1]{0}', space=sflag, size = 0x4, scoped, tag = 'scoped memory for set_transformer_forward.1']
    #allocation7 [shape = 'u8[8192]{0}', space=vmem, size = 0x2000, scoped, tag = 'input window, operand 2, single buffered']
    #allocation8 [shape = 'u8[512]{0}', space=vmem, size = 0x400, scoped, tag = 'input window, operand 3, single buffered']
    #allocation9 [shape = 's32[1]{0}', space=sflag, size = 0x4, scoped, tag = 'scoped memory for set_transformer_forward.1']
    #allocation10 [shape = 'u8[512]{0}', space=vmem, size = 0x400, scoped, tag = 'input window, operand 4, single buffered']
    #allocation11 [shape = 'u8[8192]{0}', space=vmem, size = 0x2000, scoped, tag = 'input window, operand 6, single buffered']
    #allocation12 [shape = 's32[1]{0}', space=sflag, size = 0x4, scoped, tag = 'scoped memory for set_transformer_forward.1']
    #allocation13 [shape = 'u8[2048]{0}', space=vmem, size = 0x800, scoped, tag = 'input window, operand 7, single buffered']
    #allocation14 [shape = 'u8[512]{0}', space=vmem, size = 0x400, scoped, tag = 'input window, operand 8, single buffered']
    #allocation15 [shape = 's32[1]{0}', space=sflag, size = 0x4, scoped, tag = 'scoped memory for set_transformer_forward.1']
    #allocation16 [shape = 'u8[512]{0}', space=vmem, size = 0x400, scoped, tag = 'input window, operand 9, single buffered']
    #allocation17 [shape = 'u8[8192]{0}', space=vmem, size = 0x2000, scoped, tag = 'input window, operand 11, single buffered']
    #allocation18 [shape = 's32[1]{0}', space=sflag, size = 0x4, scoped, tag = 'scoped memory for set_transformer_forward.1']
    #allocation19 [shape = 'u8[512]{0}', space=vmem, size = 0x400, scoped, tag = 'input window, operand 12, single buffered']
    #allocation20 [shape = 'u8[512]{0}', space=vmem, size = 0x400, scoped, tag = 'input window, operand 13, single buffered']
    #allocation21 [shape = 's32[1]{0}', space=sflag, size = 0x4, scoped, tag = 'scoped memory for set_transformer_forward.1']
    #allocation22 [shape = 'u8[8192]{0}', space=vmem, size = 0x2000, scoped, tag = 'input window, operand 15, single buffered']
    #allocation23 [shape = 'u8[512]{0}', space=vmem, size = 0x400, scoped, tag = 'input window, operand 16, single buffered']
    #allocation24 [shape = 's32[1]{0}', space=sflag, size = 0x4, scoped, tag = 'scoped memory for set_transformer_forward.1']
    #allocation25 [shape = 'u8[512]{0}', space=vmem, size = 0x400, scoped, tag = 'input window, operand 17, single buffered']
    #allocation26 [shape = 'u8[4096]{0}', space=vmem, size = 0x1000, scoped, tag = 'input window, operand 18, single buffered']
    #allocation27 [shape = 's32[1]{0}', space=sflag, size = 0x4, scoped, tag = 'scoped memory for set_transformer_forward.1']
    #allocation28 [shape = 'u8[512]{0}', space=vmem, size = 0x400, scoped, tag = 'input window, operand 20, single buffered']
    #allocation29 [shape = 'u8[512]{0}', space=vmem, size = 0x400, scoped, tag = 'input window, operand 21, single buffered']
    #allocation30 [shape = 's32[1]{0}', space=sflag, size = 0x4, scoped, tag = 'scoped memory for set_transformer_forward.1']
    #allocation31 [shape = 'u8[512]{0}', space=vmem, size = 0x400, scoped, tag = 'input window, operand 22, single buffered']
    #allocation32 [shape = 'u8[8192]{0}', space=vmem, size = 0x2000, scoped, tag = 'input window, operand 24, single buffered']
    #allocation33 [shape = 's32[1]{0}', space=sflag, size = 0x4, scoped, tag = 'scoped memory for set_transformer_forward.1']
    #allocation34 [shape = 'u8[4096]{0}', space=vmem, size = 0x1000, scoped, tag = 'input window, operand 25, single buffered']
    #allocation35 [shape = 'u8[4096]{0}', space=vmem, size = 0x1000, scoped, tag = 'input window, operand 26, single buffered']
    #allocation36 [shape = 's32[1]{0}', space=sflag, size = 0x4, scoped, tag = 'scoped memory for set_transformer_forward.1']
    #allocation37 [shape = 'u8[512]{0}', space=vmem, size = 0x400, scoped, tag = 'input window, operand 27, single buffered']
    #allocation38 [shape = 'u8[512]{0}', space=vmem, size = 0x400, scoped, tag = 'input window, operand 28, single buffered']
    #allocation39 [shape = 's32[1]{0}', space=sflag, size = 0x4, scoped, tag = 'scoped memory for set_transformer_forward.1']
    #allocation40 [shape = 'u8[512]{0}', space=vmem, size = 0x400, scoped, tag = 'input window, operand 31, single buffered']
    #allocation41 [shape = 'u8[512]{0}', space=vmem, size = 0x400, scoped, tag = 'input window, operand 32, single buffered']
    #allocation42 [shape = 's32[1]{0}', space=sflag, size = 0x4, scoped, tag = 'scoped memory for set_transformer_forward.1']
    #allocation43 [shape = 'u8[512]{0}', space=vmem, size = 0x400, scoped, tag = 'input window, operand 33, single buffered']
    #allocation44 [shape = 'u8[8192]{0}', space=vmem, size = 0x2000, scoped, tag = 'input window, operand 35, single buffered']
    #allocation45 [shape = 's32[1]{0}', space=sflag, size = 0x4, scoped, tag = 'scoped memory for set_transformer_forward.1']
    #allocation46 [shape = 'u8[8192]{0}', space=vmem, size = 0x2000, scoped, tag = 'input window, operand 36, single buffered']
    #allocation47 [shape = 'u8[4096]{0}', space=vmem, size = 0x1000, scoped, tag = 'output window, operand 0']
    %82 = vsyncpa [#allocation3], 0
    %s83 = scalar_lea.sflag [#allocation3], 1
    %84 = vsyncpa %s83, 0
    %85 = vsyncpa [#allocation6], 0
    %86 = vsyncpa [#allocation9], 0
    %87 = vsyncpa [#allocation12], 0
    %88 = vsyncpa [#allocation15], 0
    %89 = vsyncpa [#allocation18], 0
    %90 = vsyncpa [#allocation21], 0
    %91 = vsyncpa [#allocation24], 0
    %92 = vsyncpa [#allocation27], 0
    %93 = vsyncpa [#allocation30], 0
    %94 = vsyncpa [#allocation33], 0
    %95 = vsyncpa [#allocation36], 0
    %96 = vsyncpa [#allocation39], 0
    %97 = vsyncpa [#allocation42], 0
    %98 = vsyncpa [#allocation45], 0
    %99 = vsyncpa [#allocation4], 0
    %s100 = scalar_lea.sflag [#allocation4], 1
    %101 = vsyncpa %s100, 0
    loop: start=0, step=1, limit=4
    $region2: #{set_transformer_forward.1} parent=1 // loop_pre_header
      _
    $region3: #{set_transformer_forward.1} parent=1 // loop_header
      %s103 = sphi 0, %s107
      %p104 = scmp.ge.s32.totalorder %s103, 4
      %s113 = sphi 0, %s115
      %s116 = sphi 0, %s113
      %s117 = sphi 0, %s116
      %s133 = sphi 0, %s117
      %s137 = sphi 0, %s137
      %s139 = sphi 0, %s137
      %s140 = sphi 0, %s139
      %s154 = sphi 0, %s140
      %s158 = sphi 0, %s158
      %s160 = sphi 0, %s158
      %s161 = sphi 0, %s160
      %s175 = sphi 0, %s161
      %s179 = sphi 0, %s179
      %s181 = sphi 0, %s179
      %s182 = sphi 0, %s181
      %s196 = sphi 0, %s182
      %s200 = sphi 0, %s200
      %s202 = sphi 0, %s200
      %s203 = sphi 0, %s202
      %s217 = sphi 0, %s203
      %s221 = sphi 0, %s221
      %s223 = sphi 0, %s221
      %s224 = sphi 0, %s223
      %s238 = sphi 0, %s224
      %s242 = sphi 0, %s242
      %s244 = sphi 0, %s242
      %s245 = sphi 0, %s244
      %s259 = sphi 0, %s245
      %s263 = sphi 0, %s263
      %s265 = sphi 0, %s263
      %s266 = sphi 0, %s265
      %s280 = sphi 0, %s266
      %s284 = sphi 0, %s284
      %s286 = sphi 0, %s284
      %s287 = sphi 0, %s286
      %s301 = sphi 0, %s287
      %s305 = sphi 0, %s305
      %s307 = sphi 0, %s305
      %s308 = sphi 0, %s307
      %s322 = sphi 0, %s308
      %s326 = sphi 0, %s326
      %s328 = sphi 0, %s326
      %s329 = sphi 0, %s328
      %s343 = sphi 0, %s329
      %s347 = sphi 0, %s347
      %s349 = sphi 0, %s347
      %s350 = sphi 0, %s349
      %s364 = sphi 0, %s350
      %s368 = sphi 0, %s368
      %s370 = sphi 0, %s368
      %s371 = sphi 0, %s370
      %s385 = sphi 0, %s371
      %s389 = sphi 0, %s389
      %s391 = sphi 0, %s389
      %s392 = sphi 0, %s391
      %s406 = sphi 0, %s392
      %s410 = sphi 0, %s410
      %s412 = sphi 0, %s410
      %s413 = sphi 0, %s412
      %s427 = sphi 0, %s413
      %s431 = sphi 0, %s431
      %s433 = sphi 0, %s431
      %s434 = sphi 0, %s433
      %s448 = sphi 0, %s434
      %s452 = sphi 0, %s452
      %s454 = sphi 0, %s452
      %s455 = sphi 0, %s454
      %s469 = sphi 0, %s455
      %s473 = sphi 0, %s473
      %s475 = sphi 0, %s473
      %s476 = sphi 0, %s475
      %s490 = sphi 0, %s476
      %s494 = sphi 0, %s494
      %s496 = sphi 0, %s494
      %s497 = sphi 0, %s496
      %s511 = sphi 0, %s497
      %s515 = sphi 0, %s515
      %s517 = sphi 0, %s515
      %s518 = sphi 0, %s517
      %s532 = sphi 0, %s518
      %s536 = sphi 0, %s536
      %s538 = sphi 0, %s536
      %s539 = sphi 0, %s538
      %s553 = sphi 0, %s539
      %s557 = sphi 0, %s557
      %s559 = sphi 0, %s557
      %s560 = sphi 0, %s559
      %s574 = sphi 0, %s560
      %s578 = sphi 0, %s578
      %s580 = sphi 0, %s578
      %s581 = sphi 0, %s580
      %s595 = sphi 0, %s581
      %s599 = sphi 0, %s599
      %s601 = sphi 0, %s599
      %s602 = sphi 0, %s601
      %s616 = sphi 0, %s602
      %s620 = sphi 0, %s620
      %s622 = sphi 0, %s620
      %s623 = sphi 0, %s622
      %s637 = sphi 0, %s623
      %s641 = sphi 0, %s641
      %s643 = sphi 0, %s641
      %s644 = sphi 0, %s643
      %s658 = sphi 0, %s644
      %s662 = sphi 0, %s662
      %s664 = sphi 0, %s662
      %s665 = sphi 0, %s664
      %s679 = sphi 0, %s665
      %s683 = sphi 0, %s683
      %s685 = sphi 0, %s683
      %s686 = sphi 0, %s685
      %s700 = sphi 0, %s686
      %s704 = sphi 0, %s704
      %s706 = sphi 0, %s704
      %s707 = sphi 0, %s706
      %s721 = sphi 0, %s707
      %s725 = sphi 0, %s725
      %s727 = sphi 0, %s725
      %s728 = sphi 0, %s727
      %s742 = sphi 0, %s728
      %s746 = sphi 0, %s746
      %s748 = sphi 0, %s746
      %s749 = sphi 0, %s748
      %s763 = sphi 0, %s749
      %s767 = sphi 0, %s767
      %s769 = sphi 0, %s767
      %s770 = sphi 0, %s769
      %s784 = sphi 0, %s770
      %s788 = sphi 0, %s788
      %s790 = sphi 0, %s788
      %s791 = sphi 0, %s790
      %s805 = sphi 0, %s791
      %s809 = sphi 0, %s809
      %s811 = sphi 0, %s809
      %s812 = sphi 0, %s811
      %s826 = sphi 0, %s812
      %s830 = sphi 0, %s830
      %s832 = sphi 0, %s830
      %s833 = sphi 0, %s832
      %s847 = sphi 0, %s833
      %s851 = sphi 0, %s851
      %s853 = sphi 0, %s851
      %s854 = sphi 0, %s853
      %s868 = sphi 0, %s854
      %s872 = sphi 0, %s872
      %s874 = sphi 0, %s872
      %s875 = sphi 0, %s874
      %s889 = sphi 0, %s875
      %s893 = sphi 0, %s893
      %s895 = sphi 0, %s893
      %s896 = sphi 0, %s895
      %s910 = sphi 0, %s896
      %s916 = sphi 0, %s918
      %s919 = sphi 0, %s916
      %s920 = sphi 0, %s919
      %s936 = sphi 0, %s920
    $region4: #{set_transformer_forward.1} parent=1 // loop_header_branch
      %106 = sbr.rel (%p104) target = $region8
    $region5: #{set_transformer_forward.1} parent=1 // loop_body
      %s108 = ssub.s32 %s103, 1
      %s109 = ssub.s32 %s103, 2
      %s110 = sadd.s32 %s103, 1
      %s111 = ssub.s32 %s103, %s110
      %p112 = scmp.eq.s32.totalorder %s111, 0
      %s114 = sadd.s32 %s113, 1
      %s115 = scalar_select %p112, %s113, %s114
      %p118 = pneg %p112
      %p119 = scmp.eq.s32.totalorder %s103, 1
      %p120 = por %p118, %p119
      %p121 = scmp.ne.s32.totalorder %s113, %s116
      %p122 = scmp.eq.s32.totalorder %s103, 0
      %p123 = por %p121, %p122
      %p124 = scmp.ne.s32.totalorder %s113, %s116
      %p125 = scmp.eq.s32.totalorder %s108, 1
      %p126 = por %p124, %p125
      %p127 = scmp.ne.s32.totalorder %s116, %s117
      %p128 = scmp.eq.s32.totalorder %s108, 0
      %p129 = por %p127, %p128
      %p130 = scmp.ne.s32.totalorder %s116, %s117
      %p131 = scmp.eq.s32.totalorder %s109, 1
      %p132 = por %p130, %p131
      %p134 = scmp.ne.s32.totalorder %s117, %s133
      %p135 = scmp.eq.s32.totalorder %s109, 0
      %p136 = por %p134, %p135
      %s138 = sadd.s32 %s137, 1
      %p141 = scmp.eq.s32.totalorder %s103, 1
      %p142 = scmp.ne.s32.totalorder %s137, %s139
      %p143 = scmp.eq.s32.totalorder %s103, 0
      %p144 = por %p142, %p143
      %p145 = scmp.ne.s32.totalorder %s137, %s139
      %p146 = scmp.eq.s32.totalorder %s108, 1
      %p147 = por %p145, %p146
      %p148 = scmp.ne.s32.totalorder %s139, %s140
      %p149 = scmp.eq.s32.totalorder %s108, 0
      %p150 = por %p148, %p149
      %p151 = scmp.ne.s32.totalorder %s139, %s140
      %p152 = scmp.eq.s32.totalorder %s109, 1
      %p153 = por %p151, %p152
      %p155 = scmp.ne.s32.totalorder %s140, %s154
      %p156 = scmp.eq.s32.totalorder %s109, 0
      %p157 = por %p155, %p156
      %s159 = sadd.s32 %s158, 1
      %p162 = scmp.eq.s32.totalorder %s103, 1
      %p163 = scmp.ne.s32.totalorder %s158, %s160
      %p164 = scmp.eq.s32.totalorder %s103, 0
      %p165 = por %p163, %p164
      %p166 = scmp.ne.s32.totalorder %s158, %s160
      %p167 = scmp.eq.s32.totalorder %s108, 1
      %p168 = por %p166, %p167
      %p169 = scmp.ne.s32.totalorder %s160, %s161
      %p170 = scmp.eq.s32.totalorder %s108, 0
      %p171 = por %p169, %p170
      %p172 = scmp.ne.s32.totalorder %s160, %s161
      %p173 = scmp.eq.s32.totalorder %s109, 1
      %p174 = por %p172, %p173
      %p176 = scmp.ne.s32.totalorder %s161, %s175
      %p177 = scmp.eq.s32.totalorder %s109, 0
      %p178 = por %p176, %p177
      %s180 = sadd.s32 %s179, 1
      %p183 = scmp.eq.s32.totalorder %s103, 1
      %p184 = scmp.ne.s32.totalorder %s179, %s181
      %p185 = scmp.eq.s32.totalorder %s103, 0
      %p186 = por %p184, %p185
      %p187 = scmp.ne.s32.totalorder %s179, %s181
      %p188 = scmp.eq.s32.totalorder %s108, 1
      %p189 = por %p187, %p188
      %p190 = scmp.ne.s32.totalorder %s181, %s182
      %p191 = scmp.eq.s32.totalorder %s108, 0
      %p192 = por %p190, %p191
      %p193 = scmp.ne.s32.totalorder %s181, %s182
      %p194 = scmp.eq.s32.totalorder %s109, 1
      %p195 = por %p193, %p194
      %p197 = scmp.ne.s32.totalorder %s182, %s196
      %p198 = scmp.eq.s32.totalorder %s109, 0
      %p199 = por %p197, %p198
      %s201 = sadd.s32 %s200, 1
      %p204 = scmp.eq.s32.totalorder %s103, 1
      %p205 = scmp.ne.s32.totalorder %s200, %s202
      %p206 = scmp.eq.s32.totalorder %s103, 0
      %p207 = por %p205, %p206
      %p208 = scmp.ne.s32.totalorder %s200, %s202
      %p209 = scmp.eq.s32.totalorder %s108, 1
      %p210 = por %p208, %p209
      %p211 = scmp.ne.s32.totalorder %s202, %s203
      %p212 = scmp.eq.s32.totalorder %s108, 0
      %p213 = por %p211, %p212
      %p214 = scmp.ne.s32.totalorder %s202, %s203
      %p215 = scmp.eq.s32.totalorder %s109, 1
      %p216 = por %p214, %p215
      %p218 = scmp.ne.s32.totalorder %s203, %s217
      %p219 = scmp.eq.s32.totalorder %s109, 0
      %p220 = por %p218, %p219
      %s222 = sadd.s32 %s221, 1
      %p225 = scmp.eq.s32.totalorder %s103, 1
      %p226 = scmp.ne.s32.totalorder %s221, %s223
      %p227 = scmp.eq.s32.totalorder %s103, 0
      %p228 = por %p226, %p227
      %p229 = scmp.ne.s32.totalorder %s221, %s223
      %p230 = scmp.eq.s32.totalorder %s108, 1
      %p231 = por %p229, %p230
      %p232 = scmp.ne.s32.totalorder %s223, %s224
      %p233 = scmp.eq.s32.totalorder %s108, 0
      %p234 = por %p232, %p233
      %p235 = scmp.ne.s32.totalorder %s223, %s224
      %p236 = scmp.eq.s32.totalorder %s109, 1
      %p237 = por %p235, %p236
      %p239 = scmp.ne.s32.totalorder %s224, %s238
      %p240 = scmp.eq.s32.totalorder %s109, 0
      %p241 = por %p239, %p240
      %s243 = sadd.s32 %s242, 1
      %p246 = scmp.eq.s32.totalorder %s103, 1
      %p247 = scmp.ne.s32.totalorder %s242, %s244
      %p248 = scmp.eq.s32.totalorder %s103, 0
      %p249 = por %p247, %p248
      %p250 = scmp.ne.s32.totalorder %s242, %s244
      %p251 = scmp.eq.s32.totalorder %s108, 1
      %p252 = por %p250, %p251
      %p253 = scmp.ne.s32.totalorder %s244, %s245
      %p254 = scmp.eq.s32.totalorder %s108, 0
      %p255 = por %p253, %p254
      %p256 = scmp.ne.s32.totalorder %s244, %s245
      %p257 = scmp.eq.s32.totalorder %s109, 1
      %p258 = por %p256, %p257
      %p260 = scmp.ne.s32.totalorder %s245, %s259
      %p261 = scmp.eq.s32.totalorder %s109, 0
      %p262 = por %p260, %p261
      %s264 = sadd.s32 %s263, 1
      %p267 = scmp.eq.s32.totalorder %s103, 1
      %p268 = scmp.ne.s32.totalorder %s263, %s265
      %p269 = scmp.eq.s32.totalorder %s103, 0
      %p270 = por %p268, %p269
      %p271 = scmp.ne.s32.totalorder %s263, %s265
      %p272 = scmp.eq.s32.totalorder %s108, 1
      %p273 = por %p271, %p272
      %p274 = scmp.ne.s32.totalorder %s265, %s266
      %p275 = scmp.eq.s32.totalorder %s108, 0
      %p276 = por %p274, %p275
      %p277 = scmp.ne.s32.totalorder %s265, %s266
      %p278 = scmp.eq.s32.totalorder %s109, 1
      %p279 = por %p277, %p278
      %p281 = scmp.ne.s32.totalorder %s266, %s280
      %p282 = scmp.eq.s32.totalorder %s109, 0
      %p283 = por %p281, %p282
      %s285 = sadd.s32 %s284, 1
      %p288 = scmp.eq.s32.totalorder %s103, 1
      %p289 = scmp.ne.s32.totalorder %s284, %s286
      %p290 = scmp.eq.s32.totalorder %s103, 0
      %p291 = por %p289, %p290
      %p292 = scmp.ne.s32.totalorder %s284, %s286
      %p293 = scmp.eq.s32.totalorder %s108, 1
      %p294 = por %p292, %p293
      %p295 = scmp.ne.s32.totalorder %s286, %s287
      %p296 = scmp.eq.s32.totalorder %s108, 0
      %p297 = por %p295, %p296
      %p298 = scmp.ne.s32.totalorder %s286, %s287
      %p299 = scmp.eq.s32.totalorder %s109, 1
      %p300 = por %p298, %p299
      %p302 = scmp.ne.s32.totalorder %s287, %s301
      %p303 = scmp.eq.s32.totalorder %s109, 0
      %p304 = por %p302, %p303
      %s306 = sadd.s32 %s305, 1
      %p309 = scmp.eq.s32.totalorder %s103, 1
      %p310 = scmp.ne.s32.totalorder %s305, %s307
      %p311 = scmp.eq.s32.totalorder %s103, 0
      %p312 = por %p310, %p311
      %p313 = scmp.ne.s32.totalorder %s305, %s307
      %p314 = scmp.eq.s32.totalorder %s108, 1
      %p315 = por %p313, %p314
      %p316 = scmp.ne.s32.totalorder %s307, %s308
      %p317 = scmp.eq.s32.totalorder %s108, 0
      %p318 = por %p316, %p317
      %p319 = scmp.ne.s32.totalorder %s307, %s308
      %p320 = scmp.eq.s32.totalorder %s109, 1
      %p321 = por %p319, %p320
      %p323 = scmp.ne.s32.totalorder %s308, %s322
      %p324 = scmp.eq.s32.totalorder %s109, 0
      %p325 = por %p323, %p324
      %s327 = sadd.s32 %s326, 1
      %p330 = scmp.eq.s32.totalorder %s103, 1
      %p331 = scmp.ne.s32.totalorder %s326, %s328
      %p332 = scmp.eq.s32.totalorder %s103, 0
      %p333 = por %p331, %p332
      %p334 = scmp.ne.s32.totalorder %s326, %s328
      %p335 = scmp.eq.s32.totalorder %s108, 1
      %p336 = por %p334, %p335
      %p337 = scmp.ne.s32.totalorder %s328, %s329
      %p338 = scmp.eq.s32.totalorder %s108, 0
      %p339 = por %p337, %p338
      %p340 = scmp.ne.s32.totalorder %s328, %s329
      %p341 = scmp.eq.s32.totalorder %s109, 1
      %p342 = por %p340, %p341
      %p344 = scmp.ne.s32.totalorder %s329, %s343
      %p345 = scmp.eq.s32.totalorder %s109, 0
      %p346 = por %p344, %p345
      %s348 = sadd.s32 %s347, 1
      %p351 = scmp.eq.s32.totalorder %s103, 1
      %p352 = scmp.ne.s32.totalorder %s347, %s349
      %p353 = scmp.eq.s32.totalorder %s103, 0
      %p354 = por %p352, %p353
      %p355 = scmp.ne.s32.totalorder %s347, %s349
      %p356 = scmp.eq.s32.totalorder %s108, 1
      %p357 = por %p355, %p356
      %p358 = scmp.ne.s32.totalorder %s349, %s350
      %p359 = scmp.eq.s32.totalorder %s108, 0
      %p360 = por %p358, %p359
      %p361 = scmp.ne.s32.totalorder %s349, %s350
      %p362 = scmp.eq.s32.totalorder %s109, 1
      %p363 = por %p361, %p362
      %p365 = scmp.ne.s32.totalorder %s350, %s364
      %p366 = scmp.eq.s32.totalorder %s109, 0
      %p367 = por %p365, %p366
      %s369 = sadd.s32 %s368, 1
      %p372 = scmp.eq.s32.totalorder %s103, 1
      %p373 = scmp.ne.s32.totalorder %s368, %s370
      %p374 = scmp.eq.s32.totalorder %s103, 0
      %p375 = por %p373, %p374
      %p376 = scmp.ne.s32.totalorder %s368, %s370
      %p377 = scmp.eq.s32.totalorder %s108, 1
      %p378 = por %p376, %p377
      %p379 = scmp.ne.s32.totalorder %s370, %s371
      %p380 = scmp.eq.s32.totalorder %s108, 0
      %p381 = por %p379, %p380
      %p382 = scmp.ne.s32.totalorder %s370, %s371
      %p383 = scmp.eq.s32.totalorder %s109, 1
      %p384 = por %p382, %p383
      %p386 = scmp.ne.s32.totalorder %s371, %s385
      %p387 = scmp.eq.s32.totalorder %s109, 0
      %p388 = por %p386, %p387
      %s390 = sadd.s32 %s389, 1
      %p393 = scmp.eq.s32.totalorder %s103, 1
      %p394 = scmp.ne.s32.totalorder %s389, %s391
      %p395 = scmp.eq.s32.totalorder %s103, 0
      %p396 = por %p394, %p395
      %p397 = scmp.ne.s32.totalorder %s389, %s391
      %p398 = scmp.eq.s32.totalorder %s108, 1
      %p399 = por %p397, %p398
      %p400 = scmp.ne.s32.totalorder %s391, %s392
      %p401 = scmp.eq.s32.totalorder %s108, 0
      %p402 = por %p400, %p401
      %p403 = scmp.ne.s32.totalorder %s391, %s392
      %p404 = scmp.eq.s32.totalorder %s109, 1
      %p405 = por %p403, %p404
      %p407 = scmp.ne.s32.totalorder %s392, %s406
      %p408 = scmp.eq.s32.totalorder %s109, 0
      %p409 = por %p407, %p408
      %s411 = sadd.s32 %s410, 1
      %p414 = scmp.eq.s32.totalorder %s103, 1
      %p415 = scmp.ne.s32.totalorder %s410, %s412
      %p416 = scmp.eq.s32.totalorder %s103, 0
      %p417 = por %p415, %p416
      %p418 = scmp.ne.s32.totalorder %s410, %s412
      %p419 = scmp.eq.s32.totalorder %s108, 1
      %p420 = por %p418, %p419
      %p421 = scmp.ne.s32.totalorder %s412, %s413
      %p422 = scmp.eq.s32.totalorder %s108, 0
      %p423 = por %p421, %p422
      %p424 = scmp.ne.s32.totalorder %s412, %s413
      %p425 = scmp.eq.s32.totalorder %s109, 1
      %p426 = por %p424, %p425
      %p428 = scmp.ne.s32.totalorder %s413, %s427
      %p429 = scmp.eq.s32.totalorder %s109, 0
      %p430 = por %p428, %p429
      %s432 = sadd.s32 %s431, 1
      %p435 = scmp.eq.s32.totalorder %s103, 1
      %p436 = scmp.ne.s32.totalorder %s431, %s433
      %p437 = scmp.eq.s32.totalorder %s103, 0
      %p438 = por %p436, %p437
      %p439 = scmp.ne.s32.totalorder %s431, %s433
      %p440 = scmp.eq.s32.totalorder %s108, 1
      %p441 = por %p439, %p440
      %p442 = scmp.ne.s32.totalorder %s433, %s434
      %p443 = scmp.eq.s32.totalorder %s108, 0
      %p444 = por %p442, %p443
      %p445 = scmp.ne.s32.totalorder %s433, %s434
      %p446 = scmp.eq.s32.totalorder %s109, 1
      %p447 = por %p445, %p446
      %p449 = scmp.ne.s32.totalorder %s434, %s448
      %p450 = scmp.eq.s32.totalorder %s109, 0
      %p451 = por %p449, %p450
      %s453 = sadd.s32 %s452, 1
      %p456 = scmp.eq.s32.totalorder %s103, 1
      %p457 = scmp.ne.s32.totalorder %s452, %s454
      %p458 = scmp.eq.s32.totalorder %s103, 0
      %p459 = por %p457, %p458
      %p460 = scmp.ne.s32.totalorder %s452, %s454
      %p461 = scmp.eq.s32.totalorder %s108, 1
      %p462 = por %p460, %p461
      %p463 = scmp.ne.s32.totalorder %s454, %s455
      %p464 = scmp.eq.s32.totalorder %s108, 0
      %p465 = por %p463, %p464
      %p466 = scmp.ne.s32.totalorder %s454, %s455
      %p467 = scmp.eq.s32.totalorder %s109, 1
      %p468 = por %p466, %p467
      %p470 = scmp.ne.s32.totalorder %s455, %s469
      %p471 = scmp.eq.s32.totalorder %s109, 0
      %p472 = por %p470, %p471
      %s474 = sadd.s32 %s473, 1
      %p477 = scmp.eq.s32.totalorder %s103, 1
      %p478 = scmp.ne.s32.totalorder %s473, %s475
      %p479 = scmp.eq.s32.totalorder %s103, 0
      %p480 = por %p478, %p479
      %p481 = scmp.ne.s32.totalorder %s473, %s475
      %p482 = scmp.eq.s32.totalorder %s108, 1
      %p483 = por %p481, %p482
      %p484 = scmp.ne.s32.totalorder %s475, %s476
      %p485 = scmp.eq.s32.totalorder %s108, 0
      %p486 = por %p484, %p485
      %p487 = scmp.ne.s32.totalorder %s475, %s476
      %p488 = scmp.eq.s32.totalorder %s109, 1
      %p489 = por %p487, %p488
      %p491 = scmp.ne.s32.totalorder %s476, %s490
      %p492 = scmp.eq.s32.totalorder %s109, 0
      %p493 = por %p491, %p492
      %s495 = sadd.s32 %s494, 1
      %p498 = scmp.eq.s32.totalorder %s103, 1
      %p499 = scmp.ne.s32.totalorder %s494, %s496
      %p500 = scmp.eq.s32.totalorder %s103, 0
      %p501 = por %p499, %p500
      %p502 = scmp.ne.s32.totalorder %s494, %s496
      %p503 = scmp.eq.s32.totalorder %s108, 1
      %p504 = por %p502, %p503
      %p505 = scmp.ne.s32.totalorder %s496, %s497
      %p506 = scmp.eq.s32.totalorder %s108, 0
      %p507 = por %p505, %p506
      %p508 = scmp.ne.s32.totalorder %s496, %s497
      %p509 = scmp.eq.s32.totalorder %s109, 1
      %p510 = por %p508, %p509
      %p512 = scmp.ne.s32.totalorder %s497, %s511
      %p513 = scmp.eq.s32.totalorder %s109, 0
      %p514 = por %p512, %p513
      %s516 = sadd.s32 %s515, 1
      %p519 = scmp.eq.s32.totalorder %s103, 1
      %p520 = scmp.ne.s32.totalorder %s515, %s517
      %p521 = scmp.eq.s32.totalorder %s103, 0
      %p522 = por %p520, %p521
      %p523 = scmp.ne.s32.totalorder %s515, %s517
      %p524 = scmp.eq.s32.totalorder %s108, 1
      %p525 = por %p523, %p524
      %p526 = scmp.ne.s32.totalorder %s517, %s518
      %p527 = scmp.eq.s32.totalorder %s108, 0
      %p528 = por %p526, %p527
      %p529 = scmp.ne.s32.totalorder %s517, %s518
      %p530 = scmp.eq.s32.totalorder %s109, 1
      %p531 = por %p529, %p530
      %p533 = scmp.ne.s32.totalorder %s518, %s532
      %p534 = scmp.eq.s32.totalorder %s109, 0
      %p535 = por %p533, %p534
      %s537 = sadd.s32 %s536, 1
      %p540 = scmp.eq.s32.totalorder %s103, 1
      %p541 = scmp.ne.s32.totalorder %s536, %s538
      %p542 = scmp.eq.s32.totalorder %s103, 0
      %p543 = por %p541, %p542
      %p544 = scmp.ne.s32.totalorder %s536, %s538
      %p545 = scmp.eq.s32.totalorder %s108, 1
      %p546 = por %p544, %p545
      %p547 = scmp.ne.s32.totalorder %s538, %s539
      %p548 = scmp.eq.s32.totalorder %s108, 0
      %p549 = por %p547, %p548
      %p550 = scmp.ne.s32.totalorder %s538, %s539
      %p551 = scmp.eq.s32.totalorder %s109, 1
      %p552 = por %p550, %p551
      %p554 = scmp.ne.s32.totalorder %s539, %s553
      %p555 = scmp.eq.s32.totalorder %s109, 0
      %p556 = por %p554, %p555
      %s558 = sadd.s32 %s557, 1
      %p561 = scmp.eq.s32.totalorder %s103, 1
      %p562 = scmp.ne.s32.totalorder %s557, %s559
      %p563 = scmp.eq.s32.totalorder %s103, 0
      %p564 = por %p562, %p563
      %p565 = scmp.ne.s32.totalorder %s557, %s559
      %p566 = scmp.eq.s32.totalorder %s108, 1
      %p567 = por %p565, %p566
      %p568 = scmp.ne.s32.totalorder %s559, %s560
      %p569 = scmp.eq.s32.totalorder %s108, 0
      %p570 = por %p568, %p569
      %p571 = scmp.ne.s32.totalorder %s559, %s560
      %p572 = scmp.eq.s32.totalorder %s109, 1
      %p573 = por %p571, %p572
      %p575 = scmp.ne.s32.totalorder %s560, %s574
      %p576 = scmp.eq.s32.totalorder %s109, 0
      %p577 = por %p575, %p576
      %s579 = sadd.s32 %s578, 1
      %p582 = scmp.eq.s32.totalorder %s103, 1
      %p583 = scmp.ne.s32.totalorder %s578, %s580
      %p584 = scmp.eq.s32.totalorder %s103, 0
      %p585 = por %p583, %p584
      %p586 = scmp.ne.s32.totalorder %s578, %s580
      %p587 = scmp.eq.s32.totalorder %s108, 1
      %p588 = por %p586, %p587
      %p589 = scmp.ne.s32.totalorder %s580, %s581
      %p590 = scmp.eq.s32.totalorder %s108, 0
      %p591 = por %p589, %p590
      %p592 = scmp.ne.s32.totalorder %s580, %s581
      %p593 = scmp.eq.s32.totalorder %s109, 1
      %p594 = por %p592, %p593
      %p596 = scmp.ne.s32.totalorder %s581, %s595
      %p597 = scmp.eq.s32.totalorder %s109, 0
      %p598 = por %p596, %p597
      %s600 = sadd.s32 %s599, 1
      %p603 = scmp.eq.s32.totalorder %s103, 1
      %p604 = scmp.ne.s32.totalorder %s599, %s601
      %p605 = scmp.eq.s32.totalorder %s103, 0
      %p606 = por %p604, %p605
      %p607 = scmp.ne.s32.totalorder %s599, %s601
      %p608 = scmp.eq.s32.totalorder %s108, 1
      %p609 = por %p607, %p608
      %p610 = scmp.ne.s32.totalorder %s601, %s602
      %p611 = scmp.eq.s32.totalorder %s108, 0
      %p612 = por %p610, %p611
      %p613 = scmp.ne.s32.totalorder %s601, %s602
      %p614 = scmp.eq.s32.totalorder %s109, 1
      %p615 = por %p613, %p614
      %p617 = scmp.ne.s32.totalorder %s602, %s616
      %p618 = scmp.eq.s32.totalorder %s109, 0
      %p619 = por %p617, %p618
      %s621 = sadd.s32 %s620, 1
      %p624 = scmp.eq.s32.totalorder %s103, 1
      %p625 = scmp.ne.s32.totalorder %s620, %s622
      %p626 = scmp.eq.s32.totalorder %s103, 0
      %p627 = por %p625, %p626
      %p628 = scmp.ne.s32.totalorder %s620, %s622
      %p629 = scmp.eq.s32.totalorder %s108, 1
      %p630 = por %p628, %p629
      %p631 = scmp.ne.s32.totalorder %s622, %s623
      %p632 = scmp.eq.s32.totalorder %s108, 0
      %p633 = por %p631, %p632
      %p634 = scmp.ne.s32.totalorder %s622, %s623
      %p635 = scmp.eq.s32.totalorder %s109, 1
      %p636 = por %p634, %p635
      %p638 = scmp.ne.s32.totalorder %s623, %s637
      %p639 = scmp.eq.s32.totalorder %s109, 0
      %p640 = por %p638, %p639
      %s642 = sadd.s32 %s641, 1
      %p645 = scmp.eq.s32.totalorder %s103, 1
      %p646 = scmp.ne.s32.totalorder %s641, %s643
      %p647 = scmp.eq.s32.totalorder %s103, 0
      %p648 = por %p646, %p647
      %p649 = scmp.ne.s32.totalorder %s641, %s643
      %p650 = scmp.eq.s32.totalorder %s108, 1
      %p651 = por %p649, %p650
      %p652 = scmp.ne.s32.totalorder %s643, %s644
      %p653 = scmp.eq.s32.totalorder %s108, 0
      %p654 = por %p652, %p653
      %p655 = scmp.ne.s32.totalorder %s643, %s644
      %p656 = scmp.eq.s32.totalorder %s109, 1
      %p657 = por %p655, %p656
      %p659 = scmp.ne.s32.totalorder %s644, %s658
      %p660 = scmp.eq.s32.totalorder %s109, 0
      %p661 = por %p659, %p660
      %s663 = sadd.s32 %s662, 1
      %p666 = scmp.eq.s32.totalorder %s103, 1
      %p667 = scmp.ne.s32.totalorder %s662, %s664
      %p668 = scmp.eq.s32.totalorder %s103, 0
      %p669 = por %p667, %p668
      %p670 = scmp.ne.s32.totalorder %s662, %s664
      %p671 = scmp.eq.s32.totalorder %s108, 1
      %p672 = por %p670, %p671
      %p673 = scmp.ne.s32.totalorder %s664, %s665
      %p674 = scmp.eq.s32.totalorder %s108, 0
      %p675 = por %p673, %p674
      %p676 = scmp.ne.s32.totalorder %s664, %s665
      %p677 = scmp.eq.s32.totalorder %s109, 1
      %p678 = por %p676, %p677
      %p680 = scmp.ne.s32.totalorder %s665, %s679
      %p681 = scmp.eq.s32.totalorder %s109, 0
      %p682 = por %p680, %p681
      %s684 = sadd.s32 %s683, 1
      %p687 = scmp.eq.s32.totalorder %s103, 1
      %p688 = scmp.ne.s32.totalorder %s683, %s685
      %p689 = scmp.eq.s32.totalorder %s103, 0
      %p690 = por %p688, %p689
      %p691 = scmp.ne.s32.totalorder %s683, %s685
      %p692 = scmp.eq.s32.totalorder %s108, 1
      %p693 = por %p691, %p692
      %p694 = scmp.ne.s32.totalorder %s685, %s686
      %p695 = scmp.eq.s32.totalorder %s108, 0
      %p696 = por %p694, %p695
      %p697 = scmp.ne.s32.totalorder %s685, %s686
      %p698 = scmp.eq.s32.totalorder %s109, 1
      %p699 = por %p697, %p698
      %p701 = scmp.ne.s32.totalorder %s686, %s700
      %p702 = scmp.eq.s32.totalorder %s109, 0
      %p703 = por %p701, %p702
      %s705 = sadd.s32 %s704, 1
      %p708 = scmp.eq.s32.totalorder %s103, 1
      %p709 = scmp.ne.s32.totalorder %s704, %s706
      %p710 = scmp.eq.s32.totalorder %s103, 0
      %p711 = por %p709, %p710
      %p712 = scmp.ne.s32.totalorder %s704, %s706
      %p713 = scmp.eq.s32.totalorder %s108, 1
      %p714 = por %p712, %p713
      %p715 = scmp.ne.s32.totalorder %s706, %s707
      %p716 = scmp.eq.s32.totalorder %s108, 0
      %p717 = por %p715, %p716
      %p718 = scmp.ne.s32.totalorder %s706, %s707
      %p719 = scmp.eq.s32.totalorder %s109, 1
      %p720 = por %p718, %p719
      %p722 = scmp.ne.s32.totalorder %s707, %s721
      %p723 = scmp.eq.s32.totalorder %s109, 0
      %p724 = por %p722, %p723
      %s726 = sadd.s32 %s725, 1
      %p729 = scmp.eq.s32.totalorder %s103, 1
      %p730 = scmp.ne.s32.totalorder %s725, %s727
      %p731 = scmp.eq.s32.totalorder %s103, 0
      %p732 = por %p730, %p731
      %p733 = scmp.ne.s32.totalorder %s725, %s727
      %p734 = scmp.eq.s32.totalorder %s108, 1
      %p735 = por %p733, %p734
      %p736 = scmp.ne.s32.totalorder %s727, %s728
      %p737 = scmp.eq.s32.totalorder %s108, 0
      %p738 = por %p736, %p737
      %p739 = scmp.ne.s32.totalorder %s727, %s728
      %p740 = scmp.eq.s32.totalorder %s109, 1
      %p741 = por %p739, %p740
      %p743 = scmp.ne.s32.totalorder %s728, %s742
      %p744 = scmp.eq.s32.totalorder %s109, 0
      %p745 = por %p743, %p744
      %s747 = sadd.s32 %s746, 1
      %p750 = scmp.eq.s32.totalorder %s103, 1
      %p751 = scmp.ne.s32.totalorder %s746, %s748
      %p752 = scmp.eq.s32.totalorder %s103, 0
      %p753 = por %p751, %p752
      %p754 = scmp.ne.s32.totalorder %s746, %s748
      %p755 = scmp.eq.s32.totalorder %s108, 1
      %p756 = por %p754, %p755
      %p757 = scmp.ne.s32.totalorder %s748, %s749
      %p758 = scmp.eq.s32.totalorder %s108, 0
      %p759 = por %p757, %p758
      %p760 = scmp.ne.s32.totalorder %s748, %s749
      %p761 = scmp.eq.s32.totalorder %s109, 1
      %p762 = por %p760, %p761
      %p764 = scmp.ne.s32.totalorder %s749, %s763
      %p765 = scmp.eq.s32.totalorder %s109, 0
      %p766 = por %p764, %p765
      %s768 = sadd.s32 %s767, 1
      %p771 = scmp.eq.s32.totalorder %s103, 1
      %p772 = scmp.ne.s32.totalorder %s767, %s769
      %p773 = scmp.eq.s32.totalorder %s103, 0
      %p774 = por %p772, %p773
      %p775 = scmp.ne.s32.totalorder %s767, %s769
      %p776 = scmp.eq.s32.totalorder %s108, 1
      %p777 = por %p775, %p776
      %p778 = scmp.ne.s32.totalorder %s769, %s770
      %p779 = scmp.eq.s32.totalorder %s108, 0
      %p780 = por %p778, %p779
      %p781 = scmp.ne.s32.totalorder %s769, %s770
      %p782 = scmp.eq.s32.totalorder %s109, 1
      %p783 = por %p781, %p782
      %p785 = scmp.ne.s32.totalorder %s770, %s784
      %p786 = scmp.eq.s32.totalorder %s109, 0
      %p787 = por %p785, %p786
      %s789 = sadd.s32 %s788, 1
      %p792 = scmp.eq.s32.totalorder %s103, 1
      %p793 = scmp.ne.s32.totalorder %s788, %s790
      %p794 = scmp.eq.s32.totalorder %s103, 0
      %p795 = por %p793, %p794
      %p796 = scmp.ne.s32.totalorder %s788, %s790
      %p797 = scmp.eq.s32.totalorder %s108, 1
      %p798 = por %p796, %p797
      %p799 = scmp.ne.s32.totalorder %s790, %s791
      %p800 = scmp.eq.s32.totalorder %s108, 0
      %p801 = por %p799, %p800
      %p802 = scmp.ne.s32.totalorder %s790, %s791
      %p803 = scmp.eq.s32.totalorder %s109, 1
      %p804 = por %p802, %p803
      %p806 = scmp.ne.s32.totalorder %s791, %s805
      %p807 = scmp.eq.s32.totalorder %s109, 0
      %p808 = por %p806, %p807
      %s810 = sadd.s32 %s809, 1
      %p813 = scmp.eq.s32.totalorder %s103, 1
      %p814 = scmp.ne.s32.totalorder %s809, %s811
      %p815 = scmp.eq.s32.totalorder %s103, 0
      %p816 = por %p814, %p815
      %p817 = scmp.ne.s32.totalorder %s809, %s811
      %p818 = scmp.eq.s32.totalorder %s108, 1
      %p819 = por %p817, %p818
      %p820 = scmp.ne.s32.totalorder %s811, %s812
      %p821 = scmp.eq.s32.totalorder %s108, 0
      %p822 = por %p820, %p821
      %p823 = scmp.ne.s32.totalorder %s811, %s812
      %p824 = scmp.eq.s32.totalorder %s109, 1
      %p825 = por %p823, %p824
      %p827 = scmp.ne.s32.totalorder %s812, %s826
      %p828 = scmp.eq.s32.totalorder %s109, 0
      %p829 = por %p827, %p828
      %s831 = sadd.s32 %s830, 1
      %p834 = scmp.eq.s32.totalorder %s103, 1
      %p835 = scmp.ne.s32.totalorder %s830, %s832
      %p836 = scmp.eq.s32.totalorder %s103, 0
      %p837 = por %p835, %p836
      %p838 = scmp.ne.s32.totalorder %s830, %s832
      %p839 = scmp.eq.s32.totalorder %s108, 1
      %p840 = por %p838, %p839
      %p841 = scmp.ne.s32.totalorder %s832, %s833
      %p842 = scmp.eq.s32.totalorder %s108, 0
      %p843 = por %p841, %p842
      %p844 = scmp.ne.s32.totalorder %s832, %s833
      %p845 = scmp.eq.s32.totalorder %s109, 1
      %p846 = por %p844, %p845
      %p848 = scmp.ne.s32.totalorder %s833, %s847
      %p849 = scmp.eq.s32.totalorder %s109, 0
      %p850 = por %p848, %p849
      %s852 = sadd.s32 %s851, 1
      %p855 = scmp.eq.s32.totalorder %s103, 1
      %p856 = scmp.ne.s32.totalorder %s851, %s853
      %p857 = scmp.eq.s32.totalorder %s103, 0
      %p858 = por %p856, %p857
      %p859 = scmp.ne.s32.totalorder %s851, %s853
      %p860 = scmp.eq.s32.totalorder %s108, 1
      %p861 = por %p859, %p860
      %p862 = scmp.ne.s32.totalorder %s853, %s854
      %p863 = scmp.eq.s32.totalorder %s108, 0
      %p864 = por %p862, %p863
      %p865 = scmp.ne.s32.totalorder %s853, %s854
      %p866 = scmp.eq.s32.totalorder %s109, 1
      %p867 = por %p865, %p866
      %p869 = scmp.ne.s32.totalorder %s854, %s868
      %p870 = scmp.eq.s32.totalorder %s109, 0
      %p871 = por %p869, %p870
      %s873 = sadd.s32 %s872, 1
      %p876 = scmp.eq.s32.totalorder %s103, 1
      %p877 = scmp.ne.s32.totalorder %s872, %s874
      %p878 = scmp.eq.s32.totalorder %s103, 0
      %p879 = por %p877, %p878
      %p880 = scmp.ne.s32.totalorder %s872, %s874
      %p881 = scmp.eq.s32.totalorder %s108, 1
      %p882 = por %p880, %p881
      %p883 = scmp.ne.s32.totalorder %s874, %s875
      %p884 = scmp.eq.s32.totalorder %s108, 0
      %p885 = por %p883, %p884
      %p886 = scmp.ne.s32.totalorder %s874, %s875
      %p887 = scmp.eq.s32.totalorder %s109, 1
      %p888 = por %p886, %p887
      %p890 = scmp.ne.s32.totalorder %s875, %s889
      %p891 = scmp.eq.s32.totalorder %s109, 0
      %p892 = por %p890, %p891
      %s894 = sadd.s32 %s893, 1
      %p897 = scmp.eq.s32.totalorder %s103, 1
      %p898 = scmp.ne.s32.totalorder %s893, %s895
      %p899 = scmp.eq.s32.totalorder %s103, 0
      %p900 = por %p898, %p899
      %p901 = scmp.ne.s32.totalorder %s893, %s895
      %p902 = scmp.eq.s32.totalorder %s108, 1
      %p903 = por %p901, %p902
      %p904 = scmp.ne.s32.totalorder %s895, %s896
      %p905 = scmp.eq.s32.totalorder %s108, 0
      %p906 = por %p904, %p905
      %p907 = scmp.ne.s32.totalorder %s895, %s896
      %p908 = scmp.eq.s32.totalorder %s109, 1
      %p909 = por %p907, %p908
      %p911 = scmp.ne.s32.totalorder %s896, %s910
      %p912 = scmp.eq.s32.totalorder %s109, 0
      %p913 = por %p911, %p912
      %s914 = ssub.s32 %s103, %s110
      %p915 = scmp.eq.s32.totalorder %s914, 0
      %s917 = sadd.s32 %s916, 1
      %s918 = scalar_select %p915, %s916, %s917
      %p921 = pneg %p915
      %p922 = scmp.eq.s32.totalorder %s103, 1
      %p923 = por %p921, %p922
      %p924 = scmp.ne.s32.totalorder %s916, %s919
      %p925 = scmp.eq.s32.totalorder %s103, 0
      %p926 = por %p924, %p925
      %p927 = scmp.ne.s32.totalorder %s916, %s919
      %p928 = scmp.eq.s32.totalorder %s108, 1
      %p929 = por %p927, %p928
      %p930 = scmp.ne.s32.totalorder %s919, %s920
      %p931 = scmp.eq.s32.totalorder %s108, 0
      %p932 = por %p930, %p931
      %p933 = scmp.ne.s32.totalorder %s919, %s920
      %p934 = scmp.eq.s32.totalorder %s109, 1
      %p935 = por %p933, %p934
      %p937 = scmp.ne.s32.totalorder %s920, %s936
      %p938 = scmp.eq.s32.totalorder %s109, 0
      %p939 = por %p937, %p938
      %p940 = scmp.le.s32.totalorder 1, %s103
      %p941 = scmp.lt.s32.totalorder %s103, 3
      %p942 = pnand %p940, %p941
      %p943 = pneg %p942
      // Predicated region
      $region9: #{set_transformer_forward.1} parent=5 // pred_check
        _
      $region10: #{set_transformer_forward.1} parent=5 // pred_check_branch
        %945 = sbr.rel (%p942) target = $region12
      $region11: #{set_transformer_forward.1} parent=5 // pred_region
        %s946 = ssub.s32 %s103, 1
        // Predicated region
        $region13: #{set_transformer_forward.1} parent=11 // pred_check
          %p947 = pneg %p150
        $region14: #{set_transformer_forward.1} parent=11 // pred_check_branch
          %949 = sbr.rel (%p947) target = $region16
        $region15: #{set_transformer_forward.1} parent=11 // pred_region
          %s951 = ssub.s32 16, 16
          %952 = vsyncadd [#allocation6], %s951
          %s954 = sshll.u32 [#allocation5], 4
          %s955 = int_to_ptr.vmem [resolvable:$true] %s954
          %957 = dma.hbm_to_vmem [thread:$0]  %s3, 16, %s955, [#allocation6]
        $region16: #{set_transformer_forward.1} parent=11 // pred_fallthru
          _
        // Predicated region
        $region17: #{set_transformer_forward.1} parent=11 // pred_check
          %p958 = pneg %p171
        $region18: #{set_transformer_forward.1} parent=11 // pred_check_branch
          %960 = sbr.rel (%p958) target = $region20
        $region19: #{set_transformer_forward.1} parent=11 // pred_region
          %s962 = ssub.s32 256, 256
          %963 = vsyncadd [#allocation6], %s962
          %s964 = sshll.u32 [#allocation7], 4
          %s965 = int_to_ptr.vmem [resolvable:$true] %s964
          %970 = dma.hbm_to_vmem [thread:$0]  %s5, 256, %s965, [#allocation6], 64, 64, 4
        $region20: #{set_transformer_forward.1} parent=11 // pred_fallthru
          _
        // Predicated region
        $region21: #{set_transformer_forward.1} parent=11 // pred_check
          %p971 = pneg %p192
        $region22: #{set_transformer_forward.1} parent=11 // pred_check_branch
          %973 = sbr.rel (%p971) target = $region24
        $region23: #{set_transformer_forward.1} parent=11 // pred_region
          %s975 = ssub.s32 16, 16
          %976 = vsyncadd [#allocation9], %s975
          %s978 = sshll.u32 [#allocation8], 4
          %s979 = int_to_ptr.vmem [resolvable:$true] %s978
          %981 = dma.hbm_to_vmem [thread:$0]  %s7, 16, %s979, [#allocation9]
        $region24: #{set_transformer_forward.1} parent=11 // pred_fallthru
          _
        // Predicated region
        $region25: #{set_transformer_forward.1} parent=11 // pred_check
          %p982 = pneg %p213
        $region26: #{set_transformer_forward.1} parent=11 // pred_check_branch
          %984 = sbr.rel (%p982) target = $region28
        $region27: #{set_transformer_forward.1} parent=11 // pred_region
          %s986 = ssub.s32 16, 16
          %987 = vsyncadd [#allocation9], %s986
          %s989 = sshll.u32 [#allocation10], 4
          %s990 = int_to_ptr.vmem [resolvable:$true] %s989
          %992 = dma.hbm_to_vmem [thread:$0]  %s9, 16, %s990, [#allocation9]
        $region28: #{set_transformer_forward.1} parent=11 // pred_fallthru
          _
        // Predicated region
        $region29: #{set_transformer_forward.1} parent=11 // pred_check
          %p993 = pneg %p234
        $region30: #{set_transformer_forward.1} parent=11 // pred_check_branch
          %995 = sbr.rel (%p993) target = $region32
        $region31: #{set_transformer_forward.1} parent=11 // pred_region
          _
        $region32: #{set_transformer_forward.1} parent=11 // pred_fallthru
          _
        // Predicated region
        $region33: #{set_transformer_forward.1} parent=11 // pred_check
          %p996 = pneg %p255
        $region34: #{set_transformer_forward.1} parent=11 // pred_check_branch
          %998 = sbr.rel (%p996) target = $region36
        $region35: #{set_transformer_forward.1} parent=11 // pred_region
          %s1000 = ssub.s32 256, 256
          %1001 = vsyncadd [#allocation12], %s1000
          %s1002 = sshll.u32 [#allocation11], 4
          %s1003 = int_to_ptr.vmem [resolvable:$true] %s1002
          %1008 = dma.hbm_to_vmem [thread:$0]  %s13, 256, %s1003, [#allocation12], 64, 64, 4
        $region36: #{set_transformer_forward.1} parent=11 // pred_fallthru
          _
        // Predicated region
        $region37: #{set_transformer_forward.1} parent=11 // pred_check
          %p1009 = pneg %p276
        $region38: #{set_transformer_forward.1} parent=11 // pred_check_branch
          %1011 = sbr.rel (%p1009) target = $region40
        $region39: #{set_transformer_forward.1} parent=11 // pred_region
          %s1013 = ssub.s32 64, 64
          %1014 = vsyncadd [#allocation12], %s1013
          %s1016 = sshll.u32 [#allocation13], 4
          %s1017 = int_to_ptr.vmem [resolvable:$true] %s1016
          %1019 = dma.hbm_to_vmem [thread:$0]  %s15, 64, %s1017, [#allocation12]
        $region40: #{set_transformer_forward.1} parent=11 // pred_fallthru
          _
        // Predicated region
        $region41: #{set_transformer_forward.1} parent=11 // pred_check
          %p1020 = pneg %p297
        $region42: #{set_transformer_forward.1} parent=11 // pred_check_branch
          %1022 = sbr.rel (%p1020) target = $region44
        $region43: #{set_transformer_forward.1} parent=11 // pred_region
          %s1024 = ssub.s32 16, 16
          %1025 = vsyncadd [#allocation15], %s1024
          %s1027 = sshll.u32 [#allocation14], 4
          %s1028 = int_to_ptr.vmem [resolvable:$true] %s1027
          %1030 = dma.hbm_to_vmem [thread:$0]  %s17, 16, %s1028, [#allocation15]
        $region44: #{set_transformer_forward.1} parent=11 // pred_fallthru
          _
        // Predicated region
        $region45: #{set_transformer_forward.1} parent=11 // pred_check
          %p1031 = pneg %p318
        $region46: #{set_transformer_forward.1} parent=11 // pred_check_branch
          %1033 = sbr.rel (%p1031) target = $region48
        $region47: #{set_transformer_forward.1} parent=11 // pred_region
          %s1035 = ssub.s32 16, 16
          %1036 = vsyncadd [#allocation15], %s1035
          %s1038 = sshll.u32 [#allocation16], 4
          %s1039 = int_to_ptr.vmem [resolvable:$true] %s1038
          %1041 = dma.hbm_to_vmem [thread:$0]  %s19, 16, %s1039, [#allocation15]
        $region48: #{set_transformer_forward.1} parent=11 // pred_fallthru
          _
        // Predicated region
        $region49: #{set_transformer_forward.1} parent=11 // pred_check
          %p1042 = pneg %p339
        $region50: #{set_transformer_forward.1} parent=11 // pred_check_branch
          %1044 = sbr.rel (%p1042) target = $region52
        $region51: #{set_transformer_forward.1} parent=11 // pred_region
          _
        $region52: #{set_transformer_forward.1} parent=11 // pred_fallthru
          _
        // Predicated region
        $region53: #{set_transformer_forward.1} parent=11 // pred_check
          %p1045 = pneg %p360
        $region54: #{set_transformer_forward.1} parent=11 // pred_check_branch
          %1047 = sbr.rel (%p1045) target = $region56
        $region55: #{set_transformer_forward.1} parent=11 // pred_region
          %s1049 = ssub.s32 256, 256
          %1050 = vsyncadd [#allocation18], %s1049
          %s1051 = sshll.u32 [#allocation17], 4
          %s1052 = int_to_ptr.vmem [resolvable:$true] %s1051
          %1057 = dma.hbm_to_vmem [thread:$0]  %s23, 256, %s1052, [#allocation18], 64, 64, 4
        $region56: #{set_transformer_forward.1} parent=11 // pred_fallthru
          _
        // Predicated region
        $region57: #{set_transformer_forward.1} parent=11 // pred_check
          %p1058 = pneg %p381
        $region58: #{set_transformer_forward.1} parent=11 // pred_check_branch
          %1060 = sbr.rel (%p1058) target = $region60
        $region59: #{set_transformer_forward.1} parent=11 // pred_region
          %s1062 = ssub.s32 16, 16
          %1063 = vsyncadd [#allocation18], %s1062
          %s1065 = sshll.u32 [#allocation19], 4
          %s1066 = int_to_ptr.vmem [resolvable:$true] %s1065
          %1068 = dma.hbm_to_vmem [thread:$0]  %s25, 16, %s1066, [#allocation18]
        $region60: #{set_transformer_forward.1} parent=11 // pred_fallthru
          _
        // Predicated region
        $region61: #{set_transformer_forward.1} parent=11 // pred_check
          %p1069 = pneg %p402
        $region62: #{set_transformer_forward.1} parent=11 // pred_check_branch
          %1071 = sbr.rel (%p1069) target = $region64
        $region63: #{set_transformer_forward.1} parent=11 // pred_region
          %s1073 = ssub.s32 16, 16
          %1074 = vsyncadd [#allocation21], %s1073
          %s1076 = sshll.u32 [#allocation20], 4
          %s1077 = int_to_ptr.vmem [resolvable:$true] %s1076
          %1079 = dma.hbm_to_vmem [thread:$0]  %s27, 16, %s1077, [#allocation21]
        $region64: #{set_transformer_forward.1} parent=11 // pred_fallthru
          _
        // Predicated region
        $region65: #{set_transformer_forward.1} parent=11 // pred_check
          %p1080 = pneg %p423
        $region66: #{set_transformer_forward.1} parent=11 // pred_check_branch
          %1082 = sbr.rel (%p1080) target = $region68
        $region67: #{set_transformer_forward.1} parent=11 // pred_region
          _
        $region68: #{set_transformer_forward.1} parent=11 // pred_fallthru
          _
        // Predicated region
        $region69: #{set_transformer_forward.1} parent=11 // pred_check
          %p1083 = pneg %p444
        $region70: #{set_transformer_forward.1} parent=11 // pred_check_branch
          %1085 = sbr.rel (%p1083) target = $region72
        $region71: #{set_transformer_forward.1} parent=11 // pred_region
          %s1087 = ssub.s32 256, 256
          %1088 = vsyncadd [#allocation21], %s1087
          %s1089 = sshll.u32 [#allocation22], 4
          %s1090 = int_to_ptr.vmem [resolvable:$true] %s1089
          %1095 = dma.hbm_to_vmem [thread:$0]  %s31, 256, %s1090, [#allocation21], 64, 64, 4
        $region72: #{set_transformer_forward.1} parent=11 // pred_fallthru
          _
        // Predicated region
        $region73: #{set_transformer_forward.1} parent=11 // pred_check
          %p1096 = pneg %p465
        $region74: #{set_transformer_forward.1} parent=11 // pred_check_branch
          %1098 = sbr.rel (%p1096) target = $region76
        $region75: #{set_transformer_forward.1} parent=11 // pred_region
          %s1100 = ssub.s32 16, 16
          %1101 = vsyncadd [#allocation24], %s1100
          %s1103 = sshll.u32 [#allocation23], 4
          %s1104 = int_to_ptr.vmem [resolvable:$true] %s1103
          %1106 = dma.hbm_to_vmem [thread:$0]  %s33, 16, %s1104, [#allocation24]
        $region76: #{set_transformer_forward.1} parent=11 // pred_fallthru
          _
        // Predicated region
        $region77: #{set_transformer_forward.1} parent=11 // pred_check
          %p1107 = pneg %p486
        $region78: #{set_transformer_forward.1} parent=11 // pred_check_branch
          %1109 = sbr.rel (%p1107) target = $region80
        $region79: #{set_transformer_forward.1} parent=11 // pred_region
          %s1111 = ssub.s32 16, 16
          %1112 = vsyncadd [#allocation24], %s1111
          %s1114 = sshll.u32 [#allocation25], 4
          %s1115 = int_to_ptr.vmem [resolvable:$true] %s1114
          %1117 = dma.hbm_to_vmem [thread:$0]  %s35, 16, %s1115, [#allocation24]
        $region80: #{set_transformer_forward.1} parent=11 // pred_fallthru
          _
        // Predicated region
        $region81: #{set_transformer_forward.1} parent=11 // pred_check
          %p1118 = pneg %p507
        $region82: #{set_transformer_forward.1} parent=11 // pred_check_branch
          %1120 = sbr.rel (%p1118) target = $region84
        $region83: #{set_transformer_forward.1} parent=11 // pred_region
          %s1122 = ssub.s32 128, 128
          %1123 = vsyncadd [#allocation27], %s1122
          %s1124 = sshll.u32 [#allocation26], 4
          %s1125 = int_to_ptr.vmem [resolvable:$true] %s1124
          %1130 = dma.hbm_to_vmem [thread:$0]  %s37, 128, %s1125, [#allocation27], 64, 64, 4
        $region84: #{set_transformer_forward.1} parent=11 // pred_fallthru
          _
        // Predicated region
        $region85: #{set_transformer_forward.1} parent=11 // pred_check
          %p1131 = pneg %p528
        $region86: #{set_transformer_forward.1} parent=11 // pred_check_branch
          %1133 = sbr.rel (%p1131) target = $region88
        $region87: #{set_transformer_forward.1} parent=11 // pred_region
          _
        $region88: #{set_transformer_forward.1} parent=11 // pred_fallthru
          _
        // Predicated region
        $region89: #{set_transformer_forward.1} parent=11 // pred_check
          %p1134 = pneg %p549
        $region90: #{set_transformer_forward.1} parent=11 // pred_check_branch
          %1136 = sbr.rel (%p1134) target = $region92
        $region91: #{set_transformer_forward.1} parent=11 // pred_region
          %s1138 = ssub.s32 16, 16
          %1139 = vsyncadd [#allocation27], %s1138
          %s1141 = sshll.u32 [#allocation28], 4
          %s1142 = int_to_ptr.vmem [resolvable:$true] %s1141
          %1144 = dma.hbm_to_vmem [thread:$0]  %s41, 16, %s1142, [#allocation27]
        $region92: #{set_transformer_forward.1} parent=11 // pred_fallthru
          _
        // Predicated region
        $region93: #{set_transformer_forward.1} parent=11 // pred_check
          %p1145 = pneg %p570
        $region94: #{set_transformer_forward.1} parent=11 // pred_check_branch
          %1147 = sbr.rel (%p1145) target = $region96
        $region95: #{set_transformer_forward.1} parent=11 // pred_region
          %s1149 = ssub.s32 16, 16
          %1150 = vsyncadd [#allocation30], %s1149
          %s1152 = sshll.u32 [#allocation29], 4
          %s1153 = int_to_ptr.vmem [resolvable:$true] %s1152
          %1155 = dma.hbm_to_vmem [thread:$0]  %s43, 16, %s1153, [#allocation30]
        $region96: #{set_transformer_forward.1} parent=11 // pred_fallthru
          _
        // Predicated region
        $region97: #{set_transformer_forward.1} parent=11 // pred_check
          %p1156 = pneg %p591
        $region98: #{set_transformer_forward.1} parent=11 // pred_check_branch
          %1158 = sbr.rel (%p1156) target = $region100
        $region99: #{set_transformer_forward.1} parent=11 // pred_region
          %s1160 = ssub.s32 16, 16
          %1161 = vsyncadd [#allocation30], %s1160
          %s1163 = sshll.u32 [#allocation31], 4
          %s1164 = int_to_ptr.vmem [resolvable:$true] %s1163
          %1166 = dma.hbm_to_vmem [thread:$0]  %s45, 16, %s1164, [#allocation30]
        $region100: #{set_transformer_forward.1} parent=11 // pred_fallthru
          _
        // Predicated region
        $region101: #{set_transformer_forward.1} parent=11 // pred_check
          %p1167 = pneg %p612
        $region102: #{set_transformer_forward.1} parent=11 // pred_check_branch
          %1169 = sbr.rel (%p1167) target = $region104
        $region103: #{set_transformer_forward.1} parent=11 // pred_region
          _
        $region104: #{set_transformer_forward.1} parent=11 // pred_fallthru
          _
        // Predicated region
        $region105: #{set_transformer_forward.1} parent=11 // pred_check
          %p1170 = pneg %p633
        $region106: #{set_transformer_forward.1} parent=11 // pred_check_branch
          %1172 = sbr.rel (%p1170) target = $region108
        $region107: #{set_transformer_forward.1} parent=11 // pred_region
          %s1174 = ssub.s32 256, 256
          %1175 = vsyncadd [#allocation33], %s1174
          %s1176 = sshll.u32 [#allocation32], 4
          %s1177 = int_to_ptr.vmem [resolvable:$true] %s1176
          %1182 = dma.hbm_to_vmem [thread:$0]  %s49, 256, %s1177, [#allocation33], 64, 64, 4
        $region108: #{set_transformer_forward.1} parent=11 // pred_fallthru
          _
        // Predicated region
        $region109: #{set_transformer_forward.1} parent=11 // pred_check
          %p1183 = pneg %p654
        $region110: #{set_transformer_forward.1} parent=11 // pred_check_branch
          %1185 = sbr.rel (%p1183) target = $region112
        $region111: #{set_transformer_forward.1} parent=11 // pred_region
          %s1187 = ssub.s32 128, 128
          %1188 = vsyncadd [#allocation33], %s1187
          %s1189 = sshll.u32 [#allocation34], 4
          %s1190 = int_to_ptr.vmem [resolvable:$true] %s1189
          %1195 = dma.hbm_to_vmem [thread:$0]  %s51, 128, %s1190, [#allocation33], 64, 64, 4
        $region112: #{set_transformer_forward.1} parent=11 // pred_fallthru
          _
        // Predicated region
        $region113: #{set_transformer_forward.1} parent=11 // pred_check
          %p1196 = pneg %p675
        $region114: #{set_transformer_forward.1} parent=11 // pred_check_branch
          %1198 = sbr.rel (%p1196) target = $region116
        $region115: #{set_transformer_forward.1} parent=11 // pred_region
          %s1200 = ssub.s32 128, 128
          %1201 = vsyncadd [#allocation36], %s1200
          %s1203 = sshll.u32 [#allocation35], 4
          %s1204 = int_to_ptr.vmem [resolvable:$true] %s1203
          %1206 = dma.hbm_to_vmem [thread:$0]  %s53, 128, %s1204, [#allocation36]
        $region116: #{set_transformer_forward.1} parent=11 // pred_fallthru
          _
        // Predicated region
        $region117: #{set_transformer_forward.1} parent=11 // pred_check
          %p1207 = pneg %p696
        $region118: #{set_transformer_forward.1} parent=11 // pred_check_branch
          %1209 = sbr.rel (%p1207) target = $region120
        $region119: #{set_transformer_forward.1} parent=11 // pred_region
          %s1211 = ssub.s32 16, 16
          %1212 = vsyncadd [#allocation36], %s1211
          %s1214 = sshll.u32 [#allocation37], 4
          %s1215 = int_to_ptr.vmem [resolvable:$true] %s1214
          %1217 = dma.hbm_to_vmem [thread:$0]  %s55, 16, %s1215, [#allocation36]
        $region120: #{set_transformer_forward.1} parent=11 // pred_fallthru
          _
        // Predicated region
        $region121: #{set_transformer_forward.1} parent=11 // pred_check
          %p1218 = pneg %p717
        $region122: #{set_transformer_forward.1} parent=11 // pred_check_branch
          %1220 = sbr.rel (%p1218) target = $region124
        $region123: #{set_transformer_forward.1} parent=11 // pred_region
          %s1222 = ssub.s32 16, 16
          %1223 = vsyncadd [#allocation39], %s1222
          %s1225 = sshll.u32 [#allocation38], 4
          %s1226 = int_to_ptr.vmem [resolvable:$true] %s1225
          %1228 = dma.hbm_to_vmem [thread:$0]  %s57, 16, %s1226, [#allocation39]
        $region124: #{set_transformer_forward.1} parent=11 // pred_fallthru
          _
        // Predicated region
        $region125: #{set_transformer_forward.1} parent=11 // pred_check
          %p1229 = pneg %p738
        $region126: #{set_transformer_forward.1} parent=11 // pred_check_branch
          %1231 = sbr.rel (%p1229) target = $region128
        $region127: #{set_transformer_forward.1} parent=11 // pred_region
          _
        $region128: #{set_transformer_forward.1} parent=11 // pred_fallthru
          _
        // Predicated region
        $region129: #{set_transformer_forward.1} parent=11 // pred_check
          %p1232 = pneg %p759
        $region130: #{set_transformer_forward.1} parent=11 // pred_check_branch
          %1234 = sbr.rel (%p1232) target = $region132
        $region131: #{set_transformer_forward.1} parent=11 // pred_region
          _
        $region132: #{set_transformer_forward.1} parent=11 // pred_fallthru
          _
        // Predicated region
        $region133: #{set_transformer_forward.1} parent=11 // pred_check
          %p1235 = pneg %p780
        $region134: #{set_transformer_forward.1} parent=11 // pred_check_branch
          %1237 = sbr.rel (%p1235) target = $region136
        $region135: #{set_transformer_forward.1} parent=11 // pred_region
          %s1239 = ssub.s32 16, 16
          %1240 = vsyncadd [#allocation39], %s1239
          %s1242 = sshll.u32 [#allocation40], 4
          %s1243 = int_to_ptr.vmem [resolvable:$true] %s1242
          %1245 = dma.hbm_to_vmem [thread:$0]  %s63, 16, %s1243, [#allocation39]
        $region136: #{set_transformer_forward.1} parent=11 // pred_fallthru
          _
        // Predicated region
        $region137: #{set_transformer_forward.1} parent=11 // pred_check
          %p1246 = pneg %p801
        $region138: #{set_transformer_forward.1} parent=11 // pred_check_branch
          %1248 = sbr.rel (%p1246) target = $region140
        $region139: #{set_transformer_forward.1} parent=11 // pred_region
          %s1250 = ssub.s32 16, 16
          %1251 = vsyncadd [#allocation42], %s1250
          %s1253 = sshll.u32 [#allocation41], 4
          %s1254 = int_to_ptr.vmem [resolvable:$true] %s1253
          %1256 = dma.hbm_to_vmem [thread:$0]  %s65, 16, %s1254, [#allocation42]
        $region140: #{set_transformer_forward.1} parent=11 // pred_fallthru
          _
        // Predicated region
        $region141: #{set_transformer_forward.1} parent=11 // pred_check
          %p1257 = pneg %p822
        $region142: #{set_transformer_forward.1} parent=11 // pred_check_branch
          %1259 = sbr.rel (%p1257) target = $region144
        $region143: #{set_transformer_forward.1} parent=11 // pred_region
          %s1261 = ssub.s32 16, 16
          %1262 = vsyncadd [#allocation42], %s1261
          %s1264 = sshll.u32 [#allocation43], 4
          %s1265 = int_to_ptr.vmem [resolvable:$true] %s1264
          %1267 = dma.hbm_to_vmem [thread:$0]  %s67, 16, %s1265, [#allocation42]
        $region144: #{set_transformer_forward.1} parent=11 // pred_fallthru
          _
        // Predicated region
        $region145: #{set_transformer_forward.1} parent=11 // pred_check
          %p1268 = pneg %p843
        $region146: #{set_transformer_forward.1} parent=11 // pred_check_branch
          %1270 = sbr.rel (%p1268) target = $region148
        $region147: #{set_transformer_forward.1} parent=11 // pred_region
          _
        $region148: #{set_transformer_forward.1} parent=11 // pred_fallthru
          _
        // Predicated region
        $region149: #{set_transformer_forward.1} parent=11 // pred_check
          %p1271 = pneg %p864
        $region150: #{set_transformer_forward.1} parent=11 // pred_check_branch
          %1273 = sbr.rel (%p1271) target = $region152
        $region151: #{set_transformer_forward.1} parent=11 // pred_region
          %s1275 = ssub.s32 256, 256
          %1276 = vsyncadd [#allocation45], %s1275
          %s1277 = sshll.u32 [#allocation44], 4
          %s1278 = int_to_ptr.vmem [resolvable:$true] %s1277
          %1283 = dma.hbm_to_vmem [thread:$0]  %s71, 256, %s1278, [#allocation45], 64, 64, 4
        $region152: #{set_transformer_forward.1} parent=11 // pred_fallthru
          _
        // Predicated region
        $region153: #{set_transformer_forward.1} parent=11 // pred_check
          %p1284 = pneg %p885
        $region154: #{set_transformer_forward.1} parent=11 // pred_check_branch
          %1286 = sbr.rel (%p1284) target = $region156
        $region155: #{set_transformer_forward.1} parent=11 // pred_region
          %s1288 = ssub.s32 256, 256
          %1289 = vsyncadd [#allocation45], %s1288
          %s1290 = sshll.u32 [#allocation46], 4
          %s1291 = int_to_ptr.vmem [resolvable:$true] %s1290
          %1296 = dma.hbm_to_vmem [thread:$0]  %s73, 256, %s1291, [#allocation45], 64, 64, 4
        $region156: #{set_transformer_forward.1} parent=11 // pred_fallthru
          _
        // Predicated region
        $region157: #{set_transformer_forward.1} parent=11 // pred_check
          %p1297 = pneg %p906
        $region158: #{set_transformer_forward.1} parent=11 // pred_check_branch
          %1299 = sbr.rel (%p1297) target = $region160
        $region159: #{set_transformer_forward.1} parent=11 // pred_region
          _
        $region160: #{set_transformer_forward.1} parent=11 // pred_fallthru
          _
      $region12: #{set_transformer_forward.1} parent=5 // pred_fallthru
        _
      %p1300 = scmp.lt.s32.totalorder %s103, 2
      // Predicated region
      $region161: #{set_transformer_forward.1} parent=5 // pred_check
        %p1301 = pneg %p1300
      $region162: #{set_transformer_forward.1} parent=5 // pred_check_branch
        %1303 = sbr.rel (%p1301) target = $region164
      $region163: #{set_transformer_forward.1} parent=5 // pred_region
        // Predicated region
        $region165: #{set_transformer_forward.1} parent=163 // pred_check
          %p1304 = pneg %p123
        $region166: #{set_transformer_forward.1} parent=163 // pred_check_branch
          %1306 = sbr.rel (%p1304) target = $region168
        $region167: #{set_transformer_forward.1} parent=163 // pred_region
          %s1307 = sand.u32 %s113, 1
          %s1308 = scalar_lea.sflag [#allocation3], %s1307
          %s1309 = sand.u32 %s113, 1
          %s1310 = smul.addr %s1309, 8
          %s1311 = scalar_lea.vmem [#allocation2], %s1310
          %s1313 = ssub.s32 128, 128
          %1314 = vsyncadd %s1308, %s1313
          %s1315 = smul.addr %s103, 128
          %s1316 = scalar_lea.hbm %s1, %s1315
          %s1318 = sshll.u32 %s1311, 4
          %s1319 = int_to_ptr.vmem [resolvable:$true] %s1318
          %1321 = dma.hbm_to_vmem [thread:$0]  %s1316, 128, %s1319, %s1308
        $region168: #{set_transformer_forward.1} parent=163 // pred_fallthru
          _
      $region164: #{set_transformer_forward.1} parent=5 // pred_fallthru
        _
      %p1322 = scmp.le.s32.totalorder 1, %s103
      %p1323 = scmp.lt.s32.totalorder %s103, 3
      %p1324 = pnand %p1322, %p1323
      %p1325 = pneg %p1324
      // Predicated region
      $region169: #{set_transformer_forward.1} parent=5 // pred_check
        _
      $region170: #{set_transformer_forward.1} parent=5 // pred_check_branch
        %1327 = sbr.rel (%p1324) target = $region172
      $region171: #{set_transformer_forward.1} parent=5 // pred_region
        %s1328 = ssub.s32 %s103, 1
        %s1329 = sand.u32 %s116, 1
        %s1330 = scalar_lea.sflag [#allocation3], %s1329
        %s1331 = sand.u32 %s116, 1
        %s1332 = smul.addr %s1331, 8
        %s1333 = scalar_lea.vmem [#allocation2], %s1332
        // Predicated region
        $region173: #{set_transformer_forward.1} parent=171 // pred_check
          %p1334 = pneg %p129
        $region174: #{set_transformer_forward.1} parent=171 // pred_check_branch
          %1336 = sbr.rel (%p1334) target = $region176
        $region175: #{set_transformer_forward.1} parent=171 // pred_region
          %1337 = dma.done %s1330, 128
        $region176: #{set_transformer_forward.1} parent=171 // pred_fallthru
          _
        // Predicated region
        $region177: #{set_transformer_forward.1} parent=171 // pred_check
          %p1338 = pneg %p150
        $region178: #{set_transformer_forward.1} parent=171 // pred_check_branch
          %1340 = sbr.rel (%p1338) target = $region180
        $region179: #{set_transformer_forward.1} parent=171 // pred_region
          %1341 = dma.done [#allocation6], 16
        $region180: #{set_transformer_forward.1} parent=171 // pred_fallthru
          _
        // Predicated region
        $region181: #{set_transformer_forward.1} parent=171 // pred_check
          %p1342 = pneg %p171
        $region182: #{set_transformer_forward.1} parent=171 // pred_check_branch
          %1344 = sbr.rel (%p1342) target = $region184
        $region183: #{set_transformer_forward.1} parent=171 // pred_region
          %1345 = dma.done [#allocation6], 256
        $region184: #{set_transformer_forward.1} parent=171 // pred_fallthru
          _
        // Predicated region
        $region185: #{set_transformer_forward.1} parent=171 // pred_check
          %p1346 = pneg %p192
        $region186: #{set_transformer_forward.1} parent=171 // pred_check_branch
          %1348 = sbr.rel (%p1346) target = $region188
        $region187: #{set_transformer_forward.1} parent=171 // pred_region
          %1349 = dma.done [#allocation9], 16
        $region188: #{set_transformer_forward.1} parent=171 // pred_fallthru
          _
        // Predicated region
        $region189: #{set_transformer_forward.1} parent=171 // pred_check
          %p1350 = pneg %p213
        $region190: #{set_transformer_forward.1} parent=171 // pred_check_branch
          %1352 = sbr.rel (%p1350) target = $region192
        $region191: #{set_transformer_forward.1} parent=171 // pred_region
          %1353 = dma.done [#allocation9], 16
        $region192: #{set_transformer_forward.1} parent=171 // pred_fallthru
          _
        // Predicated region
        $region193: #{set_transformer_forward.1} parent=171 // pred_check
          %p1354 = pneg %p255
        $region194: #{set_transformer_forward.1} parent=171 // pred_check_branch
          %1356 = sbr.rel (%p1354) target = $region196
        $region195: #{set_transformer_forward.1} parent=171 // pred_region
          %1357 = dma.done [#allocation12], 256
        $region196: #{set_transformer_forward.1} parent=171 // pred_fallthru
          _
        // Predicated region
        $region197: #{set_transformer_forward.1} parent=171 // pred_check
          %p1358 = pneg %p276
        $region198: #{set_transformer_forward.1} parent=171 // pred_check_branch
          %1360 = sbr.rel (%p1358) target = $region200
        $region199: #{set_transformer_forward.1} parent=171 // pred_region
          %1361 = dma.done [#allocation12], 64
        $region200: #{set_transformer_forward.1} parent=171 // pred_fallthru
          _
        // Predicated region
        $region201: #{set_transformer_forward.1} parent=171 // pred_check
          %p1362 = pneg %p297
        $region202: #{set_transformer_forward.1} parent=171 // pred_check_branch
          %1364 = sbr.rel (%p1362) target = $region204
        $region203: #{set_transformer_forward.1} parent=171 // pred_region
          %1365 = dma.done [#allocation15], 16
        $region204: #{set_transformer_forward.1} parent=171 // pred_fallthru
          _
        // Predicated region
        $region205: #{set_transformer_forward.1} parent=171 // pred_check
          %p1366 = pneg %p318
        $region206: #{set_transformer_forward.1} parent=171 // pred_check_branch
          %1368 = sbr.rel (%p1366) target = $region208
        $region207: #{set_transformer_forward.1} parent=171 // pred_region
          %1369 = dma.done [#allocation15], 16
        $region208: #{set_transformer_forward.1} parent=171 // pred_fallthru
          _
        // Predicated region
        $region209: #{set_transformer_forward.1} parent=171 // pred_check
          %p1370 = pneg %p360
        $region210: #{set_transformer_forward.1} parent=171 // pred_check_branch
          %1372 = sbr.rel (%p1370) target = $region212
        $region211: #{set_transformer_forward.1} parent=171 // pred_region
          %1373 = dma.done [#allocation18], 256
        $region212: #{set_transformer_forward.1} parent=171 // pred_fallthru
          _
        // Predicated region
        $region213: #{set_transformer_forward.1} parent=171 // pred_check
          %p1374 = pneg %p381
        $region214: #{set_transformer_forward.1} parent=171 // pred_check_branch
          %1376 = sbr.rel (%p1374) target = $region216
        $region215: #{set_transformer_forward.1} parent=171 // pred_region
          %1377 = dma.done [#allocation18], 16
        $region216: #{set_transformer_forward.1} parent=171 // pred_fallthru
          _
        // Predicated region
        $region217: #{set_transformer_forward.1} parent=171 // pred_check
          %p1378 = pneg %p402
        $region218: #{set_transformer_forward.1} parent=171 // pred_check_branch
          %1380 = sbr.rel (%p1378) target = $region220
        $region219: #{set_transformer_forward.1} parent=171 // pred_region
          %1381 = dma.done [#allocation21], 16
        $region220: #{set_transformer_forward.1} parent=171 // pred_fallthru
          _
        // Predicated region
        $region221: #{set_transformer_forward.1} parent=171 // pred_check
          %p1382 = pneg %p444
        $region222: #{set_transformer_forward.1} parent=171 // pred_check_branch
          %1384 = sbr.rel (%p1382) target = $region224
        $region223: #{set_transformer_forward.1} parent=171 // pred_region
          %1385 = dma.done [#allocation21], 256
        $region224: #{set_transformer_forward.1} parent=171 // pred_fallthru
          _
        // Predicated region
        $region225: #{set_transformer_forward.1} parent=171 // pred_check
          %p1386 = pneg %p465
        $region226: #{set_transformer_forward.1} parent=171 // pred_check_branch
          %1388 = sbr.rel (%p1386) target = $region228
        $region227: #{set_transformer_forward.1} parent=171 // pred_region
          %1389 = dma.done [#allocation24], 16
        $region228: #{set_transformer_forward.1} parent=171 // pred_fallthru
          _
        // Predicated region
        $region229: #{set_transformer_forward.1} parent=171 // pred_check
          %p1390 = pneg %p486
        $region230: #{set_transformer_forward.1} parent=171 // pred_check_branch
          %1392 = sbr.rel (%p1390) target = $region232
        $region231: #{set_transformer_forward.1} parent=171 // pred_region
          %1393 = dma.done [#allocation24], 16
        $region232: #{set_transformer_forward.1} parent=171 // pred_fallthru
          _
        // Predicated region
        $region233: #{set_transformer_forward.1} parent=171 // pred_check
          %p1394 = pneg %p507
        $region234: #{set_transformer_forward.1} parent=171 // pred_check_branch
          %1396 = sbr.rel (%p1394) target = $region236
        $region235: #{set_transformer_forward.1} parent=171 // pred_region
          %1397 = dma.done [#allocation27], 128
        $region236: #{set_transformer_forward.1} parent=171 // pred_fallthru
          _
        // Predicated region
        $region237: #{set_transformer_forward.1} parent=171 // pred_check
          %p1398 = pneg %p549
        $region238: #{set_transformer_forward.1} parent=171 // pred_check_branch
          %1400 = sbr.rel (%p1398) target = $region240
        $region239: #{set_transformer_forward.1} parent=171 // pred_region
          %1401 = dma.done [#allocation27], 16
        $region240: #{set_transformer_forward.1} parent=171 // pred_fallthru
          _
        // Predicated region
        $region241: #{set_transformer_forward.1} parent=171 // pred_check
          %p1402 = pneg %p570
        $region242: #{set_transformer_forward.1} parent=171 // pred_check_branch
          %1404 = sbr.rel (%p1402) target = $region244
        $region243: #{set_transformer_forward.1} parent=171 // pred_region
          %1405 = dma.done [#allocation30], 16
        $region244: #{set_transformer_forward.1} parent=171 // pred_fallthru
          _
        // Predicated region
        $region245: #{set_transformer_forward.1} parent=171 // pred_check
          %p1406 = pneg %p591
        $region246: #{set_transformer_forward.1} parent=171 // pred_check_branch
          %1408 = sbr.rel (%p1406) target = $region248
        $region247: #{set_transformer_forward.1} parent=171 // pred_region
          %1409 = dma.done [#allocation30], 16
        $region248: #{set_transformer_forward.1} parent=171 // pred_fallthru
          _
        // Predicated region
        $region249: #{set_transformer_forward.1} parent=171 // pred_check
          %p1410 = pneg %p633
        $region250: #{set_transformer_forward.1} parent=171 // pred_check_branch
          %1412 = sbr.rel (%p1410) target = $region252
        $region251: #{set_transformer_forward.1} parent=171 // pred_region
          %1413 = dma.done [#allocation33], 256
        $region252: #{set_transformer_forward.1} parent=171 // pred_fallthru
          _
        // Predicated region
        $region253: #{set_transformer_forward.1} parent=171 // pred_check
          %p1414 = pneg %p654
        $region254: #{set_transformer_forward.1} parent=171 // pred_check_branch
          %1416 = sbr.rel (%p1414) target = $region256
        $region255: #{set_transformer_forward.1} parent=171 // pred_region
          %1417 = dma.done [#allocation33], 128
        $region256: #{set_transformer_forward.1} parent=171 // pred_fallthru
          _
        // Predicated region
        $region257: #{set_transformer_forward.1} parent=171 // pred_check
          %p1418 = pneg %p675
        $region258: #{set_transformer_forward.1} parent=171 // pred_check_branch
          %1420 = sbr.rel (%p1418) target = $region260
        $region259: #{set_transformer_forward.1} parent=171 // pred_region
          %1421 = dma.done [#allocation36], 128
        $region260: #{set_transformer_forward.1} parent=171 // pred_fallthru
          _
        // Predicated region
        $region261: #{set_transformer_forward.1} parent=171 // pred_check
          %p1422 = pneg %p696
        $region262: #{set_transformer_forward.1} parent=171 // pred_check_branch
          %1424 = sbr.rel (%p1422) target = $region264
        $region263: #{set_transformer_forward.1} parent=171 // pred_region
          %1425 = dma.done [#allocation36], 16
        $region264: #{set_transformer_forward.1} parent=171 // pred_fallthru
          _
        // Predicated region
        $region265: #{set_transformer_forward.1} parent=171 // pred_check
          %p1426 = pneg %p717
        $region266: #{set_transformer_forward.1} parent=171 // pred_check_branch
          %1428 = sbr.rel (%p1426) target = $region268
        $region267: #{set_transformer_forward.1} parent=171 // pred_region
          %1429 = dma.done [#allocation39], 16
        $region268: #{set_transformer_forward.1} parent=171 // pred_fallthru
          _
        // Predicated region
        $region269: #{set_transformer_forward.1} parent=171 // pred_check
          %p1430 = pneg %p780
        $region270: #{set_transformer_forward.1} parent=171 // pred_check_branch
          %1432 = sbr.rel (%p1430) target = $region272
        $region271: #{set_transformer_forward.1} parent=171 // pred_region
          %1433 = dma.done [#allocation39], 16
        $region272: #{set_transformer_forward.1} parent=171 // pred_fallthru
          _
        // Predicated region
        $region273: #{set_transformer_forward.1} parent=171 // pred_check
          %p1434 = pneg %p801
        $region274: #{set_transformer_forward.1} parent=171 // pred_check_branch
          %1436 = sbr.rel (%p1434) target = $region276
        $region275: #{set_transformer_forward.1} parent=171 // pred_region
          %1437 = dma.done [#allocation42], 16
        $region276: #{set_transformer_forward.1} parent=171 // pred_fallthru
          _
        // Predicated region
        $region277: #{set_transformer_forward.1} parent=171 // pred_check
          %p1438 = pneg %p822
        $region278: #{set_transformer_forward.1} parent=171 // pred_check_branch
          %1440 = sbr.rel (%p1438) target = $region280
        $region279: #{set_transformer_forward.1} parent=171 // pred_region
          %1441 = dma.done [#allocation42], 16
        $region280: #{set_transformer_forward.1} parent=171 // pred_fallthru
          _
        // Predicated region
        $region281: #{set_transformer_forward.1} parent=171 // pred_check
          %p1442 = pneg %p864
        $region282: #{set_transformer_forward.1} parent=171 // pred_check_branch
          %1444 = sbr.rel (%p1442) target = $region284
        $region283: #{set_transformer_forward.1} parent=171 // pred_region
          %1445 = dma.done [#allocation45], 256
        $region284: #{set_transformer_forward.1} parent=171 // pred_fallthru
          _
        // Predicated region
        $region285: #{set_transformer_forward.1} parent=171 // pred_check
          %p1446 = pneg %p885
        $region286: #{set_transformer_forward.1} parent=171 // pred_check_branch
          %1448 = sbr.rel (%p1446) target = $region288
        $region287: #{set_transformer_forward.1} parent=171 // pred_region
          %1449 = dma.done [#allocation45], 256
        $region288: #{set_transformer_forward.1} parent=171 // pred_fallthru
          _
        %s1450 = sand.u32 %s116, 1
        %s1451 = scalar_lea.sflag [#allocation3], %s1450
        %s1452 = sand.u32 %s116, 1
        %s1453 = smul.addr %s1452, 8
        %s1454 = scalar_lea.vmem [#allocation2], %s1453
        %p1455 = pneg %p129
        %p1456 = pneg %p126
        %p1457 = pneg %p150
        %p1458 = pneg %p147
        %p1459 = pneg %p171
        %p1460 = pneg %p168
        %p1461 = pneg %p192
        %p1462 = pneg %p189
        %p1463 = pneg %p213
        %p1464 = pneg %p210
        %p1465 = pneg %p234
        %p1466 = pneg %p231
        %p1467 = pneg %p255
        %p1468 = pneg %p252
        %p1469 = pneg %p276
        %p1470 = pneg %p273
        %p1471 = pneg %p297
        %p1472 = pneg %p294
        %p1473 = pneg %p318
        %p1474 = pneg %p315
        %p1475 = pneg %p339
        %p1476 = pneg %p336
        %p1477 = pneg %p360
        %p1478 = pneg %p357
        %p1479 = pneg %p381
        %p1480 = pneg %p378
        %p1481 = pneg %p402
        %p1482 = pneg %p399
        %p1483 = pneg %p423
        %p1484 = pneg %p420
        %p1485 = pneg %p444
        %p1486 = pneg %p441
        %p1487 = pneg %p465
        %p1488 = pneg %p462
        %p1489 = pneg %p486
        %p1490 = pneg %p483
        %p1491 = pneg %p507
        %p1492 = pneg %p504
        %p1493 = pneg %p528
        %p1494 = pneg %p525
        %p1495 = pneg %p549
        %p1496 = pneg %p546
        %p1497 = pneg %p570
        %p1498 = pneg %p567
        %p1499 = pneg %p591
        %p1500 = pneg %p588
        %p1501 = pneg %p612
        %p1502 = pneg %p609
        %p1503 = pneg %p633
        %p1504 = pneg %p630
        %p1505 = pneg %p654
        %p1506 = pneg %p651
        %p1507 = pneg %p675
        %p1508 = pneg %p672
        %p1509 = pneg %p696
        %p1510 = pneg %p693
        %p1511 = pneg %p717
        %p1512 = pneg %p714
        %p1513 = pneg %p738
        %p1514 = pneg %p735
        %p1515 = pneg %p759
        %p1516 = pneg %p756
        %p1517 = pneg %p780
        %p1518 = pneg %p777
        %p1519 = pneg %p801
        %p1520 = pneg %p798
        %p1521 = pneg %p822
        %p1522 = pneg %p819
        %p1523 = pneg %p843
        %p1524 = pneg %p840
        %p1525 = pneg %p864
        %p1526 = pneg %p861
        %p1527 = pneg %p885
        %p1528 = pneg %p882
        %p1529 = pneg %p906
        %p1530 = pneg %p903
        %p1531 = pneg %p932
        %p1532 = pneg %p929
        %s1533 = sand.u32 %s919, 1
        %s1534 = scalar_lea.sflag [#allocation4], %s1533
        %s1535 = sand.u32 %s919, 1
        %s1536 = smul.addr %s1535, 4
        %s1537 = scalar_lea.vmem [#allocation47], %s1536
        %v1539 = vld [vmem:[%s1333] sm:$0xff]
        %v1540 = vld [vmem:[#allocation35] sm:$0xff]
        %v1541 = vpack.c.bf16 %v1539, %v1539
        %v1542 = vld [vmem:[#allocation26] sm:$0xf]
        %v1543 = vld [vmem:[#allocation26 + $0x4] sm:$0xf]
        %v1544 = vld [vmem:[#allocation23] sm:$0x1]
        %v1546 = vlaneseq
        %v1547 = vshrl.u32 %v1546, 7
        %v1548 = vsub.s32 0, %v1547
        %v1549 = vrot.slane %v1544, %v1548
        %v1553 = vunpack.c.l.b16 %v1542
        %v1554 = vunpack.c.l.b16 %v1543
        %v1555 = vpack.c.b16 %v1554, %v1553
        %vm1557 = vcmask 130048
        %v1559 = vsel %vm1557, %v1541, 0
        %1561 = vmatprep.subr.bf16.mxu0 0
        %1562 = vmatpush1.bf16.msra.mxu0 %v1555
        %1563 = vmatprep.subr.bf16.mxu0 0
        %1564 = vmatpush1.bf16.msra.mxu0 0
        %1565 = vmatprep.subr.bf16.mxu0 0
        %1566 = vmatpush1.bf16.msra.mxu0 0
        %1567 = vmatprep.subr.bf16.mxu0 0
        %1568 = vmatpush1.bf16.msra.mxu0 0
        %1569 = vmatprep.subr.bf16.mxu0 0
        %1570 = vmatpush1.bf16.msra.mxu0 0
        %1571 = vmatprep.subr.bf16.mxu0 0
        %1572 = vmatpush1.bf16.msra.mxu0 0
        %1573 = vmatprep.subr.bf16.mxu0 0
        %1574 = vmatpush1.bf16.msra.mxu0 0
        %1575 = vmatprep.subr.bf16.mxu0 0
        %1576 = vmatpush1.bf16.msra.mxu0 0
        %1577 = vmatprep.subr.bf16.mxu0 0
        %1578 = vmatpush1.bf16.msra.mxu0 0
        %1579 = vmatprep.subr.bf16.mxu0 0
        %1580 = vmatpush1.bf16.msra.mxu0 0
        %1581 = vmatprep.subr.bf16.mxu0 0
        %1582 = vmatpush1.bf16.msra.mxu0 0
        %1583 = vmatprep.subr.bf16.mxu0 0
        %1584 = vmatpush1.bf16.msra.mxu0 0
        %1585 = vmatprep.subr.bf16.mxu0 0
        %1586 = vmatpush1.bf16.msra.mxu0 0
        %1587 = vmatprep.subr.bf16.mxu0 0
        %1588 = vmatpush1.bf16.msra.mxu0 0
        %1589 = vmatprep.subr.bf16.mxu0 0
        %1590 = vmatpush1.bf16.msra.mxu0 0
        %1591 = vmatprep.subr.bf16.mxu0 0
        %1592 = vmatpush1.bf16.msra.mxu0 0
        %1593 = vmatprep.mubr.bf16.mxu0 0
        %1594 = vmatmul.mubr.bf16.gmra.mrb[0].mxu0 %v1559
        %v1595 = vpop.f32.mrb[0].mxu0
        %v1596 = vadd.f32 %v1549, %v1595
        %v1597 = vpop.f32.mrb[0].mxu0
        %v1598 = vpop.f32.mrb[0].mxu0
        %v1599 = vpop.f32.mrb[0].mxu0
        %1600 = vdwg.mxu0
        %1602 = vrot.lane.b32.xlu0 %v1540, 120
        %v1603 = vpop.permute.xlu0 %1602
        %1605 = vrot.lane.b32.xlu0 %v1540, 112
        %v1606 = vpop.permute.xlu0 %1605
        %1608 = vrot.lane.b32.xlu0 %v1540, 104
        %v1609 = vpop.permute.xlu0 %1608
        %1612 = vrot.lane.b32.xlu0 %v1596, 120
        %v1613 = vpop.permute.xlu0 %1612
        %1615 = vrot.lane.b32.xlu0 %v1596, 112
        %v1616 = vpop.permute.xlu0 %1615
        %1618 = vrot.lane.b32.xlu0 %v1596, 104
        %v1619 = vpop.permute.xlu0 %1618
        %v1621 = vpack.c.bf16 %v1540, %v1540
        %v1622 = vpack.c.bf16 %v1603, %v1603
        %v1623 = vpack.c.bf16 %v1606, %v1606
        %v1624 = vpack.c.bf16 %v1609, %v1609
        %v1625 = vpack.c.bf16 %v1596, %v1596
        %v1626 = vpack.c.bf16 %v1613, %v1613
        %v1627 = vpack.c.bf16 %v1616, %v1616
        %v1628 = vpack.c.bf16 %v1619, %v1619
        %vm1629 = vcmask 64512
        %v1631 = vsel %vm1629, %v1621, 0
        %v1634 = vsel %vm1629, %v1625, 0
        %1636 = vmatprep.subr.bf16.mxu0 0
        %1637 = vmatpush1.bf16.xpose.msra.mxu0 %v1634
        %1638 = vmatprep.subr.bf16.mxu0 0
        %1639 = vmatpush1.bf16.xpose.msra.mxu0 0
        %1640 = vmatprep.subr.bf16.mxu0 0
        %1641 = vmatpush1.bf16.xpose.msra.mxu0 0
        %1642 = vmatprep.subr.bf16.mxu0 0
        %1643 = vmatpush1.bf16.xpose.msra.mxu0 0
        %1644 = vmatprep.subr.bf16.mxu0 0
        %1645 = vmatpush1.bf16.xpose.msra.mxu0 0
        %1646 = vmatprep.subr.bf16.mxu0 0
        %1647 = vmatpush1.bf16.xpose.msra.mxu0 0
        %1648 = vmatprep.subr.bf16.mxu0 0
        %1649 = vmatpush1.bf16.xpose.msra.mxu0 0
        %1650 = vmatprep.subr.bf16.mxu0 0
        %1651 = vmatpush1.bf16.xpose.msra.mxu0 0
        %1652 = vmatprep.subr.bf16.mxu0 0
        %1653 = vmatpush1.bf16.xpose.msra.mxu0 0
        %1654 = vmatprep.subr.bf16.mxu0 0
        %1655 = vmatpush1.bf16.xpose.msra.mxu0 0
        %1656 = vmatprep.subr.bf16.mxu0 0
        %1657 = vmatpush1.bf16.xpose.msra.mxu0 0
        %1658 = vmatprep.subr.bf16.mxu0 0
        %1659 = vmatpush1.bf16.xpose.msra.mxu0 0
        %1660 = vmatprep.subr.bf16.mxu0 0
        %1661 = vmatpush1.bf16.xpose.msra.mxu0 0
        %1662 = vmatprep.subr.bf16.mxu0 0
        %1663 = vmatpush1.bf16.xpose.msra.mxu0 0
        %1664 = vmatprep.subr.bf16.mxu0 0
        %1665 = vmatpush1.bf16.xpose.msra.mxu0 0
        %1666 = vmatprep.subr.bf16.mxu0 0
        %1667 = vmatpush1.bf16.xpose.msra.mxu0 0
        %1668 = vmatprep.mubr.bf16.mxu0 0
        %1669 = vmatmul.mubr.bf16.gmra.mrb[0].mxu0 %v1631
        %v1670 = vpop.f32.mrb[0].mxu0
        %v1671 = vadd.f32 0.0, %v1670
        %v1672 = vpop.f32.mrb[0].mxu0
        %v1673 = vpop.f32.mrb[0].mxu0
        %v1674 = vpop.f32.mrb[0].mxu0
        %1675 = vdwg.mxu0
        %v1677 = vsel %vm1629, %v1622, 0
        %v1680 = vsel %vm1629, %v1626, 0
        %1682 = vmatprep.subr.bf16.mxu0 0
        %1683 = vmatpush1.bf16.xpose.msra.mxu0 %v1680
        %1684 = vmatprep.subr.bf16.mxu0 0
        %1685 = vmatpush1.bf16.xpose.msra.mxu0 0
        %1686 = vmatprep.subr.bf16.mxu0 0
        %1687 = vmatpush1.bf16.xpose.msra.mxu0 0
        %1688 = vmatprep.subr.bf16.mxu0 0
        %1689 = vmatpush1.bf16.xpose.msra.mxu0 0
        %1690 = vmatprep.subr.bf16.mxu0 0
        %1691 = vmatpush1.bf16.xpose.msra.mxu0 0
        %1692 = vmatprep.subr.bf16.mxu0 0
        %1693 = vmatpush1.bf16.xpose.msra.mxu0 0
        %1694 = vmatprep.subr.bf16.mxu0 0
        %1695 = vmatpush1.bf16.xpose.msra.mxu0 0
        %1696 = vmatprep.subr.bf16.mxu0 0
        %1697 = vmatpush1.bf16.xpose.msra.mxu0 0
        %1698 = vmatprep.subr.bf16.mxu0 0
        %1699 = vmatpush1.bf16.xpose.msra.mxu0 0
        %1700 = vmatprep.subr.bf16.mxu0 0
        %1701 = vmatpush1.bf16.xpose.msra.mxu0 0
        %1702 = vmatprep.subr.bf16.mxu0 0
        %1703 = vmatpush1.bf16.xpose.msra.mxu0 0
        %1704 = vmatprep.subr.bf16.mxu0 0
        %1705 = vmatpush1.bf16.xpose.msra.mxu0 0
        %1706 = vmatprep.subr.bf16.mxu0 0
        %1707 = vmatpush1.bf16.xpose.msra.mxu0 0
        %1708 = vmatprep.subr.bf16.mxu0 0
        %1709 = vmatpush1.bf16.xpose.msra.mxu0 0
        %1710 = vmatprep.subr.bf16.mxu0 0
        %1711 = vmatpush1.bf16.xpose.msra.mxu0 0
        %1712 = vmatprep.subr.bf16.mxu0 0
        %1713 = vmatpush1.bf16.xpose.msra.mxu0 0
        %1714 = vmatprep.mubr.bf16.mxu0 0
        %1715 = vmatmul.mubr.bf16.gmra.mrb[0].mxu0 %v1677
        %v1716 = vpop.f32.mrb[0].mxu0
        %v1717 = vadd.f32 0.0, %v1716
        %v1718 = vpop.f32.mrb[0].mxu0
        %v1719 = vpop.f32.mrb[0].mxu0
        %v1720 = vpop.f32.mrb[0].mxu0
        %1721 = vdwg.mxu0
        %v1723 = vsel %vm1629, %v1623, 0
        %v1726 = vsel %vm1629, %v1627, 0
        %1728 = vmatprep.subr.bf16.mxu0 0
        %1729 = vmatpush1.bf16.xpose.msra.mxu0 %v1726
        %1730 = vmatprep.subr.bf16.mxu0 0
        %1731 = vmatpush1.bf16.xpose.msra.mxu0 0
        %1732 = vmatprep.subr.bf16.mxu0 0
        %1733 = vmatpush1.bf16.xpose.msra.mxu0 0
        %1734 = vmatprep.subr.bf16.mxu0 0
        %1735 = vmatpush1.bf16.xpose.msra.mxu0 0
        %1736 = vmatprep.subr.bf16.mxu0 0
        %1737 = vmatpush1.bf16.xpose.msra.mxu0 0
        %1738 = vmatprep.subr.bf16.mxu0 0
        %1739 = vmatpush1.bf16.xpose.msra.mxu0 0
        %1740 = vmatprep.subr.bf16.mxu0 0
        %1741 = vmatpush1.bf16.xpose.msra.mxu0 0
        %1742 = vmatprep.subr.bf16.mxu0 0
        %1743 = vmatpush1.bf16.xpose.msra.mxu0 0
        %1744 = vmatprep.subr.bf16.mxu0 0
        %1745 = vmatpush1.bf16.xpose.msra.mxu0 0
        %1746 = vmatprep.subr.bf16.mxu0 0
        %1747 = vmatpush1.bf16.xpose.msra.mxu0 0
        %1748 = vmatprep.subr.bf16.mxu0 0
        %1749 = vmatpush1.bf16.xpose.msra.mxu0 0
        %1750 = vmatprep.subr.bf16.mxu0 0
        %1751 = vmatpush1.bf16.xpose.msra.mxu0 0
        %1752 = vmatprep.subr.bf16.mxu0 0
        %1753 = vmatpush1.bf16.xpose.msra.mxu0 0
        %1754 = vmatprep.subr.bf16.mxu0 0
        %1755 = vmatpush1.bf16.xpose.msra.mxu0 0
        %1756 = vmatprep.subr.bf16.mxu0 0
        %1757 = vmatpush1.bf16.xpose.msra.mxu0 0
        %1758 = vmatprep.subr.bf16.mxu0 0
        %1759 = vmatpush1.bf16.xpose.msra.mxu0 0
        %1760 = vmatprep.mubr.bf16.mxu0 0
        %1761 = vmatmul.mubr.bf16.gmra.mrb[0].mxu0 %v1723
        %v1762 = vpop.f32.mrb[0].mxu0
        %v1763 = vadd.f32 0.0, %v1762
        %v1764 = vpop.f32.mrb[0].mxu0
        %v1765 = vpop.f32.mrb[0].mxu0
        %v1766 = vpop.f32.mrb[0].mxu0
        %1767 = vdwg.mxu0
        %v1769 = vsel %vm1629, %v1624, 0
        %v1772 = vsel %vm1629, %v1628, 0
        %1774 = vmatprep.subr.bf16.mxu0 0
        %1775 = vmatpush1.bf16.xpose.msra.mxu0 %v1772
        %1776 = vmatprep.subr.bf16.mxu0 0
        %1777 = vmatpush1.bf16.xpose.msra.mxu0 0
        %1778 = vmatprep.subr.bf16.mxu0 0
        %1779 = vmatpush1.bf16.xpose.msra.mxu0 0
        %1780 = vmatprep.subr.bf16.mxu0 0
        %1781 = vmatpush1.bf16.xpose.msra.mxu0 0
        %1782 = vmatprep.subr.bf16.mxu0 0
        %1783 = vmatpush1.bf16.xpose.msra.mxu0 0
        %1784 = vmatprep.subr.bf16.mxu0 0
        %1785 = vmatpush1.bf16.xpose.msra.mxu0 0
        %1786 = vmatprep.subr.bf16.mxu0 0
        %1787 = vmatpush1.bf16.xpose.msra.mxu0 0
        %1788 = vmatprep.subr.bf16.mxu0 0
        %1789 = vmatpush1.bf16.xpose.msra.mxu0 0
        %1790 = vmatprep.subr.bf16.mxu0 0
        %1791 = vmatpush1.bf16.xpose.msra.mxu0 0
        %1792 = vmatprep.subr.bf16.mxu0 0
        %1793 = vmatpush1.bf16.xpose.msra.mxu0 0
        %1794 = vmatprep.subr.bf16.mxu0 0
        %1795 = vmatpush1.bf16.xpose.msra.mxu0 0
        %1796 = vmatprep.subr.bf16.mxu0 0
        %1797 = vmatpush1.bf16.xpose.msra.mxu0 0
        %1798 = vmatprep.subr.bf16.mxu0 0
        %1799 = vmatpush1.bf16.xpose.msra.mxu0 0
        %1800 = vmatprep.subr.bf16.mxu0 0
        %1801 = vmatpush1.bf16.xpose.msra.mxu0 0
        %1802 = vmatprep.subr.bf16.mxu0 0
        %1803 = vmatpush1.bf16.xpose.msra.mxu0 0
        %1804 = vmatprep.subr.bf16.mxu0 0
        %1805 = vmatpush1.bf16.xpose.msra.mxu0 0
        %1806 = vmatprep.mubr.bf16.mxu0 0
        %1807 = vmatmul.mubr.bf16.gmra.mrb[0].mxu0 %v1769
        %v1808 = vpop.f32.mrb[0].mxu0
        %v1809 = vadd.f32 0.0, %v1808
        %v1810 = vpop.f32.mrb[0].mxu0
        %v1811 = vpop.f32.mrb[0].mxu0
        %v1812 = vpop.f32.mrb[0].mxu0
        %1813 = vdwg.mxu0
        %v1814 = vmul.f32 %v1671, 0.17677669
        %v1815 = vmul.f32 %v1717, 0.17677669
        %v1816 = vmul.f32 %v1763, 0.17677669
        %v1817 = vmul.f32 %v1809, 0.17677669
        %v1818 = vsel %vm1629, %v1814, -inf
        %1819 = vmax.xlane.f32.xlu0 %v1818
        %v1820 = vpop.xlane.xlu0 %1819
        %v1821 = vsel %vm1629, %v1815, -inf
        %1822 = vmax.xlane.f32.xlu0 %v1821
        %v1823 = vpop.xlane.xlu0 %1822
        %v1824 = vsel %vm1629, %v1816, -inf
        %1825 = vmax.xlane.f32.xlu0 %v1824
        %v1826 = vpop.xlane.xlu0 %1825
        %v1827 = vsel %vm1629, %v1817, -inf
        %1828 = vmax.xlane.f32.xlu0 %v1827
        %v1829 = vpop.xlane.xlu0 %1828
        %v1830 = vsub.f32 %v1814, %v1820
        %v1831 = vsub.f32 %v1815, %v1823
        %v1832 = vsub.f32 %v1816, %v1826
        %v1833 = vsub.f32 %v1817, %v1829
        %v1834 = vmul.f32 %v1830, 1.442695
        %v1835 = vpow.pop %v1834
        %v1836 = vmul.f32 %v1831, 1.442695
        %v1837 = vpow.pop %v1836
        %v1838 = vmul.f32 %v1832, 1.442695
        %v1839 = vpow.pop %v1838
        %v1840 = vmul.f32 %v1833, 1.442695
        %v1841 = vpow.pop %v1840
        %v1842 = vsel %vm1629, %v1835, 0.0
        %1843 = vadd.xlane.f32.xlu0 %v1842
        %v1844 = vpop.xlane.xlu0 %1843
        %v1845 = vsel %vm1629, %v1837, 0.0
        %1846 = vadd.xlane.f32.xlu0 %v1845
        %v1847 = vpop.xlane.xlu0 %1846
        %v1848 = vsel %vm1629, %v1839, 0.0
        %1849 = vadd.xlane.f32.xlu0 %v1848
        %v1850 = vpop.xlane.xlu0 %1849
        %v1851 = vsel %vm1629, %v1841, 0.0
        %1852 = vadd.xlane.f32.xlu0 %v1851
        %v1853 = vpop.xlane.xlu0 %1852
        %v1854 = vrcp.pop %v1844
        %v1855 = vrcp.pop %v1847
        %v1856 = vrcp.pop %v1850
        %v1857 = vrcp.pop %v1853
        %v1858 = vmul.f32 %v1835, %v1854
        %v1859 = vmul.f32 %v1837, %v1855
        %v1860 = vmul.f32 %v1839, %v1856
        %v1861 = vmul.f32 %v1841, %v1857
        %v1862 = vpack.c.bf16 %v1858, %v1858
        %v1863 = vpack.c.bf16 %v1859, %v1859
        %v1864 = vpack.c.bf16 %v1860, %v1860
        %v1865 = vpack.c.bf16 %v1861, %v1861
        %1867 = vrot.lane.b32.xlu0 %v1625, 96
        %v1868 = vpop.permute.xlu0 %1867
        %v1870 = vsel %vm1629, %v1862, 0
        %vm1872 = vcmask 1043456
        %v1874 = vsel %vm1872, %v1868, 0
        %1876 = vmatprep.subr.bf16.mxu0 0
        %1877 = vmatpush1.bf16.msra.mxu0 %v1874
        %1878 = vmatprep.subr.bf16.mxu0 0
        %1879 = vmatpush1.bf16.msra.mxu0 0
        %1880 = vmatprep.subr.bf16.mxu0 0
        %1881 = vmatpush1.bf16.msra.mxu0 0
        %1882 = vmatprep.subr.bf16.mxu0 0
        %1883 = vmatpush1.bf16.msra.mxu0 0
        %1884 = vmatprep.subr.bf16.mxu0 0
        %1885 = vmatpush1.bf16.msra.mxu0 0
        %1886 = vmatprep.subr.bf16.mxu0 0
        %1887 = vmatpush1.bf16.msra.mxu0 0
        %1888 = vmatprep.subr.bf16.mxu0 0
        %1889 = vmatpush1.bf16.msra.mxu0 0
        %1890 = vmatprep.subr.bf16.mxu0 0
        %1891 = vmatpush1.bf16.msra.mxu0 0
        %1892 = vmatprep.subr.bf16.mxu0 0
        %1893 = vmatpush1.bf16.msra.mxu0 0
        %1894 = vmatprep.subr.bf16.mxu0 0
        %1895 = vmatpush1.bf16.msra.mxu0 0
        %1896 = vmatprep.subr.bf16.mxu0 0
        %1897 = vmatpush1.bf16.msra.mxu0 0
        %1898 = vmatprep.subr.bf16.mxu0 0
        %1899 = vmatpush1.bf16.msra.mxu0 0
        %1900 = vmatprep.subr.bf16.mxu0 0
        %1901 = vmatpush1.bf16.msra.mxu0 0
        %1902 = vmatprep.subr.bf16.mxu0 0
        %1903 = vmatpush1.bf16.msra.mxu0 0
        %1904 = vmatprep.subr.bf16.mxu0 0
        %1905 = vmatpush1.bf16.msra.mxu0 0
        %1906 = vmatprep.subr.bf16.mxu0 0
        %1907 = vmatpush1.bf16.msra.mxu0 0
        %1908 = vmatprep.mubr.bf16.mxu0 0
        %1909 = vmatmul.mubr.bf16.gmra.mrb[0].mxu0 %v1870
        %v1910 = vpop.f32.mrb[0].mxu0
        %v1911 = vadd.f32 0.0, %v1910
        %v1912 = vpop.f32.mrb[0].mxu0
        %v1913 = vpop.f32.mrb[0].mxu0
        %v1914 = vpop.f32.mrb[0].mxu0
        %1915 = vdwg.mxu0
        %1917 = vrot.lane.b32.xlu0 %v1626, 96
        %v1918 = vpop.permute.xlu0 %1917
        %v1920 = vsel %vm1629, %v1863, 0
        %v1923 = vsel %vm1872, %v1918, 0
        %1925 = vmatprep.subr.bf16.mxu0 0
        %1926 = vmatpush1.bf16.msra.mxu0 %v1923
        %1927 = vmatprep.subr.bf16.mxu0 0
        %1928 = vmatpush1.bf16.msra.mxu0 0
        %1929 = vmatprep.subr.bf16.mxu0 0
        %1930 = vmatpush1.bf16.msra.mxu0 0
        %1931 = vmatprep.subr.bf16.mxu0 0
        %1932 = vmatpush1.bf16.msra.mxu0 0
        %1933 = vmatprep.subr.bf16.mxu0 0
        %1934 = vmatpush1.bf16.msra.mxu0 0
        %1935 = vmatprep.subr.bf16.mxu0 0
        %1936 = vmatpush1.bf16.msra.mxu0 0
        %1937 = vmatprep.subr.bf16.mxu0 0
        %1938 = vmatpush1.bf16.msra.mxu0 0
        %1939 = vmatprep.subr.bf16.mxu0 0
        %1940 = vmatpush1.bf16.msra.mxu0 0
        %1941 = vmatprep.subr.bf16.mxu0 0
        %1942 = vmatpush1.bf16.msra.mxu0 0
        %1943 = vmatprep.subr.bf16.mxu0 0
        %1944 = vmatpush1.bf16.msra.mxu0 0
        %1945 = vmatprep.subr.bf16.mxu0 0
        %1946 = vmatpush1.bf16.msra.mxu0 0
        %1947 = vmatprep.subr.bf16.mxu0 0
        %1948 = vmatpush1.bf16.msra.mxu0 0
        %1949 = vmatprep.subr.bf16.mxu0 0
        %1950 = vmatpush1.bf16.msra.mxu0 0
        %1951 = vmatprep.subr.bf16.mxu0 0
        %1952 = vmatpush1.bf16.msra.mxu0 0
        %1953 = vmatprep.subr.bf16.mxu0 0
        %1954 = vmatpush1.bf16.msra.mxu0 0
        %1955 = vmatprep.subr.bf16.mxu0 0
        %1956 = vmatpush1.bf16.msra.mxu0 0
        %1957 = vmatprep.mubr.bf16.mxu0 0
        %1958 = vmatmul.mubr.bf16.gmra.mrb[0].mxu0 %v1920
        %v1959 = vpop.f32.mrb[0].mxu0
        %v1960 = vadd.f32 0.0, %v1959
        %v1961 = vpop.f32.mrb[0].mxu0
        %v1962 = vpop.f32.mrb[0].mxu0
        %v1963 = vpop.f32.mrb[0].mxu0
        %1964 = vdwg.mxu0
        %1966 = vrot.lane.b32.xlu0 %v1627, 96
        %v1967 = vpop.permute.xlu0 %1966
        %v1969 = vsel %vm1629, %v1864, 0
        %v1972 = vsel %vm1872, %v1967, 0
        %1974 = vmatprep.subr.bf16.mxu0 0
        %1975 = vmatpush1.bf16.msra.mxu0 %v1972
        %1976 = vmatprep.subr.bf16.mxu0 0
        %1977 = vmatpush1.bf16.msra.mxu0 0
        %1978 = vmatprep.subr.bf16.mxu0 0
        %1979 = vmatpush1.bf16.msra.mxu0 0
        %1980 = vmatprep.subr.bf16.mxu0 0
        %1981 = vmatpush1.bf16.msra.mxu0 0
        %1982 = vmatprep.subr.bf16.mxu0 0
        %1983 = vmatpush1.bf16.msra.mxu0 0
        %1984 = vmatprep.subr.bf16.mxu0 0
        %1985 = vmatpush1.bf16.msra.mxu0 0
        %1986 = vmatprep.subr.bf16.mxu0 0
        %1987 = vmatpush1.bf16.msra.mxu0 0
        %1988 = vmatprep.subr.bf16.mxu0 0
        %1989 = vmatpush1.bf16.msra.mxu0 0
        %1990 = vmatprep.subr.bf16.mxu0 0
        %1991 = vmatpush1.bf16.msra.mxu0 0
        %1992 = vmatprep.subr.bf16.mxu0 0
        %1993 = vmatpush1.bf16.msra.mxu0 0
        %1994 = vmatprep.subr.bf16.mxu0 0
        %1995 = vmatpush1.bf16.msra.mxu0 0
        %1996 = vmatprep.subr.bf16.mxu0 0
        %1997 = vmatpush1.bf16.msra.mxu0 0
        %1998 = vmatprep.subr.bf16.mxu0 0
        %1999 = vmatpush1.bf16.msra.mxu0 0
        %2000 = vmatprep.subr.bf16.mxu0 0
        %2001 = vmatpush1.bf16.msra.mxu0 0
        %2002 = vmatprep.subr.bf16.mxu0 0
        %2003 = vmatpush1.bf16.msra.mxu0 0
        %2004 = vmatprep.subr.bf16.mxu0 0
        %2005 = vmatpush1.bf16.msra.mxu0 0
        %2006 = vmatprep.mubr.bf16.mxu0 0
        %2007 = vmatmul.mubr.bf16.gmra.mrb[0].mxu0 %v1969
        %v2008 = vpop.f32.mrb[0].mxu0
        %v2009 = vadd.f32 0.0, %v2008
        %v2010 = vpop.f32.mrb[0].mxu0
        %v2011 = vpop.f32.mrb[0].mxu0
        %v2012 = vpop.f32.mrb[0].mxu0
        %2013 = vdwg.mxu0
        %2015 = vrot.lane.b32.xlu0 %v1628, 96
        %v2016 = vpop.permute.xlu0 %2015
        %v2018 = vsel %vm1629, %v1865, 0
        %v2021 = vsel %vm1872, %v2016, 0
        %2023 = vmatprep.subr.bf16.mxu0 0
        %2024 = vmatpush1.bf16.msra.mxu0 %v2021
        %2025 = vmatprep.subr.bf16.mxu0 0
        %2026 = vmatpush1.bf16.msra.mxu0 0
        %2027 = vmatprep.subr.bf16.mxu0 0
        %2028 = vmatpush1.bf16.msra.mxu0 0
        %2029 = vmatprep.subr.bf16.mxu0 0
        %2030 = vmatpush1.bf16.msra.mxu0 0
        %2031 = vmatprep.subr.bf16.mxu0 0
        %2032 = vmatpush1.bf16.msra.mxu0 0
        %2033 = vmatprep.subr.bf16.mxu0 0
        %2034 = vmatpush1.bf16.msra.mxu0 0
        %2035 = vmatprep.subr.bf16.mxu0 0
        %2036 = vmatpush1.bf16.msra.mxu0 0
        %2037 = vmatprep.subr.bf16.mxu0 0
        %2038 = vmatpush1.bf16.msra.mxu0 0
        %2039 = vmatprep.subr.bf16.mxu0 0
        %2040 = vmatpush1.bf16.msra.mxu0 0
        %2041 = vmatprep.subr.bf16.mxu0 0
        %2042 = vmatpush1.bf16.msra.mxu0 0
        %2043 = vmatprep.subr.bf16.mxu0 0
        %2044 = vmatpush1.bf16.msra.mxu0 0
        %2045 = vmatprep.subr.bf16.mxu0 0
        %2046 = vmatpush1.bf16.msra.mxu0 0
        %2047 = vmatprep.subr.bf16.mxu0 0
        %2048 = vmatpush1.bf16.msra.mxu0 0
        %2049 = vmatprep.subr.bf16.mxu0 0
        %2050 = vmatpush1.bf16.msra.mxu0 0
        %2051 = vmatprep.subr.bf16.mxu0 0
        %2052 = vmatpush1.bf16.msra.mxu0 0
        %2053 = vmatprep.subr.bf16.mxu0 0
        %2054 = vmatpush1.bf16.msra.mxu0 0
        %2055 = vmatprep.mubr.bf16.mxu0 0
        %2056 = vmatmul.mubr.bf16.gmra.mrb[0].mxu0 %v2018
        %v2057 = vpop.f32.mrb[0].mxu0
        %v2058 = vadd.f32 0.0, %v2057
        %v2059 = vpop.f32.mrb[0].mxu0
        %v2060 = vpop.f32.mrb[0].mxu0
        %v2061 = vpop.f32.mrb[0].mxu0
        %2062 = vdwg.mxu0
        %v2063 = vadd.f32 %v1540, %v1911
        %v2064 = vadd.f32 %v1603, %v1960
        %v2065 = vadd.f32 %v1606, %v2009
        %v2066 = vadd.f32 %v1609, %v2058
        %2068 = vrot.lane.b32.xlu0 %v2064, 8
        %v2069 = vpop.permute.xlu0 %2068
        %2072 = vrot.lane.b32.xlu0 %v2065, 16
        %v2073 = vpop.permute.xlu0 %2072
        %2076 = vrot.lane.b32.xlu0 %v2066, 24
        %v2077 = vpop.permute.xlu0 %2076
        %v2079 = vsel %vm1629, %v2063, %v2069
        %v2080 = vsel %vm1557, %v2079, %v2073
        %vm2081 = vcmask 195584
        %v2082 = vsel %vm2081, %v2080, %v2077
        %v2083 = vpack.c.bf16 %v2082, %v2082
        %v2084 = vld [vmem:[%s39] sm:$0xf]
        %v2085 = vld [vmem:[%s39 + $0x4] sm:$0xf]
        %v2086 = vld [vmem:[%s39 + $0x8] sm:$0xf]
        %v2087 = vld [vmem:[%s39 + $0xc] sm:$0xf]
        %v2088 = vld [vmem:[#allocation25] sm:$0x1]
        %v2090 = vlaneseq
        %v2091 = vshrl.u32 %v2090, 7
        %v2092 = vsub.s32 0, %v2091
        %v2093 = vrot.slane %v2088, %v2092
        %v2099 = vunpack.c.l.b16 %v2084
        %v2100 = vunpack.c.l.b16 %v2085
        %v2101 = vunpack.c.l.b16 %v2086
        %v2102 = vunpack.c.l.b16 %v2087
        %v2103 = vpack.c.b16 %v2100, %v2099
        %v2104 = vpack.c.b16 %v2102, %v2101
        %vm2107 = vcmask 261120
        %v2109 = vsel %vm2107, %v2083, 0
        %2111 = vmatprep.subr.bf16.mxu0 0
        %2112 = vmatpush1.bf16.msra.mxu0 %v2103
        %2113 = vmatprep.subr.bf16.mxu0 0
        %2114 = vmatpush1.bf16.msra.mxu0 %v2104
        %2115 = vmatprep.subr.bf16.mxu0 0
        %2116 = vmatpush1.bf16.msra.mxu0 0
        %2117 = vmatprep.subr.bf16.mxu0 0
        %2118 = vmatpush1.bf16.msra.mxu0 0
        %2119 = vmatprep.subr.bf16.mxu0 0
        %2120 = vmatpush1.bf16.msra.mxu0 0
        %2121 = vmatprep.subr.bf16.mxu0 0
        %2122 = vmatpush1.bf16.msra.mxu0 0
        %2123 = vmatprep.subr.bf16.mxu0 0
        %2124 = vmatpush1.bf16.msra.mxu0 0
        %2125 = vmatprep.subr.bf16.mxu0 0
        %2126 = vmatpush1.bf16.msra.mxu0 0
        %2127 = vmatprep.subr.bf16.mxu0 0
        %2128 = vmatpush1.bf16.msra.mxu0 0
        %2129 = vmatprep.subr.bf16.mxu0 0
        %2130 = vmatpush1.bf16.msra.mxu0 0
        %2131 = vmatprep.subr.bf16.mxu0 0
        %2132 = vmatpush1.bf16.msra.mxu0 0
        %2133 = vmatprep.subr.bf16.mxu0 0
        %2134 = vmatpush1.bf16.msra.mxu0 0
        %2135 = vmatprep.subr.bf16.mxu0 0
        %2136 = vmatpush1.bf16.msra.mxu0 0
        %2137 = vmatprep.subr.bf16.mxu0 0
        %2138 = vmatpush1.bf16.msra.mxu0 0
        %2139 = vmatprep.subr.bf16.mxu0 0
        %2140 = vmatpush1.bf16.msra.mxu0 0
        %2141 = vmatprep.subr.bf16.mxu0 0
        %2142 = vmatpush1.bf16.msra.mxu0 0
        %2143 = vmatprep.mubr.bf16.mxu0 0
        %2144 = vmatmul.mubr.bf16.gmra.mrb[0].mxu0 %v2109
        %v2145 = vpop.f32.mrb[0].mxu0
        %v2146 = vadd.f32 %v2093, %v2145
        %v2147 = vpop.f32.mrb[0].mxu0
        %v2148 = vpop.f32.mrb[0].mxu0
        %v2149 = vpop.f32.mrb[0].mxu0
        %2150 = vdwg.mxu0
        %v2151 = vmax.f32 %v2146, 0.0
        %v2152 = vadd.f32 %v2082, %v2151
        %v2153 = vld [vmem:[#allocation34] sm:$0xf]
        %v2154 = vld [vmem:[#allocation34 + $0x4] sm:$0xf]
        %v2155 = vld [vmem:[#allocation31] sm:$0x1]
        %v2157 = vlaneseq
        %v2158 = vshrl.u32 %v2157, 7
        %v2159 = vsub.s32 0, %v2158
        %v2160 = vrot.slane %v2155, %v2159
        %v2164 = vunpack.c.l.b16 %v2153
        %v2165 = vunpack.c.l.b16 %v2154
        %v2166 = vpack.c.b16 %v2165, %v2164
        %2168 = vmatprep.subr.bf16.mxu0 0
        %2169 = vmatpush1.bf16.msra.mxu0 %v2166
        %2170 = vmatprep.subr.bf16.mxu0 0
        %2171 = vmatpush1.bf16.msra.mxu0 0
        %2172 = vmatprep.subr.bf16.mxu0 0
        %2173 = vmatpush1.bf16.msra.mxu0 0
        %2174 = vmatprep.subr.bf16.mxu0 0
        %2175 = vmatpush1.bf16.msra.mxu0 0
        %2176 = vmatprep.subr.bf16.mxu0 0
        %2177 = vmatpush1.bf16.msra.mxu0 0
        %2178 = vmatprep.subr.bf16.mxu0 0
        %2179 = vmatpush1.bf16.msra.mxu0 0
        %2180 = vmatprep.subr.bf16.mxu0 0
        %2181 = vmatpush1.bf16.msra.mxu0 0
        %2182 = vmatprep.subr.bf16.mxu0 0
        %2183 = vmatpush1.bf16.msra.mxu0 0
        %2184 = vmatprep.subr.bf16.mxu0 0
        %2185 = vmatpush1.bf16.msra.mxu0 0
        %2186 = vmatprep.subr.bf16.mxu0 0
        %2187 = vmatpush1.bf16.msra.mxu0 0
        %2188 = vmatprep.subr.bf16.mxu0 0
        %2189 = vmatpush1.bf16.msra.mxu0 0
        %2190 = vmatprep.subr.bf16.mxu0 0
        %2191 = vmatpush1.bf16.msra.mxu0 0
        %2192 = vmatprep.subr.bf16.mxu0 0
        %2193 = vmatpush1.bf16.msra.mxu0 0
        %2194 = vmatprep.subr.bf16.mxu0 0
        %2195 = vmatpush1.bf16.msra.mxu0 0
        %2196 = vmatprep.subr.bf16.mxu0 0
        %2197 = vmatpush1.bf16.msra.mxu0 0
        %2198 = vmatprep.subr.bf16.mxu0 0
        %2199 = vmatpush1.bf16.msra.mxu0 0
        %2200 = vmatprep.mubr.bf16.mxu0 0
        %2201 = vmatmul.mubr.bf16.gmra.mrb[0].mxu0 %v1559
        %v2202 = vpop.f32.mrb[0].mxu0
        %v2203 = vadd.f32 %v2160, %v2202
        %v2204 = vpop.f32.mrb[0].mxu0
        %v2205 = vpop.f32.mrb[0].mxu0
        %v2206 = vpop.f32.mrb[0].mxu0
        %2207 = vdwg.mxu0
        %v2208 = vpack.c.bf16 %v2152, %v2152
        %v2209 = vld [vmem:[%s47] sm:$0xf]
        %v2210 = vld [vmem:[%s47 + $0x4] sm:$0xf]
        %v2211 = vld [vmem:[%s47 + $0x8] sm:$0xf]
        %v2212 = vld [vmem:[%s47 + $0xc] sm:$0xf]
        %v2213 = vld [vmem:[#allocation28] sm:$0x1]
        %v2215 = vlaneseq
        %v2216 = vshrl.u32 %v2215, 7
        %v2217 = vsub.s32 0, %v2216
        %v2218 = vrot.slane %v2213, %v2217
        %v2224 = vunpack.c.l.b16 %v2209
        %v2225 = vunpack.c.l.b16 %v2210
        %v2226 = vunpack.c.l.b16 %v2211
        %v2227 = vunpack.c.l.b16 %v2212
        %v2228 = vpack.c.b16 %v2225, %v2224
        %v2229 = vpack.c.b16 %v2227, %v2226
        %v2233 = vsel %vm2107, %v2208, 0
        %2235 = vmatprep.subr.bf16.mxu0 0
        %2236 = vmatpush1.bf16.msra.mxu0 %v2228
        %2237 = vmatprep.subr.bf16.mxu0 0
        %2238 = vmatpush1.bf16.msra.mxu0 %v2229
        %2239 = vmatprep.subr.bf16.mxu0 0
        %2240 = vmatpush1.bf16.msra.mxu0 0
        %2241 = vmatprep.subr.bf16.mxu0 0
        %2242 = vmatpush1.bf16.msra.mxu0 0
        %2243 = vmatprep.subr.bf16.mxu0 0
        %2244 = vmatpush1.bf16.msra.mxu0 0
        %2245 = vmatprep.subr.bf16.mxu0 0
        %2246 = vmatpush1.bf16.msra.mxu0 0
        %2247 = vmatprep.subr.bf16.mxu0 0
        %2248 = vmatpush1.bf16.msra.mxu0 0
        %2249 = vmatprep.subr.bf16.mxu0 0
        %2250 = vmatpush1.bf16.msra.mxu0 0
        %2251 = vmatprep.subr.bf16.mxu0 0
        %2252 = vmatpush1.bf16.msra.mxu0 0
        %2253 = vmatprep.subr.bf16.mxu0 0
        %2254 = vmatpush1.bf16.msra.mxu0 0
        %2255 = vmatprep.subr.bf16.mxu0 0
        %2256 = vmatpush1.bf16.msra.mxu0 0
        %2257 = vmatprep.subr.bf16.mxu0 0
        %2258 = vmatpush1.bf16.msra.mxu0 0
        %2259 = vmatprep.subr.bf16.mxu0 0
        %2260 = vmatpush1.bf16.msra.mxu0 0
        %2261 = vmatprep.subr.bf16.mxu0 0
        %2262 = vmatpush1.bf16.msra.mxu0 0
        %2263 = vmatprep.subr.bf16.mxu0 0
        %2264 = vmatpush1.bf16.msra.mxu0 0
        %2265 = vmatprep.subr.bf16.mxu0 0
        %2266 = vmatpush1.bf16.msra.mxu0 0
        %2267 = vmatprep.mubr.bf16.mxu0 0
        %2268 = vmatmul.mubr.bf16.gmra.mrb[0].mxu0 %v2233
        %v2269 = vpop.f32.mrb[0].mxu0
        %v2270 = vadd.f32 %v2218, %v2269
        %v2271 = vpop.f32.mrb[0].mxu0
        %v2272 = vpop.f32.mrb[0].mxu0
        %v2273 = vpop.f32.mrb[0].mxu0
        %2274 = vdwg.mxu0
        %2276 = vrot.lane.b32.xlu0 %v2203, 120
        %v2277 = vpop.permute.xlu0 %2276
        %2279 = vrot.lane.b32.xlu0 %v2203, 112
        %v2280 = vpop.permute.xlu0 %2279
        %2282 = vrot.lane.b32.xlu0 %v2203, 104
        %v2283 = vpop.permute.xlu0 %2282
        %2286 = vrot.lane.b32.xlu0 %v2270, 120
        %v2287 = vpop.permute.xlu0 %2286
        %2289 = vrot.lane.b32.xlu0 %v2270, 112
        %v2290 = vpop.permute.xlu0 %2289
        %2292 = vrot.lane.b32.xlu0 %v2270, 104
        %v2293 = vpop.permute.xlu0 %2292
        %v2295 = vpack.c.bf16 %v2203, %v2203
        %v2296 = vpack.c.bf16 %v2277, %v2277
        %v2297 = vpack.c.bf16 %v2280, %v2280
        %v2298 = vpack.c.bf16 %v2283, %v2283
        %v2299 = vpack.c.bf16 %v2270, %v2270
        %v2300 = vpack.c.bf16 %v2287, %v2287
        %v2301 = vpack.c.bf16 %v2290, %v2290
        %v2302 = vpack.c.bf16 %v2293, %v2293
        %v2304 = vsel %vm1629, %v2295, 0
        %v2307 = vsel %vm1629, %v2299, 0
        %2309 = vmatprep.subr.bf16.mxu0 0
        %2310 = vmatpush1.bf16.xpose.msra.mxu0 %v2307
        %2311 = vmatprep.subr.bf16.mxu0 0
        %2312 = vmatpush1.bf16.xpose.msra.mxu0 0
        %2313 = vmatprep.subr.bf16.mxu0 0
        %2314 = vmatpush1.bf16.xpose.msra.mxu0 0
        %2315 = vmatprep.subr.bf16.mxu0 0
        %2316 = vmatpush1.bf16.xpose.msra.mxu0 0
        %2317 = vmatprep.subr.bf16.mxu0 0
        %2318 = vmatpush1.bf16.xpose.msra.mxu0 0
        %2319 = vmatprep.subr.bf16.mxu0 0
        %2320 = vmatpush1.bf16.xpose.msra.mxu0 0
        %2321 = vmatprep.subr.bf16.mxu0 0
        %2322 = vmatpush1.bf16.xpose.msra.mxu0 0
        %2323 = vmatprep.subr.bf16.mxu0 0
        %2324 = vmatpush1.bf16.xpose.msra.mxu0 0
        %2325 = vmatprep.subr.bf16.mxu0 0
        %2326 = vmatpush1.bf16.xpose.msra.mxu0 0
        %2327 = vmatprep.subr.bf16.mxu0 0
        %2328 = vmatpush1.bf16.xpose.msra.mxu0 0
        %2329 = vmatprep.subr.bf16.mxu0 0
        %2330 = vmatpush1.bf16.xpose.msra.mxu0 0
        %2331 = vmatprep.subr.bf16.mxu0 0
        %2332 = vmatpush1.bf16.xpose.msra.mxu0 0
        %2333 = vmatprep.subr.bf16.mxu0 0
        %2334 = vmatpush1.bf16.xpose.msra.mxu0 0
        %2335 = vmatprep.subr.bf16.mxu0 0
        %2336 = vmatpush1.bf16.xpose.msra.mxu0 0
        %2337 = vmatprep.subr.bf16.mxu0 0
        %2338 = vmatpush1.bf16.xpose.msra.mxu0 0
        %2339 = vmatprep.subr.bf16.mxu0 0
        %2340 = vmatpush1.bf16.xpose.msra.mxu0 0
        %2341 = vmatprep.mubr.bf16.mxu0 0
        %2342 = vmatmul.mubr.bf16.gmra.mrb[0].mxu0 %v2304
        %v2343 = vpop.f32.mrb[0].mxu0
        %v2344 = vadd.f32 0.0, %v2343
        %v2345 = vpop.f32.mrb[0].mxu0
        %v2346 = vpop.f32.mrb[0].mxu0
        %v2347 = vpop.f32.mrb[0].mxu0
        %2348 = vdwg.mxu0
        %v2350 = vsel %vm1629, %v2296, 0
        %v2353 = vsel %vm1629, %v2300, 0
        %2355 = vmatprep.subr.bf16.mxu0 0
        %2356 = vmatpush1.bf16.xpose.msra.mxu0 %v2353
        %2357 = vmatprep.subr.bf16.mxu0 0
        %2358 = vmatpush1.bf16.xpose.msra.mxu0 0
        %2359 = vmatprep.subr.bf16.mxu0 0
        %2360 = vmatpush1.bf16.xpose.msra.mxu0 0
        %2361 = vmatprep.subr.bf16.mxu0 0
        %2362 = vmatpush1.bf16.xpose.msra.mxu0 0
        %2363 = vmatprep.subr.bf16.mxu0 0
        %2364 = vmatpush1.bf16.xpose.msra.mxu0 0
        %2365 = vmatprep.subr.bf16.mxu0 0
        %2366 = vmatpush1.bf16.xpose.msra.mxu0 0
        %2367 = vmatprep.subr.bf16.mxu0 0
        %2368 = vmatpush1.bf16.xpose.msra.mxu0 0
        %2369 = vmatprep.subr.bf16.mxu0 0
        %2370 = vmatpush1.bf16.xpose.msra.mxu0 0
        %2371 = vmatprep.subr.bf16.mxu0 0
        %2372 = vmatpush1.bf16.xpose.msra.mxu0 0
        %2373 = vmatprep.subr.bf16.mxu0 0
        %2374 = vmatpush1.bf16.xpose.msra.mxu0 0
        %2375 = vmatprep.subr.bf16.mxu0 0
        %2376 = vmatpush1.bf16.xpose.msra.mxu0 0
        %2377 = vmatprep.subr.bf16.mxu0 0
        %2378 = vmatpush1.bf16.xpose.msra.mxu0 0
        %2379 = vmatprep.subr.bf16.mxu0 0
        %2380 = vmatpush1.bf16.xpose.msra.mxu0 0
        %2381 = vmatprep.subr.bf16.mxu0 0
        %2382 = vmatpush1.bf16.xpose.msra.mxu0 0
        %2383 = vmatprep.subr.bf16.mxu0 0
        %2384 = vmatpush1.bf16.xpose.msra.mxu0 0
        %2385 = vmatprep.subr.bf16.mxu0 0
        %2386 = vmatpush1.bf16.xpose.msra.mxu0 0
        %2387 = vmatprep.mubr.bf16.mxu0 0
        %2388 = vmatmul.mubr.bf16.gmra.mrb[0].mxu0 %v2350
        %v2389 = vpop.f32.mrb[0].mxu0
        %v2390 = vadd.f32 0.0, %v2389
        %v2391 = vpop.f32.mrb[0].mxu0
        %v2392 = vpop.f32.mrb[0].mxu0
        %v2393 = vpop.f32.mrb[0].mxu0
        %2394 = vdwg.mxu0
        %v2396 = vsel %vm1629, %v2297, 0
        %v2399 = vsel %vm1629, %v2301, 0
        %2401 = vmatprep.subr.bf16.mxu0 0
        %2402 = vmatpush1.bf16.xpose.msra.mxu0 %v2399
        %2403 = vmatprep.subr.bf16.mxu0 0
        %2404 = vmatpush1.bf16.xpose.msra.mxu0 0
        %2405 = vmatprep.subr.bf16.mxu0 0
        %2406 = vmatpush1.bf16.xpose.msra.mxu0 0
        %2407 = vmatprep.subr.bf16.mxu0 0
        %2408 = vmatpush1.bf16.xpose.msra.mxu0 0
        %2409 = vmatprep.subr.bf16.mxu0 0
        %2410 = vmatpush1.bf16.xpose.msra.mxu0 0
        %2411 = vmatprep.subr.bf16.mxu0 0
        %2412 = vmatpush1.bf16.xpose.msra.mxu0 0
        %2413 = vmatprep.subr.bf16.mxu0 0
        %2414 = vmatpush1.bf16.xpose.msra.mxu0 0
        %2415 = vmatprep.subr.bf16.mxu0 0
        %2416 = vmatpush1.bf16.xpose.msra.mxu0 0
        %2417 = vmatprep.subr.bf16.mxu0 0
        %2418 = vmatpush1.bf16.xpose.msra.mxu0 0
        %2419 = vmatprep.subr.bf16.mxu0 0
        %2420 = vmatpush1.bf16.xpose.msra.mxu0 0
        %2421 = vmatprep.subr.bf16.mxu0 0
        %2422 = vmatpush1.bf16.xpose.msra.mxu0 0
        %2423 = vmatprep.subr.bf16.mxu0 0
        %2424 = vmatpush1.bf16.xpose.msra.mxu0 0
        %2425 = vmatprep.subr.bf16.mxu0 0
        %2426 = vmatpush1.bf16.xpose.msra.mxu0 0
        %2427 = vmatprep.subr.bf16.mxu0 0
        %2428 = vmatpush1.bf16.xpose.msra.mxu0 0
        %2429 = vmatprep.subr.bf16.mxu0 0
        %2430 = vmatpush1.bf16.xpose.msra.mxu0 0
        %2431 = vmatprep.subr.bf16.mxu0 0
        %2432 = vmatpush1.bf16.xpose.msra.mxu0 0
        %2433 = vmatprep.mubr.bf16.mxu0 0
        %2434 = vmatmul.mubr.bf16.gmra.mrb[0].mxu0 %v2396
        %v2435 = vpop.f32.mrb[0].mxu0
        %v2436 = vadd.f32 0.0, %v2435
        %v2437 = vpop.f32.mrb[0].mxu0
        %v2438 = vpop.f32.mrb[0].mxu0
        %v2439 = vpop.f32.mrb[0].mxu0
        %2440 = vdwg.mxu0
        %v2442 = vsel %vm1629, %v2298, 0
        %v2445 = vsel %vm1629, %v2302, 0
        %2447 = vmatprep.subr.bf16.mxu0 0
        %2448 = vmatpush1.bf16.xpose.msra.mxu0 %v2445
        %2449 = vmatprep.subr.bf16.mxu0 0
        %2450 = vmatpush1.bf16.xpose.msra.mxu0 0
        %2451 = vmatprep.subr.bf16.mxu0 0
        %2452 = vmatpush1.bf16.xpose.msra.mxu0 0
        %2453 = vmatprep.subr.bf16.mxu0 0
        %2454 = vmatpush1.bf16.xpose.msra.mxu0 0
        %2455 = vmatprep.subr.bf16.mxu0 0
        %2456 = vmatpush1.bf16.xpose.msra.mxu0 0
        %2457 = vmatprep.subr.bf16.mxu0 0
        %2458 = vmatpush1.bf16.xpose.msra.mxu0 0
        %2459 = vmatprep.subr.bf16.mxu0 0
        %2460 = vmatpush1.bf16.xpose.msra.mxu0 0
        %2461 = vmatprep.subr.bf16.mxu0 0
        %2462 = vmatpush1.bf16.xpose.msra.mxu0 0
        %2463 = vmatprep.subr.bf16.mxu0 0
        %2464 = vmatpush1.bf16.xpose.msra.mxu0 0
        %2465 = vmatprep.subr.bf16.mxu0 0
        %2466 = vmatpush1.bf16.xpose.msra.mxu0 0
        %2467 = vmatprep.subr.bf16.mxu0 0
        %2468 = vmatpush1.bf16.xpose.msra.mxu0 0
        %2469 = vmatprep.subr.bf16.mxu0 0
        %2470 = vmatpush1.bf16.xpose.msra.mxu0 0
        %2471 = vmatprep.subr.bf16.mxu0 0
        %2472 = vmatpush1.bf16.xpose.msra.mxu0 0
        %2473 = vmatprep.subr.bf16.mxu0 0
        %2474 = vmatpush1.bf16.xpose.msra.mxu0 0
        %2475 = vmatprep.subr.bf16.mxu0 0
        %2476 = vmatpush1.bf16.xpose.msra.mxu0 0
        %2477 = vmatprep.subr.bf16.mxu0 0
        %2478 = vmatpush1.bf16.xpose.msra.mxu0 0
        %2479 = vmatprep.mubr.bf16.mxu0 0
        %2480 = vmatmul.mubr.bf16.gmra.mrb[0].mxu0 %v2442
        %v2481 = vpop.f32.mrb[0].mxu0
        %v2482 = vadd.f32 0.0, %v2481
        %v2483 = vpop.f32.mrb[0].mxu0
        %v2484 = vpop.f32.mrb[0].mxu0
        %v2485 = vpop.f32.mrb[0].mxu0
        %2486 = vdwg.mxu0
        %v2487 = vmul.f32 %v2344, 0.17677669
        %v2488 = vmul.f32 %v2390, 0.17677669
        %v2489 = vmul.f32 %v2436, 0.17677669
        %v2490 = vmul.f32 %v2482, 0.17677669
        %v2491 = vsel %vm1629, %v2487, -inf
        %2492 = vmax.xlane.f32.xlu0 %v2491
        %v2493 = vpop.xlane.xlu0 %2492
        %v2494 = vsel %vm1629, %v2488, -inf
        %2495 = vmax.xlane.f32.xlu0 %v2494
        %v2496 = vpop.xlane.xlu0 %2495
        %v2497 = vsel %vm1629, %v2489, -inf
        %2498 = vmax.xlane.f32.xlu0 %v2497
        %v2499 = vpop.xlane.xlu0 %2498
        %v2500 = vsel %vm1629, %v2490, -inf
        %2501 = vmax.xlane.f32.xlu0 %v2500
        %v2502 = vpop.xlane.xlu0 %2501
        %v2503 = vsub.f32 %v2487, %v2493
        %v2504 = vsub.f32 %v2488, %v2496
        %v2505 = vsub.f32 %v2489, %v2499
        %v2506 = vsub.f32 %v2490, %v2502
        %v2507 = vmul.f32 %v2503, 1.442695
        %v2508 = vpow.pop %v2507
        %v2509 = vmul.f32 %v2504, 1.442695
        %v2510 = vpow.pop %v2509
        %v2511 = vmul.f32 %v2505, 1.442695
        %v2512 = vpow.pop %v2511
        %v2513 = vmul.f32 %v2506, 1.442695
        %v2514 = vpow.pop %v2513
        %v2515 = vsel %vm1629, %v2508, 0.0
        %2516 = vadd.xlane.f32.xlu0 %v2515
        %v2517 = vpop.xlane.xlu0 %2516
        %v2518 = vsel %vm1629, %v2510, 0.0
        %2519 = vadd.xlane.f32.xlu0 %v2518
        %v2520 = vpop.xlane.xlu0 %2519
        %v2521 = vsel %vm1629, %v2512, 0.0
        %2522 = vadd.xlane.f32.xlu0 %v2521
        %v2523 = vpop.xlane.xlu0 %2522
        %v2524 = vsel %vm1629, %v2514, 0.0
        %2525 = vadd.xlane.f32.xlu0 %v2524
        %v2526 = vpop.xlane.xlu0 %2525
        %v2527 = vrcp.pop %v2517
        %v2528 = vrcp.pop %v2520
        %v2529 = vrcp.pop %v2523
        %v2530 = vrcp.pop %v2526
        %v2531 = vmul.f32 %v2508, %v2527
        %v2532 = vmul.f32 %v2510, %v2528
        %v2533 = vmul.f32 %v2512, %v2529
        %v2534 = vmul.f32 %v2514, %v2530
        %v2535 = vpack.c.bf16 %v2531, %v2531
        %v2536 = vpack.c.bf16 %v2532, %v2532
        %v2537 = vpack.c.bf16 %v2533, %v2533
        %v2538 = vpack.c.bf16 %v2534, %v2534
        %2540 = vrot.lane.b32.xlu0 %v2299, 96
        %v2541 = vpop.permute.xlu0 %2540
        %v2543 = vsel %vm1629, %v2535, 0
        %v2546 = vsel %vm1872, %v2541, 0
        %2548 = vmatprep.subr.bf16.mxu0 0
        %2549 = vmatpush1.bf16.msra.mxu0 %v2546
        %2550 = vmatprep.subr.bf16.mxu0 0
        %2551 = vmatpush1.bf16.msra.mxu0 0
        %2552 = vmatprep.subr.bf16.mxu0 0
        %2553 = vmatpush1.bf16.msra.mxu0 0
        %2554 = vmatprep.subr.bf16.mxu0 0
        %2555 = vmatpush1.bf16.msra.mxu0 0
        %2556 = vmatprep.subr.bf16.mxu0 0
        %2557 = vmatpush1.bf16.msra.mxu0 0
        %2558 = vmatprep.subr.bf16.mxu0 0
        %2559 = vmatpush1.bf16.msra.mxu0 0
        %2560 = vmatprep.subr.bf16.mxu0 0
        %2561 = vmatpush1.bf16.msra.mxu0 0
        %2562 = vmatprep.subr.bf16.mxu0 0
        %2563 = vmatpush1.bf16.msra.mxu0 0
        %2564 = vmatprep.subr.bf16.mxu0 0
        %2565 = vmatpush1.bf16.msra.mxu0 0
        %2566 = vmatprep.subr.bf16.mxu0 0
        %2567 = vmatpush1.bf16.msra.mxu0 0
        %2568 = vmatprep.subr.bf16.mxu0 0
        %2569 = vmatpush1.bf16.msra.mxu0 0
        %2570 = vmatprep.subr.bf16.mxu0 0
        %2571 = vmatpush1.bf16.msra.mxu0 0
        %2572 = vmatprep.subr.bf16.mxu0 0
        %2573 = vmatpush1.bf16.msra.mxu0 0
        %2574 = vmatprep.subr.bf16.mxu0 0
        %2575 = vmatpush1.bf16.msra.mxu0 0
        %2576 = vmatprep.subr.bf16.mxu0 0
        %2577 = vmatpush1.bf16.msra.mxu0 0
        %2578 = vmatprep.subr.bf16.mxu0 0
        %2579 = vmatpush1.bf16.msra.mxu0 0
        %2580 = vmatprep.mubr.bf16.mxu0 0
        %2581 = vmatmul.mubr.bf16.gmra.mrb[0].mxu0 %v2543
        %v2582 = vpop.f32.mrb[0].mxu0
        %v2583 = vadd.f32 0.0, %v2582
        %v2584 = vpop.f32.mrb[0].mxu0
        %v2585 = vpop.f32.mrb[0].mxu0
        %v2586 = vpop.f32.mrb[0].mxu0
        %2587 = vdwg.mxu0
        %2589 = vrot.lane.b32.xlu0 %v2300, 96
        %v2590 = vpop.permute.xlu0 %2589
        %v2592 = vsel %vm1629, %v2536, 0
        %v2595 = vsel %vm1872, %v2590, 0
        %2597 = vmatprep.subr.bf16.mxu0 0
        %2598 = vmatpush1.bf16.msra.mxu0 %v2595
        %2599 = vmatprep.subr.bf16.mxu0 0
        %2600 = vmatpush1.bf16.msra.mxu0 0
        %2601 = vmatprep.subr.bf16.mxu0 0
        %2602 = vmatpush1.bf16.msra.mxu0 0
        %2603 = vmatprep.subr.bf16.mxu0 0
        %2604 = vmatpush1.bf16.msra.mxu0 0
        %2605 = vmatprep.subr.bf16.mxu0 0
        %2606 = vmatpush1.bf16.msra.mxu0 0
        %2607 = vmatprep.subr.bf16.mxu0 0
        %2608 = vmatpush1.bf16.msra.mxu0 0
        %2609 = vmatprep.subr.bf16.mxu0 0
        %2610 = vmatpush1.bf16.msra.mxu0 0
        %2611 = vmatprep.subr.bf16.mxu0 0
        %2612 = vmatpush1.bf16.msra.mxu0 0
        %2613 = vmatprep.subr.bf16.mxu0 0
        %2614 = vmatpush1.bf16.msra.mxu0 0
        %2615 = vmatprep.subr.bf16.mxu0 0
        %2616 = vmatpush1.bf16.msra.mxu0 0
        %2617 = vmatprep.subr.bf16.mxu0 0
        %2618 = vmatpush1.bf16.msra.mxu0 0
        %2619 = vmatprep.subr.bf16.mxu0 0
        %2620 = vmatpush1.bf16.msra.mxu0 0
        %2621 = vmatprep.subr.bf16.mxu0 0
        %2622 = vmatpush1.bf16.msra.mxu0 0
        %2623 = vmatprep.subr.bf16.mxu0 0
        %2624 = vmatpush1.bf16.msra.mxu0 0
        %2625 = vmatprep.subr.bf16.mxu0 0
        %2626 = vmatpush1.bf16.msra.mxu0 0
        %2627 = vmatprep.subr.bf16.mxu0 0
        %2628 = vmatpush1.bf16.msra.mxu0 0
        %2629 = vmatprep.mubr.bf16.mxu0 0
        %2630 = vmatmul.mubr.bf16.gmra.mrb[0].mxu0 %v2592
        %v2631 = vpop.f32.mrb[0].mxu0
        %v2632 = vadd.f32 0.0, %v2631
        %v2633 = vpop.f32.mrb[0].mxu0
        %v2634 = vpop.f32.mrb[0].mxu0
        %v2635 = vpop.f32.mrb[0].mxu0
        %2636 = vdwg.mxu0
        %2638 = vrot.lane.b32.xlu0 %v2301, 96
        %v2639 = vpop.permute.xlu0 %2638
        %v2641 = vsel %vm1629, %v2537, 0
        %v2644 = vsel %vm1872, %v2639, 0
        %2646 = vmatprep.subr.bf16.mxu0 0
        %2647 = vmatpush1.bf16.msra.mxu0 %v2644
        %2648 = vmatprep.subr.bf16.mxu0 0
        %2649 = vmatpush1.bf16.msra.mxu0 0
        %2650 = vmatprep.subr.bf16.mxu0 0
        %2651 = vmatpush1.bf16.msra.mxu0 0
        %2652 = vmatprep.subr.bf16.mxu0 0
        %2653 = vmatpush1.bf16.msra.mxu0 0
        %2654 = vmatprep.subr.bf16.mxu0 0
        %2655 = vmatpush1.bf16.msra.mxu0 0
        %2656 = vmatprep.subr.bf16.mxu0 0
        %2657 = vmatpush1.bf16.msra.mxu0 0
        %2658 = vmatprep.subr.bf16.mxu0 0
        %2659 = vmatpush1.bf16.msra.mxu0 0
        %2660 = vmatprep.subr.bf16.mxu0 0
        %2661 = vmatpush1.bf16.msra.mxu0 0
        %2662 = vmatprep.subr.bf16.mxu0 0
        %2663 = vmatpush1.bf16.msra.mxu0 0
        %2664 = vmatprep.subr.bf16.mxu0 0
        %2665 = vmatpush1.bf16.msra.mxu0 0
        %2666 = vmatprep.subr.bf16.mxu0 0
        %2667 = vmatpush1.bf16.msra.mxu0 0
        %2668 = vmatprep.subr.bf16.mxu0 0
        %2669 = vmatpush1.bf16.msra.mxu0 0
        %2670 = vmatprep.subr.bf16.mxu0 0
        %2671 = vmatpush1.bf16.msra.mxu0 0
        %2672 = vmatprep.subr.bf16.mxu0 0
        %2673 = vmatpush1.bf16.msra.mxu0 0
        %2674 = vmatprep.subr.bf16.mxu0 0
        %2675 = vmatpush1.bf16.msra.mxu0 0
        %2676 = vmatprep.subr.bf16.mxu0 0
        %2677 = vmatpush1.bf16.msra.mxu0 0
        %2678 = vmatprep.mubr.bf16.mxu0 0
        %2679 = vmatmul.mubr.bf16.gmra.mrb[0].mxu0 %v2641
        %v2680 = vpop.f32.mrb[0].mxu0
        %v2681 = vadd.f32 0.0, %v2680
        %v2682 = vpop.f32.mrb[0].mxu0
        %v2683 = vpop.f32.mrb[0].mxu0
        %v2684 = vpop.f32.mrb[0].mxu0
        %2685 = vdwg.mxu0
        %2687 = vrot.lane.b32.xlu0 %v2302, 96
        %v2688 = vpop.permute.xlu0 %2687
        %v2690 = vsel %vm1629, %v2538, 0
        %v2693 = vsel %vm1872, %v2688, 0
        %2695 = vmatprep.subr.bf16.mxu0 0
        %2696 = vmatpush1.bf16.msra.mxu0 %v2693
        %2697 = vmatprep.subr.bf16.mxu0 0
        %2698 = vmatpush1.bf16.msra.mxu0 0
        %2699 = vmatprep.subr.bf16.mxu0 0
        %2700 = vmatpush1.bf16.msra.mxu0 0
        %2701 = vmatprep.subr.bf16.mxu0 0
        %2702 = vmatpush1.bf16.msra.mxu0 0
        %2703 = vmatprep.subr.bf16.mxu0 0
        %2704 = vmatpush1.bf16.msra.mxu0 0
        %2705 = vmatprep.subr.bf16.mxu0 0
        %2706 = vmatpush1.bf16.msra.mxu0 0
        %2707 = vmatprep.subr.bf16.mxu0 0
        %2708 = vmatpush1.bf16.msra.mxu0 0
        %2709 = vmatprep.subr.bf16.mxu0 0
        %2710 = vmatpush1.bf16.msra.mxu0 0
        %2711 = vmatprep.subr.bf16.mxu0 0
        %2712 = vmatpush1.bf16.msra.mxu0 0
        %2713 = vmatprep.subr.bf16.mxu0 0
        %2714 = vmatpush1.bf16.msra.mxu0 0
        %2715 = vmatprep.subr.bf16.mxu0 0
        %2716 = vmatpush1.bf16.msra.mxu0 0
        %2717 = vmatprep.subr.bf16.mxu0 0
        %2718 = vmatpush1.bf16.msra.mxu0 0
        %2719 = vmatprep.subr.bf16.mxu0 0
        %2720 = vmatpush1.bf16.msra.mxu0 0
        %2721 = vmatprep.subr.bf16.mxu0 0
        %2722 = vmatpush1.bf16.msra.mxu0 0
        %2723 = vmatprep.subr.bf16.mxu0 0
        %2724 = vmatpush1.bf16.msra.mxu0 0
        %2725 = vmatprep.subr.bf16.mxu0 0
        %2726 = vmatpush1.bf16.msra.mxu0 0
        %2727 = vmatprep.mubr.bf16.mxu0 0
        %2728 = vmatmul.mubr.bf16.gmra.mrb[0].mxu0 %v2690
        %v2729 = vpop.f32.mrb[0].mxu0
        %v2730 = vadd.f32 0.0, %v2729
        %v2731 = vpop.f32.mrb[0].mxu0
        %v2732 = vpop.f32.mrb[0].mxu0
        %v2733 = vpop.f32.mrb[0].mxu0
        %2734 = vdwg.mxu0
        %v2735 = vadd.f32 %v2203, %v2583
        %v2736 = vadd.f32 %v2277, %v2632
        %v2737 = vadd.f32 %v2280, %v2681
        %v2738 = vadd.f32 %v2283, %v2730
        %2740 = vrot.lane.b32.xlu0 %v2736, 8
        %v2741 = vpop.permute.xlu0 %2740
        %2744 = vrot.lane.b32.xlu0 %v2737, 16
        %v2745 = vpop.permute.xlu0 %2744
        %2748 = vrot.lane.b32.xlu0 %v2738, 24
        %v2749 = vpop.permute.xlu0 %2748
        %v2751 = vsel %vm1629, %v2735, %v2741
        %v2752 = vsel %vm1557, %v2751, %v2745
        %v2753 = vsel %vm2081, %v2752, %v2749
        %v2754 = vpack.c.bf16 %v2753, %v2753
        %v2755 = vld [vmem:[#allocation32] sm:$0xf]
        %v2756 = vld [vmem:[#allocation32 + $0x4] sm:$0xf]
        %v2757 = vld [vmem:[#allocation32 + $0x8] sm:$0xf]
        %v2758 = vld [vmem:[#allocation32 + $0xc] sm:$0xf]
        %v2759 = vld [vmem:[#allocation29] sm:$0x1]
        %v2761 = vlaneseq
        %v2762 = vshrl.u32 %v2761, 7
        %v2763 = vsub.s32 0, %v2762
        %v2764 = vrot.slane %v2759, %v2763
        %v2770 = vunpack.c.l.b16 %v2755
        %v2771 = vunpack.c.l.b16 %v2756
        %v2772 = vunpack.c.l.b16 %v2757
        %v2773 = vunpack.c.l.b16 %v2758
        %v2774 = vpack.c.b16 %v2771, %v2770
        %v2775 = vpack.c.b16 %v2773, %v2772
        %v2779 = vsel %vm2107, %v2754, 0
        %2781 = vmatprep.subr.bf16.mxu0 0
        %2782 = vmatpush1.bf16.msra.mxu0 %v2774
        %2783 = vmatprep.subr.bf16.mxu0 0
        %2784 = vmatpush1.bf16.msra.mxu0 %v2775
        %2785 = vmatprep.subr.bf16.mxu0 0
        %2786 = vmatpush1.bf16.msra.mxu0 0
        %2787 = vmatprep.subr.bf16.mxu0 0
        %2788 = vmatpush1.bf16.msra.mxu0 0
        %2789 = vmatprep.subr.bf16.mxu0 0
        %2790 = vmatpush1.bf16.msra.mxu0 0
        %2791 = vmatprep.subr.bf16.mxu0 0
        %2792 = vmatpush1.bf16.msra.mxu0 0
        %2793 = vmatprep.subr.bf16.mxu0 0
        %2794 = vmatpush1.bf16.msra.mxu0 0
        %2795 = vmatprep.subr.bf16.mxu0 0
        %2796 = vmatpush1.bf16.msra.mxu0 0
        %2797 = vmatprep.subr.bf16.mxu0 0
        %2798 = vmatpush1.bf16.msra.mxu0 0
        %2799 = vmatprep.subr.bf16.mxu0 0
        %2800 = vmatpush1.bf16.msra.mxu0 0
        %2801 = vmatprep.subr.bf16.mxu0 0
        %2802 = vmatpush1.bf16.msra.mxu0 0
        %2803 = vmatprep.subr.bf16.mxu0 0
        %2804 = vmatpush1.bf16.msra.mxu0 0
        %2805 = vmatprep.subr.bf16.mxu0 0
        %2806 = vmatpush1.bf16.msra.mxu0 0
        %2807 = vmatprep.subr.bf16.mxu0 0
        %2808 = vmatpush1.bf16.msra.mxu0 0
        %2809 = vmatprep.subr.bf16.mxu0 0
        %2810 = vmatpush1.bf16.msra.mxu0 0
        %2811 = vmatprep.subr.bf16.mxu0 0
        %2812 = vmatpush1.bf16.msra.mxu0 0
        %2813 = vmatprep.mubr.bf16.mxu0 0
        %2814 = vmatmul.mubr.bf16.gmra.mrb[0].mxu0 %v2779
        %v2815 = vpop.f32.mrb[0].mxu0
        %v2816 = vadd.f32 %v2764, %v2815
        %v2817 = vpop.f32.mrb[0].mxu0
        %v2818 = vpop.f32.mrb[0].mxu0
        %v2819 = vpop.f32.mrb[0].mxu0
        %2820 = vdwg.mxu0
        %v2821 = vmax.f32 %v2816, 0.0
        %v2822 = vadd.f32 %v2753, %v2821
        %v2823 = vld [vmem:[%s75] sm:$0xff]
        %v2824 = vpack.c.bf16 %v2822, %v2822
        %v2825 = vld [vmem:[%s59] sm:$0xf]
        %v2826 = vld [vmem:[%s59 + $0x4] sm:$0xf]
        %v2827 = vld [vmem:[%s59 + $0x8] sm:$0xf]
        %v2828 = vld [vmem:[%s59 + $0xc] sm:$0xf]
        %v2829 = vld [vmem:[#allocation37] sm:$0x1]
        %v2831 = vlaneseq
        %v2832 = vshrl.u32 %v2831, 7
        %v2833 = vsub.s32 0, %v2832
        %v2834 = vrot.slane %v2829, %v2833
        %v2840 = vunpack.c.l.b16 %v2825
        %v2841 = vunpack.c.l.b16 %v2826
        %v2842 = vunpack.c.l.b16 %v2827
        %v2843 = vunpack.c.l.b16 %v2828
        %v2844 = vpack.c.b16 %v2841, %v2840
        %v2845 = vpack.c.b16 %v2843, %v2842
        %v2849 = vsel %vm2107, %v2824, 0
        %2851 = vmatprep.subr.bf16.mxu0 0
        %2852 = vmatpush1.bf16.msra.mxu0 %v2844
        %2853 = vmatprep.subr.bf16.mxu0 0
        %2854 = vmatpush1.bf16.msra.mxu0 %v2845
        %2855 = vmatprep.subr.bf16.mxu0 0
        %2856 = vmatpush1.bf16.msra.mxu0 0
        %2857 = vmatprep.subr.bf16.mxu0 0
        %2858 = vmatpush1.bf16.msra.mxu0 0
        %2859 = vmatprep.subr.bf16.mxu0 0
        %2860 = vmatpush1.bf16.msra.mxu0 0
        %2861 = vmatprep.subr.bf16.mxu0 0
        %2862 = vmatpush1.bf16.msra.mxu0 0
        %2863 = vmatprep.subr.bf16.mxu0 0
        %2864 = vmatpush1.bf16.msra.mxu0 0
        %2865 = vmatprep.subr.bf16.mxu0 0
        %2866 = vmatpush1.bf16.msra.mxu0 0
        %2867 = vmatprep.subr.bf16.mxu0 0
        %2868 = vmatpush1.bf16.msra.mxu0 0
        %2869 = vmatprep.subr.bf16.mxu0 0
        %2870 = vmatpush1.bf16.msra.mxu0 0
        %2871 = vmatprep.subr.bf16.mxu0 0
        %2872 = vmatpush1.bf16.msra.mxu0 0
        %2873 = vmatprep.subr.bf16.mxu0 0
        %2874 = vmatpush1.bf16.msra.mxu0 0
        %2875 = vmatprep.subr.bf16.mxu0 0
        %2876 = vmatpush1.bf16.msra.mxu0 0
        %2877 = vmatprep.subr.bf16.mxu0 0
        %2878 = vmatpush1.bf16.msra.mxu0 0
        %2879 = vmatprep.subr.bf16.mxu0 0
        %2880 = vmatpush1.bf16.msra.mxu0 0
        %2881 = vmatprep.subr.bf16.mxu0 0
        %2882 = vmatpush1.bf16.msra.mxu0 0
        %2883 = vmatprep.mubr.bf16.mxu0 0
        %2884 = vmatmul.mubr.bf16.gmra.mrb[0].mxu0 %v2849
        %v2885 = vpop.f32.mrb[0].mxu0
        %v2886 = vadd.f32 %v2834, %v2885
        %v2887 = vpop.f32.mrb[0].mxu0
        %v2888 = vpop.f32.mrb[0].mxu0
        %v2889 = vpop.f32.mrb[0].mxu0
        %2890 = vdwg.mxu0
        %2892 = vrot.lane.b32.xlu0 %v2823, 120
        %v2893 = vpop.permute.xlu0 %2892
        %2895 = vrot.lane.b32.xlu0 %v2823, 112
        %v2896 = vpop.permute.xlu0 %2895
        %2898 = vrot.lane.b32.xlu0 %v2823, 104
        %v2899 = vpop.permute.xlu0 %2898
        %2902 = vrot.lane.b32.xlu0 %v2886, 120
        %v2903 = vpop.permute.xlu0 %2902
        %2905 = vrot.lane.b32.xlu0 %v2886, 112
        %v2906 = vpop.permute.xlu0 %2905
        %2908 = vrot.lane.b32.xlu0 %v2886, 104
        %v2909 = vpop.permute.xlu0 %2908
        %v2911 = vpack.c.bf16 %v2823, %v2823
        %v2912 = vpack.c.bf16 %v2893, %v2893
        %v2913 = vpack.c.bf16 %v2896, %v2896
        %v2914 = vpack.c.bf16 %v2899, %v2899
        %v2915 = vpack.c.bf16 %v2886, %v2886
        %v2916 = vpack.c.bf16 %v2903, %v2903
        %v2917 = vpack.c.bf16 %v2906, %v2906
        %v2918 = vpack.c.bf16 %v2909, %v2909
        %v2920 = vsel %vm1629, %v2911, 0
        %v2923 = vsel %vm1629, %v2915, 0
        %2925 = vmatprep.subr.bf16.mxu0 0
        %2926 = vmatpush1.bf16.xpose.msra.mxu0 %v2923
        %2927 = vmatprep.subr.bf16.mxu0 0
        %2928 = vmatpush1.bf16.xpose.msra.mxu0 0
        %2929 = vmatprep.subr.bf16.mxu0 0
        %2930 = vmatpush1.bf16.xpose.msra.mxu0 0
        %2931 = vmatprep.subr.bf16.mxu0 0
        %2932 = vmatpush1.bf16.xpose.msra.mxu0 0
        %2933 = vmatprep.subr.bf16.mxu0 0
        %2934 = vmatpush1.bf16.xpose.msra.mxu0 0
        %2935 = vmatprep.subr.bf16.mxu0 0
        %2936 = vmatpush1.bf16.xpose.msra.mxu0 0
        %2937 = vmatprep.subr.bf16.mxu0 0
        %2938 = vmatpush1.bf16.xpose.msra.mxu0 0
        %2939 = vmatprep.subr.bf16.mxu0 0
        %2940 = vmatpush1.bf16.xpose.msra.mxu0 0
        %2941 = vmatprep.subr.bf16.mxu0 0
        %2942 = vmatpush1.bf16.xpose.msra.mxu0 0
        %2943 = vmatprep.subr.bf16.mxu0 0
        %2944 = vmatpush1.bf16.xpose.msra.mxu0 0
        %2945 = vmatprep.subr.bf16.mxu0 0
        %2946 = vmatpush1.bf16.xpose.msra.mxu0 0
        %2947 = vmatprep.subr.bf16.mxu0 0
        %2948 = vmatpush1.bf16.xpose.msra.mxu0 0
        %2949 = vmatprep.subr.bf16.mxu0 0
        %2950 = vmatpush1.bf16.xpose.msra.mxu0 0
        %2951 = vmatprep.subr.bf16.mxu0 0
        %2952 = vmatpush1.bf16.xpose.msra.mxu0 0
        %2953 = vmatprep.subr.bf16.mxu0 0
        %2954 = vmatpush1.bf16.xpose.msra.mxu0 0
        %2955 = vmatprep.subr.bf16.mxu0 0
        %2956 = vmatpush1.bf16.xpose.msra.mxu0 0
        %2957 = vmatprep.mubr.bf16.mxu0 0
        %2958 = vmatmul.mubr.bf16.gmra.mrb[0].mxu0 %v2920
        %v2959 = vpop.f32.mrb[0].mxu0
        %v2960 = vadd.f32 0.0, %v2959
        %v2961 = vpop.f32.mrb[0].mxu0
        %v2962 = vpop.f32.mrb[0].mxu0
        %v2963 = vpop.f32.mrb[0].mxu0
        %2964 = vdwg.mxu0
        %v2966 = vsel %vm1629, %v2912, 0
        %v2969 = vsel %vm1629, %v2916, 0
        %2971 = vmatprep.subr.bf16.mxu0 0
        %2972 = vmatpush1.bf16.xpose.msra.mxu0 %v2969
        %2973 = vmatprep.subr.bf16.mxu0 0
        %2974 = vmatpush1.bf16.xpose.msra.mxu0 0
        %2975 = vmatprep.subr.bf16.mxu0 0
        %2976 = vmatpush1.bf16.xpose.msra.mxu0 0
        %2977 = vmatprep.subr.bf16.mxu0 0
        %2978 = vmatpush1.bf16.xpose.msra.mxu0 0
        %2979 = vmatprep.subr.bf16.mxu0 0
        %2980 = vmatpush1.bf16.xpose.msra.mxu0 0
        %2981 = vmatprep.subr.bf16.mxu0 0
        %2982 = vmatpush1.bf16.xpose.msra.mxu0 0
        %2983 = vmatprep.subr.bf16.mxu0 0
        %2984 = vmatpush1.bf16.xpose.msra.mxu0 0
        %2985 = vmatprep.subr.bf16.mxu0 0
        %2986 = vmatpush1.bf16.xpose.msra.mxu0 0
        %2987 = vmatprep.subr.bf16.mxu0 0
        %2988 = vmatpush1.bf16.xpose.msra.mxu0 0
        %2989 = vmatprep.subr.bf16.mxu0 0
        %2990 = vmatpush1.bf16.xpose.msra.mxu0 0
        %2991 = vmatprep.subr.bf16.mxu0 0
        %2992 = vmatpush1.bf16.xpose.msra.mxu0 0
        %2993 = vmatprep.subr.bf16.mxu0 0
        %2994 = vmatpush1.bf16.xpose.msra.mxu0 0
        %2995 = vmatprep.subr.bf16.mxu0 0
        %2996 = vmatpush1.bf16.xpose.msra.mxu0 0
        %2997 = vmatprep.subr.bf16.mxu0 0
        %2998 = vmatpush1.bf16.xpose.msra.mxu0 0
        %2999 = vmatprep.subr.bf16.mxu0 0
        %3000 = vmatpush1.bf16.xpose.msra.mxu0 0
        %3001 = vmatprep.subr.bf16.mxu0 0
        %3002 = vmatpush1.bf16.xpose.msra.mxu0 0
        %3003 = vmatprep.mubr.bf16.mxu0 0
        %3004 = vmatmul.mubr.bf16.gmra.mrb[0].mxu0 %v2966
        %v3005 = vpop.f32.mrb[0].mxu0
        %v3006 = vadd.f32 0.0, %v3005
        %v3007 = vpop.f32.mrb[0].mxu0
        %v3008 = vpop.f32.mrb[0].mxu0
        %v3009 = vpop.f32.mrb[0].mxu0
        %3010 = vdwg.mxu0
        %v3012 = vsel %vm1629, %v2913, 0
        %v3015 = vsel %vm1629, %v2917, 0
        %3017 = vmatprep.subr.bf16.mxu0 0
        %3018 = vmatpush1.bf16.xpose.msra.mxu0 %v3015
        %3019 = vmatprep.subr.bf16.mxu0 0
        %3020 = vmatpush1.bf16.xpose.msra.mxu0 0
        %3021 = vmatprep.subr.bf16.mxu0 0
        %3022 = vmatpush1.bf16.xpose.msra.mxu0 0
        %3023 = vmatprep.subr.bf16.mxu0 0
        %3024 = vmatpush1.bf16.xpose.msra.mxu0 0
        %3025 = vmatprep.subr.bf16.mxu0 0
        %3026 = vmatpush1.bf16.xpose.msra.mxu0 0
        %3027 = vmatprep.subr.bf16.mxu0 0
        %3028 = vmatpush1.bf16.xpose.msra.mxu0 0
        %3029 = vmatprep.subr.bf16.mxu0 0
        %3030 = vmatpush1.bf16.xpose.msra.mxu0 0
        %3031 = vmatprep.subr.bf16.mxu0 0
        %3032 = vmatpush1.bf16.xpose.msra.mxu0 0
        %3033 = vmatprep.subr.bf16.mxu0 0
        %3034 = vmatpush1.bf16.xpose.msra.mxu0 0
        %3035 = vmatprep.subr.bf16.mxu0 0
        %3036 = vmatpush1.bf16.xpose.msra.mxu0 0
        %3037 = vmatprep.subr.bf16.mxu0 0
        %3038 = vmatpush1.bf16.xpose.msra.mxu0 0
        %3039 = vmatprep.subr.bf16.mxu0 0
        %3040 = vmatpush1.bf16.xpose.msra.mxu0 0
        %3041 = vmatprep.subr.bf16.mxu0 0
        %3042 = vmatpush1.bf16.xpose.msra.mxu0 0
        %3043 = vmatprep.subr.bf16.mxu0 0
        %3044 = vmatpush1.bf16.xpose.msra.mxu0 0
        %3045 = vmatprep.subr.bf16.mxu0 0
        %3046 = vmatpush1.bf16.xpose.msra.mxu0 0
        %3047 = vmatprep.subr.bf16.mxu0 0
        %3048 = vmatpush1.bf16.xpose.msra.mxu0 0
        %3049 = vmatprep.mubr.bf16.mxu0 0
        %3050 = vmatmul.mubr.bf16.gmra.mrb[0].mxu0 %v3012
        %v3051 = vpop.f32.mrb[0].mxu0
        %v3052 = vadd.f32 0.0, %v3051
        %v3053 = vpop.f32.mrb[0].mxu0
        %v3054 = vpop.f32.mrb[0].mxu0
        %v3055 = vpop.f32.mrb[0].mxu0
        %3056 = vdwg.mxu0
        %v3058 = vsel %vm1629, %v2914, 0
        %v3061 = vsel %vm1629, %v2918, 0
        %3063 = vmatprep.subr.bf16.mxu0 0
        %3064 = vmatpush1.bf16.xpose.msra.mxu0 %v3061
        %3065 = vmatprep.subr.bf16.mxu0 0
        %3066 = vmatpush1.bf16.xpose.msra.mxu0 0
        %3067 = vmatprep.subr.bf16.mxu0 0
        %3068 = vmatpush1.bf16.xpose.msra.mxu0 0
        %3069 = vmatprep.subr.bf16.mxu0 0
        %3070 = vmatpush1.bf16.xpose.msra.mxu0 0
        %3071 = vmatprep.subr.bf16.mxu0 0
        %3072 = vmatpush1.bf16.xpose.msra.mxu0 0
        %3073 = vmatprep.subr.bf16.mxu0 0
        %3074 = vmatpush1.bf16.xpose.msra.mxu0 0
        %3075 = vmatprep.subr.bf16.mxu0 0
        %3076 = vmatpush1.bf16.xpose.msra.mxu0 0
        %3077 = vmatprep.subr.bf16.mxu0 0
        %3078 = vmatpush1.bf16.xpose.msra.mxu0 0
        %3079 = vmatprep.subr.bf16.mxu0 0
        %3080 = vmatpush1.bf16.xpose.msra.mxu0 0
        %3081 = vmatprep.subr.bf16.mxu0 0
        %3082 = vmatpush1.bf16.xpose.msra.mxu0 0
        %3083 = vmatprep.subr.bf16.mxu0 0
        %3084 = vmatpush1.bf16.xpose.msra.mxu0 0
        %3085 = vmatprep.subr.bf16.mxu0 0
        %3086 = vmatpush1.bf16.xpose.msra.mxu0 0
        %3087 = vmatprep.subr.bf16.mxu0 0
        %3088 = vmatpush1.bf16.xpose.msra.mxu0 0
        %3089 = vmatprep.subr.bf16.mxu0 0
        %3090 = vmatpush1.bf16.xpose.msra.mxu0 0
        %3091 = vmatprep.subr.bf16.mxu0 0
        %3092 = vmatpush1.bf16.xpose.msra.mxu0 0
        %3093 = vmatprep.subr.bf16.mxu0 0
        %3094 = vmatpush1.bf16.xpose.msra.mxu0 0
        %3095 = vmatprep.mubr.bf16.mxu0 0
        %3096 = vmatmul.mubr.bf16.gmra.mrb[0].mxu0 %v3058
        %v3097 = vpop.f32.mrb[0].mxu0
        %v3098 = vadd.f32 0.0, %v3097
        %v3099 = vpop.f32.mrb[0].mxu0
        %v3100 = vpop.f32.mrb[0].mxu0
        %v3101 = vpop.f32.mrb[0].mxu0
        %3102 = vdwg.mxu0
        %v3103 = vmul.f32 %v2960, 0.17677669
        %v3104 = vmul.f32 %v3006, 0.17677669
        %v3105 = vmul.f32 %v3052, 0.17677669
        %v3106 = vmul.f32 %v3098, 0.17677669
        %v3107 = vsel %vm1629, %v3103, -inf
        %3108 = vmax.xlane.f32.xlu0 %v3107
        %v3109 = vpop.xlane.xlu0 %3108
        %v3110 = vsel %vm1629, %v3104, -inf
        %3111 = vmax.xlane.f32.xlu0 %v3110
        %v3112 = vpop.xlane.xlu0 %3111
        %v3113 = vsel %vm1629, %v3105, -inf
        %3114 = vmax.xlane.f32.xlu0 %v3113
        %v3115 = vpop.xlane.xlu0 %3114
        %v3116 = vsel %vm1629, %v3106, -inf
        %3117 = vmax.xlane.f32.xlu0 %v3116
        %v3118 = vpop.xlane.xlu0 %3117
        %v3119 = vsub.f32 %v3103, %v3109
        %v3120 = vsub.f32 %v3104, %v3112
        %v3121 = vsub.f32 %v3105, %v3115
        %v3122 = vsub.f32 %v3106, %v3118
        %v3123 = vmul.f32 %v3119, 1.442695
        %v3124 = vpow.pop %v3123
        %v3125 = vmul.f32 %v3120, 1.442695
        %v3126 = vpow.pop %v3125
        %v3127 = vmul.f32 %v3121, 1.442695
        %v3128 = vpow.pop %v3127
        %v3129 = vmul.f32 %v3122, 1.442695
        %v3130 = vpow.pop %v3129
        %v3131 = vsel %vm1629, %v3124, 0.0
        %3132 = vadd.xlane.f32.xlu0 %v3131
        %v3133 = vpop.xlane.xlu0 %3132
        %v3134 = vsel %vm1629, %v3126, 0.0
        %3135 = vadd.xlane.f32.xlu0 %v3134
        %v3136 = vpop.xlane.xlu0 %3135
        %v3137 = vsel %vm1629, %v3128, 0.0
        %3138 = vadd.xlane.f32.xlu0 %v3137
        %v3139 = vpop.xlane.xlu0 %3138
        %v3140 = vsel %vm1629, %v3130, 0.0
        %3141 = vadd.xlane.f32.xlu0 %v3140
        %v3142 = vpop.xlane.xlu0 %3141
        %v3143 = vrcp.pop %v3133
        %v3144 = vrcp.pop %v3136
        %v3145 = vrcp.pop %v3139
        %v3146 = vrcp.pop %v3142
        %v3147 = vmul.f32 %v3124, %v3143
        %v3148 = vmul.f32 %v3126, %v3144
        %v3149 = vmul.f32 %v3128, %v3145
        %v3150 = vmul.f32 %v3130, %v3146
        %v3151 = vpack.c.bf16 %v3147, %v3147
        %v3152 = vpack.c.bf16 %v3148, %v3148
        %v3153 = vpack.c.bf16 %v3149, %v3149
        %v3154 = vpack.c.bf16 %v3150, %v3150
        %3156 = vrot.lane.b32.xlu0 %v2915, 96
        %v3157 = vpop.permute.xlu0 %3156
        %v3159 = vsel %vm1629, %v3151, 0
        %v3162 = vsel %vm1872, %v3157, 0
        %3164 = vmatprep.subr.bf16.mxu0 0
        %3165 = vmatpush1.bf16.msra.mxu0 %v3162
        %3166 = vmatprep.subr.bf16.mxu0 0
        %3167 = vmatpush1.bf16.msra.mxu0 0
        %3168 = vmatprep.subr.bf16.mxu0 0
        %3169 = vmatpush1.bf16.msra.mxu0 0
        %3170 = vmatprep.subr.bf16.mxu0 0
        %3171 = vmatpush1.bf16.msra.mxu0 0
        %3172 = vmatprep.subr.bf16.mxu0 0
        %3173 = vmatpush1.bf16.msra.mxu0 0
        %3174 = vmatprep.subr.bf16.mxu0 0
        %3175 = vmatpush1.bf16.msra.mxu0 0
        %3176 = vmatprep.subr.bf16.mxu0 0
        %3177 = vmatpush1.bf16.msra.mxu0 0
        %3178 = vmatprep.subr.bf16.mxu0 0
        %3179 = vmatpush1.bf16.msra.mxu0 0
        %3180 = vmatprep.subr.bf16.mxu0 0
        %3181 = vmatpush1.bf16.msra.mxu0 0
        %3182 = vmatprep.subr.bf16.mxu0 0
        %3183 = vmatpush1.bf16.msra.mxu0 0
        %3184 = vmatprep.subr.bf16.mxu0 0
        %3185 = vmatpush1.bf16.msra.mxu0 0
        %3186 = vmatprep.subr.bf16.mxu0 0
        %3187 = vmatpush1.bf16.msra.mxu0 0
        %3188 = vmatprep.subr.bf16.mxu0 0
        %3189 = vmatpush1.bf16.msra.mxu0 0
        %3190 = vmatprep.subr.bf16.mxu0 0
        %3191 = vmatpush1.bf16.msra.mxu0 0
        %3192 = vmatprep.subr.bf16.mxu0 0
        %3193 = vmatpush1.bf16.msra.mxu0 0
        %3194 = vmatprep.subr.bf16.mxu0 0
        %3195 = vmatpush1.bf16.msra.mxu0 0
        %3196 = vmatprep.mubr.bf16.mxu0 0
        %3197 = vmatmul.mubr.bf16.gmra.mrb[0].mxu0 %v3159
        %v3198 = vpop.f32.mrb[0].mxu0
        %v3199 = vadd.f32 0.0, %v3198
        %v3200 = vpop.f32.mrb[0].mxu0
        %v3201 = vpop.f32.mrb[0].mxu0
        %v3202 = vpop.f32.mrb[0].mxu0
        %3203 = vdwg.mxu0
        %3205 = vrot.lane.b32.xlu0 %v2916, 96
        %v3206 = vpop.permute.xlu0 %3205
        %v3208 = vsel %vm1629, %v3152, 0
        %v3211 = vsel %vm1872, %v3206, 0
        %3213 = vmatprep.subr.bf16.mxu0 0
        %3214 = vmatpush1.bf16.msra.mxu0 %v3211
        %3215 = vmatprep.subr.bf16.mxu0 0
        %3216 = vmatpush1.bf16.msra.mxu0 0
        %3217 = vmatprep.subr.bf16.mxu0 0
        %3218 = vmatpush1.bf16.msra.mxu0 0
        %3219 = vmatprep.subr.bf16.mxu0 0
        %3220 = vmatpush1.bf16.msra.mxu0 0
        %3221 = vmatprep.subr.bf16.mxu0 0
        %3222 = vmatpush1.bf16.msra.mxu0 0
        %3223 = vmatprep.subr.bf16.mxu0 0
        %3224 = vmatpush1.bf16.msra.mxu0 0
        %3225 = vmatprep.subr.bf16.mxu0 0
        %3226 = vmatpush1.bf16.msra.mxu0 0
        %3227 = vmatprep.subr.bf16.mxu0 0
        %3228 = vmatpush1.bf16.msra.mxu0 0
        %3229 = vmatprep.subr.bf16.mxu0 0
        %3230 = vmatpush1.bf16.msra.mxu0 0
        %3231 = vmatprep.subr.bf16.mxu0 0
        %3232 = vmatpush1.bf16.msra.mxu0 0
        %3233 = vmatprep.subr.bf16.mxu0 0
        %3234 = vmatpush1.bf16.msra.mxu0 0
        %3235 = vmatprep.subr.bf16.mxu0 0
        %3236 = vmatpush1.bf16.msra.mxu0 0
        %3237 = vmatprep.subr.bf16.mxu0 0
        %3238 = vmatpush1.bf16.msra.mxu0 0
        %3239 = vmatprep.subr.bf16.mxu0 0
        %3240 = vmatpush1.bf16.msra.mxu0 0
        %3241 = vmatprep.subr.bf16.mxu0 0
        %3242 = vmatpush1.bf16.msra.mxu0 0
        %3243 = vmatprep.subr.bf16.mxu0 0
        %3244 = vmatpush1.bf16.msra.mxu0 0
        %3245 = vmatprep.mubr.bf16.mxu0 0
        %3246 = vmatmul.mubr.bf16.gmra.mrb[0].mxu0 %v3208
        %v3247 = vpop.f32.mrb[0].mxu0
        %v3248 = vadd.f32 0.0, %v3247
        %v3249 = vpop.f32.mrb[0].mxu0
        %v3250 = vpop.f32.mrb[0].mxu0
        %v3251 = vpop.f32.mrb[0].mxu0
        %3252 = vdwg.mxu0
        %3254 = vrot.lane.b32.xlu0 %v2917, 96
        %v3255 = vpop.permute.xlu0 %3254
        %v3257 = vsel %vm1629, %v3153, 0
        %v3260 = vsel %vm1872, %v3255, 0
        %3262 = vmatprep.subr.bf16.mxu0 0
        %3263 = vmatpush1.bf16.msra.mxu0 %v3260
        %3264 = vmatprep.subr.bf16.mxu0 0
        %3265 = vmatpush1.bf16.msra.mxu0 0
        %3266 = vmatprep.subr.bf16.mxu0 0
        %3267 = vmatpush1.bf16.msra.mxu0 0
        %3268 = vmatprep.subr.bf16.mxu0 0
        %3269 = vmatpush1.bf16.msra.mxu0 0
        %3270 = vmatprep.subr.bf16.mxu0 0
        %3271 = vmatpush1.bf16.msra.mxu0 0
        %3272 = vmatprep.subr.bf16.mxu0 0
        %3273 = vmatpush1.bf16.msra.mxu0 0
        %3274 = vmatprep.subr.bf16.mxu0 0
        %3275 = vmatpush1.bf16.msra.mxu0 0
        %3276 = vmatprep.subr.bf16.mxu0 0
        %3277 = vmatpush1.bf16.msra.mxu0 0
        %3278 = vmatprep.subr.bf16.mxu0 0
        %3279 = vmatpush1.bf16.msra.mxu0 0
        %3280 = vmatprep.subr.bf16.mxu0 0
        %3281 = vmatpush1.bf16.msra.mxu0 0
        %3282 = vmatprep.subr.bf16.mxu0 0
        %3283 = vmatpush1.bf16.msra.mxu0 0
        %3284 = vmatprep.subr.bf16.mxu0 0
        %3285 = vmatpush1.bf16.msra.mxu0 0
        %3286 = vmatprep.subr.bf16.mxu0 0
        %3287 = vmatpush1.bf16.msra.mxu0 0
        %3288 = vmatprep.subr.bf16.mxu0 0
        %3289 = vmatpush1.bf16.msra.mxu0 0
        %3290 = vmatprep.subr.bf16.mxu0 0
        %3291 = vmatpush1.bf16.msra.mxu0 0
        %3292 = vmatprep.subr.bf16.mxu0 0
        %3293 = vmatpush1.bf16.msra.mxu0 0
        %3294 = vmatprep.mubr.bf16.mxu0 0
        %3295 = vmatmul.mubr.bf16.gmra.mrb[0].mxu0 %v3257
        %v3296 = vpop.f32.mrb[0].mxu0
        %v3297 = vadd.f32 0.0, %v3296
        %v3298 = vpop.f32.mrb[0].mxu0
        %v3299 = vpop.f32.mrb[0].mxu0
        %v3300 = vpop.f32.mrb[0].mxu0
        %3301 = vdwg.mxu0
        %3303 = vrot.lane.b32.xlu0 %v2918, 96
        %v3304 = vpop.permute.xlu0 %3303
        %v3306 = vsel %vm1629, %v3154, 0
        %v3309 = vsel %vm1872, %v3304, 0
        %3311 = vmatprep.subr.bf16.mxu0 0
        %3312 = vmatpush1.bf16.msra.mxu0 %v3309
        %3313 = vmatprep.subr.bf16.mxu0 0
        %3314 = vmatpush1.bf16.msra.mxu0 0
        %3315 = vmatprep.subr.bf16.mxu0 0
        %3316 = vmatpush1.bf16.msra.mxu0 0
        %3317 = vmatprep.subr.bf16.mxu0 0
        %3318 = vmatpush1.bf16.msra.mxu0 0
        %3319 = vmatprep.subr.bf16.mxu0 0
        %3320 = vmatpush1.bf16.msra.mxu0 0
        %3321 = vmatprep.subr.bf16.mxu0 0
        %3322 = vmatpush1.bf16.msra.mxu0 0
        %3323 = vmatprep.subr.bf16.mxu0 0
        %3324 = vmatpush1.bf16.msra.mxu0 0
        %3325 = vmatprep.subr.bf16.mxu0 0
        %3326 = vmatpush1.bf16.msra.mxu0 0
        %3327 = vmatprep.subr.bf16.mxu0 0
        %3328 = vmatpush1.bf16.msra.mxu0 0
        %3329 = vmatprep.subr.bf16.mxu0 0
        %3330 = vmatpush1.bf16.msra.mxu0 0
        %3331 = vmatprep.subr.bf16.mxu0 0
        %3332 = vmatpush1.bf16.msra.mxu0 0
        %3333 = vmatprep.subr.bf16.mxu0 0
        %3334 = vmatpush1.bf16.msra.mxu0 0
        %3335 = vmatprep.subr.bf16.mxu0 0
        %3336 = vmatpush1.bf16.msra.mxu0 0
        %3337 = vmatprep.subr.bf16.mxu0 0
        %3338 = vmatpush1.bf16.msra.mxu0 0
        %3339 = vmatprep.subr.bf16.mxu0 0
        %3340 = vmatpush1.bf16.msra.mxu0 0
        %3341 = vmatprep.subr.bf16.mxu0 0
        %3342 = vmatpush1.bf16.msra.mxu0 0
        %3343 = vmatprep.mubr.bf16.mxu0 0
        %3344 = vmatmul.mubr.bf16.gmra.mrb[0].mxu0 %v3306
        %v3345 = vpop.f32.mrb[0].mxu0
        %v3346 = vadd.f32 0.0, %v3345
        %v3347 = vpop.f32.mrb[0].mxu0
        %v3348 = vpop.f32.mrb[0].mxu0
        %v3349 = vpop.f32.mrb[0].mxu0
        %3350 = vdwg.mxu0
        %v3351 = vadd.f32 %v2823, %v3199
        %v3352 = vadd.f32 %v2893, %v3248
        %v3353 = vadd.f32 %v2896, %v3297
        %v3354 = vadd.f32 %v2899, %v3346
        %3356 = vrot.lane.b32.xlu0 %v3352, 8
        %v3357 = vpop.permute.xlu0 %3356
        %3360 = vrot.lane.b32.xlu0 %v3353, 16
        %v3361 = vpop.permute.xlu0 %3360
        %3364 = vrot.lane.b32.xlu0 %v3354, 24
        %v3365 = vpop.permute.xlu0 %3364
        %v3367 = vsel %vm1629, %v3351, %v3357
        %v3368 = vsel %vm1557, %v3367, %v3361
        %v3369 = vsel %vm2081, %v3368, %v3365
        %v3370 = vpack.c.bf16 %v3369, %v3369
        %v3371 = vld [vmem:[%s61] sm:$0xf]
        %v3372 = vld [vmem:[%s61 + $0x4] sm:$0xf]
        %v3373 = vld [vmem:[%s61 + $0x8] sm:$0xf]
        %v3374 = vld [vmem:[%s61 + $0xc] sm:$0xf]
        %v3375 = vld [vmem:[#allocation38] sm:$0x1]
        %v3377 = vlaneseq
        %v3378 = vshrl.u32 %v3377, 7
        %v3379 = vsub.s32 0, %v3378
        %v3380 = vrot.slane %v3375, %v3379
        %v3386 = vunpack.c.l.b16 %v3371
        %v3387 = vunpack.c.l.b16 %v3372
        %v3388 = vunpack.c.l.b16 %v3373
        %v3389 = vunpack.c.l.b16 %v3374
        %v3390 = vpack.c.b16 %v3387, %v3386
        %v3391 = vpack.c.b16 %v3389, %v3388
        %v3395 = vsel %vm2107, %v3370, 0
        %3397 = vmatprep.subr.bf16.mxu0 0
        %3398 = vmatpush1.bf16.msra.mxu0 %v3390
        %3399 = vmatprep.subr.bf16.mxu0 0
        %3400 = vmatpush1.bf16.msra.mxu0 %v3391
        %3401 = vmatprep.subr.bf16.mxu0 0
        %3402 = vmatpush1.bf16.msra.mxu0 0
        %3403 = vmatprep.subr.bf16.mxu0 0
        %3404 = vmatpush1.bf16.msra.mxu0 0
        %3405 = vmatprep.subr.bf16.mxu0 0
        %3406 = vmatpush1.bf16.msra.mxu0 0
        %3407 = vmatprep.subr.bf16.mxu0 0
        %3408 = vmatpush1.bf16.msra.mxu0 0
        %3409 = vmatprep.subr.bf16.mxu0 0
        %3410 = vmatpush1.bf16.msra.mxu0 0
        %3411 = vmatprep.subr.bf16.mxu0 0
        %3412 = vmatpush1.bf16.msra.mxu0 0
        %3413 = vmatprep.subr.bf16.mxu0 0
        %3414 = vmatpush1.bf16.msra.mxu0 0
        %3415 = vmatprep.subr.bf16.mxu0 0
        %3416 = vmatpush1.bf16.msra.mxu0 0
        %3417 = vmatprep.subr.bf16.mxu0 0
        %3418 = vmatpush1.bf16.msra.mxu0 0
        %3419 = vmatprep.subr.bf16.mxu0 0
        %3420 = vmatpush1.bf16.msra.mxu0 0
        %3421 = vmatprep.subr.bf16.mxu0 0
        %3422 = vmatpush1.bf16.msra.mxu0 0
        %3423 = vmatprep.subr.bf16.mxu0 0
        %3424 = vmatpush1.bf16.msra.mxu0 0
        %3425 = vmatprep.subr.bf16.mxu0 0
        %3426 = vmatpush1.bf16.msra.mxu0 0
        %3427 = vmatprep.subr.bf16.mxu0 0
        %3428 = vmatpush1.bf16.msra.mxu0 0
        %3429 = vmatprep.mubr.bf16.mxu0 0
        %3430 = vmatmul.mubr.bf16.gmra.mrb[0].mxu0 %v3395
        %v3431 = vpop.f32.mrb[0].mxu0
        %v3432 = vadd.f32 %v3380, %v3431
        %v3433 = vpop.f32.mrb[0].mxu0
        %v3434 = vpop.f32.mrb[0].mxu0
        %v3435 = vpop.f32.mrb[0].mxu0
        %3436 = vdwg.mxu0
        %v3437 = vmax.f32 %v3432, 0.0
        %v3438 = vadd.f32 %v3369, %v3437
        %v3439 = vld [vmem:[#allocation46] sm:$0xf]
        %v3440 = vld [vmem:[#allocation46 + $0x4] sm:$0xf]
        %v3441 = vld [vmem:[#allocation46 + $0x8] sm:$0xf]
        %v3442 = vld [vmem:[#allocation46 + $0xc] sm:$0xf]
        %v3443 = vld [vmem:[#allocation43] sm:$0x1]
        %v3445 = vlaneseq
        %v3446 = vshrl.u32 %v3445, 7
        %v3447 = vsub.s32 0, %v3446
        %v3448 = vrot.slane %v3443, %v3447
        %v3454 = vunpack.c.l.b16 %v3439
        %v3455 = vunpack.c.l.b16 %v3440
        %v3456 = vunpack.c.l.b16 %v3441
        %v3457 = vunpack.c.l.b16 %v3442
        %v3458 = vpack.c.b16 %v3455, %v3454
        %v3459 = vpack.c.b16 %v3457, %v3456
        %3462 = vmatprep.subr.bf16.mxu0 0
        %3463 = vmatpush1.bf16.msra.mxu0 %v3458
        %3464 = vmatprep.subr.bf16.mxu0 0
        %3465 = vmatpush1.bf16.msra.mxu0 %v3459
        %3466 = vmatprep.subr.bf16.mxu0 0
        %3467 = vmatpush1.bf16.msra.mxu0 0
        %3468 = vmatprep.subr.bf16.mxu0 0
        %3469 = vmatpush1.bf16.msra.mxu0 0
        %3470 = vmatprep.subr.bf16.mxu0 0
        %3471 = vmatpush1.bf16.msra.mxu0 0
        %3472 = vmatprep.subr.bf16.mxu0 0
        %3473 = vmatpush1.bf16.msra.mxu0 0
        %3474 = vmatprep.subr.bf16.mxu0 0
        %3475 = vmatpush1.bf16.msra.mxu0 0
        %3476 = vmatprep.subr.bf16.mxu0 0
        %3477 = vmatpush1.bf16.msra.mxu0 0
        %3478 = vmatprep.subr.bf16.mxu0 0
        %3479 = vmatpush1.bf16.msra.mxu0 0
        %3480 = vmatprep.subr.bf16.mxu0 0
        %3481 = vmatpush1.bf16.msra.mxu0 0
        %3482 = vmatprep.subr.bf16.mxu0 0
        %3483 = vmatpush1.bf16.msra.mxu0 0
        %3484 = vmatprep.subr.bf16.mxu0 0
        %3485 = vmatpush1.bf16.msra.mxu0 0
        %3486 = vmatprep.subr.bf16.mxu0 0
        %3487 = vmatpush1.bf16.msra.mxu0 0
        %3488 = vmatprep.subr.bf16.mxu0 0
        %3489 = vmatpush1.bf16.msra.mxu0 0
        %3490 = vmatprep.subr.bf16.mxu0 0
        %3491 = vmatpush1.bf16.msra.mxu0 0
        %3492 = vmatprep.subr.bf16.mxu0 0
        %3493 = vmatpush1.bf16.msra.mxu0 0
        %3494 = vmatprep.mubr.bf16.mxu0 0
        %3495 = vmatmul.mubr.bf16.gmra.mrb[0].mxu0 %v2849
        %v3496 = vpop.f32.mrb[0].mxu0
        %v3497 = vadd.f32 %v3448, %v3496
        %v3498 = vpop.f32.mrb[0].mxu0
        %v3499 = vpop.f32.mrb[0].mxu0
        %v3500 = vpop.f32.mrb[0].mxu0
        %3501 = vdwg.mxu0
        %v3502 = vpack.c.bf16 %v3438, %v3438
        %v3503 = vld [vmem:[%s69] sm:$0xf]
        %v3504 = vld [vmem:[%s69 + $0x4] sm:$0xf]
        %v3505 = vld [vmem:[%s69 + $0x8] sm:$0xf]
        %v3506 = vld [vmem:[%s69 + $0xc] sm:$0xf]
        %v3507 = vld [vmem:[#allocation40] sm:$0x1]
        %v3509 = vlaneseq
        %v3510 = vshrl.u32 %v3509, 7
        %v3511 = vsub.s32 0, %v3510
        %v3512 = vrot.slane %v3507, %v3511
        %v3518 = vunpack.c.l.b16 %v3503
        %v3519 = vunpack.c.l.b16 %v3504
        %v3520 = vunpack.c.l.b16 %v3505
        %v3521 = vunpack.c.l.b16 %v3506
        %v3522 = vpack.c.b16 %v3519, %v3518
        %v3523 = vpack.c.b16 %v3521, %v3520
        %v3527 = vsel %vm2107, %v3502, 0
        %3529 = vmatprep.subr.bf16.mxu0 0
        %3530 = vmatpush1.bf16.msra.mxu0 %v3522
        %3531 = vmatprep.subr.bf16.mxu0 0
        %3532 = vmatpush1.bf16.msra.mxu0 %v3523
        %3533 = vmatprep.subr.bf16.mxu0 0
        %3534 = vmatpush1.bf16.msra.mxu0 0
        %3535 = vmatprep.subr.bf16.mxu0 0
        %3536 = vmatpush1.bf16.msra.mxu0 0
        %3537 = vmatprep.subr.bf16.mxu0 0
        %3538 = vmatpush1.bf16.msra.mxu0 0
        %3539 = vmatprep.subr.bf16.mxu0 0
        %3540 = vmatpush1.bf16.msra.mxu0 0
        %3541 = vmatprep.subr.bf16.mxu0 0
        %3542 = vmatpush1.bf16.msra.mxu0 0
        %3543 = vmatprep.subr.bf16.mxu0 0
        %3544 = vmatpush1.bf16.msra.mxu0 0
        %3545 = vmatprep.subr.bf16.mxu0 0
        %3546 = vmatpush1.bf16.msra.mxu0 0
        %3547 = vmatprep.subr.bf16.mxu0 0
        %3548 = vmatpush1.bf16.msra.mxu0 0
        %3549 = vmatprep.subr.bf16.mxu0 0
        %3550 = vmatpush1.bf16.msra.mxu0 0
        %3551 = vmatprep.subr.bf16.mxu0 0
        %3552 = vmatpush1.bf16.msra.mxu0 0
        %3553 = vmatprep.subr.bf16.mxu0 0
        %3554 = vmatpush1.bf16.msra.mxu0 0
        %3555 = vmatprep.subr.bf16.mxu0 0
        %3556 = vmatpush1.bf16.msra.mxu0 0
        %3557 = vmatprep.subr.bf16.mxu0 0
        %3558 = vmatpush1.bf16.msra.mxu0 0
        %3559 = vmatprep.subr.bf16.mxu0 0
        %3560 = vmatpush1.bf16.msra.mxu0 0
        %3561 = vmatprep.mubr.bf16.mxu0 0
        %3562 = vmatmul.mubr.bf16.gmra.mrb[0].mxu0 %v3527
        %v3563 = vpop.f32.mrb[0].mxu0
        %v3564 = vadd.f32 %v3512, %v3563
        %v3565 = vpop.f32.mrb[0].mxu0
        %v3566 = vpop.f32.mrb[0].mxu0
        %v3567 = vpop.f32.mrb[0].mxu0
        %3568 = vdwg.mxu0
        %3570 = vrot.lane.b32.xlu0 %v3497, 120
        %v3571 = vpop.permute.xlu0 %3570
        %3573 = vrot.lane.b32.xlu0 %v3497, 112
        %v3574 = vpop.permute.xlu0 %3573
        %3576 = vrot.lane.b32.xlu0 %v3497, 104
        %v3577 = vpop.permute.xlu0 %3576
        %3580 = vrot.lane.b32.xlu0 %v3564, 120
        %v3581 = vpop.permute.xlu0 %3580
        %3583 = vrot.lane.b32.xlu0 %v3564, 112
        %v3584 = vpop.permute.xlu0 %3583
        %3586 = vrot.lane.b32.xlu0 %v3564, 104
        %v3587 = vpop.permute.xlu0 %3586
        %v3589 = vpack.c.bf16 %v3497, %v3497
        %v3590 = vpack.c.bf16 %v3571, %v3571
        %v3591 = vpack.c.bf16 %v3574, %v3574
        %v3592 = vpack.c.bf16 %v3577, %v3577
        %v3593 = vpack.c.bf16 %v3564, %v3564
        %v3594 = vpack.c.bf16 %v3581, %v3581
        %v3595 = vpack.c.bf16 %v3584, %v3584
        %v3596 = vpack.c.bf16 %v3587, %v3587
        %v3598 = vsel %vm1629, %v3589, 0
        %v3601 = vsel %vm1629, %v3593, 0
        %3603 = vmatprep.subr.bf16.mxu0 0
        %3604 = vmatpush1.bf16.xpose.msra.mxu0 %v3601
        %3605 = vmatprep.subr.bf16.mxu0 0
        %3606 = vmatpush1.bf16.xpose.msra.mxu0 0
        %3607 = vmatprep.subr.bf16.mxu0 0
        %3608 = vmatpush1.bf16.xpose.msra.mxu0 0
        %3609 = vmatprep.subr.bf16.mxu0 0
        %3610 = vmatpush1.bf16.xpose.msra.mxu0 0
        %3611 = vmatprep.subr.bf16.mxu0 0
        %3612 = vmatpush1.bf16.xpose.msra.mxu0 0
        %3613 = vmatprep.subr.bf16.mxu0 0
        %3614 = vmatpush1.bf16.xpose.msra.mxu0 0
        %3615 = vmatprep.subr.bf16.mxu0 0
        %3616 = vmatpush1.bf16.xpose.msra.mxu0 0
        %3617 = vmatprep.subr.bf16.mxu0 0
        %3618 = vmatpush1.bf16.xpose.msra.mxu0 0
        %3619 = vmatprep.subr.bf16.mxu0 0
        %3620 = vmatpush1.bf16.xpose.msra.mxu0 0
        %3621 = vmatprep.subr.bf16.mxu0 0
        %3622 = vmatpush1.bf16.xpose.msra.mxu0 0
        %3623 = vmatprep.subr.bf16.mxu0 0
        %3624 = vmatpush1.bf16.xpose.msra.mxu0 0
        %3625 = vmatprep.subr.bf16.mxu0 0
        %3626 = vmatpush1.bf16.xpose.msra.mxu0 0
        %3627 = vmatprep.subr.bf16.mxu0 0
        %3628 = vmatpush1.bf16.xpose.msra.mxu0 0
        %3629 = vmatprep.subr.bf16.mxu0 0
        %3630 = vmatpush1.bf16.xpose.msra.mxu0 0
        %3631 = vmatprep.subr.bf16.mxu0 0
        %3632 = vmatpush1.bf16.xpose.msra.mxu0 0
        %3633 = vmatprep.subr.bf16.mxu0 0
        %3634 = vmatpush1.bf16.xpose.msra.mxu0 0
        %3635 = vmatprep.mubr.bf16.mxu0 0
        %3636 = vmatmul.mubr.bf16.gmra.mrb[0].mxu0 %v3598
        %v3637 = vpop.f32.mrb[0].mxu0
        %v3638 = vadd.f32 0.0, %v3637
        %v3639 = vpop.f32.mrb[0].mxu0
        %v3640 = vpop.f32.mrb[0].mxu0
        %v3641 = vpop.f32.mrb[0].mxu0
        %3642 = vdwg.mxu0
        %v3644 = vsel %vm1629, %v3590, 0
        %v3647 = vsel %vm1629, %v3594, 0
        %3649 = vmatprep.subr.bf16.mxu0 0
        %3650 = vmatpush1.bf16.xpose.msra.mxu0 %v3647
        %3651 = vmatprep.subr.bf16.mxu0 0
        %3652 = vmatpush1.bf16.xpose.msra.mxu0 0
        %3653 = vmatprep.subr.bf16.mxu0 0
        %3654 = vmatpush1.bf16.xpose.msra.mxu0 0
        %3655 = vmatprep.subr.bf16.mxu0 0
        %3656 = vmatpush1.bf16.xpose.msra.mxu0 0
        %3657 = vmatprep.subr.bf16.mxu0 0
        %3658 = vmatpush1.bf16.xpose.msra.mxu0 0
        %3659 = vmatprep.subr.bf16.mxu0 0
        %3660 = vmatpush1.bf16.xpose.msra.mxu0 0
        %3661 = vmatprep.subr.bf16.mxu0 0
        %3662 = vmatpush1.bf16.xpose.msra.mxu0 0
        %3663 = vmatprep.subr.bf16.mxu0 0
        %3664 = vmatpush1.bf16.xpose.msra.mxu0 0
        %3665 = vmatprep.subr.bf16.mxu0 0
        %3666 = vmatpush1.bf16.xpose.msra.mxu0 0
        %3667 = vmatprep.subr.bf16.mxu0 0
        %3668 = vmatpush1.bf16.xpose.msra.mxu0 0
        %3669 = vmatprep.subr.bf16.mxu0 0
        %3670 = vmatpush1.bf16.xpose.msra.mxu0 0
        %3671 = vmatprep.subr.bf16.mxu0 0
        %3672 = vmatpush1.bf16.xpose.msra.mxu0 0
        %3673 = vmatprep.subr.bf16.mxu0 0
        %3674 = vmatpush1.bf16.xpose.msra.mxu0 0
        %3675 = vmatprep.subr.bf16.mxu0 0
        %3676 = vmatpush1.bf16.xpose.msra.mxu0 0
        %3677 = vmatprep.subr.bf16.mxu0 0
        %3678 = vmatpush1.bf16.xpose.msra.mxu0 0
        %3679 = vmatprep.subr.bf16.mxu0 0
        %3680 = vmatpush1.bf16.xpose.msra.mxu0 0
        %3681 = vmatprep.mubr.bf16.mxu0 0
        %3682 = vmatmul.mubr.bf16.gmra.mrb[0].mxu0 %v3644
        %v3683 = vpop.f32.mrb[0].mxu0
        %v3684 = vadd.f32 0.0, %v3683
        %v3685 = vpop.f32.mrb[0].mxu0
        %v3686 = vpop.f32.mrb[0].mxu0
        %v3687 = vpop.f32.mrb[0].mxu0
        %3688 = vdwg.mxu0
        %v3690 = vsel %vm1629, %v3591, 0
        %v3693 = vsel %vm1629, %v3595, 0
        %3695 = vmatprep.subr.bf16.mxu0 0
        %3696 = vmatpush1.bf16.xpose.msra.mxu0 %v3693
        %3697 = vmatprep.subr.bf16.mxu0 0
        %3698 = vmatpush1.bf16.xpose.msra.mxu0 0
        %3699 = vmatprep.subr.bf16.mxu0 0
        %3700 = vmatpush1.bf16.xpose.msra.mxu0 0
        %3701 = vmatprep.subr.bf16.mxu0 0
        %3702 = vmatpush1.bf16.xpose.msra.mxu0 0
        %3703 = vmatprep.subr.bf16.mxu0 0
        %3704 = vmatpush1.bf16.xpose.msra.mxu0 0
        %3705 = vmatprep.subr.bf16.mxu0 0
        %3706 = vmatpush1.bf16.xpose.msra.mxu0 0
        %3707 = vmatprep.subr.bf16.mxu0 0
        %3708 = vmatpush1.bf16.xpose.msra.mxu0 0
        %3709 = vmatprep.subr.bf16.mxu0 0
        %3710 = vmatpush1.bf16.xpose.msra.mxu0 0
        %3711 = vmatprep.subr.bf16.mxu0 0
        %3712 = vmatpush1.bf16.xpose.msra.mxu0 0
        %3713 = vmatprep.subr.bf16.mxu0 0
        %3714 = vmatpush1.bf16.xpose.msra.mxu0 0
        %3715 = vmatprep.subr.bf16.mxu0 0
        %3716 = vmatpush1.bf16.xpose.msra.mxu0 0
        %3717 = vmatprep.subr.bf16.mxu0 0
        %3718 = vmatpush1.bf16.xpose.msra.mxu0 0
        %3719 = vmatprep.subr.bf16.mxu0 0
        %3720 = vmatpush1.bf16.xpose.msra.mxu0 0
        %3721 = vmatprep.subr.bf16.mxu0 0
        %3722 = vmatpush1.bf16.xpose.msra.mxu0 0
        %3723 = vmatprep.subr.bf16.mxu0 0
        %3724 = vmatpush1.bf16.xpose.msra.mxu0 0
        %3725 = vmatprep.subr.bf16.mxu0 0
        %3726 = vmatpush1.bf16.xpose.msra.mxu0 0
        %3727 = vmatprep.mubr.bf16.mxu0 0
        %3728 = vmatmul.mubr.bf16.gmra.mrb[0].mxu0 %v3690
        %v3729 = vpop.f32.mrb[0].mxu0
        %v3730 = vadd.f32 0.0, %v3729
        %v3731 = vpop.f32.mrb[0].mxu0
        %v3732 = vpop.f32.mrb[0].mxu0
        %v3733 = vpop.f32.mrb[0].mxu0
        %3734 = vdwg.mxu0
        %v3736 = vsel %vm1629, %v3592, 0
        %v3739 = vsel %vm1629, %v3596, 0
        %3741 = vmatprep.subr.bf16.mxu0 0
        %3742 = vmatpush1.bf16.xpose.msra.mxu0 %v3739
        %3743 = vmatprep.subr.bf16.mxu0 0
        %3744 = vmatpush1.bf16.xpose.msra.mxu0 0
        %3745 = vmatprep.subr.bf16.mxu0 0
        %3746 = vmatpush1.bf16.xpose.msra.mxu0 0
        %3747 = vmatprep.subr.bf16.mxu0 0
        %3748 = vmatpush1.bf16.xpose.msra.mxu0 0
        %3749 = vmatprep.subr.bf16.mxu0 0
        %3750 = vmatpush1.bf16.xpose.msra.mxu0 0
        %3751 = vmatprep.subr.bf16.mxu0 0
        %3752 = vmatpush1.bf16.xpose.msra.mxu0 0
        %3753 = vmatprep.subr.bf16.mxu0 0
        %3754 = vmatpush1.bf16.xpose.msra.mxu0 0
        %3755 = vmatprep.subr.bf16.mxu0 0
        %3756 = vmatpush1.bf16.xpose.msra.mxu0 0
        %3757 = vmatprep.subr.bf16.mxu0 0
        %3758 = vmatpush1.bf16.xpose.msra.mxu0 0
        %3759 = vmatprep.subr.bf16.mxu0 0
        %3760 = vmatpush1.bf16.xpose.msra.mxu0 0
        %3761 = vmatprep.subr.bf16.mxu0 0
        %3762 = vmatpush1.bf16.xpose.msra.mxu0 0
        %3763 = vmatprep.subr.bf16.mxu0 0
        %3764 = vmatpush1.bf16.xpose.msra.mxu0 0
        %3765 = vmatprep.subr.bf16.mxu0 0
        %3766 = vmatpush1.bf16.xpose.msra.mxu0 0
        %3767 = vmatprep.subr.bf16.mxu0 0
        %3768 = vmatpush1.bf16.xpose.msra.mxu0 0
        %3769 = vmatprep.subr.bf16.mxu0 0
        %3770 = vmatpush1.bf16.xpose.msra.mxu0 0
        %3771 = vmatprep.subr.bf16.mxu0 0
        %3772 = vmatpush1.bf16.xpose.msra.mxu0 0
        %3773 = vmatprep.mubr.bf16.mxu0 0
        %3774 = vmatmul.mubr.bf16.gmra.mrb[0].mxu0 %v3736
        %v3775 = vpop.f32.mrb[0].mxu0
        %v3776 = vadd.f32 0.0, %v3775
        %v3777 = vpop.f32.mrb[0].mxu0
        %v3778 = vpop.f32.mrb[0].mxu0
        %v3779 = vpop.f32.mrb[0].mxu0
        %3780 = vdwg.mxu0
        %v3781 = vmul.f32 %v3638, 0.17677669
        %v3782 = vmul.f32 %v3684, 0.17677669
        %v3783 = vmul.f32 %v3730, 0.17677669
        %v3784 = vmul.f32 %v3776, 0.17677669
        %v3785 = vsel %vm1629, %v3781, -inf
        %3786 = vmax.xlane.f32.xlu0 %v3785
        %v3787 = vpop.xlane.xlu0 %3786
        %v3788 = vsel %vm1629, %v3782, -inf
        %3789 = vmax.xlane.f32.xlu0 %v3788
        %v3790 = vpop.xlane.xlu0 %3789
        %v3791 = vsel %vm1629, %v3783, -inf
        %3792 = vmax.xlane.f32.xlu0 %v3791
        %v3793 = vpop.xlane.xlu0 %3792
        %v3794 = vsel %vm1629, %v3784, -inf
        %3795 = vmax.xlane.f32.xlu0 %v3794
        %v3796 = vpop.xlane.xlu0 %3795
        %v3797 = vsub.f32 %v3781, %v3787
        %v3798 = vsub.f32 %v3782, %v3790
        %v3799 = vsub.f32 %v3783, %v3793
        %v3800 = vsub.f32 %v3784, %v3796
        %v3801 = vmul.f32 %v3797, 1.442695
        %v3802 = vpow.pop %v3801
        %v3803 = vmul.f32 %v3798, 1.442695
        %v3804 = vpow.pop %v3803
        %v3805 = vmul.f32 %v3799, 1.442695
        %v3806 = vpow.pop %v3805
        %v3807 = vmul.f32 %v3800, 1.442695
        %v3808 = vpow.pop %v3807
        %v3809 = vsel %vm1629, %v3802, 0.0
        %3810 = vadd.xlane.f32.xlu0 %v3809
        %v3811 = vpop.xlane.xlu0 %3810
        %v3812 = vsel %vm1629, %v3804, 0.0
        %3813 = vadd.xlane.f32.xlu0 %v3812
        %v3814 = vpop.xlane.xlu0 %3813
        %v3815 = vsel %vm1629, %v3806, 0.0
        %3816 = vadd.xlane.f32.xlu0 %v3815
        %v3817 = vpop.xlane.xlu0 %3816
        %v3818 = vsel %vm1629, %v3808, 0.0
        %3819 = vadd.xlane.f32.xlu0 %v3818
        %v3820 = vpop.xlane.xlu0 %3819
        %v3821 = vrcp.pop %v3811
        %v3822 = vrcp.pop %v3814
        %v3823 = vrcp.pop %v3817
        %v3824 = vrcp.pop %v3820
        %v3825 = vmul.f32 %v3802, %v3821
        %v3826 = vmul.f32 %v3804, %v3822
        %v3827 = vmul.f32 %v3806, %v3823
        %v3828 = vmul.f32 %v3808, %v3824
        %v3829 = vpack.c.bf16 %v3825, %v3825
        %v3830 = vpack.c.bf16 %v3826, %v3826
        %v3831 = vpack.c.bf16 %v3827, %v3827
        %v3832 = vpack.c.bf16 %v3828, %v3828
        %3834 = vrot.lane.b32.xlu0 %v3593, 96
        %v3835 = vpop.permute.xlu0 %3834
        %v3837 = vsel %vm1629, %v3829, 0
        %v3840 = vsel %vm1872, %v3835, 0
        %3842 = vmatprep.subr.bf16.mxu0 0
        %3843 = vmatpush1.bf16.msra.mxu0 %v3840
        %3844 = vmatprep.subr.bf16.mxu0 0
        %3845 = vmatpush1.bf16.msra.mxu0 0
        %3846 = vmatprep.subr.bf16.mxu0 0
        %3847 = vmatpush1.bf16.msra.mxu0 0
        %3848 = vmatprep.subr.bf16.mxu0 0
        %3849 = vmatpush1.bf16.msra.mxu0 0
        %3850 = vmatprep.subr.bf16.mxu0 0
        %3851 = vmatpush1.bf16.msra.mxu0 0
        %3852 = vmatprep.subr.bf16.mxu0 0
        %3853 = vmatpush1.bf16.msra.mxu0 0
        %3854 = vmatprep.subr.bf16.mxu0 0
        %3855 = vmatpush1.bf16.msra.mxu0 0
        %3856 = vmatprep.subr.bf16.mxu0 0
        %3857 = vmatpush1.bf16.msra.mxu0 0
        %3858 = vmatprep.subr.bf16.mxu0 0
        %3859 = vmatpush1.bf16.msra.mxu0 0
        %3860 = vmatprep.subr.bf16.mxu0 0
        %3861 = vmatpush1.bf16.msra.mxu0 0
        %3862 = vmatprep.subr.bf16.mxu0 0
        %3863 = vmatpush1.bf16.msra.mxu0 0
        %3864 = vmatprep.subr.bf16.mxu0 0
        %3865 = vmatpush1.bf16.msra.mxu0 0
        %3866 = vmatprep.subr.bf16.mxu0 0
        %3867 = vmatpush1.bf16.msra.mxu0 0
        %3868 = vmatprep.subr.bf16.mxu0 0
        %3869 = vmatpush1.bf16.msra.mxu0 0
        %3870 = vmatprep.subr.bf16.mxu0 0
        %3871 = vmatpush1.bf16.msra.mxu0 0
        %3872 = vmatprep.subr.bf16.mxu0 0
        %3873 = vmatpush1.bf16.msra.mxu0 0
        %3874 = vmatprep.mubr.bf16.mxu0 0
        %3875 = vmatmul.mubr.bf16.gmra.mrb[0].mxu0 %v3837
        %v3876 = vpop.f32.mrb[0].mxu0
        %v3877 = vadd.f32 0.0, %v3876
        %v3878 = vpop.f32.mrb[0].mxu0
        %v3879 = vpop.f32.mrb[0].mxu0
        %v3880 = vpop.f32.mrb[0].mxu0
        %3881 = vdwg.mxu0
        %3883 = vrot.lane.b32.xlu0 %v3594, 96
        %v3884 = vpop.permute.xlu0 %3883
        %v3886 = vsel %vm1629, %v3830, 0
        %v3889 = vsel %vm1872, %v3884, 0
        %3891 = vmatprep.subr.bf16.mxu0 0
        %3892 = vmatpush1.bf16.msra.mxu0 %v3889
        %3893 = vmatprep.subr.bf16.mxu0 0
        %3894 = vmatpush1.bf16.msra.mxu0 0
        %3895 = vmatprep.subr.bf16.mxu0 0
        %3896 = vmatpush1.bf16.msra.mxu0 0
        %3897 = vmatprep.subr.bf16.mxu0 0
        %3898 = vmatpush1.bf16.msra.mxu0 0
        %3899 = vmatprep.subr.bf16.mxu0 0
        %3900 = vmatpush1.bf16.msra.mxu0 0
        %3901 = vmatprep.subr.bf16.mxu0 0
        %3902 = vmatpush1.bf16.msra.mxu0 0
        %3903 = vmatprep.subr.bf16.mxu0 0
        %3904 = vmatpush1.bf16.msra.mxu0 0
        %3905 = vmatprep.subr.bf16.mxu0 0
        %3906 = vmatpush1.bf16.msra.mxu0 0
        %3907 = vmatprep.subr.bf16.mxu0 0
        %3908 = vmatpush1.bf16.msra.mxu0 0
        %3909 = vmatprep.subr.bf16.mxu0 0
        %3910 = vmatpush1.bf16.msra.mxu0 0
        %3911 = vmatprep.subr.bf16.mxu0 0
        %3912 = vmatpush1.bf16.msra.mxu0 0
        %3913 = vmatprep.subr.bf16.mxu0 0
        %3914 = vmatpush1.bf16.msra.mxu0 0
        %3915 = vmatprep.subr.bf16.mxu0 0
        %3916 = vmatpush1.bf16.msra.mxu0 0
        %3917 = vmatprep.subr.bf16.mxu0 0
        %3918 = vmatpush1.bf16.msra.mxu0 0
        %3919 = vmatprep.subr.bf16.mxu0 0
        %3920 = vmatpush1.bf16.msra.mxu0 0
        %3921 = vmatprep.subr.bf16.mxu0 0
        %3922 = vmatpush1.bf16.msra.mxu0 0
        %3923 = vmatprep.mubr.bf16.mxu0 0
        %3924 = vmatmul.mubr.bf16.gmra.mrb[0].mxu0 %v3886
        %v3925 = vpop.f32.mrb[0].mxu0
        %v3926 = vadd.f32 0.0, %v3925
        %v3927 = vpop.f32.mrb[0].mxu0
        %v3928 = vpop.f32.mrb[0].mxu0
        %v3929 = vpop.f32.mrb[0].mxu0
        %3930 = vdwg.mxu0
        %3932 = vrot.lane.b32.xlu0 %v3595, 96
        %v3933 = vpop.permute.xlu0 %3932
        %v3935 = vsel %vm1629, %v3831, 0
        %v3938 = vsel %vm1872, %v3933, 0
        %3940 = vmatprep.subr.bf16.mxu0 0
        %3941 = vmatpush1.bf16.msra.mxu0 %v3938
        %3942 = vmatprep.subr.bf16.mxu0 0
        %3943 = vmatpush1.bf16.msra.mxu0 0
        %3944 = vmatprep.subr.bf16.mxu0 0
        %3945 = vmatpush1.bf16.msra.mxu0 0
        %3946 = vmatprep.subr.bf16.mxu0 0
        %3947 = vmatpush1.bf16.msra.mxu0 0
        %3948 = vmatprep.subr.bf16.mxu0 0
        %3949 = vmatpush1.bf16.msra.mxu0 0
        %3950 = vmatprep.subr.bf16.mxu0 0
        %3951 = vmatpush1.bf16.msra.mxu0 0
        %3952 = vmatprep.subr.bf16.mxu0 0
        %3953 = vmatpush1.bf16.msra.mxu0 0
        %3954 = vmatprep.subr.bf16.mxu0 0
        %3955 = vmatpush1.bf16.msra.mxu0 0
        %3956 = vmatprep.subr.bf16.mxu0 0
        %3957 = vmatpush1.bf16.msra.mxu0 0
        %3958 = vmatprep.subr.bf16.mxu0 0
        %3959 = vmatpush1.bf16.msra.mxu0 0
        %3960 = vmatprep.subr.bf16.mxu0 0
        %3961 = vmatpush1.bf16.msra.mxu0 0
        %3962 = vmatprep.subr.bf16.mxu0 0
        %3963 = vmatpush1.bf16.msra.mxu0 0
        %3964 = vmatprep.subr.bf16.mxu0 0
        %3965 = vmatpush1.bf16.msra.mxu0 0
        %3966 = vmatprep.subr.bf16.mxu0 0
        %3967 = vmatpush1.bf16.msra.mxu0 0
        %3968 = vmatprep.subr.bf16.mxu0 0
        %3969 = vmatpush1.bf16.msra.mxu0 0
        %3970 = vmatprep.subr.bf16.mxu0 0
        %3971 = vmatpush1.bf16.msra.mxu0 0
        %3972 = vmatprep.mubr.bf16.mxu0 0
        %3973 = vmatmul.mubr.bf16.gmra.mrb[0].mxu0 %v3935
        %v3974 = vpop.f32.mrb[0].mxu0
        %v3975 = vadd.f32 0.0, %v3974
        %v3976 = vpop.f32.mrb[0].mxu0
        %v3977 = vpop.f32.mrb[0].mxu0
        %v3978 = vpop.f32.mrb[0].mxu0
        %3979 = vdwg.mxu0
        %3981 = vrot.lane.b32.xlu0 %v3596, 96
        %v3982 = vpop.permute.xlu0 %3981
        %v3984 = vsel %vm1629, %v3832, 0
        %v3987 = vsel %vm1872, %v3982, 0
        %3989 = vmatprep.subr.bf16.mxu0 0
        %3990 = vmatpush1.bf16.msra.mxu0 %v3987
        %3991 = vmatprep.subr.bf16.mxu0 0
        %3992 = vmatpush1.bf16.msra.mxu0 0
        %3993 = vmatprep.subr.bf16.mxu0 0
        %3994 = vmatpush1.bf16.msra.mxu0 0
        %3995 = vmatprep.subr.bf16.mxu0 0
        %3996 = vmatpush1.bf16.msra.mxu0 0
        %3997 = vmatprep.subr.bf16.mxu0 0
        %3998 = vmatpush1.bf16.msra.mxu0 0
        %3999 = vmatprep.subr.bf16.mxu0 0
        %4000 = vmatpush1.bf16.msra.mxu0 0
        %4001 = vmatprep.subr.bf16.mxu0 0
        %4002 = vmatpush1.bf16.msra.mxu0 0
        %4003 = vmatprep.subr.bf16.mxu0 0
        %4004 = vmatpush1.bf16.msra.mxu0 0
        %4005 = vmatprep.subr.bf16.mxu0 0
        %4006 = vmatpush1.bf16.msra.mxu0 0
        %4007 = vmatprep.subr.bf16.mxu0 0
        %4008 = vmatpush1.bf16.msra.mxu0 0
        %4009 = vmatprep.subr.bf16.mxu0 0
        %4010 = vmatpush1.bf16.msra.mxu0 0
        %4011 = vmatprep.subr.bf16.mxu0 0
        %4012 = vmatpush1.bf16.msra.mxu0 0
        %4013 = vmatprep.subr.bf16.mxu0 0
        %4014 = vmatpush1.bf16.msra.mxu0 0
        %4015 = vmatprep.subr.bf16.mxu0 0
        %4016 = vmatpush1.bf16.msra.mxu0 0
        %4017 = vmatprep.subr.bf16.mxu0 0
        %4018 = vmatpush1.bf16.msra.mxu0 0
        %4019 = vmatprep.subr.bf16.mxu0 0
        %4020 = vmatpush1.bf16.msra.mxu0 0
        %4021 = vmatprep.mubr.bf16.mxu0 0
        %4022 = vmatmul.mubr.bf16.gmra.mrb[0].mxu0 %v3984
        %v4023 = vpop.f32.mrb[0].mxu0
        %v4024 = vadd.f32 0.0, %v4023
        %v4025 = vpop.f32.mrb[0].mxu0
        %v4026 = vpop.f32.mrb[0].mxu0
        %v4027 = vpop.f32.mrb[0].mxu0
        %4028 = vdwg.mxu0
        %v4029 = vadd.f32 %v3497, %v3877
        %v4030 = vadd.f32 %v3571, %v3926
        %v4031 = vadd.f32 %v3574, %v3975
        %v4032 = vadd.f32 %v3577, %v4024
        %4034 = vrot.lane.b32.xlu0 %v4030, 8
        %v4035 = vpop.permute.xlu0 %4034
        %4038 = vrot.lane.b32.xlu0 %v4031, 16
        %v4039 = vpop.permute.xlu0 %4038
        %4042 = vrot.lane.b32.xlu0 %v4032, 24
        %v4043 = vpop.permute.xlu0 %4042
        %v4045 = vsel %vm1629, %v4029, %v4035
        %v4046 = vsel %vm1557, %v4045, %v4039
        %v4047 = vsel %vm2081, %v4046, %v4043
        %v4048 = vpack.c.bf16 %v4047, %v4047
        %v4049 = vld [vmem:[#allocation44] sm:$0xf]
        %v4050 = vld [vmem:[#allocation44 + $0x4] sm:$0xf]
        %v4051 = vld [vmem:[#allocation44 + $0x8] sm:$0xf]
        %v4052 = vld [vmem:[#allocation44 + $0xc] sm:$0xf]
        %v4053 = vld [vmem:[#allocation41] sm:$0x1]
        %v4055 = vlaneseq
        %v4056 = vshrl.u32 %v4055, 7
        %v4057 = vsub.s32 0, %v4056
        %v4058 = vrot.slane %v4053, %v4057
        %v4064 = vunpack.c.l.b16 %v4049
        %v4065 = vunpack.c.l.b16 %v4050
        %v4066 = vunpack.c.l.b16 %v4051
        %v4067 = vunpack.c.l.b16 %v4052
        %v4068 = vpack.c.b16 %v4065, %v4064
        %v4069 = vpack.c.b16 %v4067, %v4066
        %v4073 = vsel %vm2107, %v4048, 0
        %4075 = vmatprep.subr.bf16.mxu0 0
        %4076 = vmatpush1.bf16.msra.mxu0 %v4068
        %4077 = vmatprep.subr.bf16.mxu0 0
        %4078 = vmatpush1.bf16.msra.mxu0 %v4069
        %4079 = vmatprep.subr.bf16.mxu0 0
        %4080 = vmatpush1.bf16.msra.mxu0 0
        %4081 = vmatprep.subr.bf16.mxu0 0
        %4082 = vmatpush1.bf16.msra.mxu0 0
        %4083 = vmatprep.subr.bf16.mxu0 0
        %4084 = vmatpush1.bf16.msra.mxu0 0
        %4085 = vmatprep.subr.bf16.mxu0 0
        %4086 = vmatpush1.bf16.msra.mxu0 0
        %4087 = vmatprep.subr.bf16.mxu0 0
        %4088 = vmatpush1.bf16.msra.mxu0 0
        %4089 = vmatprep.subr.bf16.mxu0 0
        %4090 = vmatpush1.bf16.msra.mxu0 0
        %4091 = vmatprep.subr.bf16.mxu0 0
        %4092 = vmatpush1.bf16.msra.mxu0 0
        %4093 = vmatprep.subr.bf16.mxu0 0
        %4094 = vmatpush1.bf16.msra.mxu0 0
        %4095 = vmatprep.subr.bf16.mxu0 0
        %4096 = vmatpush1.bf16.msra.mxu0 0
        %4097 = vmatprep.subr.bf16.mxu0 0
        %4098 = vmatpush1.bf16.msra.mxu0 0
        %4099 = vmatprep.subr.bf16.mxu0 0
        %4100 = vmatpush1.bf16.msra.mxu0 0
        %4101 = vmatprep.subr.bf16.mxu0 0
        %4102 = vmatpush1.bf16.msra.mxu0 0
        %4103 = vmatprep.subr.bf16.mxu0 0
        %4104 = vmatpush1.bf16.msra.mxu0 0
        %4105 = vmatprep.subr.bf16.mxu0 0
        %4106 = vmatpush1.bf16.msra.mxu0 0
        %4107 = vmatprep.mubr.bf16.mxu0 0
        %4108 = vmatmul.mubr.bf16.gmra.mrb[0].mxu0 %v4073
        %v4109 = vpop.f32.mrb[0].mxu0
        %v4110 = vadd.f32 %v4058, %v4109
        %v4111 = vpop.f32.mrb[0].mxu0
        %v4112 = vpop.f32.mrb[0].mxu0
        %v4113 = vpop.f32.mrb[0].mxu0
        %4114 = vdwg.mxu0
        %v4115 = vmax.f32 %v4110, 0.0
        %v4116 = vadd.f32 %v4047, %v4115
        %v4117 = vld [vmem:[#allocation13] sm:$0xf]
        %v4118 = vpack.c.bf16 %v4116, %v4116
        %v4119 = vld [vmem:[%s11] sm:$0xf]
        %v4120 = vld [vmem:[%s11 + $0x4] sm:$0xf]
        %v4121 = vld [vmem:[%s11 + $0x8] sm:$0xf]
        %v4122 = vld [vmem:[%s11 + $0xc] sm:$0xf]
        %v4123 = vld [vmem:[#allocation8] sm:$0x1]
        %v4125 = vlaneseq
        %v4126 = vshrl.u32 %v4125, 7
        %v4127 = vsub.s32 0, %v4126
        %v4128 = vrot.slane %v4123, %v4127
        %v4134 = vunpack.c.l.b16 %v4119
        %v4135 = vunpack.c.l.b16 %v4120
        %v4136 = vunpack.c.l.b16 %v4121
        %v4137 = vunpack.c.l.b16 %v4122
        %v4138 = vpack.c.b16 %v4135, %v4134
        %v4139 = vpack.c.b16 %v4137, %v4136
        %v4143 = vsel %vm2107, %v4118, 0
        %4145 = vmatprep.subr.bf16.mxu0 0
        %4146 = vmatpush1.bf16.msra.mxu0 %v4138
        %4147 = vmatprep.subr.bf16.mxu0 0
        %4148 = vmatpush1.bf16.msra.mxu0 %v4139
        %4149 = vmatprep.subr.bf16.mxu0 0
        %4150 = vmatpush1.bf16.msra.mxu0 0
        %4151 = vmatprep.subr.bf16.mxu0 0
        %4152 = vmatpush1.bf16.msra.mxu0 0
        %4153 = vmatprep.subr.bf16.mxu0 0
        %4154 = vmatpush1.bf16.msra.mxu0 0
        %4155 = vmatprep.subr.bf16.mxu0 0
        %4156 = vmatpush1.bf16.msra.mxu0 0
        %4157 = vmatprep.subr.bf16.mxu0 0
        %4158 = vmatpush1.bf16.msra.mxu0 0
        %4159 = vmatprep.subr.bf16.mxu0 0
        %4160 = vmatpush1.bf16.msra.mxu0 0
        %4161 = vmatprep.subr.bf16.mxu0 0
        %4162 = vmatpush1.bf16.msra.mxu0 0
        %4163 = vmatprep.subr.bf16.mxu0 0
        %4164 = vmatpush1.bf16.msra.mxu0 0
        %4165 = vmatprep.subr.bf16.mxu0 0
        %4166 = vmatpush1.bf16.msra.mxu0 0
        %4167 = vmatprep.subr.bf16.mxu0 0
        %4168 = vmatpush1.bf16.msra.mxu0 0
        %4169 = vmatprep.subr.bf16.mxu0 0
        %4170 = vmatpush1.bf16.msra.mxu0 0
        %4171 = vmatprep.subr.bf16.mxu0 0
        %4172 = vmatpush1.bf16.msra.mxu0 0
        %4173 = vmatprep.subr.bf16.mxu0 0
        %4174 = vmatpush1.bf16.msra.mxu0 0
        %4175 = vmatprep.subr.bf16.mxu0 0
        %4176 = vmatpush1.bf16.msra.mxu0 0
        %4177 = vmatprep.mubr.bf16.mxu0 0
        %4178 = vmatmul.mubr.bf16.gmra.mrb[0].mxu0 %v4143
        %v4179 = vpop.f32.mrb[0].mxu0
        %v4180 = vadd.f32 %v4128, %v4179
        %v4181 = vpop.f32.mrb[0].mxu0
        %v4182 = vpop.f32.mrb[0].mxu0
        %v4183 = vpop.f32.mrb[0].mxu0
        %4184 = vdwg.mxu0
        %4186 = vrot.lane.b32.xlu0 %v4117, 120
        %v4187 = vpop.permute.xlu0 %4186
        %4189 = vrot.lane.b32.xlu0 %v4117, 112
        %v4190 = vpop.permute.xlu0 %4189
        %4192 = vrot.lane.b32.xlu0 %v4117, 104
        %v4193 = vpop.permute.xlu0 %4192
        %4196 = vrot.lane.b32.xlu0 %v4180, 120
        %v4197 = vpop.permute.xlu0 %4196
        %4199 = vrot.lane.b32.xlu0 %v4180, 112
        %v4200 = vpop.permute.xlu0 %4199
        %4202 = vrot.lane.b32.xlu0 %v4180, 104
        %v4203 = vpop.permute.xlu0 %4202
        %v4205 = vpack.c.bf16 %v4117, %v4117
        %v4206 = vpack.c.bf16 %v4187, %v4187
        %v4207 = vpack.c.bf16 %v4190, %v4190
        %v4208 = vpack.c.bf16 %v4193, %v4193
        %v4209 = vpack.c.bf16 %v4180, %v4180
        %v4210 = vpack.c.bf16 %v4197, %v4197
        %v4211 = vpack.c.bf16 %v4200, %v4200
        %v4212 = vpack.c.bf16 %v4203, %v4203
        %v4214 = vsel %vm1629, %v4205, 0
        %v4217 = vsel %vm1629, %v4209, 0
        %4219 = vmatprep.subr.bf16.mxu0 0
        %4220 = vmatpush1.bf16.xpose.msra.mxu0 %v4217
        %4221 = vmatprep.subr.bf16.mxu0 0
        %4222 = vmatpush1.bf16.xpose.msra.mxu0 0
        %4223 = vmatprep.subr.bf16.mxu0 0
        %4224 = vmatpush1.bf16.xpose.msra.mxu0 0
        %4225 = vmatprep.subr.bf16.mxu0 0
        %4226 = vmatpush1.bf16.xpose.msra.mxu0 0
        %4227 = vmatprep.subr.bf16.mxu0 0
        %4228 = vmatpush1.bf16.xpose.msra.mxu0 0
        %4229 = vmatprep.subr.bf16.mxu0 0
        %4230 = vmatpush1.bf16.xpose.msra.mxu0 0
        %4231 = vmatprep.subr.bf16.mxu0 0
        %4232 = vmatpush1.bf16.xpose.msra.mxu0 0
        %4233 = vmatprep.subr.bf16.mxu0 0
        %4234 = vmatpush1.bf16.xpose.msra.mxu0 0
        %4235 = vmatprep.subr.bf16.mxu0 0
        %4236 = vmatpush1.bf16.xpose.msra.mxu0 0
        %4237 = vmatprep.subr.bf16.mxu0 0
        %4238 = vmatpush1.bf16.xpose.msra.mxu0 0
        %4239 = vmatprep.subr.bf16.mxu0 0
        %4240 = vmatpush1.bf16.xpose.msra.mxu0 0
        %4241 = vmatprep.subr.bf16.mxu0 0
        %4242 = vmatpush1.bf16.xpose.msra.mxu0 0
        %4243 = vmatprep.subr.bf16.mxu0 0
        %4244 = vmatpush1.bf16.xpose.msra.mxu0 0
        %4245 = vmatprep.subr.bf16.mxu0 0
        %4246 = vmatpush1.bf16.xpose.msra.mxu0 0
        %4247 = vmatprep.subr.bf16.mxu0 0
        %4248 = vmatpush1.bf16.xpose.msra.mxu0 0
        %4249 = vmatprep.subr.bf16.mxu0 0
        %4250 = vmatpush1.bf16.xpose.msra.mxu0 0
        %4251 = vmatprep.mubr.bf16.mxu0 0
        %4252 = vmatmul.mubr.bf16.gmra.mrb[0].mxu0 %v4214
        %v4253 = vpop.f32.mrb[0].mxu0
        %v4254 = vadd.f32 0.0, %v4253
        %v4255 = vpop.f32.mrb[0].mxu0
        %v4256 = vpop.f32.mrb[0].mxu0
        %v4257 = vpop.f32.mrb[0].mxu0
        %4258 = vdwg.mxu0
        %v4260 = vsel %vm1629, %v4206, 0
        %v4263 = vsel %vm1629, %v4210, 0
        %4265 = vmatprep.subr.bf16.mxu0 0
        %4266 = vmatpush1.bf16.xpose.msra.mxu0 %v4263
        %4267 = vmatprep.subr.bf16.mxu0 0
        %4268 = vmatpush1.bf16.xpose.msra.mxu0 0
        %4269 = vmatprep.subr.bf16.mxu0 0
        %4270 = vmatpush1.bf16.xpose.msra.mxu0 0
        %4271 = vmatprep.subr.bf16.mxu0 0
        %4272 = vmatpush1.bf16.xpose.msra.mxu0 0
        %4273 = vmatprep.subr.bf16.mxu0 0
        %4274 = vmatpush1.bf16.xpose.msra.mxu0 0
        %4275 = vmatprep.subr.bf16.mxu0 0
        %4276 = vmatpush1.bf16.xpose.msra.mxu0 0
        %4277 = vmatprep.subr.bf16.mxu0 0
        %4278 = vmatpush1.bf16.xpose.msra.mxu0 0
        %4279 = vmatprep.subr.bf16.mxu0 0
        %4280 = vmatpush1.bf16.xpose.msra.mxu0 0
        %4281 = vmatprep.subr.bf16.mxu0 0
        %4282 = vmatpush1.bf16.xpose.msra.mxu0 0
        %4283 = vmatprep.subr.bf16.mxu0 0
        %4284 = vmatpush1.bf16.xpose.msra.mxu0 0
        %4285 = vmatprep.subr.bf16.mxu0 0
        %4286 = vmatpush1.bf16.xpose.msra.mxu0 0
        %4287 = vmatprep.subr.bf16.mxu0 0
        %4288 = vmatpush1.bf16.xpose.msra.mxu0 0
        %4289 = vmatprep.subr.bf16.mxu0 0
        %4290 = vmatpush1.bf16.xpose.msra.mxu0 0
        %4291 = vmatprep.subr.bf16.mxu0 0
        %4292 = vmatpush1.bf16.xpose.msra.mxu0 0
        %4293 = vmatprep.subr.bf16.mxu0 0
        %4294 = vmatpush1.bf16.xpose.msra.mxu0 0
        %4295 = vmatprep.subr.bf16.mxu0 0
        %4296 = vmatpush1.bf16.xpose.msra.mxu0 0
        %4297 = vmatprep.mubr.bf16.mxu0 0
        %4298 = vmatmul.mubr.bf16.gmra.mrb[0].mxu0 %v4260
        %v4299 = vpop.f32.mrb[0].mxu0
        %v4300 = vadd.f32 0.0, %v4299
        %v4301 = vpop.f32.mrb[0].mxu0
        %v4302 = vpop.f32.mrb[0].mxu0
        %v4303 = vpop.f32.mrb[0].mxu0
        %4304 = vdwg.mxu0
        %v4306 = vsel %vm1629, %v4207, 0
        %v4309 = vsel %vm1629, %v4211, 0
        %4311 = vmatprep.subr.bf16.mxu0 0
        %4312 = vmatpush1.bf16.xpose.msra.mxu0 %v4309
        %4313 = vmatprep.subr.bf16.mxu0 0
        %4314 = vmatpush1.bf16.xpose.msra.mxu0 0
        %4315 = vmatprep.subr.bf16.mxu0 0
        %4316 = vmatpush1.bf16.xpose.msra.mxu0 0
        %4317 = vmatprep.subr.bf16.mxu0 0
        %4318 = vmatpush1.bf16.xpose.msra.mxu0 0
        %4319 = vmatprep.subr.bf16.mxu0 0
        %4320 = vmatpush1.bf16.xpose.msra.mxu0 0
        %4321 = vmatprep.subr.bf16.mxu0 0
        %4322 = vmatpush1.bf16.xpose.msra.mxu0 0
        %4323 = vmatprep.subr.bf16.mxu0 0
        %4324 = vmatpush1.bf16.xpose.msra.mxu0 0
        %4325 = vmatprep.subr.bf16.mxu0 0
        %4326 = vmatpush1.bf16.xpose.msra.mxu0 0
        %4327 = vmatprep.subr.bf16.mxu0 0
        %4328 = vmatpush1.bf16.xpose.msra.mxu0 0
        %4329 = vmatprep.subr.bf16.mxu0 0
        %4330 = vmatpush1.bf16.xpose.msra.mxu0 0
        %4331 = vmatprep.subr.bf16.mxu0 0
        %4332 = vmatpush1.bf16.xpose.msra.mxu0 0
        %4333 = vmatprep.subr.bf16.mxu0 0
        %4334 = vmatpush1.bf16.xpose.msra.mxu0 0
        %4335 = vmatprep.subr.bf16.mxu0 0
        %4336 = vmatpush1.bf16.xpose.msra.mxu0 0
        %4337 = vmatprep.subr.bf16.mxu0 0
        %4338 = vmatpush1.bf16.xpose.msra.mxu0 0
        %4339 = vmatprep.subr.bf16.mxu0 0
        %4340 = vmatpush1.bf16.xpose.msra.mxu0 0
        %4341 = vmatprep.subr.bf16.mxu0 0
        %4342 = vmatpush1.bf16.xpose.msra.mxu0 0
        %4343 = vmatprep.mubr.bf16.mxu0 0
        %4344 = vmatmul.mubr.bf16.gmra.mrb[0].mxu0 %v4306
        %v4345 = vpop.f32.mrb[0].mxu0
        %v4346 = vadd.f32 0.0, %v4345
        %v4347 = vpop.f32.mrb[0].mxu0
        %v4348 = vpop.f32.mrb[0].mxu0
        %v4349 = vpop.f32.mrb[0].mxu0
        %4350 = vdwg.mxu0
        %v4352 = vsel %vm1629, %v4208, 0
        %v4355 = vsel %vm1629, %v4212, 0
        %4357 = vmatprep.subr.bf16.mxu0 0
        %4358 = vmatpush1.bf16.xpose.msra.mxu0 %v4355
        %4359 = vmatprep.subr.bf16.mxu0 0
        %4360 = vmatpush1.bf16.xpose.msra.mxu0 0
        %4361 = vmatprep.subr.bf16.mxu0 0
        %4362 = vmatpush1.bf16.xpose.msra.mxu0 0
        %4363 = vmatprep.subr.bf16.mxu0 0
        %4364 = vmatpush1.bf16.xpose.msra.mxu0 0
        %4365 = vmatprep.subr.bf16.mxu0 0
        %4366 = vmatpush1.bf16.xpose.msra.mxu0 0
        %4367 = vmatprep.subr.bf16.mxu0 0
        %4368 = vmatpush1.bf16.xpose.msra.mxu0 0
        %4369 = vmatprep.subr.bf16.mxu0 0
        %4370 = vmatpush1.bf16.xpose.msra.mxu0 0
        %4371 = vmatprep.subr.bf16.mxu0 0
        %4372 = vmatpush1.bf16.xpose.msra.mxu0 0
        %4373 = vmatprep.subr.bf16.mxu0 0
        %4374 = vmatpush1.bf16.xpose.msra.mxu0 0
        %4375 = vmatprep.subr.bf16.mxu0 0
        %4376 = vmatpush1.bf16.xpose.msra.mxu0 0
        %4377 = vmatprep.subr.bf16.mxu0 0
        %4378 = vmatpush1.bf16.xpose.msra.mxu0 0
        %4379 = vmatprep.subr.bf16.mxu0 0
        %4380 = vmatpush1.bf16.xpose.msra.mxu0 0
        %4381 = vmatprep.subr.bf16.mxu0 0
        %4382 = vmatpush1.bf16.xpose.msra.mxu0 0
        %4383 = vmatprep.subr.bf16.mxu0 0
        %4384 = vmatpush1.bf16.xpose.msra.mxu0 0
        %4385 = vmatprep.subr.bf16.mxu0 0
        %4386 = vmatpush1.bf16.xpose.msra.mxu0 0
        %4387 = vmatprep.subr.bf16.mxu0 0
        %4388 = vmatpush1.bf16.xpose.msra.mxu0 0
        %4389 = vmatprep.mubr.bf16.mxu0 0
        %4390 = vmatmul.mubr.bf16.gmra.mrb[0].mxu0 %v4352
        %v4391 = vpop.f32.mrb[0].mxu0
        %v4392 = vadd.f32 0.0, %v4391
        %v4393 = vpop.f32.mrb[0].mxu0
        %v4394 = vpop.f32.mrb[0].mxu0
        %v4395 = vpop.f32.mrb[0].mxu0
        %4396 = vdwg.mxu0
        %v4397 = vmul.f32 %v4254, 0.17677669
        %v4398 = vmul.f32 %v4300, 0.17677669
        %v4399 = vmul.f32 %v4346, 0.17677669
        %v4400 = vmul.f32 %v4392, 0.17677669
        %vm4401 = vcmask 60416
        %v4402 = vsel %vm4401, %v4397, -inf
        %4403 = vmax.xlane.f32.xlu0 %v4402
        %v4404 = vpop.xlane.xlu0 %4403
        %v4405 = vsel %vm4401, %v4398, -inf
        %4406 = vmax.xlane.f32.xlu0 %v4405
        %v4407 = vpop.xlane.xlu0 %4406
        %v4408 = vsel %vm4401, %v4399, -inf
        %4409 = vmax.xlane.f32.xlu0 %v4408
        %v4410 = vpop.xlane.xlu0 %4409
        %v4411 = vsel %vm4401, %v4400, -inf
        %4412 = vmax.xlane.f32.xlu0 %v4411
        %v4413 = vpop.xlane.xlu0 %4412
        %v4414 = vsub.f32 %v4397, %v4404
        %v4415 = vsub.f32 %v4398, %v4407
        %v4416 = vsub.f32 %v4399, %v4410
        %v4417 = vsub.f32 %v4400, %v4413
        %v4418 = vmul.f32 %v4414, 1.442695
        %v4419 = vpow.pop %v4418
        %v4420 = vmul.f32 %v4415, 1.442695
        %v4421 = vpow.pop %v4420
        %v4422 = vmul.f32 %v4416, 1.442695
        %v4423 = vpow.pop %v4422
        %v4424 = vmul.f32 %v4417, 1.442695
        %v4425 = vpow.pop %v4424
        %v4426 = vsel %vm4401, %v4419, 0.0
        %4427 = vadd.xlane.f32.xlu0 %v4426
        %v4428 = vpop.xlane.xlu0 %4427
        %v4429 = vsel %vm4401, %v4421, 0.0
        %4430 = vadd.xlane.f32.xlu0 %v4429
        %v4431 = vpop.xlane.xlu0 %4430
        %v4432 = vsel %vm4401, %v4423, 0.0
        %4433 = vadd.xlane.f32.xlu0 %v4432
        %v4434 = vpop.xlane.xlu0 %4433
        %v4435 = vsel %vm4401, %v4425, 0.0
        %4436 = vadd.xlane.f32.xlu0 %v4435
        %v4437 = vpop.xlane.xlu0 %4436
        %v4438 = vrcp.pop %v4428
        %v4439 = vrcp.pop %v4431
        %v4440 = vrcp.pop %v4434
        %v4441 = vrcp.pop %v4437
        %v4442 = vmul.f32 %v4419, %v4438
        %v4443 = vmul.f32 %v4421, %v4439
        %v4444 = vmul.f32 %v4423, %v4440
        %v4445 = vmul.f32 %v4425, %v4441
        %v4446 = vpack.c.bf16 %v4442, %v4442
        %v4447 = vpack.c.bf16 %v4443, %v4443
        %v4448 = vpack.c.bf16 %v4444, %v4444
        %v4449 = vpack.c.bf16 %v4445, %v4445
        %4451 = vrot.lane.b32.xlu0 %v4209, 96
        %v4452 = vpop.permute.xlu0 %4451
        %v4454 = vsel %vm1629, %v4446, 0
        %v4457 = vsel %vm1872, %v4452, 0
        %4459 = vmatprep.subr.bf16.mxu0 0
        %4460 = vmatpush1.bf16.msra.mxu0 %v4457
        %4461 = vmatprep.subr.bf16.mxu0 0
        %4462 = vmatpush1.bf16.msra.mxu0 0
        %4463 = vmatprep.subr.bf16.mxu0 0
        %4464 = vmatpush1.bf16.msra.mxu0 0
        %4465 = vmatprep.subr.bf16.mxu0 0
        %4466 = vmatpush1.bf16.msra.mxu0 0
        %4467 = vmatprep.subr.bf16.mxu0 0
        %4468 = vmatpush1.bf16.msra.mxu0 0
        %4469 = vmatprep.subr.bf16.mxu0 0
        %4470 = vmatpush1.bf16.msra.mxu0 0
        %4471 = vmatprep.subr.bf16.mxu0 0
        %4472 = vmatpush1.bf16.msra.mxu0 0
        %4473 = vmatprep.subr.bf16.mxu0 0
        %4474 = vmatpush1.bf16.msra.mxu0 0
        %4475 = vmatprep.subr.bf16.mxu0 0
        %4476 = vmatpush1.bf16.msra.mxu0 0
        %4477 = vmatprep.subr.bf16.mxu0 0
        %4478 = vmatpush1.bf16.msra.mxu0 0
        %4479 = vmatprep.subr.bf16.mxu0 0
        %4480 = vmatpush1.bf16.msra.mxu0 0
        %4481 = vmatprep.subr.bf16.mxu0 0
        %4482 = vmatpush1.bf16.msra.mxu0 0
        %4483 = vmatprep.subr.bf16.mxu0 0
        %4484 = vmatpush1.bf16.msra.mxu0 0
        %4485 = vmatprep.subr.bf16.mxu0 0
        %4486 = vmatpush1.bf16.msra.mxu0 0
        %4487 = vmatprep.subr.bf16.mxu0 0
        %4488 = vmatpush1.bf16.msra.mxu0 0
        %4489 = vmatprep.subr.bf16.mxu0 0
        %4490 = vmatpush1.bf16.msra.mxu0 0
        %4491 = vmatprep.mubr.bf16.mxu0 0
        %4492 = vmatmul.mubr.bf16.gmra.mrb[0].mxu0 %v4454
        %v4493 = vpop.f32.mrb[0].mxu0
        %v4494 = vadd.f32 0.0, %v4493
        %v4495 = vpop.f32.mrb[0].mxu0
        %v4496 = vpop.f32.mrb[0].mxu0
        %v4497 = vpop.f32.mrb[0].mxu0
        %4498 = vdwg.mxu0
        %4500 = vrot.lane.b32.xlu0 %v4210, 96
        %v4501 = vpop.permute.xlu0 %4500
        %v4503 = vsel %vm1629, %v4447, 0
        %v4506 = vsel %vm1872, %v4501, 0
        %4508 = vmatprep.subr.bf16.mxu0 0
        %4509 = vmatpush1.bf16.msra.mxu0 %v4506
        %4510 = vmatprep.subr.bf16.mxu0 0
        %4511 = vmatpush1.bf16.msra.mxu0 0
        %4512 = vmatprep.subr.bf16.mxu0 0
        %4513 = vmatpush1.bf16.msra.mxu0 0
        %4514 = vmatprep.subr.bf16.mxu0 0
        %4515 = vmatpush1.bf16.msra.mxu0 0
        %4516 = vmatprep.subr.bf16.mxu0 0
        %4517 = vmatpush1.bf16.msra.mxu0 0
        %4518 = vmatprep.subr.bf16.mxu0 0
        %4519 = vmatpush1.bf16.msra.mxu0 0
        %4520 = vmatprep.subr.bf16.mxu0 0
        %4521 = vmatpush1.bf16.msra.mxu0 0
        %4522 = vmatprep.subr.bf16.mxu0 0
        %4523 = vmatpush1.bf16.msra.mxu0 0
        %4524 = vmatprep.subr.bf16.mxu0 0
        %4525 = vmatpush1.bf16.msra.mxu0 0
        %4526 = vmatprep.subr.bf16.mxu0 0
        %4527 = vmatpush1.bf16.msra.mxu0 0
        %4528 = vmatprep.subr.bf16.mxu0 0
        %4529 = vmatpush1.bf16.msra.mxu0 0
        %4530 = vmatprep.subr.bf16.mxu0 0
        %4531 = vmatpush1.bf16.msra.mxu0 0
        %4532 = vmatprep.subr.bf16.mxu0 0
        %4533 = vmatpush1.bf16.msra.mxu0 0
        %4534 = vmatprep.subr.bf16.mxu0 0
        %4535 = vmatpush1.bf16.msra.mxu0 0
        %4536 = vmatprep.subr.bf16.mxu0 0
        %4537 = vmatpush1.bf16.msra.mxu0 0
        %4538 = vmatprep.subr.bf16.mxu0 0
        %4539 = vmatpush1.bf16.msra.mxu0 0
        %4540 = vmatprep.mubr.bf16.mxu0 0
        %4541 = vmatmul.mubr.bf16.gmra.mrb[0].mxu0 %v4503
        %v4542 = vpop.f32.mrb[0].mxu0
        %v4543 = vadd.f32 0.0, %v4542
        %v4544 = vpop.f32.mrb[0].mxu0
        %v4545 = vpop.f32.mrb[0].mxu0
        %v4546 = vpop.f32.mrb[0].mxu0
        %4547 = vdwg.mxu0
        %4549 = vrot.lane.b32.xlu0 %v4211, 96
        %v4550 = vpop.permute.xlu0 %4549
        %v4552 = vsel %vm1629, %v4448, 0
        %v4555 = vsel %vm1872, %v4550, 0
        %4557 = vmatprep.subr.bf16.mxu0 0
        %4558 = vmatpush1.bf16.msra.mxu0 %v4555
        %4559 = vmatprep.subr.bf16.mxu0 0
        %4560 = vmatpush1.bf16.msra.mxu0 0
        %4561 = vmatprep.subr.bf16.mxu0 0
        %4562 = vmatpush1.bf16.msra.mxu0 0
        %4563 = vmatprep.subr.bf16.mxu0 0
        %4564 = vmatpush1.bf16.msra.mxu0 0
        %4565 = vmatprep.subr.bf16.mxu0 0
        %4566 = vmatpush1.bf16.msra.mxu0 0
        %4567 = vmatprep.subr.bf16.mxu0 0
        %4568 = vmatpush1.bf16.msra.mxu0 0
        %4569 = vmatprep.subr.bf16.mxu0 0
        %4570 = vmatpush1.bf16.msra.mxu0 0
        %4571 = vmatprep.subr.bf16.mxu0 0
        %4572 = vmatpush1.bf16.msra.mxu0 0
        %4573 = vmatprep.subr.bf16.mxu0 0
        %4574 = vmatpush1.bf16.msra.mxu0 0
        %4575 = vmatprep.subr.bf16.mxu0 0
        %4576 = vmatpush1.bf16.msra.mxu0 0
        %4577 = vmatprep.subr.bf16.mxu0 0
        %4578 = vmatpush1.bf16.msra.mxu0 0
        %4579 = vmatprep.subr.bf16.mxu0 0
        %4580 = vmatpush1.bf16.msra.mxu0 0
        %4581 = vmatprep.subr.bf16.mxu0 0
        %4582 = vmatpush1.bf16.msra.mxu0 0
        %4583 = vmatprep.subr.bf16.mxu0 0
        %4584 = vmatpush1.bf16.msra.mxu0 0
        %4585 = vmatprep.subr.bf16.mxu0 0
        %4586 = vmatpush1.bf16.msra.mxu0 0
        %4587 = vmatprep.subr.bf16.mxu0 0
        %4588 = vmatpush1.bf16.msra.mxu0 0
        %4589 = vmatprep.mubr.bf16.mxu0 0
        %4590 = vmatmul.mubr.bf16.gmra.mrb[0].mxu0 %v4552
        %v4591 = vpop.f32.mrb[0].mxu0
        %v4592 = vadd.f32 0.0, %v4591
        %v4593 = vpop.f32.mrb[0].mxu0
        %v4594 = vpop.f32.mrb[0].mxu0
        %v4595 = vpop.f32.mrb[0].mxu0
        %4596 = vdwg.mxu0
        %4598 = vrot.lane.b32.xlu0 %v4212, 96
        %v4599 = vpop.permute.xlu0 %4598
        %v4601 = vsel %vm1629, %v4449, 0
        %v4604 = vsel %vm1872, %v4599, 0
        %4606 = vmatprep.subr.bf16.mxu0 0
        %4607 = vmatpush1.bf16.msra.mxu0 %v4604
        %4608 = vmatprep.subr.bf16.mxu0 0
        %4609 = vmatpush1.bf16.msra.mxu0 0
        %4610 = vmatprep.subr.bf16.mxu0 0
        %4611 = vmatpush1.bf16.msra.mxu0 0
        %4612 = vmatprep.subr.bf16.mxu0 0
        %4613 = vmatpush1.bf16.msra.mxu0 0
        %4614 = vmatprep.subr.bf16.mxu0 0
        %4615 = vmatpush1.bf16.msra.mxu0 0
        %4616 = vmatprep.subr.bf16.mxu0 0
        %4617 = vmatpush1.bf16.msra.mxu0 0
        %4618 = vmatprep.subr.bf16.mxu0 0
        %4619 = vmatpush1.bf16.msra.mxu0 0
        %4620 = vmatprep.subr.bf16.mxu0 0
        %4621 = vmatpush1.bf16.msra.mxu0 0
        %4622 = vmatprep.subr.bf16.mxu0 0
        %4623 = vmatpush1.bf16.msra.mxu0 0
        %4624 = vmatprep.subr.bf16.mxu0 0
        %4625 = vmatpush1.bf16.msra.mxu0 0
        %4626 = vmatprep.subr.bf16.mxu0 0
        %4627 = vmatpush1.bf16.msra.mxu0 0
        %4628 = vmatprep.subr.bf16.mxu0 0
        %4629 = vmatpush1.bf16.msra.mxu0 0
        %4630 = vmatprep.subr.bf16.mxu0 0
        %4631 = vmatpush1.bf16.msra.mxu0 0
        %4632 = vmatprep.subr.bf16.mxu0 0
        %4633 = vmatpush1.bf16.msra.mxu0 0
        %4634 = vmatprep.subr.bf16.mxu0 0
        %4635 = vmatpush1.bf16.msra.mxu0 0
        %4636 = vmatprep.subr.bf16.mxu0 0
        %4637 = vmatpush1.bf16.msra.mxu0 0
        %4638 = vmatprep.mubr.bf16.mxu0 0
        %4639 = vmatmul.mubr.bf16.gmra.mrb[0].mxu0 %v4601
        %v4640 = vpop.f32.mrb[0].mxu0
        %v4641 = vadd.f32 0.0, %v4640
        %v4642 = vpop.f32.mrb[0].mxu0
        %v4643 = vpop.f32.mrb[0].mxu0
        %v4644 = vpop.f32.mrb[0].mxu0
        %4645 = vdwg.mxu0
        %v4646 = vadd.f32 %v4117, %v4494
        %v4647 = vadd.f32 %v4187, %v4543
        %v4648 = vadd.f32 %v4190, %v4592
        %v4649 = vadd.f32 %v4193, %v4641
        %4651 = vrot.lane.b32.xlu0 %v4647, 8
        %v4652 = vpop.permute.xlu0 %4651
        %4655 = vrot.lane.b32.xlu0 %v4648, 16
        %v4656 = vpop.permute.xlu0 %4655
        %4659 = vrot.lane.b32.xlu0 %v4649, 24
        %v4660 = vpop.permute.xlu0 %4659
        %v4662 = vsel %vm1629, %v4646, %v4652
        %v4663 = vsel %vm1557, %v4662, %v4656
        %v4664 = vsel %vm2081, %v4663, %v4660
        %v4665 = vpack.c.bf16 %v4664, %v4664
        %v4666 = vld [vmem:[#allocation11] sm:$0xf]
        %v4667 = vld [vmem:[#allocation11 + $0x4] sm:$0xf]
        %v4668 = vld [vmem:[#allocation11 + $0x8] sm:$0xf]
        %v4669 = vld [vmem:[#allocation11 + $0xc] sm:$0xf]
        %v4670 = vld [vmem:[#allocation10] sm:$0x1]
        %v4672 = vlaneseq
        %v4673 = vshrl.u32 %v4672, 7
        %v4674 = vsub.s32 0, %v4673
        %v4675 = vrot.slane %v4670, %v4674
        %v4681 = vunpack.c.l.b16 %v4666
        %v4682 = vunpack.c.l.b16 %v4667
        %v4683 = vunpack.c.l.b16 %v4668
        %v4684 = vunpack.c.l.b16 %v4669
        %v4685 = vpack.c.b16 %v4682, %v4681
        %v4686 = vpack.c.b16 %v4684, %v4683
        %v4690 = vsel %vm2107, %v4665, 0
        %4692 = vmatprep.subr.bf16.mxu0 0
        %4693 = vmatpush1.bf16.msra.mxu0 %v4685
        %4694 = vmatprep.subr.bf16.mxu0 0
        %4695 = vmatpush1.bf16.msra.mxu0 %v4686
        %4696 = vmatprep.subr.bf16.mxu0 0
        %4697 = vmatpush1.bf16.msra.mxu0 0
        %4698 = vmatprep.subr.bf16.mxu0 0
        %4699 = vmatpush1.bf16.msra.mxu0 0
        %4700 = vmatprep.subr.bf16.mxu0 0
        %4701 = vmatpush1.bf16.msra.mxu0 0
        %4702 = vmatprep.subr.bf16.mxu0 0
        %4703 = vmatpush1.bf16.msra.mxu0 0
        %4704 = vmatprep.subr.bf16.mxu0 0
        %4705 = vmatpush1.bf16.msra.mxu0 0
        %4706 = vmatprep.subr.bf16.mxu0 0
        %4707 = vmatpush1.bf16.msra.mxu0 0
        %4708 = vmatprep.subr.bf16.mxu0 0
        %4709 = vmatpush1.bf16.msra.mxu0 0
        %4710 = vmatprep.subr.bf16.mxu0 0
        %4711 = vmatpush1.bf16.msra.mxu0 0
        %4712 = vmatprep.subr.bf16.mxu0 0
        %4713 = vmatpush1.bf16.msra.mxu0 0
        %4714 = vmatprep.subr.bf16.mxu0 0
        %4715 = vmatpush1.bf16.msra.mxu0 0
        %4716 = vmatprep.subr.bf16.mxu0 0
        %4717 = vmatpush1.bf16.msra.mxu0 0
        %4718 = vmatprep.subr.bf16.mxu0 0
        %4719 = vmatpush1.bf16.msra.mxu0 0
        %4720 = vmatprep.subr.bf16.mxu0 0
        %4721 = vmatpush1.bf16.msra.mxu0 0
        %4722 = vmatprep.subr.bf16.mxu0 0
        %4723 = vmatpush1.bf16.msra.mxu0 0
        %4724 = vmatprep.mubr.bf16.mxu0 0
        %4725 = vmatmul.mubr.bf16.gmra.mrb[0].mxu0 %v4690
        %v4726 = vpop.f32.mrb[0].mxu0
        %v4727 = vadd.f32 %v4675, %v4726
        %v4728 = vpop.f32.mrb[0].mxu0
        %v4729 = vpop.f32.mrb[0].mxu0
        %v4730 = vpop.f32.mrb[0].mxu0
        %4731 = vdwg.mxu0
        %v4732 = vmax.f32 %v4727, 0.0
        %v4733 = vadd.f32 %v4664, %v4732
        %v4734 = vpack.c.bf16 %v4733, %v4733
        %v4735 = vld [vmem:[#allocation17] sm:$0xf]
        %v4736 = vld [vmem:[#allocation17 + $0x4] sm:$0xf]
        %v4737 = vld [vmem:[#allocation17 + $0x8] sm:$0xf]
        %v4738 = vld [vmem:[#allocation17 + $0xc] sm:$0xf]
        %v4739 = vld [vmem:[#allocation16] sm:$0x1]
        %v4741 = vlaneseq
        %v4742 = vshrl.u32 %v4741, 7
        %v4743 = vsub.s32 0, %v4742
        %v4744 = vrot.slane %v4739, %v4743
        %v4750 = vunpack.c.l.b16 %v4735
        %v4751 = vunpack.c.l.b16 %v4736
        %v4752 = vunpack.c.l.b16 %v4737
        %v4753 = vunpack.c.l.b16 %v4738
        %v4754 = vpack.c.b16 %v4751, %v4750
        %v4755 = vpack.c.b16 %v4753, %v4752
        %v4759 = vsel %vm2107, %v4734, 0
        %4761 = vmatprep.subr.bf16.mxu0 0
        %4762 = vmatpush1.bf16.msra.mxu0 %v4754
        %4763 = vmatprep.subr.bf16.mxu0 0
        %4764 = vmatpush1.bf16.msra.mxu0 %v4755
        %4765 = vmatprep.subr.bf16.mxu0 0
        %4766 = vmatpush1.bf16.msra.mxu0 0
        %4767 = vmatprep.subr.bf16.mxu0 0
        %4768 = vmatpush1.bf16.msra.mxu0 0
        %4769 = vmatprep.subr.bf16.mxu0 0
        %4770 = vmatpush1.bf16.msra.mxu0 0
        %4771 = vmatprep.subr.bf16.mxu0 0
        %4772 = vmatpush1.bf16.msra.mxu0 0
        %4773 = vmatprep.subr.bf16.mxu0 0
        %4774 = vmatpush1.bf16.msra.mxu0 0
        %4775 = vmatprep.subr.bf16.mxu0 0
        %4776 = vmatpush1.bf16.msra.mxu0 0
        %4777 = vmatprep.subr.bf16.mxu0 0
        %4778 = vmatpush1.bf16.msra.mxu0 0
        %4779 = vmatprep.subr.bf16.mxu0 0
        %4780 = vmatpush1.bf16.msra.mxu0 0
        %4781 = vmatprep.subr.bf16.mxu0 0
        %4782 = vmatpush1.bf16.msra.mxu0 0
        %4783 = vmatprep.subr.bf16.mxu0 0
        %4784 = vmatpush1.bf16.msra.mxu0 0
        %4785 = vmatprep.subr.bf16.mxu0 0
        %4786 = vmatpush1.bf16.msra.mxu0 0
        %4787 = vmatprep.subr.bf16.mxu0 0
        %4788 = vmatpush1.bf16.msra.mxu0 0
        %4789 = vmatprep.subr.bf16.mxu0 0
        %4790 = vmatpush1.bf16.msra.mxu0 0
        %4791 = vmatprep.subr.bf16.mxu0 0
        %4792 = vmatpush1.bf16.msra.mxu0 0
        %4793 = vmatprep.mubr.bf16.mxu0 0
        %4794 = vmatmul.mubr.bf16.gmra.mrb[0].mxu0 %v4759
        %v4795 = vpop.f32.mrb[0].mxu0
        %v4796 = vadd.f32 %v4744, %v4795
        %v4797 = vpop.f32.mrb[0].mxu0
        %v4798 = vpop.f32.mrb[0].mxu0
        %v4799 = vpop.f32.mrb[0].mxu0
        %4800 = vdwg.mxu0
        %4802 = vrot.lane.b32.xlu0 %v4796, 120
        %v4803 = vpop.permute.xlu0 %4802
        %4805 = vrot.lane.b32.xlu0 %v4796, 112
        %v4806 = vpop.permute.xlu0 %4805
        %4808 = vrot.lane.b32.xlu0 %v4796, 104
        %v4809 = vpop.permute.xlu0 %4808
        %v4811 = vpack.c.bf16 %v4796, %v4796
        %v4812 = vpack.c.bf16 %v4803, %v4803
        %v4813 = vpack.c.bf16 %v4806, %v4806
        %v4814 = vpack.c.bf16 %v4809, %v4809
        %4816 = vrot.lane.b32.xlu0 %v4811, 96
        %v4817 = vpop.permute.xlu0 %4816
        %v4819 = vsel %vm1629, %v4811, 0
        %v4822 = vsel %vm1629, %v4817, 0
        %4824 = vmatprep.subr.bf16.mxu0 0
        %4825 = vmatpush1.bf16.xpose.msra.mxu0 %v4822
        %4826 = vmatprep.subr.bf16.mxu0 0
        %4827 = vmatpush1.bf16.xpose.msra.mxu0 0
        %4828 = vmatprep.subr.bf16.mxu0 0
        %4829 = vmatpush1.bf16.xpose.msra.mxu0 0
        %4830 = vmatprep.subr.bf16.mxu0 0
        %4831 = vmatpush1.bf16.xpose.msra.mxu0 0
        %4832 = vmatprep.subr.bf16.mxu0 0
        %4833 = vmatpush1.bf16.xpose.msra.mxu0 0
        %4834 = vmatprep.subr.bf16.mxu0 0
        %4835 = vmatpush1.bf16.xpose.msra.mxu0 0
        %4836 = vmatprep.subr.bf16.mxu0 0
        %4837 = vmatpush1.bf16.xpose.msra.mxu0 0
        %4838 = vmatprep.subr.bf16.mxu0 0
        %4839 = vmatpush1.bf16.xpose.msra.mxu0 0
        %4840 = vmatprep.subr.bf16.mxu0 0
        %4841 = vmatpush1.bf16.xpose.msra.mxu0 0
        %4842 = vmatprep.subr.bf16.mxu0 0
        %4843 = vmatpush1.bf16.xpose.msra.mxu0 0
        %4844 = vmatprep.subr.bf16.mxu0 0
        %4845 = vmatpush1.bf16.xpose.msra.mxu0 0
        %4846 = vmatprep.subr.bf16.mxu0 0
        %4847 = vmatpush1.bf16.xpose.msra.mxu0 0
        %4848 = vmatprep.subr.bf16.mxu0 0
        %4849 = vmatpush1.bf16.xpose.msra.mxu0 0
        %4850 = vmatprep.subr.bf16.mxu0 0
        %4851 = vmatpush1.bf16.xpose.msra.mxu0 0
        %4852 = vmatprep.subr.bf16.mxu0 0
        %4853 = vmatpush1.bf16.xpose.msra.mxu0 0
        %4854 = vmatprep.subr.bf16.mxu0 0
        %4855 = vmatpush1.bf16.xpose.msra.mxu0 0
        %4856 = vmatprep.mubr.bf16.mxu0 0
        %4857 = vmatmul.mubr.bf16.gmra.mrb[0].mxu0 %v4819
        %v4858 = vpop.f32.mrb[0].mxu0
        %v4859 = vadd.f32 0.0, %v4858
        %v4860 = vpop.f32.mrb[0].mxu0
        %v4861 = vpop.f32.mrb[0].mxu0
        %v4862 = vpop.f32.mrb[0].mxu0
        %4863 = vdwg.mxu0
        %4865 = vrot.lane.b32.xlu0 %v4812, 96
        %v4866 = vpop.permute.xlu0 %4865
        %v4868 = vsel %vm1629, %v4812, 0
        %v4871 = vsel %vm1629, %v4866, 0
        %4873 = vmatprep.subr.bf16.mxu0 0
        %4874 = vmatpush1.bf16.xpose.msra.mxu0 %v4871
        %4875 = vmatprep.subr.bf16.mxu0 0
        %4876 = vmatpush1.bf16.xpose.msra.mxu0 0
        %4877 = vmatprep.subr.bf16.mxu0 0
        %4878 = vmatpush1.bf16.xpose.msra.mxu0 0
        %4879 = vmatprep.subr.bf16.mxu0 0
        %4880 = vmatpush1.bf16.xpose.msra.mxu0 0
        %4881 = vmatprep.subr.bf16.mxu0 0
        %4882 = vmatpush1.bf16.xpose.msra.mxu0 0
        %4883 = vmatprep.subr.bf16.mxu0 0
        %4884 = vmatpush1.bf16.xpose.msra.mxu0 0
        %4885 = vmatprep.subr.bf16.mxu0 0
        %4886 = vmatpush1.bf16.xpose.msra.mxu0 0
        %4887 = vmatprep.subr.bf16.mxu0 0
        %4888 = vmatpush1.bf16.xpose.msra.mxu0 0
        %4889 = vmatprep.subr.bf16.mxu0 0
        %4890 = vmatpush1.bf16.xpose.msra.mxu0 0
        %4891 = vmatprep.subr.bf16.mxu0 0
        %4892 = vmatpush1.bf16.xpose.msra.mxu0 0
        %4893 = vmatprep.subr.bf16.mxu0 0
        %4894 = vmatpush1.bf16.xpose.msra.mxu0 0
        %4895 = vmatprep.subr.bf16.mxu0 0
        %4896 = vmatpush1.bf16.xpose.msra.mxu0 0
        %4897 = vmatprep.subr.bf16.mxu0 0
        %4898 = vmatpush1.bf16.xpose.msra.mxu0 0
        %4899 = vmatprep.subr.bf16.mxu0 0
        %4900 = vmatpush1.bf16.xpose.msra.mxu0 0
        %4901 = vmatprep.subr.bf16.mxu0 0
        %4902 = vmatpush1.bf16.xpose.msra.mxu0 0
        %4903 = vmatprep.subr.bf16.mxu0 0
        %4904 = vmatpush1.bf16.xpose.msra.mxu0 0
        %4905 = vmatprep.mubr.bf16.mxu0 0
        %4906 = vmatmul.mubr.bf16.gmra.mrb[0].mxu0 %v4868
        %v4907 = vpop.f32.mrb[0].mxu0
        %v4908 = vadd.f32 0.0, %v4907
        %v4909 = vpop.f32.mrb[0].mxu0
        %v4910 = vpop.f32.mrb[0].mxu0
        %v4911 = vpop.f32.mrb[0].mxu0
        %4912 = vdwg.mxu0
        %4914 = vrot.lane.b32.xlu0 %v4813, 96
        %v4915 = vpop.permute.xlu0 %4914
        %v4917 = vsel %vm1629, %v4813, 0
        %v4920 = vsel %vm1629, %v4915, 0
        %4922 = vmatprep.subr.bf16.mxu0 0
        %4923 = vmatpush1.bf16.xpose.msra.mxu0 %v4920
        %4924 = vmatprep.subr.bf16.mxu0 0
        %4925 = vmatpush1.bf16.xpose.msra.mxu0 0
        %4926 = vmatprep.subr.bf16.mxu0 0
        %4927 = vmatpush1.bf16.xpose.msra.mxu0 0
        %4928 = vmatprep.subr.bf16.mxu0 0
        %4929 = vmatpush1.bf16.xpose.msra.mxu0 0
        %4930 = vmatprep.subr.bf16.mxu0 0
        %4931 = vmatpush1.bf16.xpose.msra.mxu0 0
        %4932 = vmatprep.subr.bf16.mxu0 0
        %4933 = vmatpush1.bf16.xpose.msra.mxu0 0
        %4934 = vmatprep.subr.bf16.mxu0 0
        %4935 = vmatpush1.bf16.xpose.msra.mxu0 0
        %4936 = vmatprep.subr.bf16.mxu0 0
        %4937 = vmatpush1.bf16.xpose.msra.mxu0 0
        %4938 = vmatprep.subr.bf16.mxu0 0
        %4939 = vmatpush1.bf16.xpose.msra.mxu0 0
        %4940 = vmatprep.subr.bf16.mxu0 0
        %4941 = vmatpush1.bf16.xpose.msra.mxu0 0
        %4942 = vmatprep.subr.bf16.mxu0 0
        %4943 = vmatpush1.bf16.xpose.msra.mxu0 0
        %4944 = vmatprep.subr.bf16.mxu0 0
        %4945 = vmatpush1.bf16.xpose.msra.mxu0 0
        %4946 = vmatprep.subr.bf16.mxu0 0
        %4947 = vmatpush1.bf16.xpose.msra.mxu0 0
        %4948 = vmatprep.subr.bf16.mxu0 0
        %4949 = vmatpush1.bf16.xpose.msra.mxu0 0
        %4950 = vmatprep.subr.bf16.mxu0 0
        %4951 = vmatpush1.bf16.xpose.msra.mxu0 0
        %4952 = vmatprep.subr.bf16.mxu0 0
        %4953 = vmatpush1.bf16.xpose.msra.mxu0 0
        %4954 = vmatprep.mubr.bf16.mxu0 0
        %4955 = vmatmul.mubr.bf16.gmra.mrb[0].mxu0 %v4917
        %v4956 = vpop.f32.mrb[0].mxu0
        %v4957 = vadd.f32 0.0, %v4956
        %v4958 = vpop.f32.mrb[0].mxu0
        %v4959 = vpop.f32.mrb[0].mxu0
        %v4960 = vpop.f32.mrb[0].mxu0
        %4961 = vdwg.mxu0
        %4963 = vrot.lane.b32.xlu0 %v4814, 96
        %v4964 = vpop.permute.xlu0 %4963
        %v4966 = vsel %vm1629, %v4814, 0
        %v4969 = vsel %vm1629, %v4964, 0
        %4971 = vmatprep.subr.bf16.mxu0 0
        %4972 = vmatpush1.bf16.xpose.msra.mxu0 %v4969
        %4973 = vmatprep.subr.bf16.mxu0 0
        %4974 = vmatpush1.bf16.xpose.msra.mxu0 0
        %4975 = vmatprep.subr.bf16.mxu0 0
        %4976 = vmatpush1.bf16.xpose.msra.mxu0 0
        %4977 = vmatprep.subr.bf16.mxu0 0
        %4978 = vmatpush1.bf16.xpose.msra.mxu0 0
        %4979 = vmatprep.subr.bf16.mxu0 0
        %4980 = vmatpush1.bf16.xpose.msra.mxu0 0
        %4981 = vmatprep.subr.bf16.mxu0 0
        %4982 = vmatpush1.bf16.xpose.msra.mxu0 0
        %4983 = vmatprep.subr.bf16.mxu0 0
        %4984 = vmatpush1.bf16.xpose.msra.mxu0 0
        %4985 = vmatprep.subr.bf16.mxu0 0
        %4986 = vmatpush1.bf16.xpose.msra.mxu0 0
        %4987 = vmatprep.subr.bf16.mxu0 0
        %4988 = vmatpush1.bf16.xpose.msra.mxu0 0
        %4989 = vmatprep.subr.bf16.mxu0 0
        %4990 = vmatpush1.bf16.xpose.msra.mxu0 0
        %4991 = vmatprep.subr.bf16.mxu0 0
        %4992 = vmatpush1.bf16.xpose.msra.mxu0 0
        %4993 = vmatprep.subr.bf16.mxu0 0
        %4994 = vmatpush1.bf16.xpose.msra.mxu0 0
        %4995 = vmatprep.subr.bf16.mxu0 0
        %4996 = vmatpush1.bf16.xpose.msra.mxu0 0
        %4997 = vmatprep.subr.bf16.mxu0 0
        %4998 = vmatpush1.bf16.xpose.msra.mxu0 0
        %4999 = vmatprep.subr.bf16.mxu0 0
        %5000 = vmatpush1.bf16.xpose.msra.mxu0 0
        %5001 = vmatprep.subr.bf16.mxu0 0
        %5002 = vmatpush1.bf16.xpose.msra.mxu0 0
        %5003 = vmatprep.mubr.bf16.mxu0 0
        %5004 = vmatmul.mubr.bf16.gmra.mrb[0].mxu0 %v4966
        %v5005 = vpop.f32.mrb[0].mxu0
        %v5006 = vadd.f32 0.0, %v5005
        %v5007 = vpop.f32.mrb[0].mxu0
        %v5008 = vpop.f32.mrb[0].mxu0
        %v5009 = vpop.f32.mrb[0].mxu0
        %5010 = vdwg.mxu0
        %v5011 = vmul.f32 %v4859, 0.17677669
        %v5012 = vmul.f32 %v4908, 0.17677669
        %v5013 = vmul.f32 %v4957, 0.17677669
        %v5014 = vmul.f32 %v5006, 0.17677669
        %vm5015 = vcmask 27648
        %v5016 = vsel %vm5015, %v5011, -inf
        %5017 = vmax.xlane.f32.xlu0 %v5016
        %v5018 = vpop.xlane.xlu0 %5017
        %v5019 = vsel %vm5015, %v5012, -inf
        %5020 = vmax.xlane.f32.xlu0 %v5019
        %v5021 = vpop.xlane.xlu0 %5020
        %v5022 = vsel %vm5015, %v5013, -inf
        %5023 = vmax.xlane.f32.xlu0 %v5022
        %v5024 = vpop.xlane.xlu0 %5023
        %v5025 = vsel %vm5015, %v5014, -inf
        %5026 = vmax.xlane.f32.xlu0 %v5025
        %v5027 = vpop.xlane.xlu0 %5026
        %v5028 = vsub.f32 %v5011, %v5018
        %v5029 = vsub.f32 %v5012, %v5021
        %v5030 = vsub.f32 %v5013, %v5024
        %v5031 = vsub.f32 %v5014, %v5027
        %v5032 = vmul.f32 %v5028, 1.442695
        %v5033 = vpow.pop %v5032
        %v5034 = vmul.f32 %v5029, 1.442695
        %v5035 = vpow.pop %v5034
        %v5036 = vmul.f32 %v5030, 1.442695
        %v5037 = vpow.pop %v5036
        %v5038 = vmul.f32 %v5031, 1.442695
        %v5039 = vpow.pop %v5038
        %v5040 = vsel %vm5015, %v5033, 0.0
        %5041 = vadd.xlane.f32.xlu0 %v5040
        %v5042 = vpop.xlane.xlu0 %5041
        %v5043 = vsel %vm5015, %v5035, 0.0
        %5044 = vadd.xlane.f32.xlu0 %v5043
        %v5045 = vpop.xlane.xlu0 %5044
        %v5046 = vsel %vm5015, %v5037, 0.0
        %5047 = vadd.xlane.f32.xlu0 %v5046
        %v5048 = vpop.xlane.xlu0 %5047
        %v5049 = vsel %vm5015, %v5039, 0.0
        %5050 = vadd.xlane.f32.xlu0 %v5049
        %v5051 = vpop.xlane.xlu0 %5050
        %v5052 = vrcp.pop %v5042
        %v5053 = vrcp.pop %v5045
        %v5054 = vrcp.pop %v5048
        %v5055 = vrcp.pop %v5051
        %v5056 = vmul.f32 %v5033, %v5052
        %v5057 = vmul.f32 %v5035, %v5053
        %v5058 = vmul.f32 %v5037, %v5054
        %v5059 = vmul.f32 %v5039, %v5055
        %v5060 = vpack.c.bf16 %v5056, %v5056
        %v5061 = vpack.c.bf16 %v5057, %v5057
        %v5062 = vpack.c.bf16 %v5058, %v5058
        %v5063 = vpack.c.bf16 %v5059, %v5059
        %5064 = vrot.lane.b32.xlu0 %v4811, 64
        %v5065 = vpop.permute.xlu0 %5064
        %vm5066 = vcmask 31744
        %v5068 = vsel %vm5066, %v5060, 0
        %vm5070 = vcmask 1041408
        %v5072 = vsel %vm5070, %v5065, 0
        %5074 = vmatprep.subr.bf16.mxu0 0
        %5075 = vmatpush1.bf16.msra.mxu0 %v5072
        %5076 = vmatprep.subr.bf16.mxu0 0
        %5077 = vmatpush1.bf16.msra.mxu0 0
        %5078 = vmatprep.subr.bf16.mxu0 0
        %5079 = vmatpush1.bf16.msra.mxu0 0
        %5080 = vmatprep.subr.bf16.mxu0 0
        %5081 = vmatpush1.bf16.msra.mxu0 0
        %5082 = vmatprep.subr.bf16.mxu0 0
        %5083 = vmatpush1.bf16.msra.mxu0 0
        %5084 = vmatprep.subr.bf16.mxu0 0
        %5085 = vmatpush1.bf16.msra.mxu0 0
        %5086 = vmatprep.subr.bf16.mxu0 0
        %5087 = vmatpush1.bf16.msra.mxu0 0
        %5088 = vmatprep.subr.bf16.mxu0 0
        %5089 = vmatpush1.bf16.msra.mxu0 0
        %5090 = vmatprep.subr.bf16.mxu0 0
        %5091 = vmatpush1.bf16.msra.mxu0 0
        %5092 = vmatprep.subr.bf16.mxu0 0
        %5093 = vmatpush1.bf16.msra.mxu0 0
        %5094 = vmatprep.subr.bf16.mxu0 0
        %5095 = vmatpush1.bf16.msra.mxu0 0
        %5096 = vmatprep.subr.bf16.mxu0 0
        %5097 = vmatpush1.bf16.msra.mxu0 0
        %5098 = vmatprep.subr.bf16.mxu0 0
        %5099 = vmatpush1.bf16.msra.mxu0 0
        %5100 = vmatprep.subr.bf16.mxu0 0
        %5101 = vmatpush1.bf16.msra.mxu0 0
        %5102 = vmatprep.subr.bf16.mxu0 0
        %5103 = vmatpush1.bf16.msra.mxu0 0
        %5104 = vmatprep.subr.bf16.mxu0 0
        %5105 = vmatpush1.bf16.msra.mxu0 0
        %5106 = vmatprep.mubr.bf16.mxu0 0
        %5107 = vmatmul.mubr.bf16.gmra.mrb[0].mxu0 %v5068
        %v5108 = vpop.f32.mrb[0].mxu0
        %v5109 = vadd.f32 0.0, %v5108
        %v5110 = vpop.f32.mrb[0].mxu0
        %v5111 = vpop.f32.mrb[0].mxu0
        %v5112 = vpop.f32.mrb[0].mxu0
        %5113 = vdwg.mxu0
        %5114 = vrot.lane.b32.xlu0 %v4812, 64
        %v5115 = vpop.permute.xlu0 %5114
        %v5117 = vsel %vm5066, %v5061, 0
        %v5120 = vsel %vm5070, %v5115, 0
        %5122 = vmatprep.subr.bf16.mxu0 0
        %5123 = vmatpush1.bf16.msra.mxu0 %v5120
        %5124 = vmatprep.subr.bf16.mxu0 0
        %5125 = vmatpush1.bf16.msra.mxu0 0
        %5126 = vmatprep.subr.bf16.mxu0 0
        %5127 = vmatpush1.bf16.msra.mxu0 0
        %5128 = vmatprep.subr.bf16.mxu0 0
        %5129 = vmatpush1.bf16.msra.mxu0 0
        %5130 = vmatprep.subr.bf16.mxu0 0
        %5131 = vmatpush1.bf16.msra.mxu0 0
        %5132 = vmatprep.subr.bf16.mxu0 0
        %5133 = vmatpush1.bf16.msra.mxu0 0
        %5134 = vmatprep.subr.bf16.mxu0 0
        %5135 = vmatpush1.bf16.msra.mxu0 0
        %5136 = vmatprep.subr.bf16.mxu0 0
        %5137 = vmatpush1.bf16.msra.mxu0 0
        %5138 = vmatprep.subr.bf16.mxu0 0
        %5139 = vmatpush1.bf16.msra.mxu0 0
        %5140 = vmatprep.subr.bf16.mxu0 0
        %5141 = vmatpush1.bf16.msra.mxu0 0
        %5142 = vmatprep.subr.bf16.mxu0 0
        %5143 = vmatpush1.bf16.msra.mxu0 0
        %5144 = vmatprep.subr.bf16.mxu0 0
        %5145 = vmatpush1.bf16.msra.mxu0 0
        %5146 = vmatprep.subr.bf16.mxu0 0
        %5147 = vmatpush1.bf16.msra.mxu0 0
        %5148 = vmatprep.subr.bf16.mxu0 0
        %5149 = vmatpush1.bf16.msra.mxu0 0
        %5150 = vmatprep.subr.bf16.mxu0 0
        %5151 = vmatpush1.bf16.msra.mxu0 0
        %5152 = vmatprep.subr.bf16.mxu0 0
        %5153 = vmatpush1.bf16.msra.mxu0 0
        %5154 = vmatprep.mubr.bf16.mxu0 0
        %5155 = vmatmul.mubr.bf16.gmra.mrb[0].mxu0 %v5117
        %v5156 = vpop.f32.mrb[0].mxu0
        %v5157 = vadd.f32 0.0, %v5156
        %v5158 = vpop.f32.mrb[0].mxu0
        %v5159 = vpop.f32.mrb[0].mxu0
        %v5160 = vpop.f32.mrb[0].mxu0
        %5161 = vdwg.mxu0
        %5162 = vrot.lane.b32.xlu0 %v4813, 64
        %v5163 = vpop.permute.xlu0 %5162
        %v5165 = vsel %vm5066, %v5062, 0
        %v5168 = vsel %vm5070, %v5163, 0
        %5170 = vmatprep.subr.bf16.mxu0 0
        %5171 = vmatpush1.bf16.msra.mxu0 %v5168
        %5172 = vmatprep.subr.bf16.mxu0 0
        %5173 = vmatpush1.bf16.msra.mxu0 0
        %5174 = vmatprep.subr.bf16.mxu0 0
        %5175 = vmatpush1.bf16.msra.mxu0 0
        %5176 = vmatprep.subr.bf16.mxu0 0
        %5177 = vmatpush1.bf16.msra.mxu0 0
        %5178 = vmatprep.subr.bf16.mxu0 0
        %5179 = vmatpush1.bf16.msra.mxu0 0
        %5180 = vmatprep.subr.bf16.mxu0 0
        %5181 = vmatpush1.bf16.msra.mxu0 0
        %5182 = vmatprep.subr.bf16.mxu0 0
        %5183 = vmatpush1.bf16.msra.mxu0 0
        %5184 = vmatprep.subr.bf16.mxu0 0
        %5185 = vmatpush1.bf16.msra.mxu0 0
        %5186 = vmatprep.subr.bf16.mxu0 0
        %5187 = vmatpush1.bf16.msra.mxu0 0
        %5188 = vmatprep.subr.bf16.mxu0 0
        %5189 = vmatpush1.bf16.msra.mxu0 0
        %5190 = vmatprep.subr.bf16.mxu0 0
        %5191 = vmatpush1.bf16.msra.mxu0 0
        %5192 = vmatprep.subr.bf16.mxu0 0
        %5193 = vmatpush1.bf16.msra.mxu0 0
        %5194 = vmatprep.subr.bf16.mxu0 0
        %5195 = vmatpush1.bf16.msra.mxu0 0
        %5196 = vmatprep.subr.bf16.mxu0 0
        %5197 = vmatpush1.bf16.msra.mxu0 0
        %5198 = vmatprep.subr.bf16.mxu0 0
        %5199 = vmatpush1.bf16.msra.mxu0 0
        %5200 = vmatprep.subr.bf16.mxu0 0
        %5201 = vmatpush1.bf16.msra.mxu0 0
        %5202 = vmatprep.mubr.bf16.mxu0 0
        %5203 = vmatmul.mubr.bf16.gmra.mrb[0].mxu0 %v5165
        %v5204 = vpop.f32.mrb[0].mxu0
        %v5205 = vadd.f32 0.0, %v5204
        %v5206 = vpop.f32.mrb[0].mxu0
        %v5207 = vpop.f32.mrb[0].mxu0
        %v5208 = vpop.f32.mrb[0].mxu0
        %5209 = vdwg.mxu0
        %5210 = vrot.lane.b32.xlu0 %v4814, 64
        %v5211 = vpop.permute.xlu0 %5210
        %v5213 = vsel %vm5066, %v5063, 0
        %v5216 = vsel %vm5070, %v5211, 0
        %5218 = vmatprep.subr.bf16.mxu0 0
        %5219 = vmatpush1.bf16.msra.mxu0 %v5216
        %5220 = vmatprep.subr.bf16.mxu0 0
        %5221 = vmatpush1.bf16.msra.mxu0 0
        %5222 = vmatprep.subr.bf16.mxu0 0
        %5223 = vmatpush1.bf16.msra.mxu0 0
        %5224 = vmatprep.subr.bf16.mxu0 0
        %5225 = vmatpush1.bf16.msra.mxu0 0
        %5226 = vmatprep.subr.bf16.mxu0 0
        %5227 = vmatpush1.bf16.msra.mxu0 0
        %5228 = vmatprep.subr.bf16.mxu0 0
        %5229 = vmatpush1.bf16.msra.mxu0 0
        %5230 = vmatprep.subr.bf16.mxu0 0
        %5231 = vmatpush1.bf16.msra.mxu0 0
        %5232 = vmatprep.subr.bf16.mxu0 0
        %5233 = vmatpush1.bf16.msra.mxu0 0
        %5234 = vmatprep.subr.bf16.mxu0 0
        %5235 = vmatpush1.bf16.msra.mxu0 0
        %5236 = vmatprep.subr.bf16.mxu0 0
        %5237 = vmatpush1.bf16.msra.mxu0 0
        %5238 = vmatprep.subr.bf16.mxu0 0
        %5239 = vmatpush1.bf16.msra.mxu0 0
        %5240 = vmatprep.subr.bf16.mxu0 0
        %5241 = vmatpush1.bf16.msra.mxu0 0
        %5242 = vmatprep.subr.bf16.mxu0 0
        %5243 = vmatpush1.bf16.msra.mxu0 0
        %5244 = vmatprep.subr.bf16.mxu0 0
        %5245 = vmatpush1.bf16.msra.mxu0 0
        %5246 = vmatprep.subr.bf16.mxu0 0
        %5247 = vmatpush1.bf16.msra.mxu0 0
        %5248 = vmatprep.subr.bf16.mxu0 0
        %5249 = vmatpush1.bf16.msra.mxu0 0
        %5250 = vmatprep.mubr.bf16.mxu0 0
        %5251 = vmatmul.mubr.bf16.gmra.mrb[0].mxu0 %v5213
        %v5252 = vpop.f32.mrb[0].mxu0
        %v5253 = vadd.f32 0.0, %v5252
        %v5254 = vpop.f32.mrb[0].mxu0
        %v5255 = vpop.f32.mrb[0].mxu0
        %v5256 = vpop.f32.mrb[0].mxu0
        %5257 = vdwg.mxu0
        %v5258 = vadd.f32 %v4796, %v5109
        %v5259 = vadd.f32 %v4803, %v5157
        %v5260 = vadd.f32 %v4806, %v5205
        %v5261 = vadd.f32 %v4809, %v5253
        %5263 = vrot.lane.b32.xlu0 %v5259, 8
        %v5264 = vpop.permute.xlu0 %5263
        %5267 = vrot.lane.b32.xlu0 %v5260, 16
        %v5268 = vpop.permute.xlu0 %5267
        %5271 = vrot.lane.b32.xlu0 %v5261, 24
        %v5272 = vpop.permute.xlu0 %5271
        %v5274 = vsel %vm1629, %v5258, %v5264
        %v5275 = vsel %vm1557, %v5274, %v5268
        %v5276 = vsel %vm2081, %v5275, %v5272
        %v5277 = vpack.c.bf16 %v5276, %v5276
        %v5278 = vld [vmem:[%s21] sm:$0xf]
        %v5279 = vld [vmem:[%s21 + $0x4] sm:$0xf]
        %v5280 = vld [vmem:[%s21 + $0x8] sm:$0xf]
        %v5281 = vld [vmem:[%s21 + $0xc] sm:$0xf]
        %v5282 = vld [vmem:[#allocation14] sm:$0x1]
        %v5284 = vlaneseq
        %v5285 = vshrl.u32 %v5284, 7
        %v5286 = vsub.s32 0, %v5285
        %v5287 = vrot.slane %v5282, %v5286
        %v5293 = vunpack.c.l.b16 %v5278
        %v5294 = vunpack.c.l.b16 %v5279
        %v5295 = vunpack.c.l.b16 %v5280
        %v5296 = vunpack.c.l.b16 %v5281
        %v5297 = vpack.c.b16 %v5294, %v5293
        %v5298 = vpack.c.b16 %v5296, %v5295
        %v5302 = vsel %vm2107, %v5277, 0
        %5304 = vmatprep.subr.bf16.mxu0 0
        %5305 = vmatpush1.bf16.msra.mxu0 %v5297
        %5306 = vmatprep.subr.bf16.mxu0 0
        %5307 = vmatpush1.bf16.msra.mxu0 %v5298
        %5308 = vmatprep.subr.bf16.mxu0 0
        %5309 = vmatpush1.bf16.msra.mxu0 0
        %5310 = vmatprep.subr.bf16.mxu0 0
        %5311 = vmatpush1.bf16.msra.mxu0 0
        %5312 = vmatprep.subr.bf16.mxu0 0
        %5313 = vmatpush1.bf16.msra.mxu0 0
        %5314 = vmatprep.subr.bf16.mxu0 0
        %5315 = vmatpush1.bf16.msra.mxu0 0
        %5316 = vmatprep.subr.bf16.mxu0 0
        %5317 = vmatpush1.bf16.msra.mxu0 0
        %5318 = vmatprep.subr.bf16.mxu0 0
        %5319 = vmatpush1.bf16.msra.mxu0 0
        %5320 = vmatprep.subr.bf16.mxu0 0
        %5321 = vmatpush1.bf16.msra.mxu0 0
        %5322 = vmatprep.subr.bf16.mxu0 0
        %5323 = vmatpush1.bf16.msra.mxu0 0
        %5324 = vmatprep.subr.bf16.mxu0 0
        %5325 = vmatpush1.bf16.msra.mxu0 0
        %5326 = vmatprep.subr.bf16.mxu0 0
        %5327 = vmatpush1.bf16.msra.mxu0 0
        %5328 = vmatprep.subr.bf16.mxu0 0
        %5329 = vmatpush1.bf16.msra.mxu0 0
        %5330 = vmatprep.subr.bf16.mxu0 0
        %5331 = vmatpush1.bf16.msra.mxu0 0
        %5332 = vmatprep.subr.bf16.mxu0 0
        %5333 = vmatpush1.bf16.msra.mxu0 0
        %5334 = vmatprep.subr.bf16.mxu0 0
        %5335 = vmatpush1.bf16.msra.mxu0 0
        %5336 = vmatprep.mubr.bf16.mxu0 0
        %5337 = vmatmul.mubr.bf16.gmra.mrb[0].mxu0 %v5302
        %v5338 = vpop.f32.mrb[0].mxu0
        %v5339 = vadd.f32 %v5287, %v5338
        %v5340 = vpop.f32.mrb[0].mxu0
        %v5341 = vpop.f32.mrb[0].mxu0
        %v5342 = vpop.f32.mrb[0].mxu0
        %5343 = vdwg.mxu0
        %v5344 = vmax.f32 %v5339, 0.0
        %v5345 = vadd.f32 %v5276, %v5344
        %v5346 = vpack.c.bf16 %v5345, %v5345
        %v5347 = vld [vmem:[#allocation22] sm:$0xf]
        %v5348 = vld [vmem:[#allocation22 + $0x4] sm:$0xf]
        %v5349 = vld [vmem:[#allocation22 + $0x8] sm:$0xf]
        %v5350 = vld [vmem:[#allocation22 + $0xc] sm:$0xf]
        %v5351 = vld [vmem:[#allocation20] sm:$0x1]
        %v5353 = vlaneseq
        %v5354 = vshrl.u32 %v5353, 7
        %v5355 = vsub.s32 0, %v5354
        %v5356 = vrot.slane %v5351, %v5355
        %v5362 = vunpack.c.l.b16 %v5347
        %v5363 = vunpack.c.l.b16 %v5348
        %v5364 = vunpack.c.l.b16 %v5349
        %v5365 = vunpack.c.l.b16 %v5350
        %v5366 = vpack.c.b16 %v5363, %v5362
        %v5367 = vpack.c.b16 %v5365, %v5364
        %v5371 = vsel %vm2107, %v5346, 0
        %5373 = vmatprep.subr.bf16.mxu0 0
        %5374 = vmatpush1.bf16.msra.mxu0 %v5366
        %5375 = vmatprep.subr.bf16.mxu0 0
        %5376 = vmatpush1.bf16.msra.mxu0 %v5367
        %5377 = vmatprep.subr.bf16.mxu0 0
        %5378 = vmatpush1.bf16.msra.mxu0 0
        %5379 = vmatprep.subr.bf16.mxu0 0
        %5380 = vmatpush1.bf16.msra.mxu0 0
        %5381 = vmatprep.subr.bf16.mxu0 0
        %5382 = vmatpush1.bf16.msra.mxu0 0
        %5383 = vmatprep.subr.bf16.mxu0 0
        %5384 = vmatpush1.bf16.msra.mxu0 0
        %5385 = vmatprep.subr.bf16.mxu0 0
        %5386 = vmatpush1.bf16.msra.mxu0 0
        %5387 = vmatprep.subr.bf16.mxu0 0
        %5388 = vmatpush1.bf16.msra.mxu0 0
        %5389 = vmatprep.subr.bf16.mxu0 0
        %5390 = vmatpush1.bf16.msra.mxu0 0
        %5391 = vmatprep.subr.bf16.mxu0 0
        %5392 = vmatpush1.bf16.msra.mxu0 0
        %5393 = vmatprep.subr.bf16.mxu0 0
        %5394 = vmatpush1.bf16.msra.mxu0 0
        %5395 = vmatprep.subr.bf16.mxu0 0
        %5396 = vmatpush1.bf16.msra.mxu0 0
        %5397 = vmatprep.subr.bf16.mxu0 0
        %5398 = vmatpush1.bf16.msra.mxu0 0
        %5399 = vmatprep.subr.bf16.mxu0 0
        %5400 = vmatpush1.bf16.msra.mxu0 0
        %5401 = vmatprep.subr.bf16.mxu0 0
        %5402 = vmatpush1.bf16.msra.mxu0 0
        %5403 = vmatprep.subr.bf16.mxu0 0
        %5404 = vmatpush1.bf16.msra.mxu0 0
        %5405 = vmatprep.mubr.bf16.mxu0 0
        %5406 = vmatmul.mubr.bf16.gmra.mrb[0].mxu0 %v5371
        %v5407 = vpop.f32.mrb[0].mxu0
        %v5408 = vadd.f32 %v5356, %v5407
        %v5409 = vpop.f32.mrb[0].mxu0
        %v5410 = vpop.f32.mrb[0].mxu0
        %v5411 = vpop.f32.mrb[0].mxu0
        %5412 = vdwg.mxu0
        %5414 = vrot.lane.b32.xlu0 %v5408, 120
        %v5415 = vpop.permute.xlu0 %5414
        %5417 = vrot.lane.b32.xlu0 %v5408, 112
        %v5418 = vpop.permute.xlu0 %5417
        %5420 = vrot.lane.b32.xlu0 %v5408, 104
        %v5421 = vpop.permute.xlu0 %5420
        %v5423 = vpack.c.bf16 %v5408, %v5408
        %v5424 = vpack.c.bf16 %v5415, %v5415
        %v5425 = vpack.c.bf16 %v5418, %v5418
        %v5426 = vpack.c.bf16 %v5421, %v5421
        %5428 = vrot.lane.b32.xlu0 %v5423, 96
        %v5429 = vpop.permute.xlu0 %5428
        %v5431 = vsel %vm1629, %v5423, 0
        %v5434 = vsel %vm1629, %v5429, 0
        %5436 = vmatprep.subr.bf16.mxu0 0
        %5437 = vmatpush1.bf16.xpose.msra.mxu0 %v5434
        %5438 = vmatprep.subr.bf16.mxu0 0
        %5439 = vmatpush1.bf16.xpose.msra.mxu0 0
        %5440 = vmatprep.subr.bf16.mxu0 0
        %5441 = vmatpush1.bf16.xpose.msra.mxu0 0
        %5442 = vmatprep.subr.bf16.mxu0 0
        %5443 = vmatpush1.bf16.xpose.msra.mxu0 0
        %5444 = vmatprep.subr.bf16.mxu0 0
        %5445 = vmatpush1.bf16.xpose.msra.mxu0 0
        %5446 = vmatprep.subr.bf16.mxu0 0
        %5447 = vmatpush1.bf16.xpose.msra.mxu0 0
        %5448 = vmatprep.subr.bf16.mxu0 0
        %5449 = vmatpush1.bf16.xpose.msra.mxu0 0
        %5450 = vmatprep.subr.bf16.mxu0 0
        %5451 = vmatpush1.bf16.xpose.msra.mxu0 0
        %5452 = vmatprep.subr.bf16.mxu0 0
        %5453 = vmatpush1.bf16.xpose.msra.mxu0 0
        %5454 = vmatprep.subr.bf16.mxu0 0
        %5455 = vmatpush1.bf16.xpose.msra.mxu0 0
        %5456 = vmatprep.subr.bf16.mxu0 0
        %5457 = vmatpush1.bf16.xpose.msra.mxu0 0
        %5458 = vmatprep.subr.bf16.mxu0 0
        %5459 = vmatpush1.bf16.xpose.msra.mxu0 0
        %5460 = vmatprep.subr.bf16.mxu0 0
        %5461 = vmatpush1.bf16.xpose.msra.mxu0 0
        %5462 = vmatprep.subr.bf16.mxu0 0
        %5463 = vmatpush1.bf16.xpose.msra.mxu0 0
        %5464 = vmatprep.subr.bf16.mxu0 0
        %5465 = vmatpush1.bf16.xpose.msra.mxu0 0
        %5466 = vmatprep.subr.bf16.mxu0 0
        %5467 = vmatpush1.bf16.xpose.msra.mxu0 0
        %5468 = vmatprep.mubr.bf16.mxu0 0
        %5469 = vmatmul.mubr.bf16.gmra.mrb[0].mxu0 %v5431
        %v5470 = vpop.f32.mrb[0].mxu0
        %v5471 = vadd.f32 0.0, %v5470
        %v5472 = vpop.f32.mrb[0].mxu0
        %v5473 = vpop.f32.mrb[0].mxu0
        %v5474 = vpop.f32.mrb[0].mxu0
        %5475 = vdwg.mxu0
        %5477 = vrot.lane.b32.xlu0 %v5424, 96
        %v5478 = vpop.permute.xlu0 %5477
        %v5480 = vsel %vm1629, %v5424, 0
        %v5483 = vsel %vm1629, %v5478, 0
        %5485 = vmatprep.subr.bf16.mxu0 0
        %5486 = vmatpush1.bf16.xpose.msra.mxu0 %v5483
        %5487 = vmatprep.subr.bf16.mxu0 0
        %5488 = vmatpush1.bf16.xpose.msra.mxu0 0
        %5489 = vmatprep.subr.bf16.mxu0 0
        %5490 = vmatpush1.bf16.xpose.msra.mxu0 0
        %5491 = vmatprep.subr.bf16.mxu0 0
        %5492 = vmatpush1.bf16.xpose.msra.mxu0 0
        %5493 = vmatprep.subr.bf16.mxu0 0
        %5494 = vmatpush1.bf16.xpose.msra.mxu0 0
        %5495 = vmatprep.subr.bf16.mxu0 0
        %5496 = vmatpush1.bf16.xpose.msra.mxu0 0
        %5497 = vmatprep.subr.bf16.mxu0 0
        %5498 = vmatpush1.bf16.xpose.msra.mxu0 0
        %5499 = vmatprep.subr.bf16.mxu0 0
        %5500 = vmatpush1.bf16.xpose.msra.mxu0 0
        %5501 = vmatprep.subr.bf16.mxu0 0
        %5502 = vmatpush1.bf16.xpose.msra.mxu0 0
        %5503 = vmatprep.subr.bf16.mxu0 0
        %5504 = vmatpush1.bf16.xpose.msra.mxu0 0
        %5505 = vmatprep.subr.bf16.mxu0 0
        %5506 = vmatpush1.bf16.xpose.msra.mxu0 0
        %5507 = vmatprep.subr.bf16.mxu0 0
        %5508 = vmatpush1.bf16.xpose.msra.mxu0 0
        %5509 = vmatprep.subr.bf16.mxu0 0
        %5510 = vmatpush1.bf16.xpose.msra.mxu0 0
        %5511 = vmatprep.subr.bf16.mxu0 0
        %5512 = vmatpush1.bf16.xpose.msra.mxu0 0
        %5513 = vmatprep.subr.bf16.mxu0 0
        %5514 = vmatpush1.bf16.xpose.msra.mxu0 0
        %5515 = vmatprep.subr.bf16.mxu0 0
        %5516 = vmatpush1.bf16.xpose.msra.mxu0 0
        %5517 = vmatprep.mubr.bf16.mxu0 0
        %5518 = vmatmul.mubr.bf16.gmra.mrb[0].mxu0 %v5480
        %v5519 = vpop.f32.mrb[0].mxu0
        %v5520 = vadd.f32 0.0, %v5519
        %v5521 = vpop.f32.mrb[0].mxu0
        %v5522 = vpop.f32.mrb[0].mxu0
        %v5523 = vpop.f32.mrb[0].mxu0
        %5524 = vdwg.mxu0
        %5526 = vrot.lane.b32.xlu0 %v5425, 96
        %v5527 = vpop.permute.xlu0 %5526
        %v5529 = vsel %vm1629, %v5425, 0
        %v5532 = vsel %vm1629, %v5527, 0
        %5534 = vmatprep.subr.bf16.mxu0 0
        %5535 = vmatpush1.bf16.xpose.msra.mxu0 %v5532
        %5536 = vmatprep.subr.bf16.mxu0 0
        %5537 = vmatpush1.bf16.xpose.msra.mxu0 0
        %5538 = vmatprep.subr.bf16.mxu0 0
        %5539 = vmatpush1.bf16.xpose.msra.mxu0 0
        %5540 = vmatprep.subr.bf16.mxu0 0
        %5541 = vmatpush1.bf16.xpose.msra.mxu0 0
        %5542 = vmatprep.subr.bf16.mxu0 0
        %5543 = vmatpush1.bf16.xpose.msra.mxu0 0
        %5544 = vmatprep.subr.bf16.mxu0 0
        %5545 = vmatpush1.bf16.xpose.msra.mxu0 0
        %5546 = vmatprep.subr.bf16.mxu0 0
        %5547 = vmatpush1.bf16.xpose.msra.mxu0 0
        %5548 = vmatprep.subr.bf16.mxu0 0
        %5549 = vmatpush1.bf16.xpose.msra.mxu0 0
        %5550 = vmatprep.subr.bf16.mxu0 0
        %5551 = vmatpush1.bf16.xpose.msra.mxu0 0
        %5552 = vmatprep.subr.bf16.mxu0 0
        %5553 = vmatpush1.bf16.xpose.msra.mxu0 0
        %5554 = vmatprep.subr.bf16.mxu0 0
        %5555 = vmatpush1.bf16.xpose.msra.mxu0 0
        %5556 = vmatprep.subr.bf16.mxu0 0
        %5557 = vmatpush1.bf16.xpose.msra.mxu0 0
        %5558 = vmatprep.subr.bf16.mxu0 0
        %5559 = vmatpush1.bf16.xpose.msra.mxu0 0
        %5560 = vmatprep.subr.bf16.mxu0 0
        %5561 = vmatpush1.bf16.xpose.msra.mxu0 0
        %5562 = vmatprep.subr.bf16.mxu0 0
        %5563 = vmatpush1.bf16.xpose.msra.mxu0 0
        %5564 = vmatprep.subr.bf16.mxu0 0
        %5565 = vmatpush1.bf16.xpose.msra.mxu0 0
        %5566 = vmatprep.mubr.bf16.mxu0 0
        %5567 = vmatmul.mubr.bf16.gmra.mrb[0].mxu0 %v5529
        %v5568 = vpop.f32.mrb[0].mxu0
        %v5569 = vadd.f32 0.0, %v5568
        %v5570 = vpop.f32.mrb[0].mxu0
        %v5571 = vpop.f32.mrb[0].mxu0
        %v5572 = vpop.f32.mrb[0].mxu0
        %5573 = vdwg.mxu0
        %5575 = vrot.lane.b32.xlu0 %v5426, 96
        %v5576 = vpop.permute.xlu0 %5575
        %v5578 = vsel %vm1629, %v5426, 0
        %v5581 = vsel %vm1629, %v5576, 0
        %5583 = vmatprep.subr.bf16.mxu0 0
        %5584 = vmatpush1.bf16.xpose.msra.mxu0 %v5581
        %5585 = vmatprep.subr.bf16.mxu0 0
        %5586 = vmatpush1.bf16.xpose.msra.mxu0 0
        %5587 = vmatprep.subr.bf16.mxu0 0
        %5588 = vmatpush1.bf16.xpose.msra.mxu0 0
        %5589 = vmatprep.subr.bf16.mxu0 0
        %5590 = vmatpush1.bf16.xpose.msra.mxu0 0
        %5591 = vmatprep.subr.bf16.mxu0 0
        %5592 = vmatpush1.bf16.xpose.msra.mxu0 0
        %5593 = vmatprep.subr.bf16.mxu0 0
        %5594 = vmatpush1.bf16.xpose.msra.mxu0 0
        %5595 = vmatprep.subr.bf16.mxu0 0
        %5596 = vmatpush1.bf16.xpose.msra.mxu0 0
        %5597 = vmatprep.subr.bf16.mxu0 0
        %5598 = vmatpush1.bf16.xpose.msra.mxu0 0
        %5599 = vmatprep.subr.bf16.mxu0 0
        %5600 = vmatpush1.bf16.xpose.msra.mxu0 0
        %5601 = vmatprep.subr.bf16.mxu0 0
        %5602 = vmatpush1.bf16.xpose.msra.mxu0 0
        %5603 = vmatprep.subr.bf16.mxu0 0
        %5604 = vmatpush1.bf16.xpose.msra.mxu0 0
        %5605 = vmatprep.subr.bf16.mxu0 0
        %5606 = vmatpush1.bf16.xpose.msra.mxu0 0
        %5607 = vmatprep.subr.bf16.mxu0 0
        %5608 = vmatpush1.bf16.xpose.msra.mxu0 0
        %5609 = vmatprep.subr.bf16.mxu0 0
        %5610 = vmatpush1.bf16.xpose.msra.mxu0 0
        %5611 = vmatprep.subr.bf16.mxu0 0
        %5612 = vmatpush1.bf16.xpose.msra.mxu0 0
        %5613 = vmatprep.subr.bf16.mxu0 0
        %5614 = vmatpush1.bf16.xpose.msra.mxu0 0
        %5615 = vmatprep.mubr.bf16.mxu0 0
        %5616 = vmatmul.mubr.bf16.gmra.mrb[0].mxu0 %v5578
        %v5617 = vpop.f32.mrb[0].mxu0
        %v5618 = vadd.f32 0.0, %v5617
        %v5619 = vpop.f32.mrb[0].mxu0
        %v5620 = vpop.f32.mrb[0].mxu0
        %v5621 = vpop.f32.mrb[0].mxu0
        %5622 = vdwg.mxu0
        %v5623 = vmul.f32 %v5471, 0.17677669
        %v5624 = vmul.f32 %v5520, 0.17677669
        %v5625 = vmul.f32 %v5569, 0.17677669
        %v5626 = vmul.f32 %v5618, 0.17677669
        %v5627 = vsel %vm5015, %v5623, -inf
        %5628 = vmax.xlane.f32.xlu0 %v5627
        %v5629 = vpop.xlane.xlu0 %5628
        %v5630 = vsel %vm5015, %v5624, -inf
        %5631 = vmax.xlane.f32.xlu0 %v5630
        %v5632 = vpop.xlane.xlu0 %5631
        %v5633 = vsel %vm5015, %v5625, -inf
        %5634 = vmax.xlane.f32.xlu0 %v5633
        %v5635 = vpop.xlane.xlu0 %5634
        %v5636 = vsel %vm5015, %v5626, -inf
        %5637 = vmax.xlane.f32.xlu0 %v5636
        %v5638 = vpop.xlane.xlu0 %5637
        %v5639 = vsub.f32 %v5623, %v5629
        %v5640 = vsub.f32 %v5624, %v5632
        %v5641 = vsub.f32 %v5625, %v5635
        %v5642 = vsub.f32 %v5626, %v5638
        %v5643 = vmul.f32 %v5639, 1.442695
        %v5644 = vpow.pop %v5643
        %v5645 = vmul.f32 %v5640, 1.442695
        %v5646 = vpow.pop %v5645
        %v5647 = vmul.f32 %v5641, 1.442695
        %v5648 = vpow.pop %v5647
        %v5649 = vmul.f32 %v5642, 1.442695
        %v5650 = vpow.pop %v5649
        %v5651 = vsel %vm5015, %v5644, 0.0
        %5652 = vadd.xlane.f32.xlu0 %v5651
        %v5653 = vpop.xlane.xlu0 %5652
        %v5654 = vsel %vm5015, %v5646, 0.0
        %5655 = vadd.xlane.f32.xlu0 %v5654
        %v5656 = vpop.xlane.xlu0 %5655
        %v5657 = vsel %vm5015, %v5648, 0.0
        %5658 = vadd.xlane.f32.xlu0 %v5657
        %v5659 = vpop.xlane.xlu0 %5658
        %v5660 = vsel %vm5015, %v5650, 0.0
        %5661 = vadd.xlane.f32.xlu0 %v5660
        %v5662 = vpop.xlane.xlu0 %5661
        %v5663 = vrcp.pop %v5653
        %v5664 = vrcp.pop %v5656
        %v5665 = vrcp.pop %v5659
        %v5666 = vrcp.pop %v5662
        %v5667 = vmul.f32 %v5644, %v5663
        %v5668 = vmul.f32 %v5646, %v5664
        %v5669 = vmul.f32 %v5648, %v5665
        %v5670 = vmul.f32 %v5650, %v5666
        %v5671 = vpack.c.bf16 %v5667, %v5667
        %v5672 = vpack.c.bf16 %v5668, %v5668
        %v5673 = vpack.c.bf16 %v5669, %v5669
        %v5674 = vpack.c.bf16 %v5670, %v5670
        %5675 = vrot.lane.b32.xlu0 %v5423, 64
        %v5676 = vpop.permute.xlu0 %5675
        %v5678 = vsel %vm5066, %v5671, 0
        %v5681 = vsel %vm5070, %v5676, 0
        %5683 = vmatprep.subr.bf16.mxu0 0
        %5684 = vmatpush1.bf16.msra.mxu0 %v5681
        %5685 = vmatprep.subr.bf16.mxu0 0
        %5686 = vmatpush1.bf16.msra.mxu0 0
        %5687 = vmatprep.subr.bf16.mxu0 0
        %5688 = vmatpush1.bf16.msra.mxu0 0
        %5689 = vmatprep.subr.bf16.mxu0 0
        %5690 = vmatpush1.bf16.msra.mxu0 0
        %5691 = vmatprep.subr.bf16.mxu0 0
        %5692 = vmatpush1.bf16.msra.mxu0 0
        %5693 = vmatprep.subr.bf16.mxu0 0
        %5694 = vmatpush1.bf16.msra.mxu0 0
        %5695 = vmatprep.subr.bf16.mxu0 0
        %5696 = vmatpush1.bf16.msra.mxu0 0
        %5697 = vmatprep.subr.bf16.mxu0 0
        %5698 = vmatpush1.bf16.msra.mxu0 0
        %5699 = vmatprep.subr.bf16.mxu0 0
        %5700 = vmatpush1.bf16.msra.mxu0 0
        %5701 = vmatprep.subr.bf16.mxu0 0
        %5702 = vmatpush1.bf16.msra.mxu0 0
        %5703 = vmatprep.subr.bf16.mxu0 0
        %5704 = vmatpush1.bf16.msra.mxu0 0
        %5705 = vmatprep.subr.bf16.mxu0 0
        %5706 = vmatpush1.bf16.msra.mxu0 0
        %5707 = vmatprep.subr.bf16.mxu0 0
        %5708 = vmatpush1.bf16.msra.mxu0 0
        %5709 = vmatprep.subr.bf16.mxu0 0
        %5710 = vmatpush1.bf16.msra.mxu0 0
        %5711 = vmatprep.subr.bf16.mxu0 0
        %5712 = vmatpush1.bf16.msra.mxu0 0
        %5713 = vmatprep.subr.bf16.mxu0 0
        %5714 = vmatpush1.bf16.msra.mxu0 0
        %5715 = vmatprep.mubr.bf16.mxu0 0
        %5716 = vmatmul.mubr.bf16.gmra.mrb[0].mxu0 %v5678
        %v5717 = vpop.f32.mrb[0].mxu0
        %v5718 = vadd.f32 0.0, %v5717
        %v5719 = vpop.f32.mrb[0].mxu0
        %v5720 = vpop.f32.mrb[0].mxu0
        %v5721 = vpop.f32.mrb[0].mxu0
        %5722 = vdwg.mxu0
        %5723 = vrot.lane.b32.xlu0 %v5424, 64
        %v5724 = vpop.permute.xlu0 %5723
        %v5726 = vsel %vm5066, %v5672, 0
        %v5729 = vsel %vm5070, %v5724, 0
        %5731 = vmatprep.subr.bf16.mxu0 0
        %5732 = vmatpush1.bf16.msra.mxu0 %v5729
        %5733 = vmatprep.subr.bf16.mxu0 0
        %5734 = vmatpush1.bf16.msra.mxu0 0
        %5735 = vmatprep.subr.bf16.mxu0 0
        %5736 = vmatpush1.bf16.msra.mxu0 0
        %5737 = vmatprep.subr.bf16.mxu0 0
        %5738 = vmatpush1.bf16.msra.mxu0 0
        %5739 = vmatprep.subr.bf16.mxu0 0
        %5740 = vmatpush1.bf16.msra.mxu0 0
        %5741 = vmatprep.subr.bf16.mxu0 0
        %5742 = vmatpush1.bf16.msra.mxu0 0
        %5743 = vmatprep.subr.bf16.mxu0 0
        %5744 = vmatpush1.bf16.msra.mxu0 0
        %5745 = vmatprep.subr.bf16.mxu0 0
        %5746 = vmatpush1.bf16.msra.mxu0 0
        %5747 = vmatprep.subr.bf16.mxu0 0
        %5748 = vmatpush1.bf16.msra.mxu0 0
        %5749 = vmatprep.subr.bf16.mxu0 0
        %5750 = vmatpush1.bf16.msra.mxu0 0
        %5751 = vmatprep.subr.bf16.mxu0 0
        %5752 = vmatpush1.bf16.msra.mxu0 0
        %5753 = vmatprep.subr.bf16.mxu0 0
        %5754 = vmatpush1.bf16.msra.mxu0 0
        %5755 = vmatprep.subr.bf16.mxu0 0
        %5756 = vmatpush1.bf16.msra.mxu0 0
        %5757 = vmatprep.subr.bf16.mxu0 0
        %5758 = vmatpush1.bf16.msra.mxu0 0
        %5759 = vmatprep.subr.bf16.mxu0 0
        %5760 = vmatpush1.bf16.msra.mxu0 0
        %5761 = vmatprep.subr.bf16.mxu0 0
        %5762 = vmatpush1.bf16.msra.mxu0 0
        %5763 = vmatprep.mubr.bf16.mxu0 0
        %5764 = vmatmul.mubr.bf16.gmra.mrb[0].mxu0 %v5726
        %v5765 = vpop.f32.mrb[0].mxu0
        %v5766 = vadd.f32 0.0, %v5765
        %v5767 = vpop.f32.mrb[0].mxu0
        %v5768 = vpop.f32.mrb[0].mxu0
        %v5769 = vpop.f32.mrb[0].mxu0
        %5770 = vdwg.mxu0
        %5771 = vrot.lane.b32.xlu0 %v5425, 64
        %v5772 = vpop.permute.xlu0 %5771
        %v5774 = vsel %vm5066, %v5673, 0
        %v5777 = vsel %vm5070, %v5772, 0
        %5779 = vmatprep.subr.bf16.mxu0 0
        %5780 = vmatpush1.bf16.msra.mxu0 %v5777
        %5781 = vmatprep.subr.bf16.mxu0 0
        %5782 = vmatpush1.bf16.msra.mxu0 0
        %5783 = vmatprep.subr.bf16.mxu0 0
        %5784 = vmatpush1.bf16.msra.mxu0 0
        %5785 = vmatprep.subr.bf16.mxu0 0
        %5786 = vmatpush1.bf16.msra.mxu0 0
        %5787 = vmatprep.subr.bf16.mxu0 0
        %5788 = vmatpush1.bf16.msra.mxu0 0
        %5789 = vmatprep.subr.bf16.mxu0 0
        %5790 = vmatpush1.bf16.msra.mxu0 0
        %5791 = vmatprep.subr.bf16.mxu0 0
        %5792 = vmatpush1.bf16.msra.mxu0 0
        %5793 = vmatprep.subr.bf16.mxu0 0
        %5794 = vmatpush1.bf16.msra.mxu0 0
        %5795 = vmatprep.subr.bf16.mxu0 0
        %5796 = vmatpush1.bf16.msra.mxu0 0
        %5797 = vmatprep.subr.bf16.mxu0 0
        %5798 = vmatpush1.bf16.msra.mxu0 0
        %5799 = vmatprep.subr.bf16.mxu0 0
        %5800 = vmatpush1.bf16.msra.mxu0 0
        %5801 = vmatprep.subr.bf16.mxu0 0
        %5802 = vmatpush1.bf16.msra.mxu0 0
        %5803 = vmatprep.subr.bf16.mxu0 0
        %5804 = vmatpush1.bf16.msra.mxu0 0
        %5805 = vmatprep.subr.bf16.mxu0 0
        %5806 = vmatpush1.bf16.msra.mxu0 0
        %5807 = vmatprep.subr.bf16.mxu0 0
        %5808 = vmatpush1.bf16.msra.mxu0 0
        %5809 = vmatprep.subr.bf16.mxu0 0
        %5810 = vmatpush1.bf16.msra.mxu0 0
        %5811 = vmatprep.mubr.bf16.mxu0 0
        %5812 = vmatmul.mubr.bf16.gmra.mrb[0].mxu0 %v5774
        %v5813 = vpop.f32.mrb[0].mxu0
        %v5814 = vadd.f32 0.0, %v5813
        %v5815 = vpop.f32.mrb[0].mxu0
        %v5816 = vpop.f32.mrb[0].mxu0
        %v5817 = vpop.f32.mrb[0].mxu0
        %5818 = vdwg.mxu0
        %5819 = vrot.lane.b32.xlu0 %v5426, 64
        %v5820 = vpop.permute.xlu0 %5819
        %v5822 = vsel %vm5066, %v5674, 0
        %v5825 = vsel %vm5070, %v5820, 0
        %5827 = vmatprep.subr.bf16.mxu0 0
        %5828 = vmatpush1.bf16.msra.mxu0 %v5825
        %5829 = vmatprep.subr.bf16.mxu0 0
        %5830 = vmatpush1.bf16.msra.mxu0 0
        %5831 = vmatprep.subr.bf16.mxu0 0
        %5832 = vmatpush1.bf16.msra.mxu0 0
        %5833 = vmatprep.subr.bf16.mxu0 0
        %5834 = vmatpush1.bf16.msra.mxu0 0
        %5835 = vmatprep.subr.bf16.mxu0 0
        %5836 = vmatpush1.bf16.msra.mxu0 0
        %5837 = vmatprep.subr.bf16.mxu0 0
        %5838 = vmatpush1.bf16.msra.mxu0 0
        %5839 = vmatprep.subr.bf16.mxu0 0
        %5840 = vmatpush1.bf16.msra.mxu0 0
        %5841 = vmatprep.subr.bf16.mxu0 0
        %5842 = vmatpush1.bf16.msra.mxu0 0
        %5843 = vmatprep.subr.bf16.mxu0 0
        %5844 = vmatpush1.bf16.msra.mxu0 0
        %5845 = vmatprep.subr.bf16.mxu0 0
        %5846 = vmatpush1.bf16.msra.mxu0 0
        %5847 = vmatprep.subr.bf16.mxu0 0
        %5848 = vmatpush1.bf16.msra.mxu0 0
        %5849 = vmatprep.subr.bf16.mxu0 0
        %5850 = vmatpush1.bf16.msra.mxu0 0
        %5851 = vmatprep.subr.bf16.mxu0 0
        %5852 = vmatpush1.bf16.msra.mxu0 0
        %5853 = vmatprep.subr.bf16.mxu0 0
        %5854 = vmatpush1.bf16.msra.mxu0 0
        %5855 = vmatprep.subr.bf16.mxu0 0
        %5856 = vmatpush1.bf16.msra.mxu0 0
        %5857 = vmatprep.subr.bf16.mxu0 0
        %5858 = vmatpush1.bf16.msra.mxu0 0
        %5859 = vmatprep.mubr.bf16.mxu0 0
        %5860 = vmatmul.mubr.bf16.gmra.mrb[0].mxu0 %v5822
        %v5861 = vpop.f32.mrb[0].mxu0
        %v5862 = vadd.f32 0.0, %v5861
        %v5863 = vpop.f32.mrb[0].mxu0
        %v5864 = vpop.f32.mrb[0].mxu0
        %v5865 = vpop.f32.mrb[0].mxu0
        %5866 = vdwg.mxu0
        %v5867 = vadd.f32 %v5408, %v5718
        %v5868 = vadd.f32 %v5415, %v5766
        %v5869 = vadd.f32 %v5418, %v5814
        %v5870 = vadd.f32 %v5421, %v5862
        %5872 = vrot.lane.b32.xlu0 %v5868, 8
        %v5873 = vpop.permute.xlu0 %5872
        %5876 = vrot.lane.b32.xlu0 %v5869, 16
        %v5877 = vpop.permute.xlu0 %5876
        %5880 = vrot.lane.b32.xlu0 %v5870, 24
        %v5881 = vpop.permute.xlu0 %5880
        %v5883 = vsel %vm1629, %v5867, %v5873
        %v5884 = vsel %vm1557, %v5883, %v5877
        %v5885 = vsel %vm2081, %v5884, %v5881
        %v5886 = vpack.c.bf16 %v5885, %v5885
        %v5887 = vld [vmem:[%s29] sm:$0xf]
        %v5888 = vld [vmem:[%s29 + $0x4] sm:$0xf]
        %v5889 = vld [vmem:[%s29 + $0x8] sm:$0xf]
        %v5890 = vld [vmem:[%s29 + $0xc] sm:$0xf]
        %v5891 = vld [vmem:[#allocation19] sm:$0x1]
        %v5893 = vlaneseq
        %v5894 = vshrl.u32 %v5893, 7
        %v5895 = vsub.s32 0, %v5894
        %v5896 = vrot.slane %v5891, %v5895
        %v5902 = vunpack.c.l.b16 %v5887
        %v5903 = vunpack.c.l.b16 %v5888
        %v5904 = vunpack.c.l.b16 %v5889
        %v5905 = vunpack.c.l.b16 %v5890
        %v5906 = vpack.c.b16 %v5903, %v5902
        %v5907 = vpack.c.b16 %v5905, %v5904
        %v5911 = vsel %vm2107, %v5886, 0
        %5913 = vmatprep.subr.bf16.mxu0 0
        %5914 = vmatpush1.bf16.msra.mxu0 %v5906
        %5915 = vmatprep.subr.bf16.mxu0 0
        %5916 = vmatpush1.bf16.msra.mxu0 %v5907
        %5917 = vmatprep.subr.bf16.mxu0 0
        %5918 = vmatpush1.bf16.msra.mxu0 0
        %5919 = vmatprep.subr.bf16.mxu0 0
        %5920 = vmatpush1.bf16.msra.mxu0 0
        %5921 = vmatprep.subr.bf16.mxu0 0
        %5922 = vmatpush1.bf16.msra.mxu0 0
        %5923 = vmatprep.subr.bf16.mxu0 0
        %5924 = vmatpush1.bf16.msra.mxu0 0
        %5925 = vmatprep.subr.bf16.mxu0 0
        %5926 = vmatpush1.bf16.msra.mxu0 0
        %5927 = vmatprep.subr.bf16.mxu0 0
        %5928 = vmatpush1.bf16.msra.mxu0 0
        %5929 = vmatprep.subr.bf16.mxu0 0
        %5930 = vmatpush1.bf16.msra.mxu0 0
        %5931 = vmatprep.subr.bf16.mxu0 0
        %5932 = vmatpush1.bf16.msra.mxu0 0
        %5933 = vmatprep.subr.bf16.mxu0 0
        %5934 = vmatpush1.bf16.msra.mxu0 0
        %5935 = vmatprep.subr.bf16.mxu0 0
        %5936 = vmatpush1.bf16.msra.mxu0 0
        %5937 = vmatprep.subr.bf16.mxu0 0
        %5938 = vmatpush1.bf16.msra.mxu0 0
        %5939 = vmatprep.subr.bf16.mxu0 0
        %5940 = vmatpush1.bf16.msra.mxu0 0
        %5941 = vmatprep.subr.bf16.mxu0 0
        %5942 = vmatpush1.bf16.msra.mxu0 0
        %5943 = vmatprep.subr.bf16.mxu0 0
        %5944 = vmatpush1.bf16.msra.mxu0 0
        %5945 = vmatprep.mubr.bf16.mxu0 0
        %5946 = vmatmul.mubr.bf16.gmra.mrb[0].mxu0 %v5911
        %v5947 = vpop.f32.mrb[0].mxu0
        %v5948 = vadd.f32 %v5896, %v5947
        %v5949 = vpop.f32.mrb[0].mxu0
        %v5950 = vpop.f32.mrb[0].mxu0
        %v5951 = vpop.f32.mrb[0].mxu0
        %5952 = vdwg.mxu0
        %v5953 = vmax.f32 %v5948, 0.0
        %v5954 = vadd.f32 %v5885, %v5953
        %v5955 = vpack.c.bf16 %v5954, %v5954
        %v5956 = vld [vmem:[#allocation7] sm:$0xf]
        %v5957 = vld [vmem:[#allocation7 + $0x4] sm:$0xf]
        %v5958 = vld [vmem:[#allocation7 + $0x8] sm:$0xf]
        %v5959 = vld [vmem:[#allocation7 + $0xc] sm:$0xf]
        %v5960 = vld [vmem:[#allocation5] sm:$0x1]
        %v5962 = vlaneseq
        %v5963 = vshrl.u32 %v5962, 7
        %v5964 = vsub.s32 0, %v5963
        %v5965 = vrot.slane %v5960, %v5964
        %v5971 = vunpack.c.l.b16 %v5956
        %v5972 = vunpack.c.l.b16 %v5957
        %v5973 = vunpack.c.l.b16 %v5958
        %v5974 = vunpack.c.l.b16 %v5959
        %v5975 = vpack.c.b16 %v5972, %v5971
        %v5976 = vpack.c.b16 %v5974, %v5973
        %v5980 = vsel %vm2107, %v5955, 0
        %5982 = vmatprep.subr.bf16.mxu0 0
        %5983 = vmatpush1.bf16.msra.mxu0 %v5975
        %5984 = vmatprep.subr.bf16.mxu0 0
        %5985 = vmatpush1.bf16.msra.mxu0 %v5976
        %5986 = vmatprep.subr.bf16.mxu0 0
        %5987 = vmatpush1.bf16.msra.mxu0 0
        %5988 = vmatprep.subr.bf16.mxu0 0
        %5989 = vmatpush1.bf16.msra.mxu0 0
        %5990 = vmatprep.subr.bf16.mxu0 0
        %5991 = vmatpush1.bf16.msra.mxu0 0
        %5992 = vmatprep.subr.bf16.mxu0 0
        %5993 = vmatpush1.bf16.msra.mxu0 0
        %5994 = vmatprep.subr.bf16.mxu0 0
        %5995 = vmatpush1.bf16.msra.mxu0 0
        %5996 = vmatprep.subr.bf16.mxu0 0
        %5997 = vmatpush1.bf16.msra.mxu0 0
        %5998 = vmatprep.subr.bf16.mxu0 0
        %5999 = vmatpush1.bf16.msra.mxu0 0
        %6000 = vmatprep.subr.bf16.mxu0 0
        %6001 = vmatpush1.bf16.msra.mxu0 0
        %6002 = vmatprep.subr.bf16.mxu0 0
        %6003 = vmatpush1.bf16.msra.mxu0 0
        %6004 = vmatprep.subr.bf16.mxu0 0
        %6005 = vmatpush1.bf16.msra.mxu0 0
        %6006 = vmatprep.subr.bf16.mxu0 0
        %6007 = vmatpush1.bf16.msra.mxu0 0
        %6008 = vmatprep.subr.bf16.mxu0 0
        %6009 = vmatpush1.bf16.msra.mxu0 0
        %6010 = vmatprep.subr.bf16.mxu0 0
        %6011 = vmatpush1.bf16.msra.mxu0 0
        %6012 = vmatprep.subr.bf16.mxu0 0
        %6013 = vmatpush1.bf16.msra.mxu0 0
        %6014 = vmatprep.mubr.bf16.mxu0 0
        %6015 = vmatmul.mubr.bf16.gmra.mrb[0].mxu0 %v5980
        %v6016 = vpop.f32.mrb[0].mxu0
        %v6017 = vadd.f32 %v5965, %v6016
        %v6018 = vpop.f32.mrb[0].mxu0
        %v6019 = vpop.f32.mrb[0].mxu0
        %v6020 = vpop.f32.mrb[0].mxu0
        %6021 = vdwg.mxu0
        %6022 = vst [vmem:[%s1537] sm:$0xf] %v6017
        %s6023 = sand.u32 %s919, 1
        %s6024 = scalar_lea.sflag [#allocation4], %s6023
        %s6025 = sand.u32 %s919, 1
        %s6026 = smul.addr %s6025, 4
        %s6027 = scalar_lea.vmem [#allocation47], %s6026
        // Predicated region
        $region289: #{set_transformer_forward.1} parent=171 // pred_check
          %p6028 = pneg %p929
        $region290: #{set_transformer_forward.1} parent=171 // pred_check_branch
          %6030 = sbr.rel (%p6028) target = $region292
        $region291: #{set_transformer_forward.1} parent=171 // pred_region
          %s6032 = ssub.s32 64, 64
          %6033 = vsyncadd %s6024, %s6032
          %s6034 = smul.addr %s108, 64
          %s6035 = scalar_lea.hbm %s77, %s6034
          %s6037 = sshll.u32 %s6027, 4
          %s6038 = int_to_ptr.vmem [resolvable:$true] %s6037
          %6040 = dma.vmem_to_hbm [thread:$0]  %s6038, 64, %s6035, %s6024
        $region292: #{set_transformer_forward.1} parent=171 // pred_fallthru
          _
      $region172: #{set_transformer_forward.1} parent=5 // pred_fallthru
        _
      %p6041 = scmp.le.s32.totalorder 2, %s103
      // Predicated region
      $region293: #{set_transformer_forward.1} parent=5 // pred_check
        %p6042 = pneg %p6041
      $region294: #{set_transformer_forward.1} parent=5 // pred_check_branch
        %6044 = sbr.rel (%p6042) target = $region296
      $region295: #{set_transformer_forward.1} parent=5 // pred_region
        %s6045 = ssub.s32 %s103, 2
        // Predicated region
        $region297: #{set_transformer_forward.1} parent=295 // pred_check
          %p6046 = pneg %p935
        $region298: #{set_transformer_forward.1} parent=295 // pred_check_branch
          %6048 = sbr.rel (%p6046) target = $region300
        $region299: #{set_transformer_forward.1} parent=295 // pred_region
          %s6049 = sand.u32 %s920, 1
          %s6050 = scalar_lea.sflag [#allocation4], %s6049
          %s6051 = sand.u32 %s920, 1
          %s6052 = smul.addr %s6051, 4
          %s6053 = scalar_lea.vmem [#allocation47], %s6052
          %6054 = dma.done %s6050, 64
        $region300: #{set_transformer_forward.1} parent=295 // pred_fallthru
          _
      $region296: #{set_transformer_forward.1} parent=5 // pred_fallthru
        _
    $region6: #{set_transformer_forward.1} parent=1 // loop_footer
      %s107 = sadd.s32 1, %s103
    $region7: #{set_transformer_forward.1} parent=1 // loop_footer_branch
      %102 = sbr.rel target = $region3
    $region8: #{set_transformer_forward.1} parent=1 // loop_exit
      _
    %6055 = vsyncpa [#allocation3], 1
    %s6056 = scalar_lea.sflag [#allocation3], 1
    %6057 = vsyncpa %s6056, 1
    %6058 = vsyncpa [#allocation6], 1
    %6059 = vsyncpa [#allocation9], 1
    %6060 = vsyncpa [#allocation12], 1
    %6061 = vsyncpa [#allocation15], 1
    %6062 = vsyncpa [#allocation18], 1
    %6063 = vsyncpa [#allocation21], 1
    %6064 = vsyncpa [#allocation24], 1
    %6065 = vsyncpa [#allocation27], 1
    %6066 = vsyncpa [#allocation30], 1
    %6067 = vsyncpa [#allocation33], 1
    %6068 = vsyncpa [#allocation36], 1
    %6069 = vsyncpa [#allocation39], 1
    %6070 = vsyncpa [#allocation42], 1
    %6071 = vsyncpa [#allocation45], 1
    %6072 = vsyncpa [#allocation4], 1
    %s6073 = scalar_lea.sflag [#allocation4], 1
    %6074 = vsyncpa %s6073, 1

</llo_original>
